<compile_context>
chip_gen: v7x
topology: tpu7x:2x2x1
jax: 0.10.0
libtpu: 0.0.40
codegen_flags: <defaults>
</compile_context>

<pallas_src>
import jax
import jax.numpy as jnp
from jax import lax
from jax.experimental import pallas as pl
from jax.experimental.pallas import tpu as pltpu


STATS_PAD = 128  # [mu | log_sigma2] packed into one 128-lane chunk appended to x_rec


# ------------------------------ Pallas kernel --------------------------------

def _vae_fused_kernel(x_ref, u_ref,
                      m_enc_ref, b_enc_ref,
                      w_musig_ref, b_musig_ref,
                      w_lat_ref, b_lat_ref,
                      b_dec_ref, m_dec_hbm,
                      out_ref,
                      m_dec_vmem, dec_sem):
    """Whole VAE forward, VMEM-resident.

    Big matmuls: bf16 x bf16 -> f32 accumulate (MXU). The [mu|log_sigma2] affine is
    f32 at HIGHEST precision (it feeds exp). All elementwise math stays f32.
    """
    f32 = jnp.float32
    zd = u_ref.shape[-1]

    # Kick off the decoder-weight DMA immediately so it overlaps the encoder and
    # bottleneck compute instead of serializing in front of the decoder matmul.
    dec_cp = pltpu.make_async_copy(m_dec_hbm, m_dec_vmem, dec_sem)
    dec_cp.start()

    # --- encoder: Conv2d(4->8, k3, s2, p1) as dense matmul on NCHW-flat input + ReLU
    h = jnp.dot(x_ref[...], m_enc_ref[...], preferred_element_type=f32)
    h = jnp.maximum(h + b_enc_ref[...], 0.0)                              # (B, 512)

    # --- bottleneck: fused [mu | log_sigma2] affine (f32), reparameterize, latent affine
    ms = jnp.dot(h, w_musig_ref[...],
                 precision=lax.Precision.HIGHEST,
                 preferred_element_type=f32) + b_musig_ref[...]           # (B, 2*zd)
    mu, ls = ms[:, :zd], ms[:, zd:]
    z = mu + u_ref[...] * jnp.exp(ls)        # matches torch source: exp(log_sigma2)
    hdec = jnp.dot(z.astype(jnp.bfloat16), w_lat_ref[...],
                   preferred_element_type=f32) + b_lat_ref[...]           # (B, 512)

    # --- decoder: ConvTranspose2d(8->4, k4, s2, p1) as dense matmul + bias + tanh
    dec_cp.wait()                                                         # m_dec landed
    xr = jnp.dot(hdec.astype(jnp.bfloat16), m_dec_vmem[...],
                 preferred_element_type=f32) + b_dec_ref[...]             # (B, 1024)

    # single lane-dense output slab: [tanh(x_rec) | mu | log_sigma2 | zero pad]
    pad = jnp.zeros((ms.shape[0], STATS_PAD - 2 * zd), f32)
    stats128 = jnp.concatenate([ms, pad], axis=1)                         # (B, 128)
    out_ref[...] = jnp.concatenate([jnp.tanh(xr), stats128], axis=1)      # (B, 1152)


def vae_forward(x_nchw, u, params):
    """Returns (x_rec NCHW, mu, log_sigma2); per-sample math matches VAE.forward."""
    B, C, H, W = x_nchw.shape
    n_in = C * H * W
    zd = u.shape[-1]
    assert u.shape == (B, zd)
    assert 2 * zd <= STATS_PAD
    n_features = params["m_dec"].shape[0]

    vmem = lambda: pl.BlockSpec(memory_space=pltpu.MemorySpace.VMEM)
    slab = pl.pallas_call(
        _vae_fused_kernel,
        out_shape=jax.ShapeDtypeStruct((B, n_in + STATS_PAD), jnp.float32),
        in_specs=[vmem() for _ in range(9)] + [pl.BlockSpec(memory_space=pl.ANY)],
        out_specs=vmem(),
        scratch_shapes=[pltpu.VMEM((n_features, n_in), jnp.bfloat16),  # m_dec landing buf
                        pltpu.SemaphoreType.DMA(())],
    )(x_nchw.reshape(B, n_in).astype(jnp.bfloat16), u,
      params["m_enc"], params["b_enc"],
      params["w_musig"], params["b_musig"],
      params["w_lat"], params["b_lat"],
      params["b_dec"], params["m_dec"])

    x_rec = slab[:, :n_in].reshape(B, C, H, W)
    mu = slab[:, n_in:n_in + zd]
    log_sigma2 = slab[:, n_in + zd:n_in + 2 * zd]
    return x_rec, mu, log_sigma2


# --------------------------- parameter construction ---------------------------

def init_params(key, in_ch=4, feat_ch=8, z_dim=16, spatial=16):
    ks = jax.random.split(key, 10)
    fh = fw = spatial // 2
    n_features = feat_ch * fh * fw            # 512
    n_in = in_ch * spatial * spatial          # 1024

    def unif(k, shape, fan_in):
        bound = 1.0 / jnp.sqrt(jnp.float32(fan_in))
        return jax.random.uniform(k, shape, jnp.float32, -bound, bound)

    # raw parameters (PyTorch-style shapes & init)
    w_enc = unif(ks[0], (feat_ch, in_ch, 3, 3), in_ch * 9)      # Conv2d weight, OIHW
    b_enc = unif(ks[1], (feat_ch,), in_ch * 9)
    w_mu = unif(ks[2], (n_features, z_dim), n_features)
    b_mu = unif(ks[3], (1, z_dim), n_features)
    w_sig = unif(ks[4], (n_features, z_dim), n_features)
    b_sig = unif(ks[5], (1, z_dim), n_features)
    w_lat = unif(ks[6], (z_dim, n_features), z_dim)
    b_lat = unif(ks[7], (1, n_features), z_dim)
    # equivalent stride-1 conv weight of ConvTranspose2d(feat_ch->in_ch, k=4, s=2, p=1)
    # (= the ConvTranspose2d weight with I/O swapped and spatially flipped), OIHW.
    # torch's kaiming fan_in for that transposed-conv weight is out_ch*k*k = in_ch*16.
    w_dec = unif(ks[8], (in_ch, feat_ch, 4, 4), in_ch * 16)
    b_dec = unif(ks[9], (in_ch,), in_ch * 16)

    dn = ("NCHW", "OIHW", "NCHW")
    # dense matrix of the encoder conv on NCHW-flat vectors: push the identity basis
    # through the actual convolution (exact linear map; one-time setup cost)
    eye_x = jnp.eye(n_in, dtype=jnp.float32).reshape(n_in, in_ch, spatial, spatial)
    m_enc = lax.conv_general_dilated(
        eye_x, w_enc, window_strides=(2, 2), padding=[(1, 1), (1, 1)],
        dimension_numbers=dn).reshape(n_in, n_features)
    # dense matrix of the conv-transpose (stride-1 conv on the 2x-dilated input, pad=k-1-p=2)
    eye_h = jnp.eye(n_features, dtype=jnp.float32).reshape(n_features, feat_ch, fh, fw)
    m_dec = lax.conv_general_dilated(
        eye_h, w_dec, window_strides=(1, 1), padding=[(2, 2), (2, 2)],
        lhs_dilation=(2, 2), dimension_numbers=dn).reshape(n_features, n_in)

    return {
        # raw f32 params (used by the independent conv-based reference)
        "w_enc": w_enc, "b_enc_raw": b_enc, "w_dec": w_dec, "b_dec_raw": b_dec,
        "w_mu": w_mu, "b_mu": b_mu, "w_sig": w_sig, "b_sig": b_sig,
        "w_lat_raw": w_lat,
        # kernel-side params: bf16 MXU weights (f32 for the exp-sensitive bottleneck),
        # f32 biases, NCHW-flat layouts
        "m_enc": m_enc.astype(jnp.bfloat16),                        # (1024, 512) bf16
        "b_enc": jnp.repeat(b_enc, fh * fw)[None, :],               # (1, 512) NCHW-flat
        "w_musig": jnp.concatenate([w_mu, w_sig], 1),               # (512, 32) f32
        "b_musig": jnp.concatenate([b_mu, b_sig], 1),               # (1, 32)
        "w_lat": w_lat.astype(jnp.bfloat16),                        # (16, 512) bf16
        "b_lat": b_lat,                                             # (1, 512)
        "m_dec": m_dec.astype(jnp.bfloat16),                        # (512, 1024) bf16
        "b_dec": jnp.repeat(b_dec, spatial * spatial)[None, :],     # (1, 1024)
        "dims": (in_ch, feat_ch, z_dim, spatial, fh, fw),
    }


# -------------------------------- references ----------------------------------

def vae_forward_ref(x_nchw, u, p):
    """Pure-jnp mirror of the kernel math (same operand dtypes / dense matrices)."""
    B = x_nchw.shape[0]
    zd = u.shape[-1]
    f32 = jnp.float32
    x = x_nchw.reshape(B, -1).astype(jnp.bfloat16)
    h = jnp.maximum(jnp.dot(x, p["m_enc"], preferred_element_type=f32) + p["b_enc"], 0.0)
    ms = jnp.dot(h, p["w_musig"], precision=lax.Precision.HIGHEST,
                 preferred_element_type=f32) + p["b_musig"]
    mu, ls = ms[:, :zd], ms[:, zd:]
    z = mu + u * jnp.exp(ls)
    hdec = jnp.dot(z.astype(jnp.bfloat16), p["w_lat"],
                   preferred_element_type=f32) + p["b_lat"]
    xr = jnp.tanh(jnp.dot(hdec.astype(jnp.bfloat16), p["m_dec"],
                          preferred_element_type=f32) + p["b_dec"])
    return xr.reshape(x_nchw.shape), mu, ls


def vae_forward_conv_ref(x_nchw, u, p):
    """Independent f32 reference running the actual conv / conv-transpose
    (validates that the dense-matrix lowering preserves the module's semantics)."""
    in_ch, feat_ch, z_dim, spatial, fh, fw = p["dims"]
    B = x_nchw.shape[0]
    dn = ("NCHW", "OIHW", "NCHW")
    h = lax.conv_general_dilated(x_nchw, p["w_enc"], (2, 2), [(1, 1), (1, 1)],
                                 dimension_numbers=dn)
    h = jnp.maximum(h + p["b_enc_raw"][None, :, None, None], 0.0)
    h_flat = h.reshape(B, -1)                                   # NCHW flatten, like torch
    mu = h_flat @ p["w_mu"] + p["b_mu"]
    ls = h_flat @ p["w_sig"] + p["b_sig"]
    z = mu + u * jnp.exp(ls)
    hdec = (z @ p["w_lat_raw"] + p["b_lat"]).reshape(B, feat_ch, fh, fw)
    xr = lax.conv_general_dilated(hdec, p["w_dec"], (1, 1), [(2, 2), (2, 2)],
                                  lhs_dilation=(2, 2), dimension_numbers=dn)
    xr = jnp.tanh(xr + p["b_dec_raw"][None, :, None, None])
    return xr, mu, ls


# ---------------------------------- main ---------------------------------------

if __name__ == "__main__":
    key = jax.random.PRNGKey(0)
    k_param, k_x, k_u = jax.random.split(key, 3)

    params = init_params(k_param, in_ch=4, feat_ch=8, z_dim=16, spatial=16)
    # Each row is one independent batch-1 request of the PyTorch module; the kernel
    # serves B of them in one launch to amortize the weight fetch / launch overhead.
    B = 2
    x = jax.random.normal(k_x, (B, 4, 16, 16), jnp.float32)       # NCHW
    u = jax.random.normal(k_u, (B, 16), jnp.float32)              # torch.randn noise

    fwd = jax.jit(lambda x, u: vae_forward(x, u, params))
    x_rec, mu, log_sigma2 = jax.block_until_ready(fwd(x, u))

    assert x_rec.shape == x.shape and mu.shape == (B, 16) and log_sigma2.shape == (B, 16)

    # 1) Pallas kernel vs same-math jnp reference (tight)
    xr_r, mu_r, ls_r = vae_forward_ref(x, u, params)
    assert jnp.allclose(x_rec, xr_r, rtol=5e-3, atol=5e-3)
    assert jnp.allclose(mu, mu_r, rtol=5e-3, atol=5e-3)
    assert jnp.allclose(log_sigma2, ls_r, rtol=5e-3, atol=5e-3)

    # 2) Pallas kernel vs independent f32 conv/conv-transpose reference
    #    (looser tolerance: the conv weights ride the kernel path as bf16 dense maps)
    xr_c, mu_c, ls_c = vae_forward_conv_ref(x, u, params)
    assert jnp.allclose(x_rec, xr_c, rtol=5e-2, atol=5e-2)
    assert jnp.allclose(mu, mu_c, rtol=5e-2, atol=5e-2)
    assert jnp.allclose(log_sigma2, ls_c, rtol=5e-2, atol=5e-2)

    print("KERNEL_OK")
</pallas_src>

<mosaic_0001>
module attributes {stable_mosaic.version = 11 : i64} {
  func.func @_vae_fused_kernel(%arg0: memref<2x1024xbf16, #tpu.memory_space<vmem>>, %arg1: memref<2x16xf32, #tpu.memory_space<vmem>>, %arg2: memref<1024x512xbf16, #tpu.memory_space<vmem>>, %arg3: memref<1x512xf32, #tpu.memory_space<vmem>>, %arg4: memref<512x32xf32, #tpu.memory_space<vmem>>, %arg5: memref<1x32xf32, #tpu.memory_space<vmem>>, %arg6: memref<16x512xbf16, #tpu.memory_space<vmem>>, %arg7: memref<1x512xf32, #tpu.memory_space<vmem>>, %arg8: memref<1x1024xf32, #tpu.memory_space<vmem>>, %arg9: memref<512x1024xbf16, #tpu.memory_space<any>>, %arg10: memref<2x1152xf32, #tpu.memory_space<vmem>>, %arg11: memref<512x1024xbf16, #tpu.memory_space<vmem>>, %arg12: memref<!tpu.dma_semaphore, #tpu.memory_space<semaphore_mem>>) attributes {dimension_semantics = [], scalar_prefetch = 0 : i64, scratch_operands = 2 : i64, tpu.core_type = #tpu.core_type<tc>} {
    tpu.enqueue_dma source(%arg9 : memref<512x1024xbf16, #tpu.memory_space<any>>) target(%arg11 : memref<512x1024xbf16, #tpu.memory_space<vmem>>) target_semaphore(%arg12 : memref<!tpu.dma_semaphore, #tpu.memory_space<semaphore_mem>>)
    %c0 = arith.constant 0 : index
    %c0_0 = arith.constant 0 : index
    %0 = vector.load %arg0[%c0, %c0_0] : memref<2x1024xbf16, #tpu.memory_space<vmem>>, vector<2x1024xbf16>
    %c0_1 = arith.constant 0 : index
    %c0_2 = arith.constant 0 : index
    %1 = vector.load %arg2[%c0_1, %c0_2] : memref<1024x512xbf16, #tpu.memory_space<vmem>>, vector<1024x512xbf16>
    %cst = arith.constant dense<0.000000e+00> : vector<2x512xf32>
    %2 = tpu.matmul %0, %1, %cst {dimension_numbers = #tpu.dot_dimension_numbers<[1], [0], [0], [1], [0, 0, 1, 1], [], []>} : vector<2x1024xbf16>, vector<1024x512xbf16>, vector<2x512xf32> -> vector<2x512xf32>
    %c0_3 = arith.constant 0 : index
    %c0_4 = arith.constant 0 : index
    %3 = vector.load %arg3[%c0_3, %c0_4] : memref<1x512xf32, #tpu.memory_space<vmem>>, vector<1x512xf32>
    %4 = vector.broadcast %3 : vector<1x512xf32> to vector<2x512xf32>
    %5 = arith.addf %2, %4 : vector<2x512xf32>
    %cst_5 = arith.constant 0.000000e+00 : f32
    %6 = vector.broadcast %cst_5 : f32 to vector<2x512xf32>
    %7 = arith.maximumf %5, %6 : vector<2x512xf32>
    %c0_6 = arith.constant 0 : index
    %c0_7 = arith.constant 0 : index
    %8 = vector.load %arg4[%c0_6, %c0_7] : memref<512x32xf32, #tpu.memory_space<vmem>>, vector<512x32xf32>
    %cst_8 = arith.constant dense<0.000000e+00> : vector<2x32xf32>
    %9 = tpu.matmul %7, %8, %cst_8 {dimension_numbers = #tpu.dot_dimension_numbers<[1], [0], [0], [1], [0, 0, 1, 1], [], []>, precision = #tpu.contract_precision<fp32>} : vector<2x512xf32>, vector<512x32xf32>, vector<2x32xf32> -> vector<2x32xf32>
    %c0_9 = arith.constant 0 : index
    %c0_10 = arith.constant 0 : index
    %10 = vector.load %arg5[%c0_9, %c0_10] : memref<1x32xf32, #tpu.memory_space<vmem>>, vector<1x32xf32>
    %11 = vector.broadcast %10 : vector<1x32xf32> to vector<2x32xf32>
    %12 = arith.addf %9, %11 : vector<2x32xf32>
    %13 = vector.extract_strided_slice %12 {offsets = [0, 0], sizes = [2, 16], strides = [1, 1]} : vector<2x32xf32> to vector<2x16xf32>
    %14 = vector.extract_strided_slice %12 {offsets = [0, 16], sizes = [2, 16], strides = [1, 1]} : vector<2x32xf32> to vector<2x16xf32>
    %c0_11 = arith.constant 0 : index
    %c0_12 = arith.constant 0 : index
    %15 = vector.load %arg1[%c0_11, %c0_12] : memref<2x16xf32, #tpu.memory_space<vmem>>, vector<2x16xf32>
    %16 = math.exp %14 : vector<2x16xf32>
    %17 = arith.mulf %15, %16 : vector<2x16xf32>
    %18 = arith.addf %13, %17 : vector<2x16xf32>
    %19 = arith.truncf %18 : vector<2x16xf32> to vector<2x16xbf16>
    %c0_13 = arith.constant 0 : index
    %c0_14 = arith.constant 0 : index
    %20 = vector.load %arg6[%c0_13, %c0_14] : memref<16x512xbf16, #tpu.memory_space<vmem>>, vector<16x512xbf16>
    %cst_15 = arith.constant dense<0.000000e+00> : vector<2x512xf32>
    %21 = tpu.matmul %19, %20, %cst_15 {dimension_numbers = #tpu.dot_dimension_numbers<[1], [0], [0], [1], [0, 0, 1, 1], [], []>} : vector<2x16xbf16>, vector<16x512xbf16>, vector<2x512xf32> -> vector<2x512xf32>
    %c0_16 = arith.constant 0 : index
    %c0_17 = arith.constant 0 : index
    %22 = vector.load %arg7[%c0_16, %c0_17] : memref<1x512xf32, #tpu.memory_space<vmem>>, vector<1x512xf32>
    %23 = vector.broadcast %22 : vector<1x512xf32> to vector<2x512xf32>
    %24 = arith.addf %21, %23 : vector<2x512xf32>
    tpu.wait_dma2 semaphore(%arg12 : memref<!tpu.dma_semaphore, #tpu.memory_space<semaphore_mem>>) src(%arg9 : memref<512x1024xbf16, #tpu.memory_space<any>>) dst(%arg11 : memref<512x1024xbf16, #tpu.memory_space<vmem>>)
    %25 = arith.truncf %24 : vector<2x512xf32> to vector<2x512xbf16>
    %c0_18 = arith.constant 0 : index
    %c0_19 = arith.constant 0 : index
    %26 = vector.load %arg11[%c0_18, %c0_19] : memref<512x1024xbf16, #tpu.memory_space<vmem>>, vector<512x1024xbf16>
    %cst_20 = arith.constant dense<0.000000e+00> : vector<2x1024xf32>
    %27 = tpu.matmul %25, %26, %cst_20 {dimension_numbers = #tpu.dot_dimension_numbers<[1], [0], [0], [1], [0, 0, 1, 1], [], []>} : vector<2x512xbf16>, vector<512x1024xbf16>, vector<2x1024xf32> -> vector<2x1024xf32>
    %c0_21 = arith.constant 0 : index
    %c0_22 = arith.constant 0 : index
    %28 = vector.load %arg8[%c0_21, %c0_22] : memref<1x1024xf32, #tpu.memory_space<vmem>>, vector<1x1024xf32>
    %29 = vector.broadcast %28 : vector<1x1024xf32> to vector<2x1024xf32>
    %30 = arith.addf %27, %29 : vector<2x1024xf32>
    %cst_23 = arith.constant 0.000000e+00 : f32
    %31 = vector.broadcast %cst_23 : f32 to vector<2x96xf32>
    %32 = tpu.concatenate %12, %31 in 1 : vector<2x32xf32>, vector<2x96xf32> -> vector<2x128xf32>
    %33 = math.tanh %30 : vector<2x1024xf32>
    %34 = tpu.concatenate %33, %32 in 1 : vector<2x1024xf32>, vector<2x128xf32> -> vector<2x1152xf32>
    %c0_24 = arith.constant 0 : index
    %c0_25 = arith.constant 0 : index
    %35 = vector.load %arg10[%c0_24, %c0_25] : memref<2x1152xf32, #tpu.memory_space<vmem>>, vector<2x1152xf32>
    tpu.vector_store %arg10[%c0_24, %c0_25], %34 {strides = array<i32>} : memref<2x1152xf32, #tpu.memory_space<vmem>>, vector<2x1152xf32>,
    return
  }
}

</mosaic_0001>

<llo_original>
// kernel: _lambda_.1
$region0: #{_lambda_.1}
  #allocation0 [shape = 'u32[]', space=smem, size = 0x4, offset = 0x4, fixed_abs, tag = 'smem constant byte address 0x4 - core index']
  #allocation1 [shape = 'u32[144,128]{1,0:T(1,128)}', space=vmem, size = 0x12000, scoped, tag = 'internal scratch']
  #allocation2 [shape = 'bf16[512,1024]{1,0:T(16,128)(2,1)}', space=vmem, size = 0x100000, scoped, tag = 'scratch operand']
  #allocation3 [shape = 's32[1]{0}', space=sflag, size = 0x4, scoped, tag = 'scratch operand']
  #allocation4 [shape = 's32[]', space=sflag, size = 0x4, offset = 0, fixed_abs, tag = 'sflag constant byte address 0x0 - dummy sync flag']
  %s0 = inlined_call_operand.vmem [shape: bf16[2,1024], index: 0, kind: input, shape index: {}]
  %s1 = inlined_call_operand.vmem [shape: f32[2,16], index: 1, kind: input, shape index: {}]
  %s2 = inlined_call_operand.vmem [shape: bf16[1024,512], index: 2, kind: input, shape index: {}]
  %s3 = inlined_call_operand.vmem [shape: f32[1,512], index: 3, kind: input, shape index: {}]
  %s4 = inlined_call_operand.vmem [shape: f32[512,32], index: 4, kind: input, shape index: {}]
  %s5 = inlined_call_operand.vmem [shape: f32[1,32], index: 5, kind: input, shape index: {}]
  %s6 = inlined_call_operand.vmem [shape: bf16[16,512], index: 6, kind: input, shape index: {}]
  %s7 = inlined_call_operand.vmem [shape: f32[1,512], index: 7, kind: input, shape index: {}]
  %s8 = inlined_call_operand.vmem [shape: f32[1,1024], index: 8, kind: input, shape index: {}]
  %s9 = inlined_call_operand.vmem [shape: bf16[512,1024], index: 9, kind: input, shape index: {}]
  %s10 = inlined_call_operand.vmem [shape: f32[2,1152], index: 10, kind: output, shape index: {}]
  %s11 = sld [smem:[#allocation0]]
  $region94: #{_lambda_.1} parent=0
    _
  %s13 = ssub.s32 1, %s11
  %s14 = scalar_select 0, %s13, %s11
  // Predicated region
  $region2: #{_lambda_.1} parent=0 // pred_check
    _
  $region3: #{_lambda_.1} parent=0 // pred_check_branch
    %16 = sbr.rel (0) target = $region5
  $region4: #{_lambda_.1} parent=0 // pred_region
    _
  $region5: #{_lambda_.1} parent=0 // pred_fallthru
    _
  // Predicated region
  $region6: #{_lambda_.1} parent=0 // pred_check
    _
  $region7: #{_lambda_.1} parent=0 // pred_check_branch
    %18 = sbr.rel (0) target = $region9
  $region8: #{_lambda_.1} parent=0 // pred_region
    _
  $region9: #{_lambda_.1} parent=0 // pred_fallthru
    _
  // Predicated region
  $region10: #{_lambda_.1} parent=0 // pred_check
    _
  $region11: #{_lambda_.1} parent=0 // pred_check_branch
    %20 = sbr.rel (0) target = $region13
  $region12: #{_lambda_.1} parent=0 // pred_region
    _
  $region13: #{_lambda_.1} parent=0 // pred_fallthru
    _
  // Predicated region
  $region14: #{_lambda_.1} parent=0 // pred_check
    _
  $region15: #{_lambda_.1} parent=0 // pred_check_branch
    %22 = sbr.rel (0) target = $region17
  $region16: #{_lambda_.1} parent=0 // pred_region
    _
  $region17: #{_lambda_.1} parent=0 // pred_fallthru
    _
  // Predicated region
  $region18: #{_lambda_.1} parent=0 // pred_check
    _
  $region19: #{_lambda_.1} parent=0 // pred_check_branch
    %24 = sbr.rel (0) target = $region21
  $region20: #{_lambda_.1} parent=0 // pred_region
    _
  $region21: #{_lambda_.1} parent=0 // pred_fallthru
    _
  // Predicated region
  $region22: #{_lambda_.1} parent=0 // pred_check
    _
  $region23: #{_lambda_.1} parent=0 // pred_check_branch
    %26 = sbr.rel (0) target = $region25
  $region24: #{_lambda_.1} parent=0 // pred_region
    _
  $region25: #{_lambda_.1} parent=0 // pred_fallthru
    _
  // Predicated region
  $region26: #{_lambda_.1} parent=0 // pred_check
    _
  $region27: #{_lambda_.1} parent=0 // pred_check_branch
    %28 = sbr.rel (0) target = $region29
  $region28: #{_lambda_.1} parent=0 // pred_region
    _
  $region29: #{_lambda_.1} parent=0 // pred_fallthru
    _
  // Predicated region
  $region30: #{_lambda_.1} parent=0 // pred_check
    _
  $region31: #{_lambda_.1} parent=0 // pred_check_branch
    %30 = sbr.rel (0) target = $region33
  $region32: #{_lambda_.1} parent=0 // pred_region
    _
  $region33: #{_lambda_.1} parent=0 // pred_fallthru
    _
  // Predicated region
  $region34: #{_lambda_.1} parent=0 // pred_check
    _
  $region35: #{_lambda_.1} parent=0 // pred_check_branch
    %32 = sbr.rel (0) target = $region37
  $region36: #{_lambda_.1} parent=0 // pred_region
    _
  $region37: #{_lambda_.1} parent=0 // pred_fallthru
    _
  %p35 = scmp.lt.u32.totalorder 4, 8
  %p36 = pneg %p35
  // Predicated region
  $region38: #{_lambda_.1} parent=0 // pred_check
    _
  $region39: #{_lambda_.1} parent=0 // pred_check_branch
    %38 = sbr.rel (%p35) target = $region41
  $region40: #{_lambda_.1} parent=0 // pred_region
    %s1075 = sand.u32 4, 7
    %p1076 = scmp.eq.s32.totalorder %s1075, 0
    // Predicated region
    $region53: #{_lambda_.1} parent=40 // pred_check
      %p1077 = pneg %p1076
    $region54: #{_lambda_.1} parent=40 // pred_check_branch
      %1079 = sbr.rel (%p1077) target = $region56
    $region55: #{_lambda_.1} parent=40 // pred_region
      %s1080 = sshrl.u32 4, 3
      // While loop
      $region57: #{_lambda_.1} parent=55 // loop_pre_header
        _
      $region58: #{_lambda_.1} parent=55 // loop_header
        %s1084 = sphi 0, %s1086
        %p1085 = scmp.ge.s32.totalorder %s1084, %s1080
        %s1089 = sphi 0, %s2118
        %s1090 = sphi %s9, %s2121
        %s1091 = sphi [#allocation2], %s2122
      $region59: #{_lambda_.1} parent=55 // loop_header_branch
        %1088 = sbr.rel (%p1085) target = $region63
      $region60: #{_lambda_.1} parent=55 // loop_body
        %v1092 = vld [vmem:[%s1090] sm:$0xff]
        %1093 = vst [vmem:[%s1091] sm:$0xff] %v1092
        %v1094 = vld [vmem:[%s1090 + $0x20] sm:$0xff]
        %1095 = vst [vmem:[%s1091 + $0x4] sm:$0xff] %v1094
        %v1096 = vld [vmem:[%s1090 + $0x4] sm:$0xff]
        %1097 = vst [vmem:[%s1091 + $0x8] sm:$0xff] %v1096
        %v1098 = vld [vmem:[%s1090 + $0x24] sm:$0xff]
        %1099 = vst [vmem:[%s1091 + $0xc] sm:$0xff] %v1098
        %v1100 = vld [vmem:[%s1090 + $0x8] sm:$0xff]
        %1101 = vst [vmem:[%s1091 + $0x10] sm:$0xff] %v1100
        %v1102 = vld [vmem:[%s1090 + $0x28] sm:$0xff]
        %1103 = vst [vmem:[%s1091 + $0x14] sm:$0xff] %v1102
        %v1104 = vld [vmem:[%s1090 + $0xc] sm:$0xff]
        %1105 = vst [vmem:[%s1091 + $0x18] sm:$0xff] %v1104
        %v1106 = vld [vmem:[%s1090 + $0x2c] sm:$0xff]
        %1107 = vst [vmem:[%s1091 + $0x1c] sm:$0xff] %v1106
        %v1108 = vld [vmem:[%s1090 + $0x10] sm:$0xff]
        %1109 = vst [vmem:[%s1091 + $0x20] sm:$0xff] %v1108
        %v1110 = vld [vmem:[%s1090 + $0x30] sm:$0xff]
        %1111 = vst [vmem:[%s1091 + $0x24] sm:$0xff] %v1110
        %v1112 = vld [vmem:[%s1090 + $0x14] sm:$0xff]
        %1113 = vst [vmem:[%s1091 + $0x28] sm:$0xff] %v1112
        %v1114 = vld [vmem:[%s1090 + $0x34] sm:$0xff]
        %1115 = vst [vmem:[%s1091 + $0x2c] sm:$0xff] %v1114
        %v1116 = vld [vmem:[%s1090 + $0x18] sm:$0xff]
        %1117 = vst [vmem:[%s1091 + $0x30] sm:$0xff] %v1116
        %v1118 = vld [vmem:[%s1090 + $0x38] sm:$0xff]
        %1119 = vst [vmem:[%s1091 + $0x34] sm:$0xff] %v1118
        %v1120 = vld [vmem:[%s1090 + $0x1c] sm:$0xff]
        %1121 = vst [vmem:[%s1091 + $0x38] sm:$0xff] %v1120
        %v1122 = vld [vmem:[%s1090 + $0x3c] sm:$0xff]
        %1123 = vst [vmem:[%s1091 + $0x3c] sm:$0xff] %v1122
        %v1124 = vld [vmem:[%s1090 + $0x40] sm:$0xff]
        %1125 = vst [vmem:[%s1091 + $0x40] sm:$0xff] %v1124
        %v1126 = vld [vmem:[%s1090 + $0x60] sm:$0xff]
        %1127 = vst [vmem:[%s1091 + $0x44] sm:$0xff] %v1126
        %v1128 = vld [vmem:[%s1090 + $0x44] sm:$0xff]
        %1129 = vst [vmem:[%s1091 + $0x48] sm:$0xff] %v1128
        %v1130 = vld [vmem:[%s1090 + $0x64] sm:$0xff]
        %1131 = vst [vmem:[%s1091 + $0x4c] sm:$0xff] %v1130
        %v1132 = vld [vmem:[%s1090 + $0x48] sm:$0xff]
        %1133 = vst [vmem:[%s1091 + $0x50] sm:$0xff] %v1132
        %v1134 = vld [vmem:[%s1090 + $0x68] sm:$0xff]
        %1135 = vst [vmem:[%s1091 + $0x54] sm:$0xff] %v1134
        %v1136 = vld [vmem:[%s1090 + $0x4c] sm:$0xff]
        %1137 = vst [vmem:[%s1091 + $0x58] sm:$0xff] %v1136
        %v1138 = vld [vmem:[%s1090 + $0x6c] sm:$0xff]
        %1139 = vst [vmem:[%s1091 + $0x5c] sm:$0xff] %v1138
        %v1140 = vld [vmem:[%s1090 + $0x50] sm:$0xff]
        %1141 = vst [vmem:[%s1091 + $0x60] sm:$0xff] %v1140
        %v1142 = vld [vmem:[%s1090 + $0x70] sm:$0xff]
        %1143 = vst [vmem:[%s1091 + $0x64] sm:$0xff] %v1142
        %v1144 = vld [vmem:[%s1090 + $0x54] sm:$0xff]
        %1145 = vst [vmem:[%s1091 + $0x68] sm:$0xff] %v1144
        %v1146 = vld [vmem:[%s1090 + $0x74] sm:$0xff]
        %1147 = vst [vmem:[%s1091 + $0x6c] sm:$0xff] %v1146
        %v1148 = vld [vmem:[%s1090 + $0x58] sm:$0xff]
        %1149 = vst [vmem:[%s1091 + $0x70] sm:$0xff] %v1148
        %v1150 = vld [vmem:[%s1090 + $0x78] sm:$0xff]
        %1151 = vst [vmem:[%s1091 + $0x74] sm:$0xff] %v1150
        %v1152 = vld [vmem:[%s1090 + $0x5c] sm:$0xff]
        %1153 = vst [vmem:[%s1091 + $0x78] sm:$0xff] %v1152
        %v1154 = vld [vmem:[%s1090 + $0x7c] sm:$0xff]
        %1155 = vst [vmem:[%s1091 + $0x7c] sm:$0xff] %v1154
        %v1156 = vld [vmem:[%s1090 + $0x80] sm:$0xff]
        %1157 = vst [vmem:[%s1091 + $0x80] sm:$0xff] %v1156
        %v1158 = vld [vmem:[%s1090 + $0xa0] sm:$0xff]
        %1159 = vst [vmem:[%s1091 + $0x84] sm:$0xff] %v1158
        %v1160 = vld [vmem:[%s1090 + $0x84] sm:$0xff]
        %1161 = vst [vmem:[%s1091 + $0x88] sm:$0xff] %v1160
        %v1162 = vld [vmem:[%s1090 + $0xa4] sm:$0xff]
        %1163 = vst [vmem:[%s1091 + $0x8c] sm:$0xff] %v1162
        %v1164 = vld [vmem:[%s1090 + $0x88] sm:$0xff]
        %1165 = vst [vmem:[%s1091 + $0x90] sm:$0xff] %v1164
        %v1166 = vld [vmem:[%s1090 + $0xa8] sm:$0xff]
        %1167 = vst [vmem:[%s1091 + $0x94] sm:$0xff] %v1166
        %v1168 = vld [vmem:[%s1090 + $0x8c] sm:$0xff]
        %1169 = vst [vmem:[%s1091 + $0x98] sm:$0xff] %v1168
        %v1170 = vld [vmem:[%s1090 + $0xac] sm:$0xff]
        %1171 = vst [vmem:[%s1091 + $0x9c] sm:$0xff] %v1170
        %v1172 = vld [vmem:[%s1090 + $0x90] sm:$0xff]
        %1173 = vst [vmem:[%s1091 + $0xa0] sm:$0xff] %v1172
        %v1174 = vld [vmem:[%s1090 + $0xb0] sm:$0xff]
        %1175 = vst [vmem:[%s1091 + $0xa4] sm:$0xff] %v1174
        %v1176 = vld [vmem:[%s1090 + $0x94] sm:$0xff]
        %1177 = vst [vmem:[%s1091 + $0xa8] sm:$0xff] %v1176
        %v1178 = vld [vmem:[%s1090 + $0xb4] sm:$0xff]
        %1179 = vst [vmem:[%s1091 + $0xac] sm:$0xff] %v1178
        %v1180 = vld [vmem:[%s1090 + $0x98] sm:$0xff]
        %1181 = vst [vmem:[%s1091 + $0xb0] sm:$0xff] %v1180
        %v1182 = vld [vmem:[%s1090 + $0xb8] sm:$0xff]
        %1183 = vst [vmem:[%s1091 + $0xb4] sm:$0xff] %v1182
        %v1184 = vld [vmem:[%s1090 + $0x9c] sm:$0xff]
        %1185 = vst [vmem:[%s1091 + $0xb8] sm:$0xff] %v1184
        %v1186 = vld [vmem:[%s1090 + $0xbc] sm:$0xff]
        %1187 = vst [vmem:[%s1091 + $0xbc] sm:$0xff] %v1186
        %v1188 = vld [vmem:[%s1090 + $0xc0] sm:$0xff]
        %1189 = vst [vmem:[%s1091 + $0xc0] sm:$0xff] %v1188
        %v1190 = vld [vmem:[%s1090 + $0xe0] sm:$0xff]
        %1191 = vst [vmem:[%s1091 + $0xc4] sm:$0xff] %v1190
        %v1192 = vld [vmem:[%s1090 + $0xc4] sm:$0xff]
        %1193 = vst [vmem:[%s1091 + $0xc8] sm:$0xff] %v1192
        %v1194 = vld [vmem:[%s1090 + $0xe4] sm:$0xff]
        %1195 = vst [vmem:[%s1091 + $0xcc] sm:$0xff] %v1194
        %v1196 = vld [vmem:[%s1090 + $0xc8] sm:$0xff]
        %1197 = vst [vmem:[%s1091 + $0xd0] sm:$0xff] %v1196
        %v1198 = vld [vmem:[%s1090 + $0xe8] sm:$0xff]
        %1199 = vst [vmem:[%s1091 + $0xd4] sm:$0xff] %v1198
        %v1200 = vld [vmem:[%s1090 + $0xcc] sm:$0xff]
        %1201 = vst [vmem:[%s1091 + $0xd8] sm:$0xff] %v1200
        %v1202 = vld [vmem:[%s1090 + $0xec] sm:$0xff]
        %1203 = vst [vmem:[%s1091 + $0xdc] sm:$0xff] %v1202
        %v1204 = vld [vmem:[%s1090 + $0xd0] sm:$0xff]
        %1205 = vst [vmem:[%s1091 + $0xe0] sm:$0xff] %v1204
        %v1206 = vld [vmem:[%s1090 + $0xf0] sm:$0xff]
        %1207 = vst [vmem:[%s1091 + $0xe4] sm:$0xff] %v1206
        %v1208 = vld [vmem:[%s1090 + $0xd4] sm:$0xff]
        %1209 = vst [vmem:[%s1091 + $0xe8] sm:$0xff] %v1208
        %v1210 = vld [vmem:[%s1090 + $0xf4] sm:$0xff]
        %1211 = vst [vmem:[%s1091 + $0xec] sm:$0xff] %v1210
        %v1212 = vld [vmem:[%s1090 + $0xd8] sm:$0xff]
        %1213 = vst [vmem:[%s1091 + $0xf0] sm:$0xff] %v1212
        %v1214 = vld [vmem:[%s1090 + $0xf8] sm:$0xff]
        %1215 = vst [vmem:[%s1091 + $0xf4] sm:$0xff] %v1214
        %v1216 = vld [vmem:[%s1090 + $0xdc] sm:$0xff]
        %1217 = vst [vmem:[%s1091 + $0xf8] sm:$0xff] %v1216
        %v1218 = vld [vmem:[%s1090 + $0xfc] sm:$0xff]
        %1219 = vst [vmem:[%s1091 + $0xfc] sm:$0xff] %v1218
        %v1220 = vld [vmem:[%s1090 + $0x100] sm:$0xff]
        %1221 = vst [vmem:[%s1091 + $0x100] sm:$0xff] %v1220
        %v1222 = vld [vmem:[%s1090 + $0x120] sm:$0xff]
        %1223 = vst [vmem:[%s1091 + $0x104] sm:$0xff] %v1222
        %v1224 = vld [vmem:[%s1090 + $0x104] sm:$0xff]
        %1225 = vst [vmem:[%s1091 + $0x108] sm:$0xff] %v1224
        %v1226 = vld [vmem:[%s1090 + $0x124] sm:$0xff]
        %1227 = vst [vmem:[%s1091 + $0x10c] sm:$0xff] %v1226
        %v1228 = vld [vmem:[%s1090 + $0x108] sm:$0xff]
        %1229 = vst [vmem:[%s1091 + $0x110] sm:$0xff] %v1228
        %v1230 = vld [vmem:[%s1090 + $0x128] sm:$0xff]
        %1231 = vst [vmem:[%s1091 + $0x114] sm:$0xff] %v1230
        %v1232 = vld [vmem:[%s1090 + $0x10c] sm:$0xff]
        %1233 = vst [vmem:[%s1091 + $0x118] sm:$0xff] %v1232
        %v1234 = vld [vmem:[%s1090 + $0x12c] sm:$0xff]
        %1235 = vst [vmem:[%s1091 + $0x11c] sm:$0xff] %v1234
        %v1236 = vld [vmem:[%s1090 + $0x110] sm:$0xff]
        %1237 = vst [vmem:[%s1091 + $0x120] sm:$0xff] %v1236
        %v1238 = vld [vmem:[%s1090 + $0x130] sm:$0xff]
        %1239 = vst [vmem:[%s1091 + $0x124] sm:$0xff] %v1238
        %v1240 = vld [vmem:[%s1090 + $0x114] sm:$0xff]
        %1241 = vst [vmem:[%s1091 + $0x128] sm:$0xff] %v1240
        %v1242 = vld [vmem:[%s1090 + $0x134] sm:$0xff]
        %1243 = vst [vmem:[%s1091 + $0x12c] sm:$0xff] %v1242
        %v1244 = vld [vmem:[%s1090 + $0x118] sm:$0xff]
        %1245 = vst [vmem:[%s1091 + $0x130] sm:$0xff] %v1244
        %v1246 = vld [vmem:[%s1090 + $0x138] sm:$0xff]
        %1247 = vst [vmem:[%s1091 + $0x134] sm:$0xff] %v1246
        %v1248 = vld [vmem:[%s1090 + $0x11c] sm:$0xff]
        %1249 = vst [vmem:[%s1091 + $0x138] sm:$0xff] %v1248
        %v1250 = vld [vmem:[%s1090 + $0x13c] sm:$0xff]
        %1251 = vst [vmem:[%s1091 + $0x13c] sm:$0xff] %v1250
        %v1252 = vld [vmem:[%s1090 + $0x140] sm:$0xff]
        %1253 = vst [vmem:[%s1091 + $0x140] sm:$0xff] %v1252
        %v1254 = vld [vmem:[%s1090 + $0x160] sm:$0xff]
        %1255 = vst [vmem:[%s1091 + $0x144] sm:$0xff] %v1254
        %v1256 = vld [vmem:[%s1090 + $0x144] sm:$0xff]
        %1257 = vst [vmem:[%s1091 + $0x148] sm:$0xff] %v1256
        %v1258 = vld [vmem:[%s1090 + $0x164] sm:$0xff]
        %1259 = vst [vmem:[%s1091 + $0x14c] sm:$0xff] %v1258
        %v1260 = vld [vmem:[%s1090 + $0x148] sm:$0xff]
        %1261 = vst [vmem:[%s1091 + $0x150] sm:$0xff] %v1260
        %v1262 = vld [vmem:[%s1090 + $0x168] sm:$0xff]
        %1263 = vst [vmem:[%s1091 + $0x154] sm:$0xff] %v1262
        %v1264 = vld [vmem:[%s1090 + $0x14c] sm:$0xff]
        %1265 = vst [vmem:[%s1091 + $0x158] sm:$0xff] %v1264
        %v1266 = vld [vmem:[%s1090 + $0x16c] sm:$0xff]
        %1267 = vst [vmem:[%s1091 + $0x15c] sm:$0xff] %v1266
        %v1268 = vld [vmem:[%s1090 + $0x150] sm:$0xff]
        %1269 = vst [vmem:[%s1091 + $0x160] sm:$0xff] %v1268
        %v1270 = vld [vmem:[%s1090 + $0x170] sm:$0xff]
        %1271 = vst [vmem:[%s1091 + $0x164] sm:$0xff] %v1270
        %v1272 = vld [vmem:[%s1090 + $0x154] sm:$0xff]
        %1273 = vst [vmem:[%s1091 + $0x168] sm:$0xff] %v1272
        %v1274 = vld [vmem:[%s1090 + $0x174] sm:$0xff]
        %1275 = vst [vmem:[%s1091 + $0x16c] sm:$0xff] %v1274
        %v1276 = vld [vmem:[%s1090 + $0x158] sm:$0xff]
        %1277 = vst [vmem:[%s1091 + $0x170] sm:$0xff] %v1276
        %v1278 = vld [vmem:[%s1090 + $0x178] sm:$0xff]
        %1279 = vst [vmem:[%s1091 + $0x174] sm:$0xff] %v1278
        %v1280 = vld [vmem:[%s1090 + $0x15c] sm:$0xff]
        %1281 = vst [vmem:[%s1091 + $0x178] sm:$0xff] %v1280
        %v1282 = vld [vmem:[%s1090 + $0x17c] sm:$0xff]
        %1283 = vst [vmem:[%s1091 + $0x17c] sm:$0xff] %v1282
        %v1284 = vld [vmem:[%s1090 + $0x180] sm:$0xff]
        %1285 = vst [vmem:[%s1091 + $0x180] sm:$0xff] %v1284
        %v1286 = vld [vmem:[%s1090 + $0x1a0] sm:$0xff]
        %1287 = vst [vmem:[%s1091 + $0x184] sm:$0xff] %v1286
        %v1288 = vld [vmem:[%s1090 + $0x184] sm:$0xff]
        %1289 = vst [vmem:[%s1091 + $0x188] sm:$0xff] %v1288
        %v1290 = vld [vmem:[%s1090 + $0x1a4] sm:$0xff]
        %1291 = vst [vmem:[%s1091 + $0x18c] sm:$0xff] %v1290
        %v1292 = vld [vmem:[%s1090 + $0x188] sm:$0xff]
        %1293 = vst [vmem:[%s1091 + $0x190] sm:$0xff] %v1292
        %v1294 = vld [vmem:[%s1090 + $0x1a8] sm:$0xff]
        %1295 = vst [vmem:[%s1091 + $0x194] sm:$0xff] %v1294
        %v1296 = vld [vmem:[%s1090 + $0x18c] sm:$0xff]
        %1297 = vst [vmem:[%s1091 + $0x198] sm:$0xff] %v1296
        %v1298 = vld [vmem:[%s1090 + $0x1ac] sm:$0xff]
        %1299 = vst [vmem:[%s1091 + $0x19c] sm:$0xff] %v1298
        %v1300 = vld [vmem:[%s1090 + $0x190] sm:$0xff]
        %1301 = vst [vmem:[%s1091 + $0x1a0] sm:$0xff] %v1300
        %v1302 = vld [vmem:[%s1090 + $0x1b0] sm:$0xff]
        %1303 = vst [vmem:[%s1091 + $0x1a4] sm:$0xff] %v1302
        %v1304 = vld [vmem:[%s1090 + $0x194] sm:$0xff]
        %1305 = vst [vmem:[%s1091 + $0x1a8] sm:$0xff] %v1304
        %v1306 = vld [vmem:[%s1090 + $0x1b4] sm:$0xff]
        %1307 = vst [vmem:[%s1091 + $0x1ac] sm:$0xff] %v1306
        %v1308 = vld [vmem:[%s1090 + $0x198] sm:$0xff]
        %1309 = vst [vmem:[%s1091 + $0x1b0] sm:$0xff] %v1308
        %v1310 = vld [vmem:[%s1090 + $0x1b8] sm:$0xff]
        %1311 = vst [vmem:[%s1091 + $0x1b4] sm:$0xff] %v1310
        %v1312 = vld [vmem:[%s1090 + $0x19c] sm:$0xff]
        %1313 = vst [vmem:[%s1091 + $0x1b8] sm:$0xff] %v1312
        %v1314 = vld [vmem:[%s1090 + $0x1bc] sm:$0xff]
        %1315 = vst [vmem:[%s1091 + $0x1bc] sm:$0xff] %v1314
        %v1316 = vld [vmem:[%s1090 + $0x1c0] sm:$0xff]
        %1317 = vst [vmem:[%s1091 + $0x1c0] sm:$0xff] %v1316
        %v1318 = vld [vmem:[%s1090 + $0x1e0] sm:$0xff]
        %1319 = vst [vmem:[%s1091 + $0x1c4] sm:$0xff] %v1318
        %v1320 = vld [vmem:[%s1090 + $0x1c4] sm:$0xff]
        %1321 = vst [vmem:[%s1091 + $0x1c8] sm:$0xff] %v1320
        %v1322 = vld [vmem:[%s1090 + $0x1e4] sm:$0xff]
        %1323 = vst [vmem:[%s1091 + $0x1cc] sm:$0xff] %v1322
        %v1324 = vld [vmem:[%s1090 + $0x1c8] sm:$0xff]
        %1325 = vst [vmem:[%s1091 + $0x1d0] sm:$0xff] %v1324
        %v1326 = vld [vmem:[%s1090 + $0x1e8] sm:$0xff]
        %1327 = vst [vmem:[%s1091 + $0x1d4] sm:$0xff] %v1326
        %v1328 = vld [vmem:[%s1090 + $0x1cc] sm:$0xff]
        %1329 = vst [vmem:[%s1091 + $0x1d8] sm:$0xff] %v1328
        %v1330 = vld [vmem:[%s1090 + $0x1ec] sm:$0xff]
        %1331 = vst [vmem:[%s1091 + $0x1dc] sm:$0xff] %v1330
        %v1332 = vld [vmem:[%s1090 + $0x1d0] sm:$0xff]
        %1333 = vst [vmem:[%s1091 + $0x1e0] sm:$0xff] %v1332
        %v1334 = vld [vmem:[%s1090 + $0x1f0] sm:$0xff]
        %1335 = vst [vmem:[%s1091 + $0x1e4] sm:$0xff] %v1334
        %v1336 = vld [vmem:[%s1090 + $0x1d4] sm:$0xff]
        %1337 = vst [vmem:[%s1091 + $0x1e8] sm:$0xff] %v1336
        %v1338 = vld [vmem:[%s1090 + $0x1f4] sm:$0xff]
        %1339 = vst [vmem:[%s1091 + $0x1ec] sm:$0xff] %v1338
        %v1340 = vld [vmem:[%s1090 + $0x1d8] sm:$0xff]
        %1341 = vst [vmem:[%s1091 + $0x1f0] sm:$0xff] %v1340
        %v1342 = vld [vmem:[%s1090 + $0x1f8] sm:$0xff]
        %1343 = vst [vmem:[%s1091 + $0x1f4] sm:$0xff] %v1342
        %v1344 = vld [vmem:[%s1090 + $0x1dc] sm:$0xff]
        %1345 = vst [vmem:[%s1091 + $0x1f8] sm:$0xff] %v1344
        %v1346 = vld [vmem:[%s1090 + $0x1fc] sm:$0xff]
        %1347 = vst [vmem:[%s1091 + $0x1fc] sm:$0xff] %v1346
        %v1348 = vld [vmem:[%s1090 + $0x200] sm:$0xff]
        %1349 = vst [vmem:[%s1091 + $0x200] sm:$0xff] %v1348
        %v1350 = vld [vmem:[%s1090 + $0x220] sm:$0xff]
        %1351 = vst [vmem:[%s1091 + $0x204] sm:$0xff] %v1350
        %v1352 = vld [vmem:[%s1090 + $0x204] sm:$0xff]
        %1353 = vst [vmem:[%s1091 + $0x208] sm:$0xff] %v1352
        %v1354 = vld [vmem:[%s1090 + $0x224] sm:$0xff]
        %1355 = vst [vmem:[%s1091 + $0x20c] sm:$0xff] %v1354
        %v1356 = vld [vmem:[%s1090 + $0x208] sm:$0xff]
        %1357 = vst [vmem:[%s1091 + $0x210] sm:$0xff] %v1356
        %v1358 = vld [vmem:[%s1090 + $0x228] sm:$0xff]
        %1359 = vst [vmem:[%s1091 + $0x214] sm:$0xff] %v1358
        %v1360 = vld [vmem:[%s1090 + $0x20c] sm:$0xff]
        %1361 = vst [vmem:[%s1091 + $0x218] sm:$0xff] %v1360
        %v1362 = vld [vmem:[%s1090 + $0x22c] sm:$0xff]
        %1363 = vst [vmem:[%s1091 + $0x21c] sm:$0xff] %v1362
        %v1364 = vld [vmem:[%s1090 + $0x210] sm:$0xff]
        %1365 = vst [vmem:[%s1091 + $0x220] sm:$0xff] %v1364
        %v1366 = vld [vmem:[%s1090 + $0x230] sm:$0xff]
        %1367 = vst [vmem:[%s1091 + $0x224] sm:$0xff] %v1366
        %v1368 = vld [vmem:[%s1090 + $0x214] sm:$0xff]
        %1369 = vst [vmem:[%s1091 + $0x228] sm:$0xff] %v1368
        %v1370 = vld [vmem:[%s1090 + $0x234] sm:$0xff]
        %1371 = vst [vmem:[%s1091 + $0x22c] sm:$0xff] %v1370
        %v1372 = vld [vmem:[%s1090 + $0x218] sm:$0xff]
        %1373 = vst [vmem:[%s1091 + $0x230] sm:$0xff] %v1372
        %v1374 = vld [vmem:[%s1090 + $0x238] sm:$0xff]
        %1375 = vst [vmem:[%s1091 + $0x234] sm:$0xff] %v1374
        %v1376 = vld [vmem:[%s1090 + $0x21c] sm:$0xff]
        %1377 = vst [vmem:[%s1091 + $0x238] sm:$0xff] %v1376
        %v1378 = vld [vmem:[%s1090 + $0x23c] sm:$0xff]
        %1379 = vst [vmem:[%s1091 + $0x23c] sm:$0xff] %v1378
        %v1380 = vld [vmem:[%s1090 + $0x240] sm:$0xff]
        %1381 = vst [vmem:[%s1091 + $0x240] sm:$0xff] %v1380
        %v1382 = vld [vmem:[%s1090 + $0x260] sm:$0xff]
        %1383 = vst [vmem:[%s1091 + $0x244] sm:$0xff] %v1382
        %v1384 = vld [vmem:[%s1090 + $0x244] sm:$0xff]
        %1385 = vst [vmem:[%s1091 + $0x248] sm:$0xff] %v1384
        %v1386 = vld [vmem:[%s1090 + $0x264] sm:$0xff]
        %1387 = vst [vmem:[%s1091 + $0x24c] sm:$0xff] %v1386
        %v1388 = vld [vmem:[%s1090 + $0x248] sm:$0xff]
        %1389 = vst [vmem:[%s1091 + $0x250] sm:$0xff] %v1388
        %v1390 = vld [vmem:[%s1090 + $0x268] sm:$0xff]
        %1391 = vst [vmem:[%s1091 + $0x254] sm:$0xff] %v1390
        %v1392 = vld [vmem:[%s1090 + $0x24c] sm:$0xff]
        %1393 = vst [vmem:[%s1091 + $0x258] sm:$0xff] %v1392
        %v1394 = vld [vmem:[%s1090 + $0x26c] sm:$0xff]
        %1395 = vst [vmem:[%s1091 + $0x25c] sm:$0xff] %v1394
        %v1396 = vld [vmem:[%s1090 + $0x250] sm:$0xff]
        %1397 = vst [vmem:[%s1091 + $0x260] sm:$0xff] %v1396
        %v1398 = vld [vmem:[%s1090 + $0x270] sm:$0xff]
        %1399 = vst [vmem:[%s1091 + $0x264] sm:$0xff] %v1398
        %v1400 = vld [vmem:[%s1090 + $0x254] sm:$0xff]
        %1401 = vst [vmem:[%s1091 + $0x268] sm:$0xff] %v1400
        %v1402 = vld [vmem:[%s1090 + $0x274] sm:$0xff]
        %1403 = vst [vmem:[%s1091 + $0x26c] sm:$0xff] %v1402
        %v1404 = vld [vmem:[%s1090 + $0x258] sm:$0xff]
        %1405 = vst [vmem:[%s1091 + $0x270] sm:$0xff] %v1404
        %v1406 = vld [vmem:[%s1090 + $0x278] sm:$0xff]
        %1407 = vst [vmem:[%s1091 + $0x274] sm:$0xff] %v1406
        %v1408 = vld [vmem:[%s1090 + $0x25c] sm:$0xff]
        %1409 = vst [vmem:[%s1091 + $0x278] sm:$0xff] %v1408
        %v1410 = vld [vmem:[%s1090 + $0x27c] sm:$0xff]
        %1411 = vst [vmem:[%s1091 + $0x27c] sm:$0xff] %v1410
        %v1412 = vld [vmem:[%s1090 + $0x280] sm:$0xff]
        %1413 = vst [vmem:[%s1091 + $0x280] sm:$0xff] %v1412
        %v1414 = vld [vmem:[%s1090 + $0x2a0] sm:$0xff]
        %1415 = vst [vmem:[%s1091 + $0x284] sm:$0xff] %v1414
        %v1416 = vld [vmem:[%s1090 + $0x284] sm:$0xff]
        %1417 = vst [vmem:[%s1091 + $0x288] sm:$0xff] %v1416
        %v1418 = vld [vmem:[%s1090 + $0x2a4] sm:$0xff]
        %1419 = vst [vmem:[%s1091 + $0x28c] sm:$0xff] %v1418
        %v1420 = vld [vmem:[%s1090 + $0x288] sm:$0xff]
        %1421 = vst [vmem:[%s1091 + $0x290] sm:$0xff] %v1420
        %v1422 = vld [vmem:[%s1090 + $0x2a8] sm:$0xff]
        %1423 = vst [vmem:[%s1091 + $0x294] sm:$0xff] %v1422
        %v1424 = vld [vmem:[%s1090 + $0x28c] sm:$0xff]
        %1425 = vst [vmem:[%s1091 + $0x298] sm:$0xff] %v1424
        %v1426 = vld [vmem:[%s1090 + $0x2ac] sm:$0xff]
        %1427 = vst [vmem:[%s1091 + $0x29c] sm:$0xff] %v1426
        %v1428 = vld [vmem:[%s1090 + $0x290] sm:$0xff]
        %1429 = vst [vmem:[%s1091 + $0x2a0] sm:$0xff] %v1428
        %v1430 = vld [vmem:[%s1090 + $0x2b0] sm:$0xff]
        %1431 = vst [vmem:[%s1091 + $0x2a4] sm:$0xff] %v1430
        %v1432 = vld [vmem:[%s1090 + $0x294] sm:$0xff]
        %1433 = vst [vmem:[%s1091 + $0x2a8] sm:$0xff] %v1432
        %v1434 = vld [vmem:[%s1090 + $0x2b4] sm:$0xff]
        %1435 = vst [vmem:[%s1091 + $0x2ac] sm:$0xff] %v1434
        %v1436 = vld [vmem:[%s1090 + $0x298] sm:$0xff]
        %1437 = vst [vmem:[%s1091 + $0x2b0] sm:$0xff] %v1436
        %v1438 = vld [vmem:[%s1090 + $0x2b8] sm:$0xff]
        %1439 = vst [vmem:[%s1091 + $0x2b4] sm:$0xff] %v1438
        %v1440 = vld [vmem:[%s1090 + $0x29c] sm:$0xff]
        %1441 = vst [vmem:[%s1091 + $0x2b8] sm:$0xff] %v1440
        %v1442 = vld [vmem:[%s1090 + $0x2bc] sm:$0xff]
        %1443 = vst [vmem:[%s1091 + $0x2bc] sm:$0xff] %v1442
        %v1444 = vld [vmem:[%s1090 + $0x2c0] sm:$0xff]
        %1445 = vst [vmem:[%s1091 + $0x2c0] sm:$0xff] %v1444
        %v1446 = vld [vmem:[%s1090 + $0x2e0] sm:$0xff]
        %1447 = vst [vmem:[%s1091 + $0x2c4] sm:$0xff] %v1446
        %v1448 = vld [vmem:[%s1090 + $0x2c4] sm:$0xff]
        %1449 = vst [vmem:[%s1091 + $0x2c8] sm:$0xff] %v1448
        %v1450 = vld [vmem:[%s1090 + $0x2e4] sm:$0xff]
        %1451 = vst [vmem:[%s1091 + $0x2cc] sm:$0xff] %v1450
        %v1452 = vld [vmem:[%s1090 + $0x2c8] sm:$0xff]
        %1453 = vst [vmem:[%s1091 + $0x2d0] sm:$0xff] %v1452
        %v1454 = vld [vmem:[%s1090 + $0x2e8] sm:$0xff]
        %1455 = vst [vmem:[%s1091 + $0x2d4] sm:$0xff] %v1454
        %v1456 = vld [vmem:[%s1090 + $0x2cc] sm:$0xff]
        %1457 = vst [vmem:[%s1091 + $0x2d8] sm:$0xff] %v1456
        %v1458 = vld [vmem:[%s1090 + $0x2ec] sm:$0xff]
        %1459 = vst [vmem:[%s1091 + $0x2dc] sm:$0xff] %v1458
        %v1460 = vld [vmem:[%s1090 + $0x2d0] sm:$0xff]
        %1461 = vst [vmem:[%s1091 + $0x2e0] sm:$0xff] %v1460
        %v1462 = vld [vmem:[%s1090 + $0x2f0] sm:$0xff]
        %1463 = vst [vmem:[%s1091 + $0x2e4] sm:$0xff] %v1462
        %v1464 = vld [vmem:[%s1090 + $0x2d4] sm:$0xff]
        %1465 = vst [vmem:[%s1091 + $0x2e8] sm:$0xff] %v1464
        %v1466 = vld [vmem:[%s1090 + $0x2f4] sm:$0xff]
        %1467 = vst [vmem:[%s1091 + $0x2ec] sm:$0xff] %v1466
        %v1468 = vld [vmem:[%s1090 + $0x2d8] sm:$0xff]
        %1469 = vst [vmem:[%s1091 + $0x2f0] sm:$0xff] %v1468
        %v1470 = vld [vmem:[%s1090 + $0x2f8] sm:$0xff]
        %1471 = vst [vmem:[%s1091 + $0x2f4] sm:$0xff] %v1470
        %v1472 = vld [vmem:[%s1090 + $0x2dc] sm:$0xff]
        %1473 = vst [vmem:[%s1091 + $0x2f8] sm:$0xff] %v1472
        %v1474 = vld [vmem:[%s1090 + $0x2fc] sm:$0xff]
        %1475 = vst [vmem:[%s1091 + $0x2fc] sm:$0xff] %v1474
        %v1476 = vld [vmem:[%s1090 + $0x300] sm:$0xff]
        %1477 = vst [vmem:[%s1091 + $0x300] sm:$0xff] %v1476
        %v1478 = vld [vmem:[%s1090 + $0x320] sm:$0xff]
        %1479 = vst [vmem:[%s1091 + $0x304] sm:$0xff] %v1478
        %v1480 = vld [vmem:[%s1090 + $0x304] sm:$0xff]
        %1481 = vst [vmem:[%s1091 + $0x308] sm:$0xff] %v1480
        %v1482 = vld [vmem:[%s1090 + $0x324] sm:$0xff]
        %1483 = vst [vmem:[%s1091 + $0x30c] sm:$0xff] %v1482
        %v1484 = vld [vmem:[%s1090 + $0x308] sm:$0xff]
        %1485 = vst [vmem:[%s1091 + $0x310] sm:$0xff] %v1484
        %v1486 = vld [vmem:[%s1090 + $0x328] sm:$0xff]
        %1487 = vst [vmem:[%s1091 + $0x314] sm:$0xff] %v1486
        %v1488 = vld [vmem:[%s1090 + $0x30c] sm:$0xff]
        %1489 = vst [vmem:[%s1091 + $0x318] sm:$0xff] %v1488
        %v1490 = vld [vmem:[%s1090 + $0x32c] sm:$0xff]
        %1491 = vst [vmem:[%s1091 + $0x31c] sm:$0xff] %v1490
        %v1492 = vld [vmem:[%s1090 + $0x310] sm:$0xff]
        %1493 = vst [vmem:[%s1091 + $0x320] sm:$0xff] %v1492
        %v1494 = vld [vmem:[%s1090 + $0x330] sm:$0xff]
        %1495 = vst [vmem:[%s1091 + $0x324] sm:$0xff] %v1494
        %v1496 = vld [vmem:[%s1090 + $0x314] sm:$0xff]
        %1497 = vst [vmem:[%s1091 + $0x328] sm:$0xff] %v1496
        %v1498 = vld [vmem:[%s1090 + $0x334] sm:$0xff]
        %1499 = vst [vmem:[%s1091 + $0x32c] sm:$0xff] %v1498
        %v1500 = vld [vmem:[%s1090 + $0x318] sm:$0xff]
        %1501 = vst [vmem:[%s1091 + $0x330] sm:$0xff] %v1500
        %v1502 = vld [vmem:[%s1090 + $0x338] sm:$0xff]
        %1503 = vst [vmem:[%s1091 + $0x334] sm:$0xff] %v1502
        %v1504 = vld [vmem:[%s1090 + $0x31c] sm:$0xff]
        %1505 = vst [vmem:[%s1091 + $0x338] sm:$0xff] %v1504
        %v1506 = vld [vmem:[%s1090 + $0x33c] sm:$0xff]
        %1507 = vst [vmem:[%s1091 + $0x33c] sm:$0xff] %v1506
        %v1508 = vld [vmem:[%s1090 + $0x340] sm:$0xff]
        %1509 = vst [vmem:[%s1091 + $0x340] sm:$0xff] %v1508
        %v1510 = vld [vmem:[%s1090 + $0x360] sm:$0xff]
        %1511 = vst [vmem:[%s1091 + $0x344] sm:$0xff] %v1510
        %v1512 = vld [vmem:[%s1090 + $0x344] sm:$0xff]
        %1513 = vst [vmem:[%s1091 + $0x348] sm:$0xff] %v1512
        %v1514 = vld [vmem:[%s1090 + $0x364] sm:$0xff]
        %1515 = vst [vmem:[%s1091 + $0x34c] sm:$0xff] %v1514
        %v1516 = vld [vmem:[%s1090 + $0x348] sm:$0xff]
        %1517 = vst [vmem:[%s1091 + $0x350] sm:$0xff] %v1516
        %v1518 = vld [vmem:[%s1090 + $0x368] sm:$0xff]
        %1519 = vst [vmem:[%s1091 + $0x354] sm:$0xff] %v1518
        %v1520 = vld [vmem:[%s1090 + $0x34c] sm:$0xff]
        %1521 = vst [vmem:[%s1091 + $0x358] sm:$0xff] %v1520
        %v1522 = vld [vmem:[%s1090 + $0x36c] sm:$0xff]
        %1523 = vst [vmem:[%s1091 + $0x35c] sm:$0xff] %v1522
        %v1524 = vld [vmem:[%s1090 + $0x350] sm:$0xff]
        %1525 = vst [vmem:[%s1091 + $0x360] sm:$0xff] %v1524
        %v1526 = vld [vmem:[%s1090 + $0x370] sm:$0xff]
        %1527 = vst [vmem:[%s1091 + $0x364] sm:$0xff] %v1526
        %v1528 = vld [vmem:[%s1090 + $0x354] sm:$0xff]
        %1529 = vst [vmem:[%s1091 + $0x368] sm:$0xff] %v1528
        %v1530 = vld [vmem:[%s1090 + $0x374] sm:$0xff]
        %1531 = vst [vmem:[%s1091 + $0x36c] sm:$0xff] %v1530
        %v1532 = vld [vmem:[%s1090 + $0x358] sm:$0xff]
        %1533 = vst [vmem:[%s1091 + $0x370] sm:$0xff] %v1532
        %v1534 = vld [vmem:[%s1090 + $0x378] sm:$0xff]
        %1535 = vst [vmem:[%s1091 + $0x374] sm:$0xff] %v1534
        %v1536 = vld [vmem:[%s1090 + $0x35c] sm:$0xff]
        %1537 = vst [vmem:[%s1091 + $0x378] sm:$0xff] %v1536
        %v1538 = vld [vmem:[%s1090 + $0x37c] sm:$0xff]
        %1539 = vst [vmem:[%s1091 + $0x37c] sm:$0xff] %v1538
        %v1540 = vld [vmem:[%s1090 + $0x380] sm:$0xff]
        %1541 = vst [vmem:[%s1091 + $0x380] sm:$0xff] %v1540
        %v1542 = vld [vmem:[%s1090 + $0x3a0] sm:$0xff]
        %1543 = vst [vmem:[%s1091 + $0x384] sm:$0xff] %v1542
        %v1544 = vld [vmem:[%s1090 + $0x384] sm:$0xff]
        %1545 = vst [vmem:[%s1091 + $0x388] sm:$0xff] %v1544
        %v1546 = vld [vmem:[%s1090 + $0x3a4] sm:$0xff]
        %1547 = vst [vmem:[%s1091 + $0x38c] sm:$0xff] %v1546
        %v1548 = vld [vmem:[%s1090 + $0x388] sm:$0xff]
        %1549 = vst [vmem:[%s1091 + $0x390] sm:$0xff] %v1548
        %v1550 = vld [vmem:[%s1090 + $0x3a8] sm:$0xff]
        %1551 = vst [vmem:[%s1091 + $0x394] sm:$0xff] %v1550
        %v1552 = vld [vmem:[%s1090 + $0x38c] sm:$0xff]
        %1553 = vst [vmem:[%s1091 + $0x398] sm:$0xff] %v1552
        %v1554 = vld [vmem:[%s1090 + $0x3ac] sm:$0xff]
        %1555 = vst [vmem:[%s1091 + $0x39c] sm:$0xff] %v1554
        %v1556 = vld [vmem:[%s1090 + $0x390] sm:$0xff]
        %1557 = vst [vmem:[%s1091 + $0x3a0] sm:$0xff] %v1556
        %v1558 = vld [vmem:[%s1090 + $0x3b0] sm:$0xff]
        %1559 = vst [vmem:[%s1091 + $0x3a4] sm:$0xff] %v1558
        %v1560 = vld [vmem:[%s1090 + $0x394] sm:$0xff]
        %1561 = vst [vmem:[%s1091 + $0x3a8] sm:$0xff] %v1560
        %v1562 = vld [vmem:[%s1090 + $0x3b4] sm:$0xff]
        %1563 = vst [vmem:[%s1091 + $0x3ac] sm:$0xff] %v1562
        %v1564 = vld [vmem:[%s1090 + $0x398] sm:$0xff]
        %1565 = vst [vmem:[%s1091 + $0x3b0] sm:$0xff] %v1564
        %v1566 = vld [vmem:[%s1090 + $0x3b8] sm:$0xff]
        %1567 = vst [vmem:[%s1091 + $0x3b4] sm:$0xff] %v1566
        %v1568 = vld [vmem:[%s1090 + $0x39c] sm:$0xff]
        %1569 = vst [vmem:[%s1091 + $0x3b8] sm:$0xff] %v1568
        %v1570 = vld [vmem:[%s1090 + $0x3bc] sm:$0xff]
        %1571 = vst [vmem:[%s1091 + $0x3bc] sm:$0xff] %v1570
        %v1572 = vld [vmem:[%s1090 + $0x3c0] sm:$0xff]
        %1573 = vst [vmem:[%s1091 + $0x3c0] sm:$0xff] %v1572
        %v1574 = vld [vmem:[%s1090 + $0x3e0] sm:$0xff]
        %1575 = vst [vmem:[%s1091 + $0x3c4] sm:$0xff] %v1574
        %v1576 = vld [vmem:[%s1090 + $0x3c4] sm:$0xff]
        %1577 = vst [vmem:[%s1091 + $0x3c8] sm:$0xff] %v1576
        %v1578 = vld [vmem:[%s1090 + $0x3e4] sm:$0xff]
        %1579 = vst [vmem:[%s1091 + $0x3cc] sm:$0xff] %v1578
        %v1580 = vld [vmem:[%s1090 + $0x3c8] sm:$0xff]
        %1581 = vst [vmem:[%s1091 + $0x3d0] sm:$0xff] %v1580
        %v1582 = vld [vmem:[%s1090 + $0x3e8] sm:$0xff]
        %1583 = vst [vmem:[%s1091 + $0x3d4] sm:$0xff] %v1582
        %v1584 = vld [vmem:[%s1090 + $0x3cc] sm:$0xff]
        %1585 = vst [vmem:[%s1091 + $0x3d8] sm:$0xff] %v1584
        %v1586 = vld [vmem:[%s1090 + $0x3ec] sm:$0xff]
        %1587 = vst [vmem:[%s1091 + $0x3dc] sm:$0xff] %v1586
        %v1588 = vld [vmem:[%s1090 + $0x3d0] sm:$0xff]
        %1589 = vst [vmem:[%s1091 + $0x3e0] sm:$0xff] %v1588
        %v1590 = vld [vmem:[%s1090 + $0x3f0] sm:$0xff]
        %1591 = vst [vmem:[%s1091 + $0x3e4] sm:$0xff] %v1590
        %v1592 = vld [vmem:[%s1090 + $0x3d4] sm:$0xff]
        %1593 = vst [vmem:[%s1091 + $0x3e8] sm:$0xff] %v1592
        %v1594 = vld [vmem:[%s1090 + $0x3f4] sm:$0xff]
        %1595 = vst [vmem:[%s1091 + $0x3ec] sm:$0xff] %v1594
        %v1596 = vld [vmem:[%s1090 + $0x3d8] sm:$0xff]
        %1597 = vst [vmem:[%s1091 + $0x3f0] sm:$0xff] %v1596
        %v1598 = vld [vmem:[%s1090 + $0x3f8] sm:$0xff]
        %1599 = vst [vmem:[%s1091 + $0x3f4] sm:$0xff] %v1598
        %v1600 = vld [vmem:[%s1090 + $0x3dc] sm:$0xff]
        %1601 = vst [vmem:[%s1091 + $0x3f8] sm:$0xff] %v1600
        %v1602 = vld [vmem:[%s1090 + $0x3fc] sm:$0xff]
        %1603 = vst [vmem:[%s1091 + $0x3fc] sm:$0xff] %v1602
        %v1604 = vld [vmem:[%s1090 + $0x400] sm:$0xff]
        %1605 = vst [vmem:[%s1091 + $0x400] sm:$0xff] %v1604
        %v1606 = vld [vmem:[%s1090 + $0x420] sm:$0xff]
        %1607 = vst [vmem:[%s1091 + $0x404] sm:$0xff] %v1606
        %v1608 = vld [vmem:[%s1090 + $0x404] sm:$0xff]
        %1609 = vst [vmem:[%s1091 + $0x408] sm:$0xff] %v1608
        %v1610 = vld [vmem:[%s1090 + $0x424] sm:$0xff]
        %1611 = vst [vmem:[%s1091 + $0x40c] sm:$0xff] %v1610
        %v1612 = vld [vmem:[%s1090 + $0x408] sm:$0xff]
        %1613 = vst [vmem:[%s1091 + $0x410] sm:$0xff] %v1612
        %v1614 = vld [vmem:[%s1090 + $0x428] sm:$0xff]
        %1615 = vst [vmem:[%s1091 + $0x414] sm:$0xff] %v1614
        %v1616 = vld [vmem:[%s1090 + $0x40c] sm:$0xff]
        %1617 = vst [vmem:[%s1091 + $0x418] sm:$0xff] %v1616
        %v1618 = vld [vmem:[%s1090 + $0x42c] sm:$0xff]
        %1619 = vst [vmem:[%s1091 + $0x41c] sm:$0xff] %v1618
        %v1620 = vld [vmem:[%s1090 + $0x410] sm:$0xff]
        %1621 = vst [vmem:[%s1091 + $0x420] sm:$0xff] %v1620
        %v1622 = vld [vmem:[%s1090 + $0x430] sm:$0xff]
        %1623 = vst [vmem:[%s1091 + $0x424] sm:$0xff] %v1622
        %v1624 = vld [vmem:[%s1090 + $0x414] sm:$0xff]
        %1625 = vst [vmem:[%s1091 + $0x428] sm:$0xff] %v1624
        %v1626 = vld [vmem:[%s1090 + $0x434] sm:$0xff]
        %1627 = vst [vmem:[%s1091 + $0x42c] sm:$0xff] %v1626
        %v1628 = vld [vmem:[%s1090 + $0x418] sm:$0xff]
        %1629 = vst [vmem:[%s1091 + $0x430] sm:$0xff] %v1628
        %v1630 = vld [vmem:[%s1090 + $0x438] sm:$0xff]
        %1631 = vst [vmem:[%s1091 + $0x434] sm:$0xff] %v1630
        %v1632 = vld [vmem:[%s1090 + $0x41c] sm:$0xff]
        %1633 = vst [vmem:[%s1091 + $0x438] sm:$0xff] %v1632
        %v1634 = vld [vmem:[%s1090 + $0x43c] sm:$0xff]
        %1635 = vst [vmem:[%s1091 + $0x43c] sm:$0xff] %v1634
        %v1636 = vld [vmem:[%s1090 + $0x440] sm:$0xff]
        %1637 = vst [vmem:[%s1091 + $0x440] sm:$0xff] %v1636
        %v1638 = vld [vmem:[%s1090 + $0x460] sm:$0xff]
        %1639 = vst [vmem:[%s1091 + $0x444] sm:$0xff] %v1638
        %v1640 = vld [vmem:[%s1090 + $0x444] sm:$0xff]
        %1641 = vst [vmem:[%s1091 + $0x448] sm:$0xff] %v1640
        %v1642 = vld [vmem:[%s1090 + $0x464] sm:$0xff]
        %1643 = vst [vmem:[%s1091 + $0x44c] sm:$0xff] %v1642
        %v1644 = vld [vmem:[%s1090 + $0x448] sm:$0xff]
        %1645 = vst [vmem:[%s1091 + $0x450] sm:$0xff] %v1644
        %v1646 = vld [vmem:[%s1090 + $0x468] sm:$0xff]
        %1647 = vst [vmem:[%s1091 + $0x454] sm:$0xff] %v1646
        %v1648 = vld [vmem:[%s1090 + $0x44c] sm:$0xff]
        %1649 = vst [vmem:[%s1091 + $0x458] sm:$0xff] %v1648
        %v1650 = vld [vmem:[%s1090 + $0x46c] sm:$0xff]
        %1651 = vst [vmem:[%s1091 + $0x45c] sm:$0xff] %v1650
        %v1652 = vld [vmem:[%s1090 + $0x450] sm:$0xff]
        %1653 = vst [vmem:[%s1091 + $0x460] sm:$0xff] %v1652
        %v1654 = vld [vmem:[%s1090 + $0x470] sm:$0xff]
        %1655 = vst [vmem:[%s1091 + $0x464] sm:$0xff] %v1654
        %v1656 = vld [vmem:[%s1090 + $0x454] sm:$0xff]
        %1657 = vst [vmem:[%s1091 + $0x468] sm:$0xff] %v1656
        %v1658 = vld [vmem:[%s1090 + $0x474] sm:$0xff]
        %1659 = vst [vmem:[%s1091 + $0x46c] sm:$0xff] %v1658
        %v1660 = vld [vmem:[%s1090 + $0x458] sm:$0xff]
        %1661 = vst [vmem:[%s1091 + $0x470] sm:$0xff] %v1660
        %v1662 = vld [vmem:[%s1090 + $0x478] sm:$0xff]
        %1663 = vst [vmem:[%s1091 + $0x474] sm:$0xff] %v1662
        %v1664 = vld [vmem:[%s1090 + $0x45c] sm:$0xff]
        %1665 = vst [vmem:[%s1091 + $0x478] sm:$0xff] %v1664
        %v1666 = vld [vmem:[%s1090 + $0x47c] sm:$0xff]
        %1667 = vst [vmem:[%s1091 + $0x47c] sm:$0xff] %v1666
        %v1668 = vld [vmem:[%s1090 + $0x480] sm:$0xff]
        %1669 = vst [vmem:[%s1091 + $0x480] sm:$0xff] %v1668
        %v1670 = vld [vmem:[%s1090 + $0x4a0] sm:$0xff]
        %1671 = vst [vmem:[%s1091 + $0x484] sm:$0xff] %v1670
        %v1672 = vld [vmem:[%s1090 + $0x484] sm:$0xff]
        %1673 = vst [vmem:[%s1091 + $0x488] sm:$0xff] %v1672
        %v1674 = vld [vmem:[%s1090 + $0x4a4] sm:$0xff]
        %1675 = vst [vmem:[%s1091 + $0x48c] sm:$0xff] %v1674
        %v1676 = vld [vmem:[%s1090 + $0x488] sm:$0xff]
        %1677 = vst [vmem:[%s1091 + $0x490] sm:$0xff] %v1676
        %v1678 = vld [vmem:[%s1090 + $0x4a8] sm:$0xff]
        %1679 = vst [vmem:[%s1091 + $0x494] sm:$0xff] %v1678
        %v1680 = vld [vmem:[%s1090 + $0x48c] sm:$0xff]
        %1681 = vst [vmem:[%s1091 + $0x498] sm:$0xff] %v1680
        %v1682 = vld [vmem:[%s1090 + $0x4ac] sm:$0xff]
        %1683 = vst [vmem:[%s1091 + $0x49c] sm:$0xff] %v1682
        %v1684 = vld [vmem:[%s1090 + $0x490] sm:$0xff]
        %1685 = vst [vmem:[%s1091 + $0x4a0] sm:$0xff] %v1684
        %v1686 = vld [vmem:[%s1090 + $0x4b0] sm:$0xff]
        %1687 = vst [vmem:[%s1091 + $0x4a4] sm:$0xff] %v1686
        %v1688 = vld [vmem:[%s1090 + $0x494] sm:$0xff]
        %1689 = vst [vmem:[%s1091 + $0x4a8] sm:$0xff] %v1688
        %v1690 = vld [vmem:[%s1090 + $0x4b4] sm:$0xff]
        %1691 = vst [vmem:[%s1091 + $0x4ac] sm:$0xff] %v1690
        %v1692 = vld [vmem:[%s1090 + $0x498] sm:$0xff]
        %1693 = vst [vmem:[%s1091 + $0x4b0] sm:$0xff] %v1692
        %v1694 = vld [vmem:[%s1090 + $0x4b8] sm:$0xff]
        %1695 = vst [vmem:[%s1091 + $0x4b4] sm:$0xff] %v1694
        %v1696 = vld [vmem:[%s1090 + $0x49c] sm:$0xff]
        %1697 = vst [vmem:[%s1091 + $0x4b8] sm:$0xff] %v1696
        %v1698 = vld [vmem:[%s1090 + $0x4bc] sm:$0xff]
        %1699 = vst [vmem:[%s1091 + $0x4bc] sm:$0xff] %v1698
        %v1700 = vld [vmem:[%s1090 + $0x4c0] sm:$0xff]
        %1701 = vst [vmem:[%s1091 + $0x4c0] sm:$0xff] %v1700
        %v1702 = vld [vmem:[%s1090 + $0x4e0] sm:$0xff]
        %1703 = vst [vmem:[%s1091 + $0x4c4] sm:$0xff] %v1702
        %v1704 = vld [vmem:[%s1090 + $0x4c4] sm:$0xff]
        %1705 = vst [vmem:[%s1091 + $0x4c8] sm:$0xff] %v1704
        %v1706 = vld [vmem:[%s1090 + $0x4e4] sm:$0xff]
        %1707 = vst [vmem:[%s1091 + $0x4cc] sm:$0xff] %v1706
        %v1708 = vld [vmem:[%s1090 + $0x4c8] sm:$0xff]
        %1709 = vst [vmem:[%s1091 + $0x4d0] sm:$0xff] %v1708
        %v1710 = vld [vmem:[%s1090 + $0x4e8] sm:$0xff]
        %1711 = vst [vmem:[%s1091 + $0x4d4] sm:$0xff] %v1710
        %v1712 = vld [vmem:[%s1090 + $0x4cc] sm:$0xff]
        %1713 = vst [vmem:[%s1091 + $0x4d8] sm:$0xff] %v1712
        %v1714 = vld [vmem:[%s1090 + $0x4ec] sm:$0xff]
        %1715 = vst [vmem:[%s1091 + $0x4dc] sm:$0xff] %v1714
        %v1716 = vld [vmem:[%s1090 + $0x4d0] sm:$0xff]
        %1717 = vst [vmem:[%s1091 + $0x4e0] sm:$0xff] %v1716
        %v1718 = vld [vmem:[%s1090 + $0x4f0] sm:$0xff]
        %1719 = vst [vmem:[%s1091 + $0x4e4] sm:$0xff] %v1718
        %v1720 = vld [vmem:[%s1090 + $0x4d4] sm:$0xff]
        %1721 = vst [vmem:[%s1091 + $0x4e8] sm:$0xff] %v1720
        %v1722 = vld [vmem:[%s1090 + $0x4f4] sm:$0xff]
        %1723 = vst [vmem:[%s1091 + $0x4ec] sm:$0xff] %v1722
        %v1724 = vld [vmem:[%s1090 + $0x4d8] sm:$0xff]
        %1725 = vst [vmem:[%s1091 + $0x4f0] sm:$0xff] %v1724
        %v1726 = vld [vmem:[%s1090 + $0x4f8] sm:$0xff]
        %1727 = vst [vmem:[%s1091 + $0x4f4] sm:$0xff] %v1726
        %v1728 = vld [vmem:[%s1090 + $0x4dc] sm:$0xff]
        %1729 = vst [vmem:[%s1091 + $0x4f8] sm:$0xff] %v1728
        %v1730 = vld [vmem:[%s1090 + $0x4fc] sm:$0xff]
        %1731 = vst [vmem:[%s1091 + $0x4fc] sm:$0xff] %v1730
        %v1732 = vld [vmem:[%s1090 + $0x500] sm:$0xff]
        %1733 = vst [vmem:[%s1091 + $0x500] sm:$0xff] %v1732
        %v1734 = vld [vmem:[%s1090 + $0x520] sm:$0xff]
        %1735 = vst [vmem:[%s1091 + $0x504] sm:$0xff] %v1734
        %v1736 = vld [vmem:[%s1090 + $0x504] sm:$0xff]
        %1737 = vst [vmem:[%s1091 + $0x508] sm:$0xff] %v1736
        %v1738 = vld [vmem:[%s1090 + $0x524] sm:$0xff]
        %1739 = vst [vmem:[%s1091 + $0x50c] sm:$0xff] %v1738
        %v1740 = vld [vmem:[%s1090 + $0x508] sm:$0xff]
        %1741 = vst [vmem:[%s1091 + $0x510] sm:$0xff] %v1740
        %v1742 = vld [vmem:[%s1090 + $0x528] sm:$0xff]
        %1743 = vst [vmem:[%s1091 + $0x514] sm:$0xff] %v1742
        %v1744 = vld [vmem:[%s1090 + $0x50c] sm:$0xff]
        %1745 = vst [vmem:[%s1091 + $0x518] sm:$0xff] %v1744
        %v1746 = vld [vmem:[%s1090 + $0x52c] sm:$0xff]
        %1747 = vst [vmem:[%s1091 + $0x51c] sm:$0xff] %v1746
        %v1748 = vld [vmem:[%s1090 + $0x510] sm:$0xff]
        %1749 = vst [vmem:[%s1091 + $0x520] sm:$0xff] %v1748
        %v1750 = vld [vmem:[%s1090 + $0x530] sm:$0xff]
        %1751 = vst [vmem:[%s1091 + $0x524] sm:$0xff] %v1750
        %v1752 = vld [vmem:[%s1090 + $0x514] sm:$0xff]
        %1753 = vst [vmem:[%s1091 + $0x528] sm:$0xff] %v1752
        %v1754 = vld [vmem:[%s1090 + $0x534] sm:$0xff]
        %1755 = vst [vmem:[%s1091 + $0x52c] sm:$0xff] %v1754
        %v1756 = vld [vmem:[%s1090 + $0x518] sm:$0xff]
        %1757 = vst [vmem:[%s1091 + $0x530] sm:$0xff] %v1756
        %v1758 = vld [vmem:[%s1090 + $0x538] sm:$0xff]
        %1759 = vst [vmem:[%s1091 + $0x534] sm:$0xff] %v1758
        %v1760 = vld [vmem:[%s1090 + $0x51c] sm:$0xff]
        %1761 = vst [vmem:[%s1091 + $0x538] sm:$0xff] %v1760
        %v1762 = vld [vmem:[%s1090 + $0x53c] sm:$0xff]
        %1763 = vst [vmem:[%s1091 + $0x53c] sm:$0xff] %v1762
        %v1764 = vld [vmem:[%s1090 + $0x540] sm:$0xff]
        %1765 = vst [vmem:[%s1091 + $0x540] sm:$0xff] %v1764
        %v1766 = vld [vmem:[%s1090 + $0x560] sm:$0xff]
        %1767 = vst [vmem:[%s1091 + $0x544] sm:$0xff] %v1766
        %v1768 = vld [vmem:[%s1090 + $0x544] sm:$0xff]
        %1769 = vst [vmem:[%s1091 + $0x548] sm:$0xff] %v1768
        %v1770 = vld [vmem:[%s1090 + $0x564] sm:$0xff]
        %1771 = vst [vmem:[%s1091 + $0x54c] sm:$0xff] %v1770
        %v1772 = vld [vmem:[%s1090 + $0x548] sm:$0xff]
        %1773 = vst [vmem:[%s1091 + $0x550] sm:$0xff] %v1772
        %v1774 = vld [vmem:[%s1090 + $0x568] sm:$0xff]
        %1775 = vst [vmem:[%s1091 + $0x554] sm:$0xff] %v1774
        %v1776 = vld [vmem:[%s1090 + $0x54c] sm:$0xff]
        %1777 = vst [vmem:[%s1091 + $0x558] sm:$0xff] %v1776
        %v1778 = vld [vmem:[%s1090 + $0x56c] sm:$0xff]
        %1779 = vst [vmem:[%s1091 + $0x55c] sm:$0xff] %v1778
        %v1780 = vld [vmem:[%s1090 + $0x550] sm:$0xff]
        %1781 = vst [vmem:[%s1091 + $0x560] sm:$0xff] %v1780
        %v1782 = vld [vmem:[%s1090 + $0x570] sm:$0xff]
        %1783 = vst [vmem:[%s1091 + $0x564] sm:$0xff] %v1782
        %v1784 = vld [vmem:[%s1090 + $0x554] sm:$0xff]
        %1785 = vst [vmem:[%s1091 + $0x568] sm:$0xff] %v1784
        %v1786 = vld [vmem:[%s1090 + $0x574] sm:$0xff]
        %1787 = vst [vmem:[%s1091 + $0x56c] sm:$0xff] %v1786
        %v1788 = vld [vmem:[%s1090 + $0x558] sm:$0xff]
        %1789 = vst [vmem:[%s1091 + $0x570] sm:$0xff] %v1788
        %v1790 = vld [vmem:[%s1090 + $0x578] sm:$0xff]
        %1791 = vst [vmem:[%s1091 + $0x574] sm:$0xff] %v1790
        %v1792 = vld [vmem:[%s1090 + $0x55c] sm:$0xff]
        %1793 = vst [vmem:[%s1091 + $0x578] sm:$0xff] %v1792
        %v1794 = vld [vmem:[%s1090 + $0x57c] sm:$0xff]
        %1795 = vst [vmem:[%s1091 + $0x57c] sm:$0xff] %v1794
        %v1796 = vld [vmem:[%s1090 + $0x580] sm:$0xff]
        %1797 = vst [vmem:[%s1091 + $0x580] sm:$0xff] %v1796
        %v1798 = vld [vmem:[%s1090 + $0x5a0] sm:$0xff]
        %1799 = vst [vmem:[%s1091 + $0x584] sm:$0xff] %v1798
        %v1800 = vld [vmem:[%s1090 + $0x584] sm:$0xff]
        %1801 = vst [vmem:[%s1091 + $0x588] sm:$0xff] %v1800
        %v1802 = vld [vmem:[%s1090 + $0x5a4] sm:$0xff]
        %1803 = vst [vmem:[%s1091 + $0x58c] sm:$0xff] %v1802
        %v1804 = vld [vmem:[%s1090 + $0x588] sm:$0xff]
        %1805 = vst [vmem:[%s1091 + $0x590] sm:$0xff] %v1804
        %v1806 = vld [vmem:[%s1090 + $0x5a8] sm:$0xff]
        %1807 = vst [vmem:[%s1091 + $0x594] sm:$0xff] %v1806
        %v1808 = vld [vmem:[%s1090 + $0x58c] sm:$0xff]
        %1809 = vst [vmem:[%s1091 + $0x598] sm:$0xff] %v1808
        %v1810 = vld [vmem:[%s1090 + $0x5ac] sm:$0xff]
        %1811 = vst [vmem:[%s1091 + $0x59c] sm:$0xff] %v1810
        %v1812 = vld [vmem:[%s1090 + $0x590] sm:$0xff]
        %1813 = vst [vmem:[%s1091 + $0x5a0] sm:$0xff] %v1812
        %v1814 = vld [vmem:[%s1090 + $0x5b0] sm:$0xff]
        %1815 = vst [vmem:[%s1091 + $0x5a4] sm:$0xff] %v1814
        %v1816 = vld [vmem:[%s1090 + $0x594] sm:$0xff]
        %1817 = vst [vmem:[%s1091 + $0x5a8] sm:$0xff] %v1816
        %v1818 = vld [vmem:[%s1090 + $0x5b4] sm:$0xff]
        %1819 = vst [vmem:[%s1091 + $0x5ac] sm:$0xff] %v1818
        %v1820 = vld [vmem:[%s1090 + $0x598] sm:$0xff]
        %1821 = vst [vmem:[%s1091 + $0x5b0] sm:$0xff] %v1820
        %v1822 = vld [vmem:[%s1090 + $0x5b8] sm:$0xff]
        %1823 = vst [vmem:[%s1091 + $0x5b4] sm:$0xff] %v1822
        %v1824 = vld [vmem:[%s1090 + $0x59c] sm:$0xff]
        %1825 = vst [vmem:[%s1091 + $0x5b8] sm:$0xff] %v1824
        %v1826 = vld [vmem:[%s1090 + $0x5bc] sm:$0xff]
        %1827 = vst [vmem:[%s1091 + $0x5bc] sm:$0xff] %v1826
        %v1828 = vld [vmem:[%s1090 + $0x5c0] sm:$0xff]
        %1829 = vst [vmem:[%s1091 + $0x5c0] sm:$0xff] %v1828
        %v1830 = vld [vmem:[%s1090 + $0x5e0] sm:$0xff]
        %1831 = vst [vmem:[%s1091 + $0x5c4] sm:$0xff] %v1830
        %v1832 = vld [vmem:[%s1090 + $0x5c4] sm:$0xff]
        %1833 = vst [vmem:[%s1091 + $0x5c8] sm:$0xff] %v1832
        %v1834 = vld [vmem:[%s1090 + $0x5e4] sm:$0xff]
        %1835 = vst [vmem:[%s1091 + $0x5cc] sm:$0xff] %v1834
        %v1836 = vld [vmem:[%s1090 + $0x5c8] sm:$0xff]
        %1837 = vst [vmem:[%s1091 + $0x5d0] sm:$0xff] %v1836
        %v1838 = vld [vmem:[%s1090 + $0x5e8] sm:$0xff]
        %1839 = vst [vmem:[%s1091 + $0x5d4] sm:$0xff] %v1838
        %v1840 = vld [vmem:[%s1090 + $0x5cc] sm:$0xff]
        %1841 = vst [vmem:[%s1091 + $0x5d8] sm:$0xff] %v1840
        %v1842 = vld [vmem:[%s1090 + $0x5ec] sm:$0xff]
        %1843 = vst [vmem:[%s1091 + $0x5dc] sm:$0xff] %v1842
        %v1844 = vld [vmem:[%s1090 + $0x5d0] sm:$0xff]
        %1845 = vst [vmem:[%s1091 + $0x5e0] sm:$0xff] %v1844
        %v1846 = vld [vmem:[%s1090 + $0x5f0] sm:$0xff]
        %1847 = vst [vmem:[%s1091 + $0x5e4] sm:$0xff] %v1846
        %v1848 = vld [vmem:[%s1090 + $0x5d4] sm:$0xff]
        %1849 = vst [vmem:[%s1091 + $0x5e8] sm:$0xff] %v1848
        %v1850 = vld [vmem:[%s1090 + $0x5f4] sm:$0xff]
        %1851 = vst [vmem:[%s1091 + $0x5ec] sm:$0xff] %v1850
        %v1852 = vld [vmem:[%s1090 + $0x5d8] sm:$0xff]
        %1853 = vst [vmem:[%s1091 + $0x5f0] sm:$0xff] %v1852
        %v1854 = vld [vmem:[%s1090 + $0x5f8] sm:$0xff]
        %1855 = vst [vmem:[%s1091 + $0x5f4] sm:$0xff] %v1854
        %v1856 = vld [vmem:[%s1090 + $0x5dc] sm:$0xff]
        %1857 = vst [vmem:[%s1091 + $0x5f8] sm:$0xff] %v1856
        %v1858 = vld [vmem:[%s1090 + $0x5fc] sm:$0xff]
        %1859 = vst [vmem:[%s1091 + $0x5fc] sm:$0xff] %v1858
        %v1860 = vld [vmem:[%s1090 + $0x600] sm:$0xff]
        %1861 = vst [vmem:[%s1091 + $0x600] sm:$0xff] %v1860
        %v1862 = vld [vmem:[%s1090 + $0x620] sm:$0xff]
        %1863 = vst [vmem:[%s1091 + $0x604] sm:$0xff] %v1862
        %v1864 = vld [vmem:[%s1090 + $0x604] sm:$0xff]
        %1865 = vst [vmem:[%s1091 + $0x608] sm:$0xff] %v1864
        %v1866 = vld [vmem:[%s1090 + $0x624] sm:$0xff]
        %1867 = vst [vmem:[%s1091 + $0x60c] sm:$0xff] %v1866
        %v1868 = vld [vmem:[%s1090 + $0x608] sm:$0xff]
        %1869 = vst [vmem:[%s1091 + $0x610] sm:$0xff] %v1868
        %v1870 = vld [vmem:[%s1090 + $0x628] sm:$0xff]
        %1871 = vst [vmem:[%s1091 + $0x614] sm:$0xff] %v1870
        %v1872 = vld [vmem:[%s1090 + $0x60c] sm:$0xff]
        %1873 = vst [vmem:[%s1091 + $0x618] sm:$0xff] %v1872
        %v1874 = vld [vmem:[%s1090 + $0x62c] sm:$0xff]
        %1875 = vst [vmem:[%s1091 + $0x61c] sm:$0xff] %v1874
        %v1876 = vld [vmem:[%s1090 + $0x610] sm:$0xff]
        %1877 = vst [vmem:[%s1091 + $0x620] sm:$0xff] %v1876
        %v1878 = vld [vmem:[%s1090 + $0x630] sm:$0xff]
        %1879 = vst [vmem:[%s1091 + $0x624] sm:$0xff] %v1878
        %v1880 = vld [vmem:[%s1090 + $0x614] sm:$0xff]
        %1881 = vst [vmem:[%s1091 + $0x628] sm:$0xff] %v1880
        %v1882 = vld [vmem:[%s1090 + $0x634] sm:$0xff]
        %1883 = vst [vmem:[%s1091 + $0x62c] sm:$0xff] %v1882
        %v1884 = vld [vmem:[%s1090 + $0x618] sm:$0xff]
        %1885 = vst [vmem:[%s1091 + $0x630] sm:$0xff] %v1884
        %v1886 = vld [vmem:[%s1090 + $0x638] sm:$0xff]
        %1887 = vst [vmem:[%s1091 + $0x634] sm:$0xff] %v1886
        %v1888 = vld [vmem:[%s1090 + $0x61c] sm:$0xff]
        %1889 = vst [vmem:[%s1091 + $0x638] sm:$0xff] %v1888
        %v1890 = vld [vmem:[%s1090 + $0x63c] sm:$0xff]
        %1891 = vst [vmem:[%s1091 + $0x63c] sm:$0xff] %v1890
        %v1892 = vld [vmem:[%s1090 + $0x640] sm:$0xff]
        %1893 = vst [vmem:[%s1091 + $0x640] sm:$0xff] %v1892
        %v1894 = vld [vmem:[%s1090 + $0x660] sm:$0xff]
        %1895 = vst [vmem:[%s1091 + $0x644] sm:$0xff] %v1894
        %v1896 = vld [vmem:[%s1090 + $0x644] sm:$0xff]
        %1897 = vst [vmem:[%s1091 + $0x648] sm:$0xff] %v1896
        %v1898 = vld [vmem:[%s1090 + $0x664] sm:$0xff]
        %1899 = vst [vmem:[%s1091 + $0x64c] sm:$0xff] %v1898
        %v1900 = vld [vmem:[%s1090 + $0x648] sm:$0xff]
        %1901 = vst [vmem:[%s1091 + $0x650] sm:$0xff] %v1900
        %v1902 = vld [vmem:[%s1090 + $0x668] sm:$0xff]
        %1903 = vst [vmem:[%s1091 + $0x654] sm:$0xff] %v1902
        %v1904 = vld [vmem:[%s1090 + $0x64c] sm:$0xff]
        %1905 = vst [vmem:[%s1091 + $0x658] sm:$0xff] %v1904
        %v1906 = vld [vmem:[%s1090 + $0x66c] sm:$0xff]
        %1907 = vst [vmem:[%s1091 + $0x65c] sm:$0xff] %v1906
        %v1908 = vld [vmem:[%s1090 + $0x650] sm:$0xff]
        %1909 = vst [vmem:[%s1091 + $0x660] sm:$0xff] %v1908
        %v1910 = vld [vmem:[%s1090 + $0x670] sm:$0xff]
        %1911 = vst [vmem:[%s1091 + $0x664] sm:$0xff] %v1910
        %v1912 = vld [vmem:[%s1090 + $0x654] sm:$0xff]
        %1913 = vst [vmem:[%s1091 + $0x668] sm:$0xff] %v1912
        %v1914 = vld [vmem:[%s1090 + $0x674] sm:$0xff]
        %1915 = vst [vmem:[%s1091 + $0x66c] sm:$0xff] %v1914
        %v1916 = vld [vmem:[%s1090 + $0x658] sm:$0xff]
        %1917 = vst [vmem:[%s1091 + $0x670] sm:$0xff] %v1916
        %v1918 = vld [vmem:[%s1090 + $0x678] sm:$0xff]
        %1919 = vst [vmem:[%s1091 + $0x674] sm:$0xff] %v1918
        %v1920 = vld [vmem:[%s1090 + $0x65c] sm:$0xff]
        %1921 = vst [vmem:[%s1091 + $0x678] sm:$0xff] %v1920
        %v1922 = vld [vmem:[%s1090 + $0x67c] sm:$0xff]
        %1923 = vst [vmem:[%s1091 + $0x67c] sm:$0xff] %v1922
        %v1924 = vld [vmem:[%s1090 + $0x680] sm:$0xff]
        %1925 = vst [vmem:[%s1091 + $0x680] sm:$0xff] %v1924
        %v1926 = vld [vmem:[%s1090 + $0x6a0] sm:$0xff]
        %1927 = vst [vmem:[%s1091 + $0x684] sm:$0xff] %v1926
        %v1928 = vld [vmem:[%s1090 + $0x684] sm:$0xff]
        %1929 = vst [vmem:[%s1091 + $0x688] sm:$0xff] %v1928
        %v1930 = vld [vmem:[%s1090 + $0x6a4] sm:$0xff]
        %1931 = vst [vmem:[%s1091 + $0x68c] sm:$0xff] %v1930
        %v1932 = vld [vmem:[%s1090 + $0x688] sm:$0xff]
        %1933 = vst [vmem:[%s1091 + $0x690] sm:$0xff] %v1932
        %v1934 = vld [vmem:[%s1090 + $0x6a8] sm:$0xff]
        %1935 = vst [vmem:[%s1091 + $0x694] sm:$0xff] %v1934
        %v1936 = vld [vmem:[%s1090 + $0x68c] sm:$0xff]
        %1937 = vst [vmem:[%s1091 + $0x698] sm:$0xff] %v1936
        %v1938 = vld [vmem:[%s1090 + $0x6ac] sm:$0xff]
        %1939 = vst [vmem:[%s1091 + $0x69c] sm:$0xff] %v1938
        %v1940 = vld [vmem:[%s1090 + $0x690] sm:$0xff]
        %1941 = vst [vmem:[%s1091 + $0x6a0] sm:$0xff] %v1940
        %v1942 = vld [vmem:[%s1090 + $0x6b0] sm:$0xff]
        %1943 = vst [vmem:[%s1091 + $0x6a4] sm:$0xff] %v1942
        %v1944 = vld [vmem:[%s1090 + $0x694] sm:$0xff]
        %1945 = vst [vmem:[%s1091 + $0x6a8] sm:$0xff] %v1944
        %v1946 = vld [vmem:[%s1090 + $0x6b4] sm:$0xff]
        %1947 = vst [vmem:[%s1091 + $0x6ac] sm:$0xff] %v1946
        %v1948 = vld [vmem:[%s1090 + $0x698] sm:$0xff]
        %1949 = vst [vmem:[%s1091 + $0x6b0] sm:$0xff] %v1948
        %v1950 = vld [vmem:[%s1090 + $0x6b8] sm:$0xff]
        %1951 = vst [vmem:[%s1091 + $0x6b4] sm:$0xff] %v1950
        %v1952 = vld [vmem:[%s1090 + $0x69c] sm:$0xff]
        %1953 = vst [vmem:[%s1091 + $0x6b8] sm:$0xff] %v1952
        %v1954 = vld [vmem:[%s1090 + $0x6bc] sm:$0xff]
        %1955 = vst [vmem:[%s1091 + $0x6bc] sm:$0xff] %v1954
        %v1956 = vld [vmem:[%s1090 + $0x6c0] sm:$0xff]
        %1957 = vst [vmem:[%s1091 + $0x6c0] sm:$0xff] %v1956
        %v1958 = vld [vmem:[%s1090 + $0x6e0] sm:$0xff]
        %1959 = vst [vmem:[%s1091 + $0x6c4] sm:$0xff] %v1958
        %v1960 = vld [vmem:[%s1090 + $0x6c4] sm:$0xff]
        %1961 = vst [vmem:[%s1091 + $0x6c8] sm:$0xff] %v1960
        %v1962 = vld [vmem:[%s1090 + $0x6e4] sm:$0xff]
        %1963 = vst [vmem:[%s1091 + $0x6cc] sm:$0xff] %v1962
        %v1964 = vld [vmem:[%s1090 + $0x6c8] sm:$0xff]
        %1965 = vst [vmem:[%s1091 + $0x6d0] sm:$0xff] %v1964
        %v1966 = vld [vmem:[%s1090 + $0x6e8] sm:$0xff]
        %1967 = vst [vmem:[%s1091 + $0x6d4] sm:$0xff] %v1966
        %v1968 = vld [vmem:[%s1090 + $0x6cc] sm:$0xff]
        %1969 = vst [vmem:[%s1091 + $0x6d8] sm:$0xff] %v1968
        %v1970 = vld [vmem:[%s1090 + $0x6ec] sm:$0xff]
        %1971 = vst [vmem:[%s1091 + $0x6dc] sm:$0xff] %v1970
        %v1972 = vld [vmem:[%s1090 + $0x6d0] sm:$0xff]
        %1973 = vst [vmem:[%s1091 + $0x6e0] sm:$0xff] %v1972
        %v1974 = vld [vmem:[%s1090 + $0x6f0] sm:$0xff]
        %1975 = vst [vmem:[%s1091 + $0x6e4] sm:$0xff] %v1974
        %v1976 = vld [vmem:[%s1090 + $0x6d4] sm:$0xff]
        %1977 = vst [vmem:[%s1091 + $0x6e8] sm:$0xff] %v1976
        %v1978 = vld [vmem:[%s1090 + $0x6f4] sm:$0xff]
        %1979 = vst [vmem:[%s1091 + $0x6ec] sm:$0xff] %v1978
        %v1980 = vld [vmem:[%s1090 + $0x6d8] sm:$0xff]
        %1981 = vst [vmem:[%s1091 + $0x6f0] sm:$0xff] %v1980
        %v1982 = vld [vmem:[%s1090 + $0x6f8] sm:$0xff]
        %1983 = vst [vmem:[%s1091 + $0x6f4] sm:$0xff] %v1982
        %v1984 = vld [vmem:[%s1090 + $0x6dc] sm:$0xff]
        %1985 = vst [vmem:[%s1091 + $0x6f8] sm:$0xff] %v1984
        %v1986 = vld [vmem:[%s1090 + $0x6fc] sm:$0xff]
        %1987 = vst [vmem:[%s1091 + $0x6fc] sm:$0xff] %v1986
        %v1988 = vld [vmem:[%s1090 + $0x700] sm:$0xff]
        %1989 = vst [vmem:[%s1091 + $0x700] sm:$0xff] %v1988
        %v1990 = vld [vmem:[%s1090 + $0x720] sm:$0xff]
        %1991 = vst [vmem:[%s1091 + $0x704] sm:$0xff] %v1990
        %v1992 = vld [vmem:[%s1090 + $0x704] sm:$0xff]
        %1993 = vst [vmem:[%s1091 + $0x708] sm:$0xff] %v1992
        %v1994 = vld [vmem:[%s1090 + $0x724] sm:$0xff]
        %1995 = vst [vmem:[%s1091 + $0x70c] sm:$0xff] %v1994
        %v1996 = vld [vmem:[%s1090 + $0x708] sm:$0xff]
        %1997 = vst [vmem:[%s1091 + $0x710] sm:$0xff] %v1996
        %v1998 = vld [vmem:[%s1090 + $0x728] sm:$0xff]
        %1999 = vst [vmem:[%s1091 + $0x714] sm:$0xff] %v1998
        %v2000 = vld [vmem:[%s1090 + $0x70c] sm:$0xff]
        %2001 = vst [vmem:[%s1091 + $0x718] sm:$0xff] %v2000
        %v2002 = vld [vmem:[%s1090 + $0x72c] sm:$0xff]
        %2003 = vst [vmem:[%s1091 + $0x71c] sm:$0xff] %v2002
        %v2004 = vld [vmem:[%s1090 + $0x710] sm:$0xff]
        %2005 = vst [vmem:[%s1091 + $0x720] sm:$0xff] %v2004
        %v2006 = vld [vmem:[%s1090 + $0x730] sm:$0xff]
        %2007 = vst [vmem:[%s1091 + $0x724] sm:$0xff] %v2006
        %v2008 = vld [vmem:[%s1090 + $0x714] sm:$0xff]
        %2009 = vst [vmem:[%s1091 + $0x728] sm:$0xff] %v2008
        %v2010 = vld [vmem:[%s1090 + $0x734] sm:$0xff]
        %2011 = vst [vmem:[%s1091 + $0x72c] sm:$0xff] %v2010
        %v2012 = vld [vmem:[%s1090 + $0x718] sm:$0xff]
        %2013 = vst [vmem:[%s1091 + $0x730] sm:$0xff] %v2012
        %v2014 = vld [vmem:[%s1090 + $0x738] sm:$0xff]
        %2015 = vst [vmem:[%s1091 + $0x734] sm:$0xff] %v2014
        %v2016 = vld [vmem:[%s1090 + $0x71c] sm:$0xff]
        %2017 = vst [vmem:[%s1091 + $0x738] sm:$0xff] %v2016
        %v2018 = vld [vmem:[%s1090 + $0x73c] sm:$0xff]
        %2019 = vst [vmem:[%s1091 + $0x73c] sm:$0xff] %v2018
        %v2020 = vld [vmem:[%s1090 + $0x740] sm:$0xff]
        %2021 = vst [vmem:[%s1091 + $0x740] sm:$0xff] %v2020
        %v2022 = vld [vmem:[%s1090 + $0x760] sm:$0xff]
        %2023 = vst [vmem:[%s1091 + $0x744] sm:$0xff] %v2022
        %v2024 = vld [vmem:[%s1090 + $0x744] sm:$0xff]
        %2025 = vst [vmem:[%s1091 + $0x748] sm:$0xff] %v2024
        %v2026 = vld [vmem:[%s1090 + $0x764] sm:$0xff]
        %2027 = vst [vmem:[%s1091 + $0x74c] sm:$0xff] %v2026
        %v2028 = vld [vmem:[%s1090 + $0x748] sm:$0xff]
        %2029 = vst [vmem:[%s1091 + $0x750] sm:$0xff] %v2028
        %v2030 = vld [vmem:[%s1090 + $0x768] sm:$0xff]
        %2031 = vst [vmem:[%s1091 + $0x754] sm:$0xff] %v2030
        %v2032 = vld [vmem:[%s1090 + $0x74c] sm:$0xff]
        %2033 = vst [vmem:[%s1091 + $0x758] sm:$0xff] %v2032
        %v2034 = vld [vmem:[%s1090 + $0x76c] sm:$0xff]
        %2035 = vst [vmem:[%s1091 + $0x75c] sm:$0xff] %v2034
        %v2036 = vld [vmem:[%s1090 + $0x750] sm:$0xff]
        %2037 = vst [vmem:[%s1091 + $0x760] sm:$0xff] %v2036
        %v2038 = vld [vmem:[%s1090 + $0x770] sm:$0xff]
        %2039 = vst [vmem:[%s1091 + $0x764] sm:$0xff] %v2038
        %v2040 = vld [vmem:[%s1090 + $0x754] sm:$0xff]
        %2041 = vst [vmem:[%s1091 + $0x768] sm:$0xff] %v2040
        %v2042 = vld [vmem:[%s1090 + $0x774] sm:$0xff]
        %2043 = vst [vmem:[%s1091 + $0x76c] sm:$0xff] %v2042
        %v2044 = vld [vmem:[%s1090 + $0x758] sm:$0xff]
        %2045 = vst [vmem:[%s1091 + $0x770] sm:$0xff] %v2044
        %v2046 = vld [vmem:[%s1090 + $0x778] sm:$0xff]
        %2047 = vst [vmem:[%s1091 + $0x774] sm:$0xff] %v2046
        %v2048 = vld [vmem:[%s1090 + $0x75c] sm:$0xff]
        %2049 = vst [vmem:[%s1091 + $0x778] sm:$0xff] %v2048
        %v2050 = vld [vmem:[%s1090 + $0x77c] sm:$0xff]
        %2051 = vst [vmem:[%s1091 + $0x77c] sm:$0xff] %v2050
        %v2052 = vld [vmem:[%s1090 + $0x780] sm:$0xff]
        %2053 = vst [vmem:[%s1091 + $0x780] sm:$0xff] %v2052
        %v2054 = vld [vmem:[%s1090 + $0x7a0] sm:$0xff]
        %2055 = vst [vmem:[%s1091 + $0x784] sm:$0xff] %v2054
        %v2056 = vld [vmem:[%s1090 + $0x784] sm:$0xff]
        %2057 = vst [vmem:[%s1091 + $0x788] sm:$0xff] %v2056
        %v2058 = vld [vmem:[%s1090 + $0x7a4] sm:$0xff]
        %2059 = vst [vmem:[%s1091 + $0x78c] sm:$0xff] %v2058
        %v2060 = vld [vmem:[%s1090 + $0x788] sm:$0xff]
        %2061 = vst [vmem:[%s1091 + $0x790] sm:$0xff] %v2060
        %v2062 = vld [vmem:[%s1090 + $0x7a8] sm:$0xff]
        %2063 = vst [vmem:[%s1091 + $0x794] sm:$0xff] %v2062
        %v2064 = vld [vmem:[%s1090 + $0x78c] sm:$0xff]
        %2065 = vst [vmem:[%s1091 + $0x798] sm:$0xff] %v2064
        %v2066 = vld [vmem:[%s1090 + $0x7ac] sm:$0xff]
        %2067 = vst [vmem:[%s1091 + $0x79c] sm:$0xff] %v2066
        %v2068 = vld [vmem:[%s1090 + $0x790] sm:$0xff]
        %2069 = vst [vmem:[%s1091 + $0x7a0] sm:$0xff] %v2068
        %v2070 = vld [vmem:[%s1090 + $0x7b0] sm:$0xff]
        %2071 = vst [vmem:[%s1091 + $0x7a4] sm:$0xff] %v2070
        %v2072 = vld [vmem:[%s1090 + $0x794] sm:$0xff]
        %2073 = vst [vmem:[%s1091 + $0x7a8] sm:$0xff] %v2072
        %v2074 = vld [vmem:[%s1090 + $0x7b4] sm:$0xff]
        %2075 = vst [vmem:[%s1091 + $0x7ac] sm:$0xff] %v2074
        %v2076 = vld [vmem:[%s1090 + $0x798] sm:$0xff]
        %2077 = vst [vmem:[%s1091 + $0x7b0] sm:$0xff] %v2076
        %v2078 = vld [vmem:[%s1090 + $0x7b8] sm:$0xff]
        %2079 = vst [vmem:[%s1091 + $0x7b4] sm:$0xff] %v2078
        %v2080 = vld [vmem:[%s1090 + $0x79c] sm:$0xff]
        %2081 = vst [vmem:[%s1091 + $0x7b8] sm:$0xff] %v2080
        %v2082 = vld [vmem:[%s1090 + $0x7bc] sm:$0xff]
        %2083 = vst [vmem:[%s1091 + $0x7bc] sm:$0xff] %v2082
        %v2084 = vld [vmem:[%s1090 + $0x7c0] sm:$0xff]
        %2085 = vst [vmem:[%s1091 + $0x7c0] sm:$0xff] %v2084
        %v2086 = vld [vmem:[%s1090 + $0x7e0] sm:$0xff]
        %2087 = vst [vmem:[%s1091 + $0x7c4] sm:$0xff] %v2086
        %v2088 = vld [vmem:[%s1090 + $0x7c4] sm:$0xff]
        %2089 = vst [vmem:[%s1091 + $0x7c8] sm:$0xff] %v2088
        %v2090 = vld [vmem:[%s1090 + $0x7e4] sm:$0xff]
        %2091 = vst [vmem:[%s1091 + $0x7cc] sm:$0xff] %v2090
        %v2092 = vld [vmem:[%s1090 + $0x7c8] sm:$0xff]
        %2093 = vst [vmem:[%s1091 + $0x7d0] sm:$0xff] %v2092
        %v2094 = vld [vmem:[%s1090 + $0x7e8] sm:$0xff]
        %2095 = vst [vmem:[%s1091 + $0x7d4] sm:$0xff] %v2094
        %v2096 = vld [vmem:[%s1090 + $0x7cc] sm:$0xff]
        %2097 = vst [vmem:[%s1091 + $0x7d8] sm:$0xff] %v2096
        %v2098 = vld [vmem:[%s1090 + $0x7ec] sm:$0xff]
        %2099 = vst [vmem:[%s1091 + $0x7dc] sm:$0xff] %v2098
        %v2100 = vld [vmem:[%s1090 + $0x7d0] sm:$0xff]
        %2101 = vst [vmem:[%s1091 + $0x7e0] sm:$0xff] %v2100
        %v2102 = vld [vmem:[%s1090 + $0x7f0] sm:$0xff]
        %2103 = vst [vmem:[%s1091 + $0x7e4] sm:$0xff] %v2102
        %v2104 = vld [vmem:[%s1090 + $0x7d4] sm:$0xff]
        %2105 = vst [vmem:[%s1091 + $0x7e8] sm:$0xff] %v2104
        %v2106 = vld [vmem:[%s1090 + $0x7f4] sm:$0xff]
        %2107 = vst [vmem:[%s1091 + $0x7ec] sm:$0xff] %v2106
        %v2108 = vld [vmem:[%s1090 + $0x7d8] sm:$0xff]
        %2109 = vst [vmem:[%s1091 + $0x7f0] sm:$0xff] %v2108
        %v2110 = vld [vmem:[%s1090 + $0x7f8] sm:$0xff]
        %2111 = vst [vmem:[%s1091 + $0x7f4] sm:$0xff] %v2110
        %v2112 = vld [vmem:[%s1090 + $0x7dc] sm:$0xff]
        %2113 = vst [vmem:[%s1091 + $0x7f8] sm:$0xff] %v2112
        %v2114 = vld [vmem:[%s1090 + $0x7fc] sm:$0xff]
        %2115 = vst [vmem:[%s1091 + $0x7fc] sm:$0xff] %v2114
        %s2116 = sadd.s32 1, %s1089
        %p2117 = scmp.ge.s32.totalorder %s2116, %s1080
        %s2118 = scalar_select %p2117, 0, %s2116
        %s2119 = smul.u32 %s2118, 8
        %s2120 = smul.u32 %s2118, 8
        %s2121 = scalar_lea.vmem %s9, %s2119
        %s2122 = scalar_lea.vmem [#allocation2], %s2120
      $region61: #{_lambda_.1} parent=55 // loop_footer
        %s1086 = sadd.s32 %s1084, 1
      $region62: #{_lambda_.1} parent=55 // loop_footer_branch
        %1083 = sbr.rel target = $region58
      $region63: #{_lambda_.1} parent=55 // loop_exit
        _
    $region56: #{_lambda_.1} parent=40 // pred_fallthru
      _
    %p2123 = pneg %p1076
    // Predicated region
    $region64: #{_lambda_.1} parent=40 // pred_check
      _
    $region65: #{_lambda_.1} parent=40 // pred_check_branch
      %2125 = sbr.rel (%p1076) target = $region67
    $region66: #{_lambda_.1} parent=40 // pred_region
      %s2126 = sand.u32 4, 7
      %s2127 = ssub.s32 4, %s2126
      %s2128 = scalar_lea.vmem %s9, %s2127
      %s2129 = ssub.s32 4, %s2126
      %s2130 = scalar_lea.vmem [#allocation2], %s2129
      %s2131 = sshrl.u32 4, 3
      // While loop
      $region68: #{_lambda_.1} parent=66 // loop_pre_header
        _
      $region69: #{_lambda_.1} parent=66 // loop_header
        %s2135 = sphi 0, %s2137
        %p2136 = scmp.ge.s32.totalorder %s2135, %s2131
        %s2140 = sphi 0, %s3169
        %s2141 = sphi %s9, %s3172
        %s2142 = sphi [#allocation2], %s3173
      $region70: #{_lambda_.1} parent=66 // loop_header_branch
        %2139 = sbr.rel (%p2136) target = $region74
      $region71: #{_lambda_.1} parent=66 // loop_body
        %v2143 = vld [vmem:[%s2141] sm:$0xff]
        %2144 = vst [vmem:[%s2142] sm:$0xff] %v2143
        %v2145 = vld [vmem:[%s2141 + $0x20] sm:$0xff]
        %2146 = vst [vmem:[%s2142 + $0x4] sm:$0xff] %v2145
        %v2147 = vld [vmem:[%s2141 + $0x4] sm:$0xff]
        %2148 = vst [vmem:[%s2142 + $0x8] sm:$0xff] %v2147
        %v2149 = vld [vmem:[%s2141 + $0x24] sm:$0xff]
        %2150 = vst [vmem:[%s2142 + $0xc] sm:$0xff] %v2149
        %v2151 = vld [vmem:[%s2141 + $0x8] sm:$0xff]
        %2152 = vst [vmem:[%s2142 + $0x10] sm:$0xff] %v2151
        %v2153 = vld [vmem:[%s2141 + $0x28] sm:$0xff]
        %2154 = vst [vmem:[%s2142 + $0x14] sm:$0xff] %v2153
        %v2155 = vld [vmem:[%s2141 + $0xc] sm:$0xff]
        %2156 = vst [vmem:[%s2142 + $0x18] sm:$0xff] %v2155
        %v2157 = vld [vmem:[%s2141 + $0x2c] sm:$0xff]
        %2158 = vst [vmem:[%s2142 + $0x1c] sm:$0xff] %v2157
        %v2159 = vld [vmem:[%s2141 + $0x10] sm:$0xff]
        %2160 = vst [vmem:[%s2142 + $0x20] sm:$0xff] %v2159
        %v2161 = vld [vmem:[%s2141 + $0x30] sm:$0xff]
        %2162 = vst [vmem:[%s2142 + $0x24] sm:$0xff] %v2161
        %v2163 = vld [vmem:[%s2141 + $0x14] sm:$0xff]
        %2164 = vst [vmem:[%s2142 + $0x28] sm:$0xff] %v2163
        %v2165 = vld [vmem:[%s2141 + $0x34] sm:$0xff]
        %2166 = vst [vmem:[%s2142 + $0x2c] sm:$0xff] %v2165
        %v2167 = vld [vmem:[%s2141 + $0x18] sm:$0xff]
        %2168 = vst [vmem:[%s2142 + $0x30] sm:$0xff] %v2167
        %v2169 = vld [vmem:[%s2141 + $0x38] sm:$0xff]
        %2170 = vst [vmem:[%s2142 + $0x34] sm:$0xff] %v2169
        %v2171 = vld [vmem:[%s2141 + $0x1c] sm:$0xff]
        %2172 = vst [vmem:[%s2142 + $0x38] sm:$0xff] %v2171
        %v2173 = vld [vmem:[%s2141 + $0x3c] sm:$0xff]
        %2174 = vst [vmem:[%s2142 + $0x3c] sm:$0xff] %v2173
        %v2175 = vld [vmem:[%s2141 + $0x40] sm:$0xff]
        %2176 = vst [vmem:[%s2142 + $0x40] sm:$0xff] %v2175
        %v2177 = vld [vmem:[%s2141 + $0x60] sm:$0xff]
        %2178 = vst [vmem:[%s2142 + $0x44] sm:$0xff] %v2177
        %v2179 = vld [vmem:[%s2141 + $0x44] sm:$0xff]
        %2180 = vst [vmem:[%s2142 + $0x48] sm:$0xff] %v2179
        %v2181 = vld [vmem:[%s2141 + $0x64] sm:$0xff]
        %2182 = vst [vmem:[%s2142 + $0x4c] sm:$0xff] %v2181
        %v2183 = vld [vmem:[%s2141 + $0x48] sm:$0xff]
        %2184 = vst [vmem:[%s2142 + $0x50] sm:$0xff] %v2183
        %v2185 = vld [vmem:[%s2141 + $0x68] sm:$0xff]
        %2186 = vst [vmem:[%s2142 + $0x54] sm:$0xff] %v2185
        %v2187 = vld [vmem:[%s2141 + $0x4c] sm:$0xff]
        %2188 = vst [vmem:[%s2142 + $0x58] sm:$0xff] %v2187
        %v2189 = vld [vmem:[%s2141 + $0x6c] sm:$0xff]
        %2190 = vst [vmem:[%s2142 + $0x5c] sm:$0xff] %v2189
        %v2191 = vld [vmem:[%s2141 + $0x50] sm:$0xff]
        %2192 = vst [vmem:[%s2142 + $0x60] sm:$0xff] %v2191
        %v2193 = vld [vmem:[%s2141 + $0x70] sm:$0xff]
        %2194 = vst [vmem:[%s2142 + $0x64] sm:$0xff] %v2193
        %v2195 = vld [vmem:[%s2141 + $0x54] sm:$0xff]
        %2196 = vst [vmem:[%s2142 + $0x68] sm:$0xff] %v2195
        %v2197 = vld [vmem:[%s2141 + $0x74] sm:$0xff]
        %2198 = vst [vmem:[%s2142 + $0x6c] sm:$0xff] %v2197
        %v2199 = vld [vmem:[%s2141 + $0x58] sm:$0xff]
        %2200 = vst [vmem:[%s2142 + $0x70] sm:$0xff] %v2199
        %v2201 = vld [vmem:[%s2141 + $0x78] sm:$0xff]
        %2202 = vst [vmem:[%s2142 + $0x74] sm:$0xff] %v2201
        %v2203 = vld [vmem:[%s2141 + $0x5c] sm:$0xff]
        %2204 = vst [vmem:[%s2142 + $0x78] sm:$0xff] %v2203
        %v2205 = vld [vmem:[%s2141 + $0x7c] sm:$0xff]
        %2206 = vst [vmem:[%s2142 + $0x7c] sm:$0xff] %v2205
        %v2207 = vld [vmem:[%s2141 + $0x80] sm:$0xff]
        %2208 = vst [vmem:[%s2142 + $0x80] sm:$0xff] %v2207
        %v2209 = vld [vmem:[%s2141 + $0xa0] sm:$0xff]
        %2210 = vst [vmem:[%s2142 + $0x84] sm:$0xff] %v2209
        %v2211 = vld [vmem:[%s2141 + $0x84] sm:$0xff]
        %2212 = vst [vmem:[%s2142 + $0x88] sm:$0xff] %v2211
        %v2213 = vld [vmem:[%s2141 + $0xa4] sm:$0xff]
        %2214 = vst [vmem:[%s2142 + $0x8c] sm:$0xff] %v2213
        %v2215 = vld [vmem:[%s2141 + $0x88] sm:$0xff]
        %2216 = vst [vmem:[%s2142 + $0x90] sm:$0xff] %v2215
        %v2217 = vld [vmem:[%s2141 + $0xa8] sm:$0xff]
        %2218 = vst [vmem:[%s2142 + $0x94] sm:$0xff] %v2217
        %v2219 = vld [vmem:[%s2141 + $0x8c] sm:$0xff]
        %2220 = vst [vmem:[%s2142 + $0x98] sm:$0xff] %v2219
        %v2221 = vld [vmem:[%s2141 + $0xac] sm:$0xff]
        %2222 = vst [vmem:[%s2142 + $0x9c] sm:$0xff] %v2221
        %v2223 = vld [vmem:[%s2141 + $0x90] sm:$0xff]
        %2224 = vst [vmem:[%s2142 + $0xa0] sm:$0xff] %v2223
        %v2225 = vld [vmem:[%s2141 + $0xb0] sm:$0xff]
        %2226 = vst [vmem:[%s2142 + $0xa4] sm:$0xff] %v2225
        %v2227 = vld [vmem:[%s2141 + $0x94] sm:$0xff]
        %2228 = vst [vmem:[%s2142 + $0xa8] sm:$0xff] %v2227
        %v2229 = vld [vmem:[%s2141 + $0xb4] sm:$0xff]
        %2230 = vst [vmem:[%s2142 + $0xac] sm:$0xff] %v2229
        %v2231 = vld [vmem:[%s2141 + $0x98] sm:$0xff]
        %2232 = vst [vmem:[%s2142 + $0xb0] sm:$0xff] %v2231
        %v2233 = vld [vmem:[%s2141 + $0xb8] sm:$0xff]
        %2234 = vst [vmem:[%s2142 + $0xb4] sm:$0xff] %v2233
        %v2235 = vld [vmem:[%s2141 + $0x9c] sm:$0xff]
        %2236 = vst [vmem:[%s2142 + $0xb8] sm:$0xff] %v2235
        %v2237 = vld [vmem:[%s2141 + $0xbc] sm:$0xff]
        %2238 = vst [vmem:[%s2142 + $0xbc] sm:$0xff] %v2237
        %v2239 = vld [vmem:[%s2141 + $0xc0] sm:$0xff]
        %2240 = vst [vmem:[%s2142 + $0xc0] sm:$0xff] %v2239
        %v2241 = vld [vmem:[%s2141 + $0xe0] sm:$0xff]
        %2242 = vst [vmem:[%s2142 + $0xc4] sm:$0xff] %v2241
        %v2243 = vld [vmem:[%s2141 + $0xc4] sm:$0xff]
        %2244 = vst [vmem:[%s2142 + $0xc8] sm:$0xff] %v2243
        %v2245 = vld [vmem:[%s2141 + $0xe4] sm:$0xff]
        %2246 = vst [vmem:[%s2142 + $0xcc] sm:$0xff] %v2245
        %v2247 = vld [vmem:[%s2141 + $0xc8] sm:$0xff]
        %2248 = vst [vmem:[%s2142 + $0xd0] sm:$0xff] %v2247
        %v2249 = vld [vmem:[%s2141 + $0xe8] sm:$0xff]
        %2250 = vst [vmem:[%s2142 + $0xd4] sm:$0xff] %v2249
        %v2251 = vld [vmem:[%s2141 + $0xcc] sm:$0xff]
        %2252 = vst [vmem:[%s2142 + $0xd8] sm:$0xff] %v2251
        %v2253 = vld [vmem:[%s2141 + $0xec] sm:$0xff]
        %2254 = vst [vmem:[%s2142 + $0xdc] sm:$0xff] %v2253
        %v2255 = vld [vmem:[%s2141 + $0xd0] sm:$0xff]
        %2256 = vst [vmem:[%s2142 + $0xe0] sm:$0xff] %v2255
        %v2257 = vld [vmem:[%s2141 + $0xf0] sm:$0xff]
        %2258 = vst [vmem:[%s2142 + $0xe4] sm:$0xff] %v2257
        %v2259 = vld [vmem:[%s2141 + $0xd4] sm:$0xff]
        %2260 = vst [vmem:[%s2142 + $0xe8] sm:$0xff] %v2259
        %v2261 = vld [vmem:[%s2141 + $0xf4] sm:$0xff]
        %2262 = vst [vmem:[%s2142 + $0xec] sm:$0xff] %v2261
        %v2263 = vld [vmem:[%s2141 + $0xd8] sm:$0xff]
        %2264 = vst [vmem:[%s2142 + $0xf0] sm:$0xff] %v2263
        %v2265 = vld [vmem:[%s2141 + $0xf8] sm:$0xff]
        %2266 = vst [vmem:[%s2142 + $0xf4] sm:$0xff] %v2265
        %v2267 = vld [vmem:[%s2141 + $0xdc] sm:$0xff]
        %2268 = vst [vmem:[%s2142 + $0xf8] sm:$0xff] %v2267
        %v2269 = vld [vmem:[%s2141 + $0xfc] sm:$0xff]
        %2270 = vst [vmem:[%s2142 + $0xfc] sm:$0xff] %v2269
        %v2271 = vld [vmem:[%s2141 + $0x100] sm:$0xff]
        %2272 = vst [vmem:[%s2142 + $0x100] sm:$0xff] %v2271
        %v2273 = vld [vmem:[%s2141 + $0x120] sm:$0xff]
        %2274 = vst [vmem:[%s2142 + $0x104] sm:$0xff] %v2273
        %v2275 = vld [vmem:[%s2141 + $0x104] sm:$0xff]
        %2276 = vst [vmem:[%s2142 + $0x108] sm:$0xff] %v2275
        %v2277 = vld [vmem:[%s2141 + $0x124] sm:$0xff]
        %2278 = vst [vmem:[%s2142 + $0x10c] sm:$0xff] %v2277
        %v2279 = vld [vmem:[%s2141 + $0x108] sm:$0xff]
        %2280 = vst [vmem:[%s2142 + $0x110] sm:$0xff] %v2279
        %v2281 = vld [vmem:[%s2141 + $0x128] sm:$0xff]
        %2282 = vst [vmem:[%s2142 + $0x114] sm:$0xff] %v2281
        %v2283 = vld [vmem:[%s2141 + $0x10c] sm:$0xff]
        %2284 = vst [vmem:[%s2142 + $0x118] sm:$0xff] %v2283
        %v2285 = vld [vmem:[%s2141 + $0x12c] sm:$0xff]
        %2286 = vst [vmem:[%s2142 + $0x11c] sm:$0xff] %v2285
        %v2287 = vld [vmem:[%s2141 + $0x110] sm:$0xff]
        %2288 = vst [vmem:[%s2142 + $0x120] sm:$0xff] %v2287
        %v2289 = vld [vmem:[%s2141 + $0x130] sm:$0xff]
        %2290 = vst [vmem:[%s2142 + $0x124] sm:$0xff] %v2289
        %v2291 = vld [vmem:[%s2141 + $0x114] sm:$0xff]
        %2292 = vst [vmem:[%s2142 + $0x128] sm:$0xff] %v2291
        %v2293 = vld [vmem:[%s2141 + $0x134] sm:$0xff]
        %2294 = vst [vmem:[%s2142 + $0x12c] sm:$0xff] %v2293
        %v2295 = vld [vmem:[%s2141 + $0x118] sm:$0xff]
        %2296 = vst [vmem:[%s2142 + $0x130] sm:$0xff] %v2295
        %v2297 = vld [vmem:[%s2141 + $0x138] sm:$0xff]
        %2298 = vst [vmem:[%s2142 + $0x134] sm:$0xff] %v2297
        %v2299 = vld [vmem:[%s2141 + $0x11c] sm:$0xff]
        %2300 = vst [vmem:[%s2142 + $0x138] sm:$0xff] %v2299
        %v2301 = vld [vmem:[%s2141 + $0x13c] sm:$0xff]
        %2302 = vst [vmem:[%s2142 + $0x13c] sm:$0xff] %v2301
        %v2303 = vld [vmem:[%s2141 + $0x140] sm:$0xff]
        %2304 = vst [vmem:[%s2142 + $0x140] sm:$0xff] %v2303
        %v2305 = vld [vmem:[%s2141 + $0x160] sm:$0xff]
        %2306 = vst [vmem:[%s2142 + $0x144] sm:$0xff] %v2305
        %v2307 = vld [vmem:[%s2141 + $0x144] sm:$0xff]
        %2308 = vst [vmem:[%s2142 + $0x148] sm:$0xff] %v2307
        %v2309 = vld [vmem:[%s2141 + $0x164] sm:$0xff]
        %2310 = vst [vmem:[%s2142 + $0x14c] sm:$0xff] %v2309
        %v2311 = vld [vmem:[%s2141 + $0x148] sm:$0xff]
        %2312 = vst [vmem:[%s2142 + $0x150] sm:$0xff] %v2311
        %v2313 = vld [vmem:[%s2141 + $0x168] sm:$0xff]
        %2314 = vst [vmem:[%s2142 + $0x154] sm:$0xff] %v2313
        %v2315 = vld [vmem:[%s2141 + $0x14c] sm:$0xff]
        %2316 = vst [vmem:[%s2142 + $0x158] sm:$0xff] %v2315
        %v2317 = vld [vmem:[%s2141 + $0x16c] sm:$0xff]
        %2318 = vst [vmem:[%s2142 + $0x15c] sm:$0xff] %v2317
        %v2319 = vld [vmem:[%s2141 + $0x150] sm:$0xff]
        %2320 = vst [vmem:[%s2142 + $0x160] sm:$0xff] %v2319
        %v2321 = vld [vmem:[%s2141 + $0x170] sm:$0xff]
        %2322 = vst [vmem:[%s2142 + $0x164] sm:$0xff] %v2321
        %v2323 = vld [vmem:[%s2141 + $0x154] sm:$0xff]
        %2324 = vst [vmem:[%s2142 + $0x168] sm:$0xff] %v2323
        %v2325 = vld [vmem:[%s2141 + $0x174] sm:$0xff]
        %2326 = vst [vmem:[%s2142 + $0x16c] sm:$0xff] %v2325
        %v2327 = vld [vmem:[%s2141 + $0x158] sm:$0xff]
        %2328 = vst [vmem:[%s2142 + $0x170] sm:$0xff] %v2327
        %v2329 = vld [vmem:[%s2141 + $0x178] sm:$0xff]
        %2330 = vst [vmem:[%s2142 + $0x174] sm:$0xff] %v2329
        %v2331 = vld [vmem:[%s2141 + $0x15c] sm:$0xff]
        %2332 = vst [vmem:[%s2142 + $0x178] sm:$0xff] %v2331
        %v2333 = vld [vmem:[%s2141 + $0x17c] sm:$0xff]
        %2334 = vst [vmem:[%s2142 + $0x17c] sm:$0xff] %v2333
        %v2335 = vld [vmem:[%s2141 + $0x180] sm:$0xff]
        %2336 = vst [vmem:[%s2142 + $0x180] sm:$0xff] %v2335
        %v2337 = vld [vmem:[%s2141 + $0x1a0] sm:$0xff]
        %2338 = vst [vmem:[%s2142 + $0x184] sm:$0xff] %v2337
        %v2339 = vld [vmem:[%s2141 + $0x184] sm:$0xff]
        %2340 = vst [vmem:[%s2142 + $0x188] sm:$0xff] %v2339
        %v2341 = vld [vmem:[%s2141 + $0x1a4] sm:$0xff]
        %2342 = vst [vmem:[%s2142 + $0x18c] sm:$0xff] %v2341
        %v2343 = vld [vmem:[%s2141 + $0x188] sm:$0xff]
        %2344 = vst [vmem:[%s2142 + $0x190] sm:$0xff] %v2343
        %v2345 = vld [vmem:[%s2141 + $0x1a8] sm:$0xff]
        %2346 = vst [vmem:[%s2142 + $0x194] sm:$0xff] %v2345
        %v2347 = vld [vmem:[%s2141 + $0x18c] sm:$0xff]
        %2348 = vst [vmem:[%s2142 + $0x198] sm:$0xff] %v2347
        %v2349 = vld [vmem:[%s2141 + $0x1ac] sm:$0xff]
        %2350 = vst [vmem:[%s2142 + $0x19c] sm:$0xff] %v2349
        %v2351 = vld [vmem:[%s2141 + $0x190] sm:$0xff]
        %2352 = vst [vmem:[%s2142 + $0x1a0] sm:$0xff] %v2351
        %v2353 = vld [vmem:[%s2141 + $0x1b0] sm:$0xff]
        %2354 = vst [vmem:[%s2142 + $0x1a4] sm:$0xff] %v2353
        %v2355 = vld [vmem:[%s2141 + $0x194] sm:$0xff]
        %2356 = vst [vmem:[%s2142 + $0x1a8] sm:$0xff] %v2355
        %v2357 = vld [vmem:[%s2141 + $0x1b4] sm:$0xff]
        %2358 = vst [vmem:[%s2142 + $0x1ac] sm:$0xff] %v2357
        %v2359 = vld [vmem:[%s2141 + $0x198] sm:$0xff]
        %2360 = vst [vmem:[%s2142 + $0x1b0] sm:$0xff] %v2359
        %v2361 = vld [vmem:[%s2141 + $0x1b8] sm:$0xff]
        %2362 = vst [vmem:[%s2142 + $0x1b4] sm:$0xff] %v2361
        %v2363 = vld [vmem:[%s2141 + $0x19c] sm:$0xff]
        %2364 = vst [vmem:[%s2142 + $0x1b8] sm:$0xff] %v2363
        %v2365 = vld [vmem:[%s2141 + $0x1bc] sm:$0xff]
        %2366 = vst [vmem:[%s2142 + $0x1bc] sm:$0xff] %v2365
        %v2367 = vld [vmem:[%s2141 + $0x1c0] sm:$0xff]
        %2368 = vst [vmem:[%s2142 + $0x1c0] sm:$0xff] %v2367
        %v2369 = vld [vmem:[%s2141 + $0x1e0] sm:$0xff]
        %2370 = vst [vmem:[%s2142 + $0x1c4] sm:$0xff] %v2369
        %v2371 = vld [vmem:[%s2141 + $0x1c4] sm:$0xff]
        %2372 = vst [vmem:[%s2142 + $0x1c8] sm:$0xff] %v2371
        %v2373 = vld [vmem:[%s2141 + $0x1e4] sm:$0xff]
        %2374 = vst [vmem:[%s2142 + $0x1cc] sm:$0xff] %v2373
        %v2375 = vld [vmem:[%s2141 + $0x1c8] sm:$0xff]
        %2376 = vst [vmem:[%s2142 + $0x1d0] sm:$0xff] %v2375
        %v2377 = vld [vmem:[%s2141 + $0x1e8] sm:$0xff]
        %2378 = vst [vmem:[%s2142 + $0x1d4] sm:$0xff] %v2377
        %v2379 = vld [vmem:[%s2141 + $0x1cc] sm:$0xff]
        %2380 = vst [vmem:[%s2142 + $0x1d8] sm:$0xff] %v2379
        %v2381 = vld [vmem:[%s2141 + $0x1ec] sm:$0xff]
        %2382 = vst [vmem:[%s2142 + $0x1dc] sm:$0xff] %v2381
        %v2383 = vld [vmem:[%s2141 + $0x1d0] sm:$0xff]
        %2384 = vst [vmem:[%s2142 + $0x1e0] sm:$0xff] %v2383
        %v2385 = vld [vmem:[%s2141 + $0x1f0] sm:$0xff]
        %2386 = vst [vmem:[%s2142 + $0x1e4] sm:$0xff] %v2385
        %v2387 = vld [vmem:[%s2141 + $0x1d4] sm:$0xff]
        %2388 = vst [vmem:[%s2142 + $0x1e8] sm:$0xff] %v2387
        %v2389 = vld [vmem:[%s2141 + $0x1f4] sm:$0xff]
        %2390 = vst [vmem:[%s2142 + $0x1ec] sm:$0xff] %v2389
        %v2391 = vld [vmem:[%s2141 + $0x1d8] sm:$0xff]
        %2392 = vst [vmem:[%s2142 + $0x1f0] sm:$0xff] %v2391
        %v2393 = vld [vmem:[%s2141 + $0x1f8] sm:$0xff]
        %2394 = vst [vmem:[%s2142 + $0x1f4] sm:$0xff] %v2393
        %v2395 = vld [vmem:[%s2141 + $0x1dc] sm:$0xff]
        %2396 = vst [vmem:[%s2142 + $0x1f8] sm:$0xff] %v2395
        %v2397 = vld [vmem:[%s2141 + $0x1fc] sm:$0xff]
        %2398 = vst [vmem:[%s2142 + $0x1fc] sm:$0xff] %v2397
        %v2399 = vld [vmem:[%s2141 + $0x200] sm:$0xff]
        %2400 = vst [vmem:[%s2142 + $0x200] sm:$0xff] %v2399
        %v2401 = vld [vmem:[%s2141 + $0x220] sm:$0xff]
        %2402 = vst [vmem:[%s2142 + $0x204] sm:$0xff] %v2401
        %v2403 = vld [vmem:[%s2141 + $0x204] sm:$0xff]
        %2404 = vst [vmem:[%s2142 + $0x208] sm:$0xff] %v2403
        %v2405 = vld [vmem:[%s2141 + $0x224] sm:$0xff]
        %2406 = vst [vmem:[%s2142 + $0x20c] sm:$0xff] %v2405
        %v2407 = vld [vmem:[%s2141 + $0x208] sm:$0xff]
        %2408 = vst [vmem:[%s2142 + $0x210] sm:$0xff] %v2407
        %v2409 = vld [vmem:[%s2141 + $0x228] sm:$0xff]
        %2410 = vst [vmem:[%s2142 + $0x214] sm:$0xff] %v2409
        %v2411 = vld [vmem:[%s2141 + $0x20c] sm:$0xff]
        %2412 = vst [vmem:[%s2142 + $0x218] sm:$0xff] %v2411
        %v2413 = vld [vmem:[%s2141 + $0x22c] sm:$0xff]
        %2414 = vst [vmem:[%s2142 + $0x21c] sm:$0xff] %v2413
        %v2415 = vld [vmem:[%s2141 + $0x210] sm:$0xff]
        %2416 = vst [vmem:[%s2142 + $0x220] sm:$0xff] %v2415
        %v2417 = vld [vmem:[%s2141 + $0x230] sm:$0xff]
        %2418 = vst [vmem:[%s2142 + $0x224] sm:$0xff] %v2417
        %v2419 = vld [vmem:[%s2141 + $0x214] sm:$0xff]
        %2420 = vst [vmem:[%s2142 + $0x228] sm:$0xff] %v2419
        %v2421 = vld [vmem:[%s2141 + $0x234] sm:$0xff]
        %2422 = vst [vmem:[%s2142 + $0x22c] sm:$0xff] %v2421
        %v2423 = vld [vmem:[%s2141 + $0x218] sm:$0xff]
        %2424 = vst [vmem:[%s2142 + $0x230] sm:$0xff] %v2423
        %v2425 = vld [vmem:[%s2141 + $0x238] sm:$0xff]
        %2426 = vst [vmem:[%s2142 + $0x234] sm:$0xff] %v2425
        %v2427 = vld [vmem:[%s2141 + $0x21c] sm:$0xff]
        %2428 = vst [vmem:[%s2142 + $0x238] sm:$0xff] %v2427
        %v2429 = vld [vmem:[%s2141 + $0x23c] sm:$0xff]
        %2430 = vst [vmem:[%s2142 + $0x23c] sm:$0xff] %v2429
        %v2431 = vld [vmem:[%s2141 + $0x240] sm:$0xff]
        %2432 = vst [vmem:[%s2142 + $0x240] sm:$0xff] %v2431
        %v2433 = vld [vmem:[%s2141 + $0x260] sm:$0xff]
        %2434 = vst [vmem:[%s2142 + $0x244] sm:$0xff] %v2433
        %v2435 = vld [vmem:[%s2141 + $0x244] sm:$0xff]
        %2436 = vst [vmem:[%s2142 + $0x248] sm:$0xff] %v2435
        %v2437 = vld [vmem:[%s2141 + $0x264] sm:$0xff]
        %2438 = vst [vmem:[%s2142 + $0x24c] sm:$0xff] %v2437
        %v2439 = vld [vmem:[%s2141 + $0x248] sm:$0xff]
        %2440 = vst [vmem:[%s2142 + $0x250] sm:$0xff] %v2439
        %v2441 = vld [vmem:[%s2141 + $0x268] sm:$0xff]
        %2442 = vst [vmem:[%s2142 + $0x254] sm:$0xff] %v2441
        %v2443 = vld [vmem:[%s2141 + $0x24c] sm:$0xff]
        %2444 = vst [vmem:[%s2142 + $0x258] sm:$0xff] %v2443
        %v2445 = vld [vmem:[%s2141 + $0x26c] sm:$0xff]
        %2446 = vst [vmem:[%s2142 + $0x25c] sm:$0xff] %v2445
        %v2447 = vld [vmem:[%s2141 + $0x250] sm:$0xff]
        %2448 = vst [vmem:[%s2142 + $0x260] sm:$0xff] %v2447
        %v2449 = vld [vmem:[%s2141 + $0x270] sm:$0xff]
        %2450 = vst [vmem:[%s2142 + $0x264] sm:$0xff] %v2449
        %v2451 = vld [vmem:[%s2141 + $0x254] sm:$0xff]
        %2452 = vst [vmem:[%s2142 + $0x268] sm:$0xff] %v2451
        %v2453 = vld [vmem:[%s2141 + $0x274] sm:$0xff]
        %2454 = vst [vmem:[%s2142 + $0x26c] sm:$0xff] %v2453
        %v2455 = vld [vmem:[%s2141 + $0x258] sm:$0xff]
        %2456 = vst [vmem:[%s2142 + $0x270] sm:$0xff] %v2455
        %v2457 = vld [vmem:[%s2141 + $0x278] sm:$0xff]
        %2458 = vst [vmem:[%s2142 + $0x274] sm:$0xff] %v2457
        %v2459 = vld [vmem:[%s2141 + $0x25c] sm:$0xff]
        %2460 = vst [vmem:[%s2142 + $0x278] sm:$0xff] %v2459
        %v2461 = vld [vmem:[%s2141 + $0x27c] sm:$0xff]
        %2462 = vst [vmem:[%s2142 + $0x27c] sm:$0xff] %v2461
        %v2463 = vld [vmem:[%s2141 + $0x280] sm:$0xff]
        %2464 = vst [vmem:[%s2142 + $0x280] sm:$0xff] %v2463
        %v2465 = vld [vmem:[%s2141 + $0x2a0] sm:$0xff]
        %2466 = vst [vmem:[%s2142 + $0x284] sm:$0xff] %v2465
        %v2467 = vld [vmem:[%s2141 + $0x284] sm:$0xff]
        %2468 = vst [vmem:[%s2142 + $0x288] sm:$0xff] %v2467
        %v2469 = vld [vmem:[%s2141 + $0x2a4] sm:$0xff]
        %2470 = vst [vmem:[%s2142 + $0x28c] sm:$0xff] %v2469
        %v2471 = vld [vmem:[%s2141 + $0x288] sm:$0xff]
        %2472 = vst [vmem:[%s2142 + $0x290] sm:$0xff] %v2471
        %v2473 = vld [vmem:[%s2141 + $0x2a8] sm:$0xff]
        %2474 = vst [vmem:[%s2142 + $0x294] sm:$0xff] %v2473
        %v2475 = vld [vmem:[%s2141 + $0x28c] sm:$0xff]
        %2476 = vst [vmem:[%s2142 + $0x298] sm:$0xff] %v2475
        %v2477 = vld [vmem:[%s2141 + $0x2ac] sm:$0xff]
        %2478 = vst [vmem:[%s2142 + $0x29c] sm:$0xff] %v2477
        %v2479 = vld [vmem:[%s2141 + $0x290] sm:$0xff]
        %2480 = vst [vmem:[%s2142 + $0x2a0] sm:$0xff] %v2479
        %v2481 = vld [vmem:[%s2141 + $0x2b0] sm:$0xff]
        %2482 = vst [vmem:[%s2142 + $0x2a4] sm:$0xff] %v2481
        %v2483 = vld [vmem:[%s2141 + $0x294] sm:$0xff]
        %2484 = vst [vmem:[%s2142 + $0x2a8] sm:$0xff] %v2483
        %v2485 = vld [vmem:[%s2141 + $0x2b4] sm:$0xff]
        %2486 = vst [vmem:[%s2142 + $0x2ac] sm:$0xff] %v2485
        %v2487 = vld [vmem:[%s2141 + $0x298] sm:$0xff]
        %2488 = vst [vmem:[%s2142 + $0x2b0] sm:$0xff] %v2487
        %v2489 = vld [vmem:[%s2141 + $0x2b8] sm:$0xff]
        %2490 = vst [vmem:[%s2142 + $0x2b4] sm:$0xff] %v2489
        %v2491 = vld [vmem:[%s2141 + $0x29c] sm:$0xff]
        %2492 = vst [vmem:[%s2142 + $0x2b8] sm:$0xff] %v2491
        %v2493 = vld [vmem:[%s2141 + $0x2bc] sm:$0xff]
        %2494 = vst [vmem:[%s2142 + $0x2bc] sm:$0xff] %v2493
        %v2495 = vld [vmem:[%s2141 + $0x2c0] sm:$0xff]
        %2496 = vst [vmem:[%s2142 + $0x2c0] sm:$0xff] %v2495
        %v2497 = vld [vmem:[%s2141 + $0x2e0] sm:$0xff]
        %2498 = vst [vmem:[%s2142 + $0x2c4] sm:$0xff] %v2497
        %v2499 = vld [vmem:[%s2141 + $0x2c4] sm:$0xff]
        %2500 = vst [vmem:[%s2142 + $0x2c8] sm:$0xff] %v2499
        %v2501 = vld [vmem:[%s2141 + $0x2e4] sm:$0xff]
        %2502 = vst [vmem:[%s2142 + $0x2cc] sm:$0xff] %v2501
        %v2503 = vld [vmem:[%s2141 + $0x2c8] sm:$0xff]
        %2504 = vst [vmem:[%s2142 + $0x2d0] sm:$0xff] %v2503
        %v2505 = vld [vmem:[%s2141 + $0x2e8] sm:$0xff]
        %2506 = vst [vmem:[%s2142 + $0x2d4] sm:$0xff] %v2505
        %v2507 = vld [vmem:[%s2141 + $0x2cc] sm:$0xff]
        %2508 = vst [vmem:[%s2142 + $0x2d8] sm:$0xff] %v2507
        %v2509 = vld [vmem:[%s2141 + $0x2ec] sm:$0xff]
        %2510 = vst [vmem:[%s2142 + $0x2dc] sm:$0xff] %v2509
        %v2511 = vld [vmem:[%s2141 + $0x2d0] sm:$0xff]
        %2512 = vst [vmem:[%s2142 + $0x2e0] sm:$0xff] %v2511
        %v2513 = vld [vmem:[%s2141 + $0x2f0] sm:$0xff]
        %2514 = vst [vmem:[%s2142 + $0x2e4] sm:$0xff] %v2513
        %v2515 = vld [vmem:[%s2141 + $0x2d4] sm:$0xff]
        %2516 = vst [vmem:[%s2142 + $0x2e8] sm:$0xff] %v2515
        %v2517 = vld [vmem:[%s2141 + $0x2f4] sm:$0xff]
        %2518 = vst [vmem:[%s2142 + $0x2ec] sm:$0xff] %v2517
        %v2519 = vld [vmem:[%s2141 + $0x2d8] sm:$0xff]
        %2520 = vst [vmem:[%s2142 + $0x2f0] sm:$0xff] %v2519
        %v2521 = vld [vmem:[%s2141 + $0x2f8] sm:$0xff]
        %2522 = vst [vmem:[%s2142 + $0x2f4] sm:$0xff] %v2521
        %v2523 = vld [vmem:[%s2141 + $0x2dc] sm:$0xff]
        %2524 = vst [vmem:[%s2142 + $0x2f8] sm:$0xff] %v2523
        %v2525 = vld [vmem:[%s2141 + $0x2fc] sm:$0xff]
        %2526 = vst [vmem:[%s2142 + $0x2fc] sm:$0xff] %v2525
        %v2527 = vld [vmem:[%s2141 + $0x300] sm:$0xff]
        %2528 = vst [vmem:[%s2142 + $0x300] sm:$0xff] %v2527
        %v2529 = vld [vmem:[%s2141 + $0x320] sm:$0xff]
        %2530 = vst [vmem:[%s2142 + $0x304] sm:$0xff] %v2529
        %v2531 = vld [vmem:[%s2141 + $0x304] sm:$0xff]
        %2532 = vst [vmem:[%s2142 + $0x308] sm:$0xff] %v2531
        %v2533 = vld [vmem:[%s2141 + $0x324] sm:$0xff]
        %2534 = vst [vmem:[%s2142 + $0x30c] sm:$0xff] %v2533
        %v2535 = vld [vmem:[%s2141 + $0x308] sm:$0xff]
        %2536 = vst [vmem:[%s2142 + $0x310] sm:$0xff] %v2535
        %v2537 = vld [vmem:[%s2141 + $0x328] sm:$0xff]
        %2538 = vst [vmem:[%s2142 + $0x314] sm:$0xff] %v2537
        %v2539 = vld [vmem:[%s2141 + $0x30c] sm:$0xff]
        %2540 = vst [vmem:[%s2142 + $0x318] sm:$0xff] %v2539
        %v2541 = vld [vmem:[%s2141 + $0x32c] sm:$0xff]
        %2542 = vst [vmem:[%s2142 + $0x31c] sm:$0xff] %v2541
        %v2543 = vld [vmem:[%s2141 + $0x310] sm:$0xff]
        %2544 = vst [vmem:[%s2142 + $0x320] sm:$0xff] %v2543
        %v2545 = vld [vmem:[%s2141 + $0x330] sm:$0xff]
        %2546 = vst [vmem:[%s2142 + $0x324] sm:$0xff] %v2545
        %v2547 = vld [vmem:[%s2141 + $0x314] sm:$0xff]
        %2548 = vst [vmem:[%s2142 + $0x328] sm:$0xff] %v2547
        %v2549 = vld [vmem:[%s2141 + $0x334] sm:$0xff]
        %2550 = vst [vmem:[%s2142 + $0x32c] sm:$0xff] %v2549
        %v2551 = vld [vmem:[%s2141 + $0x318] sm:$0xff]
        %2552 = vst [vmem:[%s2142 + $0x330] sm:$0xff] %v2551
        %v2553 = vld [vmem:[%s2141 + $0x338] sm:$0xff]
        %2554 = vst [vmem:[%s2142 + $0x334] sm:$0xff] %v2553
        %v2555 = vld [vmem:[%s2141 + $0x31c] sm:$0xff]
        %2556 = vst [vmem:[%s2142 + $0x338] sm:$0xff] %v2555
        %v2557 = vld [vmem:[%s2141 + $0x33c] sm:$0xff]
        %2558 = vst [vmem:[%s2142 + $0x33c] sm:$0xff] %v2557
        %v2559 = vld [vmem:[%s2141 + $0x340] sm:$0xff]
        %2560 = vst [vmem:[%s2142 + $0x340] sm:$0xff] %v2559
        %v2561 = vld [vmem:[%s2141 + $0x360] sm:$0xff]
        %2562 = vst [vmem:[%s2142 + $0x344] sm:$0xff] %v2561
        %v2563 = vld [vmem:[%s2141 + $0x344] sm:$0xff]
        %2564 = vst [vmem:[%s2142 + $0x348] sm:$0xff] %v2563
        %v2565 = vld [vmem:[%s2141 + $0x364] sm:$0xff]
        %2566 = vst [vmem:[%s2142 + $0x34c] sm:$0xff] %v2565
        %v2567 = vld [vmem:[%s2141 + $0x348] sm:$0xff]
        %2568 = vst [vmem:[%s2142 + $0x350] sm:$0xff] %v2567
        %v2569 = vld [vmem:[%s2141 + $0x368] sm:$0xff]
        %2570 = vst [vmem:[%s2142 + $0x354] sm:$0xff] %v2569
        %v2571 = vld [vmem:[%s2141 + $0x34c] sm:$0xff]
        %2572 = vst [vmem:[%s2142 + $0x358] sm:$0xff] %v2571
        %v2573 = vld [vmem:[%s2141 + $0x36c] sm:$0xff]
        %2574 = vst [vmem:[%s2142 + $0x35c] sm:$0xff] %v2573
        %v2575 = vld [vmem:[%s2141 + $0x350] sm:$0xff]
        %2576 = vst [vmem:[%s2142 + $0x360] sm:$0xff] %v2575
        %v2577 = vld [vmem:[%s2141 + $0x370] sm:$0xff]
        %2578 = vst [vmem:[%s2142 + $0x364] sm:$0xff] %v2577
        %v2579 = vld [vmem:[%s2141 + $0x354] sm:$0xff]
        %2580 = vst [vmem:[%s2142 + $0x368] sm:$0xff] %v2579
        %v2581 = vld [vmem:[%s2141 + $0x374] sm:$0xff]
        %2582 = vst [vmem:[%s2142 + $0x36c] sm:$0xff] %v2581
        %v2583 = vld [vmem:[%s2141 + $0x358] sm:$0xff]
        %2584 = vst [vmem:[%s2142 + $0x370] sm:$0xff] %v2583
        %v2585 = vld [vmem:[%s2141 + $0x378] sm:$0xff]
        %2586 = vst [vmem:[%s2142 + $0x374] sm:$0xff] %v2585
        %v2587 = vld [vmem:[%s2141 + $0x35c] sm:$0xff]
        %2588 = vst [vmem:[%s2142 + $0x378] sm:$0xff] %v2587
        %v2589 = vld [vmem:[%s2141 + $0x37c] sm:$0xff]
        %2590 = vst [vmem:[%s2142 + $0x37c] sm:$0xff] %v2589
        %v2591 = vld [vmem:[%s2141 + $0x380] sm:$0xff]
        %2592 = vst [vmem:[%s2142 + $0x380] sm:$0xff] %v2591
        %v2593 = vld [vmem:[%s2141 + $0x3a0] sm:$0xff]
        %2594 = vst [vmem:[%s2142 + $0x384] sm:$0xff] %v2593
        %v2595 = vld [vmem:[%s2141 + $0x384] sm:$0xff]
        %2596 = vst [vmem:[%s2142 + $0x388] sm:$0xff] %v2595
        %v2597 = vld [vmem:[%s2141 + $0x3a4] sm:$0xff]
        %2598 = vst [vmem:[%s2142 + $0x38c] sm:$0xff] %v2597
        %v2599 = vld [vmem:[%s2141 + $0x388] sm:$0xff]
        %2600 = vst [vmem:[%s2142 + $0x390] sm:$0xff] %v2599
        %v2601 = vld [vmem:[%s2141 + $0x3a8] sm:$0xff]
        %2602 = vst [vmem:[%s2142 + $0x394] sm:$0xff] %v2601
        %v2603 = vld [vmem:[%s2141 + $0x38c] sm:$0xff]
        %2604 = vst [vmem:[%s2142 + $0x398] sm:$0xff] %v2603
        %v2605 = vld [vmem:[%s2141 + $0x3ac] sm:$0xff]
        %2606 = vst [vmem:[%s2142 + $0x39c] sm:$0xff] %v2605
        %v2607 = vld [vmem:[%s2141 + $0x390] sm:$0xff]
        %2608 = vst [vmem:[%s2142 + $0x3a0] sm:$0xff] %v2607
        %v2609 = vld [vmem:[%s2141 + $0x3b0] sm:$0xff]
        %2610 = vst [vmem:[%s2142 + $0x3a4] sm:$0xff] %v2609
        %v2611 = vld [vmem:[%s2141 + $0x394] sm:$0xff]
        %2612 = vst [vmem:[%s2142 + $0x3a8] sm:$0xff] %v2611
        %v2613 = vld [vmem:[%s2141 + $0x3b4] sm:$0xff]
        %2614 = vst [vmem:[%s2142 + $0x3ac] sm:$0xff] %v2613
        %v2615 = vld [vmem:[%s2141 + $0x398] sm:$0xff]
        %2616 = vst [vmem:[%s2142 + $0x3b0] sm:$0xff] %v2615
        %v2617 = vld [vmem:[%s2141 + $0x3b8] sm:$0xff]
        %2618 = vst [vmem:[%s2142 + $0x3b4] sm:$0xff] %v2617
        %v2619 = vld [vmem:[%s2141 + $0x39c] sm:$0xff]
        %2620 = vst [vmem:[%s2142 + $0x3b8] sm:$0xff] %v2619
        %v2621 = vld [vmem:[%s2141 + $0x3bc] sm:$0xff]
        %2622 = vst [vmem:[%s2142 + $0x3bc] sm:$0xff] %v2621
        %v2623 = vld [vmem:[%s2141 + $0x3c0] sm:$0xff]
        %2624 = vst [vmem:[%s2142 + $0x3c0] sm:$0xff] %v2623
        %v2625 = vld [vmem:[%s2141 + $0x3e0] sm:$0xff]
        %2626 = vst [vmem:[%s2142 + $0x3c4] sm:$0xff] %v2625
        %v2627 = vld [vmem:[%s2141 + $0x3c4] sm:$0xff]
        %2628 = vst [vmem:[%s2142 + $0x3c8] sm:$0xff] %v2627
        %v2629 = vld [vmem:[%s2141 + $0x3e4] sm:$0xff]
        %2630 = vst [vmem:[%s2142 + $0x3cc] sm:$0xff] %v2629
        %v2631 = vld [vmem:[%s2141 + $0x3c8] sm:$0xff]
        %2632 = vst [vmem:[%s2142 + $0x3d0] sm:$0xff] %v2631
        %v2633 = vld [vmem:[%s2141 + $0x3e8] sm:$0xff]
        %2634 = vst [vmem:[%s2142 + $0x3d4] sm:$0xff] %v2633
        %v2635 = vld [vmem:[%s2141 + $0x3cc] sm:$0xff]
        %2636 = vst [vmem:[%s2142 + $0x3d8] sm:$0xff] %v2635
        %v2637 = vld [vmem:[%s2141 + $0x3ec] sm:$0xff]
        %2638 = vst [vmem:[%s2142 + $0x3dc] sm:$0xff] %v2637
        %v2639 = vld [vmem:[%s2141 + $0x3d0] sm:$0xff]
        %2640 = vst [vmem:[%s2142 + $0x3e0] sm:$0xff] %v2639
        %v2641 = vld [vmem:[%s2141 + $0x3f0] sm:$0xff]
        %2642 = vst [vmem:[%s2142 + $0x3e4] sm:$0xff] %v2641
        %v2643 = vld [vmem:[%s2141 + $0x3d4] sm:$0xff]
        %2644 = vst [vmem:[%s2142 + $0x3e8] sm:$0xff] %v2643
        %v2645 = vld [vmem:[%s2141 + $0x3f4] sm:$0xff]
        %2646 = vst [vmem:[%s2142 + $0x3ec] sm:$0xff] %v2645
        %v2647 = vld [vmem:[%s2141 + $0x3d8] sm:$0xff]
        %2648 = vst [vmem:[%s2142 + $0x3f0] sm:$0xff] %v2647
        %v2649 = vld [vmem:[%s2141 + $0x3f8] sm:$0xff]
        %2650 = vst [vmem:[%s2142 + $0x3f4] sm:$0xff] %v2649
        %v2651 = vld [vmem:[%s2141 + $0x3dc] sm:$0xff]
        %2652 = vst [vmem:[%s2142 + $0x3f8] sm:$0xff] %v2651
        %v2653 = vld [vmem:[%s2141 + $0x3fc] sm:$0xff]
        %2654 = vst [vmem:[%s2142 + $0x3fc] sm:$0xff] %v2653
        %v2655 = vld [vmem:[%s2141 + $0x400] sm:$0xff]
        %2656 = vst [vmem:[%s2142 + $0x400] sm:$0xff] %v2655
        %v2657 = vld [vmem:[%s2141 + $0x420] sm:$0xff]
        %2658 = vst [vmem:[%s2142 + $0x404] sm:$0xff] %v2657
        %v2659 = vld [vmem:[%s2141 + $0x404] sm:$0xff]
        %2660 = vst [vmem:[%s2142 + $0x408] sm:$0xff] %v2659
        %v2661 = vld [vmem:[%s2141 + $0x424] sm:$0xff]
        %2662 = vst [vmem:[%s2142 + $0x40c] sm:$0xff] %v2661
        %v2663 = vld [vmem:[%s2141 + $0x408] sm:$0xff]
        %2664 = vst [vmem:[%s2142 + $0x410] sm:$0xff] %v2663
        %v2665 = vld [vmem:[%s2141 + $0x428] sm:$0xff]
        %2666 = vst [vmem:[%s2142 + $0x414] sm:$0xff] %v2665
        %v2667 = vld [vmem:[%s2141 + $0x40c] sm:$0xff]
        %2668 = vst [vmem:[%s2142 + $0x418] sm:$0xff] %v2667
        %v2669 = vld [vmem:[%s2141 + $0x42c] sm:$0xff]
        %2670 = vst [vmem:[%s2142 + $0x41c] sm:$0xff] %v2669
        %v2671 = vld [vmem:[%s2141 + $0x410] sm:$0xff]
        %2672 = vst [vmem:[%s2142 + $0x420] sm:$0xff] %v2671
        %v2673 = vld [vmem:[%s2141 + $0x430] sm:$0xff]
        %2674 = vst [vmem:[%s2142 + $0x424] sm:$0xff] %v2673
        %v2675 = vld [vmem:[%s2141 + $0x414] sm:$0xff]
        %2676 = vst [vmem:[%s2142 + $0x428] sm:$0xff] %v2675
        %v2677 = vld [vmem:[%s2141 + $0x434] sm:$0xff]
        %2678 = vst [vmem:[%s2142 + $0x42c] sm:$0xff] %v2677
        %v2679 = vld [vmem:[%s2141 + $0x418] sm:$0xff]
        %2680 = vst [vmem:[%s2142 + $0x430] sm:$0xff] %v2679
        %v2681 = vld [vmem:[%s2141 + $0x438] sm:$0xff]
        %2682 = vst [vmem:[%s2142 + $0x434] sm:$0xff] %v2681
        %v2683 = vld [vmem:[%s2141 + $0x41c] sm:$0xff]
        %2684 = vst [vmem:[%s2142 + $0x438] sm:$0xff] %v2683
        %v2685 = vld [vmem:[%s2141 + $0x43c] sm:$0xff]
        %2686 = vst [vmem:[%s2142 + $0x43c] sm:$0xff] %v2685
        %v2687 = vld [vmem:[%s2141 + $0x440] sm:$0xff]
        %2688 = vst [vmem:[%s2142 + $0x440] sm:$0xff] %v2687
        %v2689 = vld [vmem:[%s2141 + $0x460] sm:$0xff]
        %2690 = vst [vmem:[%s2142 + $0x444] sm:$0xff] %v2689
        %v2691 = vld [vmem:[%s2141 + $0x444] sm:$0xff]
        %2692 = vst [vmem:[%s2142 + $0x448] sm:$0xff] %v2691
        %v2693 = vld [vmem:[%s2141 + $0x464] sm:$0xff]
        %2694 = vst [vmem:[%s2142 + $0x44c] sm:$0xff] %v2693
        %v2695 = vld [vmem:[%s2141 + $0x448] sm:$0xff]
        %2696 = vst [vmem:[%s2142 + $0x450] sm:$0xff] %v2695
        %v2697 = vld [vmem:[%s2141 + $0x468] sm:$0xff]
        %2698 = vst [vmem:[%s2142 + $0x454] sm:$0xff] %v2697
        %v2699 = vld [vmem:[%s2141 + $0x44c] sm:$0xff]
        %2700 = vst [vmem:[%s2142 + $0x458] sm:$0xff] %v2699
        %v2701 = vld [vmem:[%s2141 + $0x46c] sm:$0xff]
        %2702 = vst [vmem:[%s2142 + $0x45c] sm:$0xff] %v2701
        %v2703 = vld [vmem:[%s2141 + $0x450] sm:$0xff]
        %2704 = vst [vmem:[%s2142 + $0x460] sm:$0xff] %v2703
        %v2705 = vld [vmem:[%s2141 + $0x470] sm:$0xff]
        %2706 = vst [vmem:[%s2142 + $0x464] sm:$0xff] %v2705
        %v2707 = vld [vmem:[%s2141 + $0x454] sm:$0xff]
        %2708 = vst [vmem:[%s2142 + $0x468] sm:$0xff] %v2707
        %v2709 = vld [vmem:[%s2141 + $0x474] sm:$0xff]
        %2710 = vst [vmem:[%s2142 + $0x46c] sm:$0xff] %v2709
        %v2711 = vld [vmem:[%s2141 + $0x458] sm:$0xff]
        %2712 = vst [vmem:[%s2142 + $0x470] sm:$0xff] %v2711
        %v2713 = vld [vmem:[%s2141 + $0x478] sm:$0xff]
        %2714 = vst [vmem:[%s2142 + $0x474] sm:$0xff] %v2713
        %v2715 = vld [vmem:[%s2141 + $0x45c] sm:$0xff]
        %2716 = vst [vmem:[%s2142 + $0x478] sm:$0xff] %v2715
        %v2717 = vld [vmem:[%s2141 + $0x47c] sm:$0xff]
        %2718 = vst [vmem:[%s2142 + $0x47c] sm:$0xff] %v2717
        %v2719 = vld [vmem:[%s2141 + $0x480] sm:$0xff]
        %2720 = vst [vmem:[%s2142 + $0x480] sm:$0xff] %v2719
        %v2721 = vld [vmem:[%s2141 + $0x4a0] sm:$0xff]
        %2722 = vst [vmem:[%s2142 + $0x484] sm:$0xff] %v2721
        %v2723 = vld [vmem:[%s2141 + $0x484] sm:$0xff]
        %2724 = vst [vmem:[%s2142 + $0x488] sm:$0xff] %v2723
        %v2725 = vld [vmem:[%s2141 + $0x4a4] sm:$0xff]
        %2726 = vst [vmem:[%s2142 + $0x48c] sm:$0xff] %v2725
        %v2727 = vld [vmem:[%s2141 + $0x488] sm:$0xff]
        %2728 = vst [vmem:[%s2142 + $0x490] sm:$0xff] %v2727
        %v2729 = vld [vmem:[%s2141 + $0x4a8] sm:$0xff]
        %2730 = vst [vmem:[%s2142 + $0x494] sm:$0xff] %v2729
        %v2731 = vld [vmem:[%s2141 + $0x48c] sm:$0xff]
        %2732 = vst [vmem:[%s2142 + $0x498] sm:$0xff] %v2731
        %v2733 = vld [vmem:[%s2141 + $0x4ac] sm:$0xff]
        %2734 = vst [vmem:[%s2142 + $0x49c] sm:$0xff] %v2733
        %v2735 = vld [vmem:[%s2141 + $0x490] sm:$0xff]
        %2736 = vst [vmem:[%s2142 + $0x4a0] sm:$0xff] %v2735
        %v2737 = vld [vmem:[%s2141 + $0x4b0] sm:$0xff]
        %2738 = vst [vmem:[%s2142 + $0x4a4] sm:$0xff] %v2737
        %v2739 = vld [vmem:[%s2141 + $0x494] sm:$0xff]
        %2740 = vst [vmem:[%s2142 + $0x4a8] sm:$0xff] %v2739
        %v2741 = vld [vmem:[%s2141 + $0x4b4] sm:$0xff]
        %2742 = vst [vmem:[%s2142 + $0x4ac] sm:$0xff] %v2741
        %v2743 = vld [vmem:[%s2141 + $0x498] sm:$0xff]
        %2744 = vst [vmem:[%s2142 + $0x4b0] sm:$0xff] %v2743
        %v2745 = vld [vmem:[%s2141 + $0x4b8] sm:$0xff]
        %2746 = vst [vmem:[%s2142 + $0x4b4] sm:$0xff] %v2745
        %v2747 = vld [vmem:[%s2141 + $0x49c] sm:$0xff]
        %2748 = vst [vmem:[%s2142 + $0x4b8] sm:$0xff] %v2747
        %v2749 = vld [vmem:[%s2141 + $0x4bc] sm:$0xff]
        %2750 = vst [vmem:[%s2142 + $0x4bc] sm:$0xff] %v2749
        %v2751 = vld [vmem:[%s2141 + $0x4c0] sm:$0xff]
        %2752 = vst [vmem:[%s2142 + $0x4c0] sm:$0xff] %v2751
        %v2753 = vld [vmem:[%s2141 + $0x4e0] sm:$0xff]
        %2754 = vst [vmem:[%s2142 + $0x4c4] sm:$0xff] %v2753
        %v2755 = vld [vmem:[%s2141 + $0x4c4] sm:$0xff]
        %2756 = vst [vmem:[%s2142 + $0x4c8] sm:$0xff] %v2755
        %v2757 = vld [vmem:[%s2141 + $0x4e4] sm:$0xff]
        %2758 = vst [vmem:[%s2142 + $0x4cc] sm:$0xff] %v2757
        %v2759 = vld [vmem:[%s2141 + $0x4c8] sm:$0xff]
        %2760 = vst [vmem:[%s2142 + $0x4d0] sm:$0xff] %v2759
        %v2761 = vld [vmem:[%s2141 + $0x4e8] sm:$0xff]
        %2762 = vst [vmem:[%s2142 + $0x4d4] sm:$0xff] %v2761
        %v2763 = vld [vmem:[%s2141 + $0x4cc] sm:$0xff]
        %2764 = vst [vmem:[%s2142 + $0x4d8] sm:$0xff] %v2763
        %v2765 = vld [vmem:[%s2141 + $0x4ec] sm:$0xff]
        %2766 = vst [vmem:[%s2142 + $0x4dc] sm:$0xff] %v2765
        %v2767 = vld [vmem:[%s2141 + $0x4d0] sm:$0xff]
        %2768 = vst [vmem:[%s2142 + $0x4e0] sm:$0xff] %v2767
        %v2769 = vld [vmem:[%s2141 + $0x4f0] sm:$0xff]
        %2770 = vst [vmem:[%s2142 + $0x4e4] sm:$0xff] %v2769
        %v2771 = vld [vmem:[%s2141 + $0x4d4] sm:$0xff]
        %2772 = vst [vmem:[%s2142 + $0x4e8] sm:$0xff] %v2771
        %v2773 = vld [vmem:[%s2141 + $0x4f4] sm:$0xff]
        %2774 = vst [vmem:[%s2142 + $0x4ec] sm:$0xff] %v2773
        %v2775 = vld [vmem:[%s2141 + $0x4d8] sm:$0xff]
        %2776 = vst [vmem:[%s2142 + $0x4f0] sm:$0xff] %v2775
        %v2777 = vld [vmem:[%s2141 + $0x4f8] sm:$0xff]
        %2778 = vst [vmem:[%s2142 + $0x4f4] sm:$0xff] %v2777
        %v2779 = vld [vmem:[%s2141 + $0x4dc] sm:$0xff]
        %2780 = vst [vmem:[%s2142 + $0x4f8] sm:$0xff] %v2779
        %v2781 = vld [vmem:[%s2141 + $0x4fc] sm:$0xff]
        %2782 = vst [vmem:[%s2142 + $0x4fc] sm:$0xff] %v2781
        %v2783 = vld [vmem:[%s2141 + $0x500] sm:$0xff]
        %2784 = vst [vmem:[%s2142 + $0x500] sm:$0xff] %v2783
        %v2785 = vld [vmem:[%s2141 + $0x520] sm:$0xff]
        %2786 = vst [vmem:[%s2142 + $0x504] sm:$0xff] %v2785
        %v2787 = vld [vmem:[%s2141 + $0x504] sm:$0xff]
        %2788 = vst [vmem:[%s2142 + $0x508] sm:$0xff] %v2787
        %v2789 = vld [vmem:[%s2141 + $0x524] sm:$0xff]
        %2790 = vst [vmem:[%s2142 + $0x50c] sm:$0xff] %v2789
        %v2791 = vld [vmem:[%s2141 + $0x508] sm:$0xff]
        %2792 = vst [vmem:[%s2142 + $0x510] sm:$0xff] %v2791
        %v2793 = vld [vmem:[%s2141 + $0x528] sm:$0xff]
        %2794 = vst [vmem:[%s2142 + $0x514] sm:$0xff] %v2793
        %v2795 = vld [vmem:[%s2141 + $0x50c] sm:$0xff]
        %2796 = vst [vmem:[%s2142 + $0x518] sm:$0xff] %v2795
        %v2797 = vld [vmem:[%s2141 + $0x52c] sm:$0xff]
        %2798 = vst [vmem:[%s2142 + $0x51c] sm:$0xff] %v2797
        %v2799 = vld [vmem:[%s2141 + $0x510] sm:$0xff]
        %2800 = vst [vmem:[%s2142 + $0x520] sm:$0xff] %v2799
        %v2801 = vld [vmem:[%s2141 + $0x530] sm:$0xff]
        %2802 = vst [vmem:[%s2142 + $0x524] sm:$0xff] %v2801
        %v2803 = vld [vmem:[%s2141 + $0x514] sm:$0xff]
        %2804 = vst [vmem:[%s2142 + $0x528] sm:$0xff] %v2803
        %v2805 = vld [vmem:[%s2141 + $0x534] sm:$0xff]
        %2806 = vst [vmem:[%s2142 + $0x52c] sm:$0xff] %v2805
        %v2807 = vld [vmem:[%s2141 + $0x518] sm:$0xff]
        %2808 = vst [vmem:[%s2142 + $0x530] sm:$0xff] %v2807
        %v2809 = vld [vmem:[%s2141 + $0x538] sm:$0xff]
        %2810 = vst [vmem:[%s2142 + $0x534] sm:$0xff] %v2809
        %v2811 = vld [vmem:[%s2141 + $0x51c] sm:$0xff]
        %2812 = vst [vmem:[%s2142 + $0x538] sm:$0xff] %v2811
        %v2813 = vld [vmem:[%s2141 + $0x53c] sm:$0xff]
        %2814 = vst [vmem:[%s2142 + $0x53c] sm:$0xff] %v2813
        %v2815 = vld [vmem:[%s2141 + $0x540] sm:$0xff]
        %2816 = vst [vmem:[%s2142 + $0x540] sm:$0xff] %v2815
        %v2817 = vld [vmem:[%s2141 + $0x560] sm:$0xff]
        %2818 = vst [vmem:[%s2142 + $0x544] sm:$0xff] %v2817
        %v2819 = vld [vmem:[%s2141 + $0x544] sm:$0xff]
        %2820 = vst [vmem:[%s2142 + $0x548] sm:$0xff] %v2819
        %v2821 = vld [vmem:[%s2141 + $0x564] sm:$0xff]
        %2822 = vst [vmem:[%s2142 + $0x54c] sm:$0xff] %v2821
        %v2823 = vld [vmem:[%s2141 + $0x548] sm:$0xff]
        %2824 = vst [vmem:[%s2142 + $0x550] sm:$0xff] %v2823
        %v2825 = vld [vmem:[%s2141 + $0x568] sm:$0xff]
        %2826 = vst [vmem:[%s2142 + $0x554] sm:$0xff] %v2825
        %v2827 = vld [vmem:[%s2141 + $0x54c] sm:$0xff]
        %2828 = vst [vmem:[%s2142 + $0x558] sm:$0xff] %v2827
        %v2829 = vld [vmem:[%s2141 + $0x56c] sm:$0xff]
        %2830 = vst [vmem:[%s2142 + $0x55c] sm:$0xff] %v2829
        %v2831 = vld [vmem:[%s2141 + $0x550] sm:$0xff]
        %2832 = vst [vmem:[%s2142 + $0x560] sm:$0xff] %v2831
        %v2833 = vld [vmem:[%s2141 + $0x570] sm:$0xff]
        %2834 = vst [vmem:[%s2142 + $0x564] sm:$0xff] %v2833
        %v2835 = vld [vmem:[%s2141 + $0x554] sm:$0xff]
        %2836 = vst [vmem:[%s2142 + $0x568] sm:$0xff] %v2835
        %v2837 = vld [vmem:[%s2141 + $0x574] sm:$0xff]
        %2838 = vst [vmem:[%s2142 + $0x56c] sm:$0xff] %v2837
        %v2839 = vld [vmem:[%s2141 + $0x558] sm:$0xff]
        %2840 = vst [vmem:[%s2142 + $0x570] sm:$0xff] %v2839
        %v2841 = vld [vmem:[%s2141 + $0x578] sm:$0xff]
        %2842 = vst [vmem:[%s2142 + $0x574] sm:$0xff] %v2841
        %v2843 = vld [vmem:[%s2141 + $0x55c] sm:$0xff]
        %2844 = vst [vmem:[%s2142 + $0x578] sm:$0xff] %v2843
        %v2845 = vld [vmem:[%s2141 + $0x57c] sm:$0xff]
        %2846 = vst [vmem:[%s2142 + $0x57c] sm:$0xff] %v2845
        %v2847 = vld [vmem:[%s2141 + $0x580] sm:$0xff]
        %2848 = vst [vmem:[%s2142 + $0x580] sm:$0xff] %v2847
        %v2849 = vld [vmem:[%s2141 + $0x5a0] sm:$0xff]
        %2850 = vst [vmem:[%s2142 + $0x584] sm:$0xff] %v2849
        %v2851 = vld [vmem:[%s2141 + $0x584] sm:$0xff]
        %2852 = vst [vmem:[%s2142 + $0x588] sm:$0xff] %v2851
        %v2853 = vld [vmem:[%s2141 + $0x5a4] sm:$0xff]
        %2854 = vst [vmem:[%s2142 + $0x58c] sm:$0xff] %v2853
        %v2855 = vld [vmem:[%s2141 + $0x588] sm:$0xff]
        %2856 = vst [vmem:[%s2142 + $0x590] sm:$0xff] %v2855
        %v2857 = vld [vmem:[%s2141 + $0x5a8] sm:$0xff]
        %2858 = vst [vmem:[%s2142 + $0x594] sm:$0xff] %v2857
        %v2859 = vld [vmem:[%s2141 + $0x58c] sm:$0xff]
        %2860 = vst [vmem:[%s2142 + $0x598] sm:$0xff] %v2859
        %v2861 = vld [vmem:[%s2141 + $0x5ac] sm:$0xff]
        %2862 = vst [vmem:[%s2142 + $0x59c] sm:$0xff] %v2861
        %v2863 = vld [vmem:[%s2141 + $0x590] sm:$0xff]
        %2864 = vst [vmem:[%s2142 + $0x5a0] sm:$0xff] %v2863
        %v2865 = vld [vmem:[%s2141 + $0x5b0] sm:$0xff]
        %2866 = vst [vmem:[%s2142 + $0x5a4] sm:$0xff] %v2865
        %v2867 = vld [vmem:[%s2141 + $0x594] sm:$0xff]
        %2868 = vst [vmem:[%s2142 + $0x5a8] sm:$0xff] %v2867
        %v2869 = vld [vmem:[%s2141 + $0x5b4] sm:$0xff]
        %2870 = vst [vmem:[%s2142 + $0x5ac] sm:$0xff] %v2869
        %v2871 = vld [vmem:[%s2141 + $0x598] sm:$0xff]
        %2872 = vst [vmem:[%s2142 + $0x5b0] sm:$0xff] %v2871
        %v2873 = vld [vmem:[%s2141 + $0x5b8] sm:$0xff]
        %2874 = vst [vmem:[%s2142 + $0x5b4] sm:$0xff] %v2873
        %v2875 = vld [vmem:[%s2141 + $0x59c] sm:$0xff]
        %2876 = vst [vmem:[%s2142 + $0x5b8] sm:$0xff] %v2875
        %v2877 = vld [vmem:[%s2141 + $0x5bc] sm:$0xff]
        %2878 = vst [vmem:[%s2142 + $0x5bc] sm:$0xff] %v2877
        %v2879 = vld [vmem:[%s2141 + $0x5c0] sm:$0xff]
        %2880 = vst [vmem:[%s2142 + $0x5c0] sm:$0xff] %v2879
        %v2881 = vld [vmem:[%s2141 + $0x5e0] sm:$0xff]
        %2882 = vst [vmem:[%s2142 + $0x5c4] sm:$0xff] %v2881
        %v2883 = vld [vmem:[%s2141 + $0x5c4] sm:$0xff]
        %2884 = vst [vmem:[%s2142 + $0x5c8] sm:$0xff] %v2883
        %v2885 = vld [vmem:[%s2141 + $0x5e4] sm:$0xff]
        %2886 = vst [vmem:[%s2142 + $0x5cc] sm:$0xff] %v2885
        %v2887 = vld [vmem:[%s2141 + $0x5c8] sm:$0xff]
        %2888 = vst [vmem:[%s2142 + $0x5d0] sm:$0xff] %v2887
        %v2889 = vld [vmem:[%s2141 + $0x5e8] sm:$0xff]
        %2890 = vst [vmem:[%s2142 + $0x5d4] sm:$0xff] %v2889
        %v2891 = vld [vmem:[%s2141 + $0x5cc] sm:$0xff]
        %2892 = vst [vmem:[%s2142 + $0x5d8] sm:$0xff] %v2891
        %v2893 = vld [vmem:[%s2141 + $0x5ec] sm:$0xff]
        %2894 = vst [vmem:[%s2142 + $0x5dc] sm:$0xff] %v2893
        %v2895 = vld [vmem:[%s2141 + $0x5d0] sm:$0xff]
        %2896 = vst [vmem:[%s2142 + $0x5e0] sm:$0xff] %v2895
        %v2897 = vld [vmem:[%s2141 + $0x5f0] sm:$0xff]
        %2898 = vst [vmem:[%s2142 + $0x5e4] sm:$0xff] %v2897
        %v2899 = vld [vmem:[%s2141 + $0x5d4] sm:$0xff]
        %2900 = vst [vmem:[%s2142 + $0x5e8] sm:$0xff] %v2899
        %v2901 = vld [vmem:[%s2141 + $0x5f4] sm:$0xff]
        %2902 = vst [vmem:[%s2142 + $0x5ec] sm:$0xff] %v2901
        %v2903 = vld [vmem:[%s2141 + $0x5d8] sm:$0xff]
        %2904 = vst [vmem:[%s2142 + $0x5f0] sm:$0xff] %v2903
        %v2905 = vld [vmem:[%s2141 + $0x5f8] sm:$0xff]
        %2906 = vst [vmem:[%s2142 + $0x5f4] sm:$0xff] %v2905
        %v2907 = vld [vmem:[%s2141 + $0x5dc] sm:$0xff]
        %2908 = vst [vmem:[%s2142 + $0x5f8] sm:$0xff] %v2907
        %v2909 = vld [vmem:[%s2141 + $0x5fc] sm:$0xff]
        %2910 = vst [vmem:[%s2142 + $0x5fc] sm:$0xff] %v2909
        %v2911 = vld [vmem:[%s2141 + $0x600] sm:$0xff]
        %2912 = vst [vmem:[%s2142 + $0x600] sm:$0xff] %v2911
        %v2913 = vld [vmem:[%s2141 + $0x620] sm:$0xff]
        %2914 = vst [vmem:[%s2142 + $0x604] sm:$0xff] %v2913
        %v2915 = vld [vmem:[%s2141 + $0x604] sm:$0xff]
        %2916 = vst [vmem:[%s2142 + $0x608] sm:$0xff] %v2915
        %v2917 = vld [vmem:[%s2141 + $0x624] sm:$0xff]
        %2918 = vst [vmem:[%s2142 + $0x60c] sm:$0xff] %v2917
        %v2919 = vld [vmem:[%s2141 + $0x608] sm:$0xff]
        %2920 = vst [vmem:[%s2142 + $0x610] sm:$0xff] %v2919
        %v2921 = vld [vmem:[%s2141 + $0x628] sm:$0xff]
        %2922 = vst [vmem:[%s2142 + $0x614] sm:$0xff] %v2921
        %v2923 = vld [vmem:[%s2141 + $0x60c] sm:$0xff]
        %2924 = vst [vmem:[%s2142 + $0x618] sm:$0xff] %v2923
        %v2925 = vld [vmem:[%s2141 + $0x62c] sm:$0xff]
        %2926 = vst [vmem:[%s2142 + $0x61c] sm:$0xff] %v2925
        %v2927 = vld [vmem:[%s2141 + $0x610] sm:$0xff]
        %2928 = vst [vmem:[%s2142 + $0x620] sm:$0xff] %v2927
        %v2929 = vld [vmem:[%s2141 + $0x630] sm:$0xff]
        %2930 = vst [vmem:[%s2142 + $0x624] sm:$0xff] %v2929
        %v2931 = vld [vmem:[%s2141 + $0x614] sm:$0xff]
        %2932 = vst [vmem:[%s2142 + $0x628] sm:$0xff] %v2931
        %v2933 = vld [vmem:[%s2141 + $0x634] sm:$0xff]
        %2934 = vst [vmem:[%s2142 + $0x62c] sm:$0xff] %v2933
        %v2935 = vld [vmem:[%s2141 + $0x618] sm:$0xff]
        %2936 = vst [vmem:[%s2142 + $0x630] sm:$0xff] %v2935
        %v2937 = vld [vmem:[%s2141 + $0x638] sm:$0xff]
        %2938 = vst [vmem:[%s2142 + $0x634] sm:$0xff] %v2937
        %v2939 = vld [vmem:[%s2141 + $0x61c] sm:$0xff]
        %2940 = vst [vmem:[%s2142 + $0x638] sm:$0xff] %v2939
        %v2941 = vld [vmem:[%s2141 + $0x63c] sm:$0xff]
        %2942 = vst [vmem:[%s2142 + $0x63c] sm:$0xff] %v2941
        %v2943 = vld [vmem:[%s2141 + $0x640] sm:$0xff]
        %2944 = vst [vmem:[%s2142 + $0x640] sm:$0xff] %v2943
        %v2945 = vld [vmem:[%s2141 + $0x660] sm:$0xff]
        %2946 = vst [vmem:[%s2142 + $0x644] sm:$0xff] %v2945
        %v2947 = vld [vmem:[%s2141 + $0x644] sm:$0xff]
        %2948 = vst [vmem:[%s2142 + $0x648] sm:$0xff] %v2947
        %v2949 = vld [vmem:[%s2141 + $0x664] sm:$0xff]
        %2950 = vst [vmem:[%s2142 + $0x64c] sm:$0xff] %v2949
        %v2951 = vld [vmem:[%s2141 + $0x648] sm:$0xff]
        %2952 = vst [vmem:[%s2142 + $0x650] sm:$0xff] %v2951
        %v2953 = vld [vmem:[%s2141 + $0x668] sm:$0xff]
        %2954 = vst [vmem:[%s2142 + $0x654] sm:$0xff] %v2953
        %v2955 = vld [vmem:[%s2141 + $0x64c] sm:$0xff]
        %2956 = vst [vmem:[%s2142 + $0x658] sm:$0xff] %v2955
        %v2957 = vld [vmem:[%s2141 + $0x66c] sm:$0xff]
        %2958 = vst [vmem:[%s2142 + $0x65c] sm:$0xff] %v2957
        %v2959 = vld [vmem:[%s2141 + $0x650] sm:$0xff]
        %2960 = vst [vmem:[%s2142 + $0x660] sm:$0xff] %v2959
        %v2961 = vld [vmem:[%s2141 + $0x670] sm:$0xff]
        %2962 = vst [vmem:[%s2142 + $0x664] sm:$0xff] %v2961
        %v2963 = vld [vmem:[%s2141 + $0x654] sm:$0xff]
        %2964 = vst [vmem:[%s2142 + $0x668] sm:$0xff] %v2963
        %v2965 = vld [vmem:[%s2141 + $0x674] sm:$0xff]
        %2966 = vst [vmem:[%s2142 + $0x66c] sm:$0xff] %v2965
        %v2967 = vld [vmem:[%s2141 + $0x658] sm:$0xff]
        %2968 = vst [vmem:[%s2142 + $0x670] sm:$0xff] %v2967
        %v2969 = vld [vmem:[%s2141 + $0x678] sm:$0xff]
        %2970 = vst [vmem:[%s2142 + $0x674] sm:$0xff] %v2969
        %v2971 = vld [vmem:[%s2141 + $0x65c] sm:$0xff]
        %2972 = vst [vmem:[%s2142 + $0x678] sm:$0xff] %v2971
        %v2973 = vld [vmem:[%s2141 + $0x67c] sm:$0xff]
        %2974 = vst [vmem:[%s2142 + $0x67c] sm:$0xff] %v2973
        %v2975 = vld [vmem:[%s2141 + $0x680] sm:$0xff]
        %2976 = vst [vmem:[%s2142 + $0x680] sm:$0xff] %v2975
        %v2977 = vld [vmem:[%s2141 + $0x6a0] sm:$0xff]
        %2978 = vst [vmem:[%s2142 + $0x684] sm:$0xff] %v2977
        %v2979 = vld [vmem:[%s2141 + $0x684] sm:$0xff]
        %2980 = vst [vmem:[%s2142 + $0x688] sm:$0xff] %v2979
        %v2981 = vld [vmem:[%s2141 + $0x6a4] sm:$0xff]
        %2982 = vst [vmem:[%s2142 + $0x68c] sm:$0xff] %v2981
        %v2983 = vld [vmem:[%s2141 + $0x688] sm:$0xff]
        %2984 = vst [vmem:[%s2142 + $0x690] sm:$0xff] %v2983
        %v2985 = vld [vmem:[%s2141 + $0x6a8] sm:$0xff]
        %2986 = vst [vmem:[%s2142 + $0x694] sm:$0xff] %v2985
        %v2987 = vld [vmem:[%s2141 + $0x68c] sm:$0xff]
        %2988 = vst [vmem:[%s2142 + $0x698] sm:$0xff] %v2987
        %v2989 = vld [vmem:[%s2141 + $0x6ac] sm:$0xff]
        %2990 = vst [vmem:[%s2142 + $0x69c] sm:$0xff] %v2989
        %v2991 = vld [vmem:[%s2141 + $0x690] sm:$0xff]
        %2992 = vst [vmem:[%s2142 + $0x6a0] sm:$0xff] %v2991
        %v2993 = vld [vmem:[%s2141 + $0x6b0] sm:$0xff]
        %2994 = vst [vmem:[%s2142 + $0x6a4] sm:$0xff] %v2993
        %v2995 = vld [vmem:[%s2141 + $0x694] sm:$0xff]
        %2996 = vst [vmem:[%s2142 + $0x6a8] sm:$0xff] %v2995
        %v2997 = vld [vmem:[%s2141 + $0x6b4] sm:$0xff]
        %2998 = vst [vmem:[%s2142 + $0x6ac] sm:$0xff] %v2997
        %v2999 = vld [vmem:[%s2141 + $0x698] sm:$0xff]
        %3000 = vst [vmem:[%s2142 + $0x6b0] sm:$0xff] %v2999
        %v3001 = vld [vmem:[%s2141 + $0x6b8] sm:$0xff]
        %3002 = vst [vmem:[%s2142 + $0x6b4] sm:$0xff] %v3001
        %v3003 = vld [vmem:[%s2141 + $0x69c] sm:$0xff]
        %3004 = vst [vmem:[%s2142 + $0x6b8] sm:$0xff] %v3003
        %v3005 = vld [vmem:[%s2141 + $0x6bc] sm:$0xff]
        %3006 = vst [vmem:[%s2142 + $0x6bc] sm:$0xff] %v3005
        %v3007 = vld [vmem:[%s2141 + $0x6c0] sm:$0xff]
        %3008 = vst [vmem:[%s2142 + $0x6c0] sm:$0xff] %v3007
        %v3009 = vld [vmem:[%s2141 + $0x6e0] sm:$0xff]
        %3010 = vst [vmem:[%s2142 + $0x6c4] sm:$0xff] %v3009
        %v3011 = vld [vmem:[%s2141 + $0x6c4] sm:$0xff]
        %3012 = vst [vmem:[%s2142 + $0x6c8] sm:$0xff] %v3011
        %v3013 = vld [vmem:[%s2141 + $0x6e4] sm:$0xff]
        %3014 = vst [vmem:[%s2142 + $0x6cc] sm:$0xff] %v3013
        %v3015 = vld [vmem:[%s2141 + $0x6c8] sm:$0xff]
        %3016 = vst [vmem:[%s2142 + $0x6d0] sm:$0xff] %v3015
        %v3017 = vld [vmem:[%s2141 + $0x6e8] sm:$0xff]
        %3018 = vst [vmem:[%s2142 + $0x6d4] sm:$0xff] %v3017
        %v3019 = vld [vmem:[%s2141 + $0x6cc] sm:$0xff]
        %3020 = vst [vmem:[%s2142 + $0x6d8] sm:$0xff] %v3019
        %v3021 = vld [vmem:[%s2141 + $0x6ec] sm:$0xff]
        %3022 = vst [vmem:[%s2142 + $0x6dc] sm:$0xff] %v3021
        %v3023 = vld [vmem:[%s2141 + $0x6d0] sm:$0xff]
        %3024 = vst [vmem:[%s2142 + $0x6e0] sm:$0xff] %v3023
        %v3025 = vld [vmem:[%s2141 + $0x6f0] sm:$0xff]
        %3026 = vst [vmem:[%s2142 + $0x6e4] sm:$0xff] %v3025
        %v3027 = vld [vmem:[%s2141 + $0x6d4] sm:$0xff]
        %3028 = vst [vmem:[%s2142 + $0x6e8] sm:$0xff] %v3027
        %v3029 = vld [vmem:[%s2141 + $0x6f4] sm:$0xff]
        %3030 = vst [vmem:[%s2142 + $0x6ec] sm:$0xff] %v3029
        %v3031 = vld [vmem:[%s2141 + $0x6d8] sm:$0xff]
        %3032 = vst [vmem:[%s2142 + $0x6f0] sm:$0xff] %v3031
        %v3033 = vld [vmem:[%s2141 + $0x6f8] sm:$0xff]
        %3034 = vst [vmem:[%s2142 + $0x6f4] sm:$0xff] %v3033
        %v3035 = vld [vmem:[%s2141 + $0x6dc] sm:$0xff]
        %3036 = vst [vmem:[%s2142 + $0x6f8] sm:$0xff] %v3035
        %v3037 = vld [vmem:[%s2141 + $0x6fc] sm:$0xff]
        %3038 = vst [vmem:[%s2142 + $0x6fc] sm:$0xff] %v3037
        %v3039 = vld [vmem:[%s2141 + $0x700] sm:$0xff]
        %3040 = vst [vmem:[%s2142 + $0x700] sm:$0xff] %v3039
        %v3041 = vld [vmem:[%s2141 + $0x720] sm:$0xff]
        %3042 = vst [vmem:[%s2142 + $0x704] sm:$0xff] %v3041
        %v3043 = vld [vmem:[%s2141 + $0x704] sm:$0xff]
        %3044 = vst [vmem:[%s2142 + $0x708] sm:$0xff] %v3043
        %v3045 = vld [vmem:[%s2141 + $0x724] sm:$0xff]
        %3046 = vst [vmem:[%s2142 + $0x70c] sm:$0xff] %v3045
        %v3047 = vld [vmem:[%s2141 + $0x708] sm:$0xff]
        %3048 = vst [vmem:[%s2142 + $0x710] sm:$0xff] %v3047
        %v3049 = vld [vmem:[%s2141 + $0x728] sm:$0xff]
        %3050 = vst [vmem:[%s2142 + $0x714] sm:$0xff] %v3049
        %v3051 = vld [vmem:[%s2141 + $0x70c] sm:$0xff]
        %3052 = vst [vmem:[%s2142 + $0x718] sm:$0xff] %v3051
        %v3053 = vld [vmem:[%s2141 + $0x72c] sm:$0xff]
        %3054 = vst [vmem:[%s2142 + $0x71c] sm:$0xff] %v3053
        %v3055 = vld [vmem:[%s2141 + $0x710] sm:$0xff]
        %3056 = vst [vmem:[%s2142 + $0x720] sm:$0xff] %v3055
        %v3057 = vld [vmem:[%s2141 + $0x730] sm:$0xff]
        %3058 = vst [vmem:[%s2142 + $0x724] sm:$0xff] %v3057
        %v3059 = vld [vmem:[%s2141 + $0x714] sm:$0xff]
        %3060 = vst [vmem:[%s2142 + $0x728] sm:$0xff] %v3059
        %v3061 = vld [vmem:[%s2141 + $0x734] sm:$0xff]
        %3062 = vst [vmem:[%s2142 + $0x72c] sm:$0xff] %v3061
        %v3063 = vld [vmem:[%s2141 + $0x718] sm:$0xff]
        %3064 = vst [vmem:[%s2142 + $0x730] sm:$0xff] %v3063
        %v3065 = vld [vmem:[%s2141 + $0x738] sm:$0xff]
        %3066 = vst [vmem:[%s2142 + $0x734] sm:$0xff] %v3065
        %v3067 = vld [vmem:[%s2141 + $0x71c] sm:$0xff]
        %3068 = vst [vmem:[%s2142 + $0x738] sm:$0xff] %v3067
        %v3069 = vld [vmem:[%s2141 + $0x73c] sm:$0xff]
        %3070 = vst [vmem:[%s2142 + $0x73c] sm:$0xff] %v3069
        %v3071 = vld [vmem:[%s2141 + $0x740] sm:$0xff]
        %3072 = vst [vmem:[%s2142 + $0x740] sm:$0xff] %v3071
        %v3073 = vld [vmem:[%s2141 + $0x760] sm:$0xff]
        %3074 = vst [vmem:[%s2142 + $0x744] sm:$0xff] %v3073
        %v3075 = vld [vmem:[%s2141 + $0x744] sm:$0xff]
        %3076 = vst [vmem:[%s2142 + $0x748] sm:$0xff] %v3075
        %v3077 = vld [vmem:[%s2141 + $0x764] sm:$0xff]
        %3078 = vst [vmem:[%s2142 + $0x74c] sm:$0xff] %v3077
        %v3079 = vld [vmem:[%s2141 + $0x748] sm:$0xff]
        %3080 = vst [vmem:[%s2142 + $0x750] sm:$0xff] %v3079
        %v3081 = vld [vmem:[%s2141 + $0x768] sm:$0xff]
        %3082 = vst [vmem:[%s2142 + $0x754] sm:$0xff] %v3081
        %v3083 = vld [vmem:[%s2141 + $0x74c] sm:$0xff]
        %3084 = vst [vmem:[%s2142 + $0x758] sm:$0xff] %v3083
        %v3085 = vld [vmem:[%s2141 + $0x76c] sm:$0xff]
        %3086 = vst [vmem:[%s2142 + $0x75c] sm:$0xff] %v3085
        %v3087 = vld [vmem:[%s2141 + $0x750] sm:$0xff]
        %3088 = vst [vmem:[%s2142 + $0x760] sm:$0xff] %v3087
        %v3089 = vld [vmem:[%s2141 + $0x770] sm:$0xff]
        %3090 = vst [vmem:[%s2142 + $0x764] sm:$0xff] %v3089
        %v3091 = vld [vmem:[%s2141 + $0x754] sm:$0xff]
        %3092 = vst [vmem:[%s2142 + $0x768] sm:$0xff] %v3091
        %v3093 = vld [vmem:[%s2141 + $0x774] sm:$0xff]
        %3094 = vst [vmem:[%s2142 + $0x76c] sm:$0xff] %v3093
        %v3095 = vld [vmem:[%s2141 + $0x758] sm:$0xff]
        %3096 = vst [vmem:[%s2142 + $0x770] sm:$0xff] %v3095
        %v3097 = vld [vmem:[%s2141 + $0x778] sm:$0xff]
        %3098 = vst [vmem:[%s2142 + $0x774] sm:$0xff] %v3097
        %v3099 = vld [vmem:[%s2141 + $0x75c] sm:$0xff]
        %3100 = vst [vmem:[%s2142 + $0x778] sm:$0xff] %v3099
        %v3101 = vld [vmem:[%s2141 + $0x77c] sm:$0xff]
        %3102 = vst [vmem:[%s2142 + $0x77c] sm:$0xff] %v3101
        %v3103 = vld [vmem:[%s2141 + $0x780] sm:$0xff]
        %3104 = vst [vmem:[%s2142 + $0x780] sm:$0xff] %v3103
        %v3105 = vld [vmem:[%s2141 + $0x7a0] sm:$0xff]
        %3106 = vst [vmem:[%s2142 + $0x784] sm:$0xff] %v3105
        %v3107 = vld [vmem:[%s2141 + $0x784] sm:$0xff]
        %3108 = vst [vmem:[%s2142 + $0x788] sm:$0xff] %v3107
        %v3109 = vld [vmem:[%s2141 + $0x7a4] sm:$0xff]
        %3110 = vst [vmem:[%s2142 + $0x78c] sm:$0xff] %v3109
        %v3111 = vld [vmem:[%s2141 + $0x788] sm:$0xff]
        %3112 = vst [vmem:[%s2142 + $0x790] sm:$0xff] %v3111
        %v3113 = vld [vmem:[%s2141 + $0x7a8] sm:$0xff]
        %3114 = vst [vmem:[%s2142 + $0x794] sm:$0xff] %v3113
        %v3115 = vld [vmem:[%s2141 + $0x78c] sm:$0xff]
        %3116 = vst [vmem:[%s2142 + $0x798] sm:$0xff] %v3115
        %v3117 = vld [vmem:[%s2141 + $0x7ac] sm:$0xff]
        %3118 = vst [vmem:[%s2142 + $0x79c] sm:$0xff] %v3117
        %v3119 = vld [vmem:[%s2141 + $0x790] sm:$0xff]
        %3120 = vst [vmem:[%s2142 + $0x7a0] sm:$0xff] %v3119
        %v3121 = vld [vmem:[%s2141 + $0x7b0] sm:$0xff]
        %3122 = vst [vmem:[%s2142 + $0x7a4] sm:$0xff] %v3121
        %v3123 = vld [vmem:[%s2141 + $0x794] sm:$0xff]
        %3124 = vst [vmem:[%s2142 + $0x7a8] sm:$0xff] %v3123
        %v3125 = vld [vmem:[%s2141 + $0x7b4] sm:$0xff]
        %3126 = vst [vmem:[%s2142 + $0x7ac] sm:$0xff] %v3125
        %v3127 = vld [vmem:[%s2141 + $0x798] sm:$0xff]
        %3128 = vst [vmem:[%s2142 + $0x7b0] sm:$0xff] %v3127
        %v3129 = vld [vmem:[%s2141 + $0x7b8] sm:$0xff]
        %3130 = vst [vmem:[%s2142 + $0x7b4] sm:$0xff] %v3129
        %v3131 = vld [vmem:[%s2141 + $0x79c] sm:$0xff]
        %3132 = vst [vmem:[%s2142 + $0x7b8] sm:$0xff] %v3131
        %v3133 = vld [vmem:[%s2141 + $0x7bc] sm:$0xff]
        %3134 = vst [vmem:[%s2142 + $0x7bc] sm:$0xff] %v3133
        %v3135 = vld [vmem:[%s2141 + $0x7c0] sm:$0xff]
        %3136 = vst [vmem:[%s2142 + $0x7c0] sm:$0xff] %v3135
        %v3137 = vld [vmem:[%s2141 + $0x7e0] sm:$0xff]
        %3138 = vst [vmem:[%s2142 + $0x7c4] sm:$0xff] %v3137
        %v3139 = vld [vmem:[%s2141 + $0x7c4] sm:$0xff]
        %3140 = vst [vmem:[%s2142 + $0x7c8] sm:$0xff] %v3139
        %v3141 = vld [vmem:[%s2141 + $0x7e4] sm:$0xff]
        %3142 = vst [vmem:[%s2142 + $0x7cc] sm:$0xff] %v3141
        %v3143 = vld [vmem:[%s2141 + $0x7c8] sm:$0xff]
        %3144 = vst [vmem:[%s2142 + $0x7d0] sm:$0xff] %v3143
        %v3145 = vld [vmem:[%s2141 + $0x7e8] sm:$0xff]
        %3146 = vst [vmem:[%s2142 + $0x7d4] sm:$0xff] %v3145
        %v3147 = vld [vmem:[%s2141 + $0x7cc] sm:$0xff]
        %3148 = vst [vmem:[%s2142 + $0x7d8] sm:$0xff] %v3147
        %v3149 = vld [vmem:[%s2141 + $0x7ec] sm:$0xff]
        %3150 = vst [vmem:[%s2142 + $0x7dc] sm:$0xff] %v3149
        %v3151 = vld [vmem:[%s2141 + $0x7d0] sm:$0xff]
        %3152 = vst [vmem:[%s2142 + $0x7e0] sm:$0xff] %v3151
        %v3153 = vld [vmem:[%s2141 + $0x7f0] sm:$0xff]
        %3154 = vst [vmem:[%s2142 + $0x7e4] sm:$0xff] %v3153
        %v3155 = vld [vmem:[%s2141 + $0x7d4] sm:$0xff]
        %3156 = vst [vmem:[%s2142 + $0x7e8] sm:$0xff] %v3155
        %v3157 = vld [vmem:[%s2141 + $0x7f4] sm:$0xff]
        %3158 = vst [vmem:[%s2142 + $0x7ec] sm:$0xff] %v3157
        %v3159 = vld [vmem:[%s2141 + $0x7d8] sm:$0xff]
        %3160 = vst [vmem:[%s2142 + $0x7f0] sm:$0xff] %v3159
        %v3161 = vld [vmem:[%s2141 + $0x7f8] sm:$0xff]
        %3162 = vst [vmem:[%s2142 + $0x7f4] sm:$0xff] %v3161
        %v3163 = vld [vmem:[%s2141 + $0x7dc] sm:$0xff]
        %3164 = vst [vmem:[%s2142 + $0x7f8] sm:$0xff] %v3163
        %v3165 = vld [vmem:[%s2141 + $0x7fc] sm:$0xff]
        %3166 = vst [vmem:[%s2142 + $0x7fc] sm:$0xff] %v3165
        %s3167 = sadd.s32 1, %s2140
        %p3168 = scmp.ge.s32.totalorder %s3167, %s2131
        %s3169 = scalar_select %p3168, 0, %s3167
        %s3170 = smul.u32 %s3169, 8
        %s3171 = smul.u32 %s3169, 8
        %s3172 = scalar_lea.vmem %s9, %s3170
        %s3173 = scalar_lea.vmem [#allocation2], %s3171
      $region72: #{_lambda_.1} parent=66 // loop_footer
        %s2137 = sadd.s32 %s2135, 1
      $region73: #{_lambda_.1} parent=66 // loop_footer_branch
        %2134 = sbr.rel target = $region69
      $region74: #{_lambda_.1} parent=66 // loop_exit
        _
      %s3174 = sshllo.u32 0, %s2126
      loop: start=0, step=1, limit=1
      $region75: #{_lambda_.1} parent=66 // loop_pre_header
        _
      $region76: #{_lambda_.1} parent=66 // loop_header
        %s3176 = sphi 0, %s3180
        %p3177 = scmp.ge.s32.totalorder %s3176, 1
        %s3181 = sphi %s2128, %s2128
        %s3182 = sphi %s2130, %s2130
      $region77: #{_lambda_.1} parent=66 // loop_header_branch
        %3179 = sbr.rel (%p3177) target = $region81
      $region78: #{_lambda_.1} parent=66 // loop_body
        %v3183 = vld [vmem:[%s3181] sm:%s3174]
        %3184 = vst [vmem:[%s3182] sm:%s3174] %v3183
        %v3185 = vld [vmem:[%s3181 + $0x20] sm:%s3174]
        %3186 = vst [vmem:[%s3182 + $0x4] sm:%s3174] %v3185
        %v3187 = vld [vmem:[%s3181 + $0x4] sm:%s3174]
        %3188 = vst [vmem:[%s3182 + $0x8] sm:%s3174] %v3187
        %v3189 = vld [vmem:[%s3181 + $0x24] sm:%s3174]
        %3190 = vst [vmem:[%s3182 + $0xc] sm:%s3174] %v3189
        %v3191 = vld [vmem:[%s3181 + $0x8] sm:%s3174]
        %3192 = vst [vmem:[%s3182 + $0x10] sm:%s3174] %v3191
        %v3193 = vld [vmem:[%s3181 + $0x28] sm:%s3174]
        %3194 = vst [vmem:[%s3182 + $0x14] sm:%s3174] %v3193
        %v3195 = vld [vmem:[%s3181 + $0xc] sm:%s3174]
        %3196 = vst [vmem:[%s3182 + $0x18] sm:%s3174] %v3195
        %v3197 = vld [vmem:[%s3181 + $0x2c] sm:%s3174]
        %3198 = vst [vmem:[%s3182 + $0x1c] sm:%s3174] %v3197
        %v3199 = vld [vmem:[%s3181 + $0x10] sm:%s3174]
        %3200 = vst [vmem:[%s3182 + $0x20] sm:%s3174] %v3199
        %v3201 = vld [vmem:[%s3181 + $0x30] sm:%s3174]
        %3202 = vst [vmem:[%s3182 + $0x24] sm:%s3174] %v3201
        %v3203 = vld [vmem:[%s3181 + $0x14] sm:%s3174]
        %3204 = vst [vmem:[%s3182 + $0x28] sm:%s3174] %v3203
        %v3205 = vld [vmem:[%s3181 + $0x34] sm:%s3174]
        %3206 = vst [vmem:[%s3182 + $0x2c] sm:%s3174] %v3205
        %v3207 = vld [vmem:[%s3181 + $0x18] sm:%s3174]
        %3208 = vst [vmem:[%s3182 + $0x30] sm:%s3174] %v3207
        %v3209 = vld [vmem:[%s3181 + $0x38] sm:%s3174]
        %3210 = vst [vmem:[%s3182 + $0x34] sm:%s3174] %v3209
        %v3211 = vld [vmem:[%s3181 + $0x1c] sm:%s3174]
        %3212 = vst [vmem:[%s3182 + $0x38] sm:%s3174] %v3211
        %v3213 = vld [vmem:[%s3181 + $0x3c] sm:%s3174]
        %3214 = vst [vmem:[%s3182 + $0x3c] sm:%s3174] %v3213
        %v3215 = vld [vmem:[%s3181 + $0x40] sm:%s3174]
        %3216 = vst [vmem:[%s3182 + $0x40] sm:%s3174] %v3215
        %v3217 = vld [vmem:[%s3181 + $0x60] sm:%s3174]
        %3218 = vst [vmem:[%s3182 + $0x44] sm:%s3174] %v3217
        %v3219 = vld [vmem:[%s3181 + $0x44] sm:%s3174]
        %3220 = vst [vmem:[%s3182 + $0x48] sm:%s3174] %v3219
        %v3221 = vld [vmem:[%s3181 + $0x64] sm:%s3174]
        %3222 = vst [vmem:[%s3182 + $0x4c] sm:%s3174] %v3221
        %v3223 = vld [vmem:[%s3181 + $0x48] sm:%s3174]
        %3224 = vst [vmem:[%s3182 + $0x50] sm:%s3174] %v3223
        %v3225 = vld [vmem:[%s3181 + $0x68] sm:%s3174]
        %3226 = vst [vmem:[%s3182 + $0x54] sm:%s3174] %v3225
        %v3227 = vld [vmem:[%s3181 + $0x4c] sm:%s3174]
        %3228 = vst [vmem:[%s3182 + $0x58] sm:%s3174] %v3227
        %v3229 = vld [vmem:[%s3181 + $0x6c] sm:%s3174]
        %3230 = vst [vmem:[%s3182 + $0x5c] sm:%s3174] %v3229
        %v3231 = vld [vmem:[%s3181 + $0x50] sm:%s3174]
        %3232 = vst [vmem:[%s3182 + $0x60] sm:%s3174] %v3231
        %v3233 = vld [vmem:[%s3181 + $0x70] sm:%s3174]
        %3234 = vst [vmem:[%s3182 + $0x64] sm:%s3174] %v3233
        %v3235 = vld [vmem:[%s3181 + $0x54] sm:%s3174]
        %3236 = vst [vmem:[%s3182 + $0x68] sm:%s3174] %v3235
        %v3237 = vld [vmem:[%s3181 + $0x74] sm:%s3174]
        %3238 = vst [vmem:[%s3182 + $0x6c] sm:%s3174] %v3237
        %v3239 = vld [vmem:[%s3181 + $0x58] sm:%s3174]
        %3240 = vst [vmem:[%s3182 + $0x70] sm:%s3174] %v3239
        %v3241 = vld [vmem:[%s3181 + $0x78] sm:%s3174]
        %3242 = vst [vmem:[%s3182 + $0x74] sm:%s3174] %v3241
        %v3243 = vld [vmem:[%s3181 + $0x5c] sm:%s3174]
        %3244 = vst [vmem:[%s3182 + $0x78] sm:%s3174] %v3243
        %v3245 = vld [vmem:[%s3181 + $0x7c] sm:%s3174]
        %3246 = vst [vmem:[%s3182 + $0x7c] sm:%s3174] %v3245
        %v3247 = vld [vmem:[%s3181 + $0x80] sm:%s3174]
        %3248 = vst [vmem:[%s3182 + $0x80] sm:%s3174] %v3247
        %v3249 = vld [vmem:[%s3181 + $0xa0] sm:%s3174]
        %3250 = vst [vmem:[%s3182 + $0x84] sm:%s3174] %v3249
        %v3251 = vld [vmem:[%s3181 + $0x84] sm:%s3174]
        %3252 = vst [vmem:[%s3182 + $0x88] sm:%s3174] %v3251
        %v3253 = vld [vmem:[%s3181 + $0xa4] sm:%s3174]
        %3254 = vst [vmem:[%s3182 + $0x8c] sm:%s3174] %v3253
        %v3255 = vld [vmem:[%s3181 + $0x88] sm:%s3174]
        %3256 = vst [vmem:[%s3182 + $0x90] sm:%s3174] %v3255
        %v3257 = vld [vmem:[%s3181 + $0xa8] sm:%s3174]
        %3258 = vst [vmem:[%s3182 + $0x94] sm:%s3174] %v3257
        %v3259 = vld [vmem:[%s3181 + $0x8c] sm:%s3174]
        %3260 = vst [vmem:[%s3182 + $0x98] sm:%s3174] %v3259
        %v3261 = vld [vmem:[%s3181 + $0xac] sm:%s3174]
        %3262 = vst [vmem:[%s3182 + $0x9c] sm:%s3174] %v3261
        %v3263 = vld [vmem:[%s3181 + $0x90] sm:%s3174]
        %3264 = vst [vmem:[%s3182 + $0xa0] sm:%s3174] %v3263
        %v3265 = vld [vmem:[%s3181 + $0xb0] sm:%s3174]
        %3266 = vst [vmem:[%s3182 + $0xa4] sm:%s3174] %v3265
        %v3267 = vld [vmem:[%s3181 + $0x94] sm:%s3174]
        %3268 = vst [vmem:[%s3182 + $0xa8] sm:%s3174] %v3267
        %v3269 = vld [vmem:[%s3181 + $0xb4] sm:%s3174]
        %3270 = vst [vmem:[%s3182 + $0xac] sm:%s3174] %v3269
        %v3271 = vld [vmem:[%s3181 + $0x98] sm:%s3174]
        %3272 = vst [vmem:[%s3182 + $0xb0] sm:%s3174] %v3271
        %v3273 = vld [vmem:[%s3181 + $0xb8] sm:%s3174]
        %3274 = vst [vmem:[%s3182 + $0xb4] sm:%s3174] %v3273
        %v3275 = vld [vmem:[%s3181 + $0x9c] sm:%s3174]
        %3276 = vst [vmem:[%s3182 + $0xb8] sm:%s3174] %v3275
        %v3277 = vld [vmem:[%s3181 + $0xbc] sm:%s3174]
        %3278 = vst [vmem:[%s3182 + $0xbc] sm:%s3174] %v3277
        %v3279 = vld [vmem:[%s3181 + $0xc0] sm:%s3174]
        %3280 = vst [vmem:[%s3182 + $0xc0] sm:%s3174] %v3279
        %v3281 = vld [vmem:[%s3181 + $0xe0] sm:%s3174]
        %3282 = vst [vmem:[%s3182 + $0xc4] sm:%s3174] %v3281
        %v3283 = vld [vmem:[%s3181 + $0xc4] sm:%s3174]
        %3284 = vst [vmem:[%s3182 + $0xc8] sm:%s3174] %v3283
        %v3285 = vld [vmem:[%s3181 + $0xe4] sm:%s3174]
        %3286 = vst [vmem:[%s3182 + $0xcc] sm:%s3174] %v3285
        %v3287 = vld [vmem:[%s3181 + $0xc8] sm:%s3174]
        %3288 = vst [vmem:[%s3182 + $0xd0] sm:%s3174] %v3287
        %v3289 = vld [vmem:[%s3181 + $0xe8] sm:%s3174]
        %3290 = vst [vmem:[%s3182 + $0xd4] sm:%s3174] %v3289
        %v3291 = vld [vmem:[%s3181 + $0xcc] sm:%s3174]
        %3292 = vst [vmem:[%s3182 + $0xd8] sm:%s3174] %v3291
        %v3293 = vld [vmem:[%s3181 + $0xec] sm:%s3174]
        %3294 = vst [vmem:[%s3182 + $0xdc] sm:%s3174] %v3293
        %v3295 = vld [vmem:[%s3181 + $0xd0] sm:%s3174]
        %3296 = vst [vmem:[%s3182 + $0xe0] sm:%s3174] %v3295
        %v3297 = vld [vmem:[%s3181 + $0xf0] sm:%s3174]
        %3298 = vst [vmem:[%s3182 + $0xe4] sm:%s3174] %v3297
        %v3299 = vld [vmem:[%s3181 + $0xd4] sm:%s3174]
        %3300 = vst [vmem:[%s3182 + $0xe8] sm:%s3174] %v3299
        %v3301 = vld [vmem:[%s3181 + $0xf4] sm:%s3174]
        %3302 = vst [vmem:[%s3182 + $0xec] sm:%s3174] %v3301
        %v3303 = vld [vmem:[%s3181 + $0xd8] sm:%s3174]
        %3304 = vst [vmem:[%s3182 + $0xf0] sm:%s3174] %v3303
        %v3305 = vld [vmem:[%s3181 + $0xf8] sm:%s3174]
        %3306 = vst [vmem:[%s3182 + $0xf4] sm:%s3174] %v3305
        %v3307 = vld [vmem:[%s3181 + $0xdc] sm:%s3174]
        %3308 = vst [vmem:[%s3182 + $0xf8] sm:%s3174] %v3307
        %v3309 = vld [vmem:[%s3181 + $0xfc] sm:%s3174]
        %3310 = vst [vmem:[%s3182 + $0xfc] sm:%s3174] %v3309
        %v3311 = vld [vmem:[%s3181 + $0x100] sm:%s3174]
        %3312 = vst [vmem:[%s3182 + $0x100] sm:%s3174] %v3311
        %v3313 = vld [vmem:[%s3181 + $0x120] sm:%s3174]
        %3314 = vst [vmem:[%s3182 + $0x104] sm:%s3174] %v3313
        %v3315 = vld [vmem:[%s3181 + $0x104] sm:%s3174]
        %3316 = vst [vmem:[%s3182 + $0x108] sm:%s3174] %v3315
        %v3317 = vld [vmem:[%s3181 + $0x124] sm:%s3174]
        %3318 = vst [vmem:[%s3182 + $0x10c] sm:%s3174] %v3317
        %v3319 = vld [vmem:[%s3181 + $0x108] sm:%s3174]
        %3320 = vst [vmem:[%s3182 + $0x110] sm:%s3174] %v3319
        %v3321 = vld [vmem:[%s3181 + $0x128] sm:%s3174]
        %3322 = vst [vmem:[%s3182 + $0x114] sm:%s3174] %v3321
        %v3323 = vld [vmem:[%s3181 + $0x10c] sm:%s3174]
        %3324 = vst [vmem:[%s3182 + $0x118] sm:%s3174] %v3323
        %v3325 = vld [vmem:[%s3181 + $0x12c] sm:%s3174]
        %3326 = vst [vmem:[%s3182 + $0x11c] sm:%s3174] %v3325
        %v3327 = vld [vmem:[%s3181 + $0x110] sm:%s3174]
        %3328 = vst [vmem:[%s3182 + $0x120] sm:%s3174] %v3327
        %v3329 = vld [vmem:[%s3181 + $0x130] sm:%s3174]
        %3330 = vst [vmem:[%s3182 + $0x124] sm:%s3174] %v3329
        %v3331 = vld [vmem:[%s3181 + $0x114] sm:%s3174]
        %3332 = vst [vmem:[%s3182 + $0x128] sm:%s3174] %v3331
        %v3333 = vld [vmem:[%s3181 + $0x134] sm:%s3174]
        %3334 = vst [vmem:[%s3182 + $0x12c] sm:%s3174] %v3333
        %v3335 = vld [vmem:[%s3181 + $0x118] sm:%s3174]
        %3336 = vst [vmem:[%s3182 + $0x130] sm:%s3174] %v3335
        %v3337 = vld [vmem:[%s3181 + $0x138] sm:%s3174]
        %3338 = vst [vmem:[%s3182 + $0x134] sm:%s3174] %v3337
        %v3339 = vld [vmem:[%s3181 + $0x11c] sm:%s3174]
        %3340 = vst [vmem:[%s3182 + $0x138] sm:%s3174] %v3339
        %v3341 = vld [vmem:[%s3181 + $0x13c] sm:%s3174]
        %3342 = vst [vmem:[%s3182 + $0x13c] sm:%s3174] %v3341
        %v3343 = vld [vmem:[%s3181 + $0x140] sm:%s3174]
        %3344 = vst [vmem:[%s3182 + $0x140] sm:%s3174] %v3343
        %v3345 = vld [vmem:[%s3181 + $0x160] sm:%s3174]
        %3346 = vst [vmem:[%s3182 + $0x144] sm:%s3174] %v3345
        %v3347 = vld [vmem:[%s3181 + $0x144] sm:%s3174]
        %3348 = vst [vmem:[%s3182 + $0x148] sm:%s3174] %v3347
        %v3349 = vld [vmem:[%s3181 + $0x164] sm:%s3174]
        %3350 = vst [vmem:[%s3182 + $0x14c] sm:%s3174] %v3349
        %v3351 = vld [vmem:[%s3181 + $0x148] sm:%s3174]
        %3352 = vst [vmem:[%s3182 + $0x150] sm:%s3174] %v3351
        %v3353 = vld [vmem:[%s3181 + $0x168] sm:%s3174]
        %3354 = vst [vmem:[%s3182 + $0x154] sm:%s3174] %v3353
        %v3355 = vld [vmem:[%s3181 + $0x14c] sm:%s3174]
        %3356 = vst [vmem:[%s3182 + $0x158] sm:%s3174] %v3355
        %v3357 = vld [vmem:[%s3181 + $0x16c] sm:%s3174]
        %3358 = vst [vmem:[%s3182 + $0x15c] sm:%s3174] %v3357
        %v3359 = vld [vmem:[%s3181 + $0x150] sm:%s3174]
        %3360 = vst [vmem:[%s3182 + $0x160] sm:%s3174] %v3359
        %v3361 = vld [vmem:[%s3181 + $0x170] sm:%s3174]
        %3362 = vst [vmem:[%s3182 + $0x164] sm:%s3174] %v3361
        %v3363 = vld [vmem:[%s3181 + $0x154] sm:%s3174]
        %3364 = vst [vmem:[%s3182 + $0x168] sm:%s3174] %v3363
        %v3365 = vld [vmem:[%s3181 + $0x174] sm:%s3174]
        %3366 = vst [vmem:[%s3182 + $0x16c] sm:%s3174] %v3365
        %v3367 = vld [vmem:[%s3181 + $0x158] sm:%s3174]
        %3368 = vst [vmem:[%s3182 + $0x170] sm:%s3174] %v3367
        %v3369 = vld [vmem:[%s3181 + $0x178] sm:%s3174]
        %3370 = vst [vmem:[%s3182 + $0x174] sm:%s3174] %v3369
        %v3371 = vld [vmem:[%s3181 + $0x15c] sm:%s3174]
        %3372 = vst [vmem:[%s3182 + $0x178] sm:%s3174] %v3371
        %v3373 = vld [vmem:[%s3181 + $0x17c] sm:%s3174]
        %3374 = vst [vmem:[%s3182 + $0x17c] sm:%s3174] %v3373
        %v3375 = vld [vmem:[%s3181 + $0x180] sm:%s3174]
        %3376 = vst [vmem:[%s3182 + $0x180] sm:%s3174] %v3375
        %v3377 = vld [vmem:[%s3181 + $0x1a0] sm:%s3174]
        %3378 = vst [vmem:[%s3182 + $0x184] sm:%s3174] %v3377
        %v3379 = vld [vmem:[%s3181 + $0x184] sm:%s3174]
        %3380 = vst [vmem:[%s3182 + $0x188] sm:%s3174] %v3379
        %v3381 = vld [vmem:[%s3181 + $0x1a4] sm:%s3174]
        %3382 = vst [vmem:[%s3182 + $0x18c] sm:%s3174] %v3381
        %v3383 = vld [vmem:[%s3181 + $0x188] sm:%s3174]
        %3384 = vst [vmem:[%s3182 + $0x190] sm:%s3174] %v3383
        %v3385 = vld [vmem:[%s3181 + $0x1a8] sm:%s3174]
        %3386 = vst [vmem:[%s3182 + $0x194] sm:%s3174] %v3385
        %v3387 = vld [vmem:[%s3181 + $0x18c] sm:%s3174]
        %3388 = vst [vmem:[%s3182 + $0x198] sm:%s3174] %v3387
        %v3389 = vld [vmem:[%s3181 + $0x1ac] sm:%s3174]
        %3390 = vst [vmem:[%s3182 + $0x19c] sm:%s3174] %v3389
        %v3391 = vld [vmem:[%s3181 + $0x190] sm:%s3174]
        %3392 = vst [vmem:[%s3182 + $0x1a0] sm:%s3174] %v3391
        %v3393 = vld [vmem:[%s3181 + $0x1b0] sm:%s3174]
        %3394 = vst [vmem:[%s3182 + $0x1a4] sm:%s3174] %v3393
        %v3395 = vld [vmem:[%s3181 + $0x194] sm:%s3174]
        %3396 = vst [vmem:[%s3182 + $0x1a8] sm:%s3174] %v3395
        %v3397 = vld [vmem:[%s3181 + $0x1b4] sm:%s3174]
        %3398 = vst [vmem:[%s3182 + $0x1ac] sm:%s3174] %v3397
        %v3399 = vld [vmem:[%s3181 + $0x198] sm:%s3174]
        %3400 = vst [vmem:[%s3182 + $0x1b0] sm:%s3174] %v3399
        %v3401 = vld [vmem:[%s3181 + $0x1b8] sm:%s3174]
        %3402 = vst [vmem:[%s3182 + $0x1b4] sm:%s3174] %v3401
        %v3403 = vld [vmem:[%s3181 + $0x19c] sm:%s3174]
        %3404 = vst [vmem:[%s3182 + $0x1b8] sm:%s3174] %v3403
        %v3405 = vld [vmem:[%s3181 + $0x1bc] sm:%s3174]
        %3406 = vst [vmem:[%s3182 + $0x1bc] sm:%s3174] %v3405
        %v3407 = vld [vmem:[%s3181 + $0x1c0] sm:%s3174]
        %3408 = vst [vmem:[%s3182 + $0x1c0] sm:%s3174] %v3407
        %v3409 = vld [vmem:[%s3181 + $0x1e0] sm:%s3174]
        %3410 = vst [vmem:[%s3182 + $0x1c4] sm:%s3174] %v3409
        %v3411 = vld [vmem:[%s3181 + $0x1c4] sm:%s3174]
        %3412 = vst [vmem:[%s3182 + $0x1c8] sm:%s3174] %v3411
        %v3413 = vld [vmem:[%s3181 + $0x1e4] sm:%s3174]
        %3414 = vst [vmem:[%s3182 + $0x1cc] sm:%s3174] %v3413
        %v3415 = vld [vmem:[%s3181 + $0x1c8] sm:%s3174]
        %3416 = vst [vmem:[%s3182 + $0x1d0] sm:%s3174] %v3415
        %v3417 = vld [vmem:[%s3181 + $0x1e8] sm:%s3174]
        %3418 = vst [vmem:[%s3182 + $0x1d4] sm:%s3174] %v3417
        %v3419 = vld [vmem:[%s3181 + $0x1cc] sm:%s3174]
        %3420 = vst [vmem:[%s3182 + $0x1d8] sm:%s3174] %v3419
        %v3421 = vld [vmem:[%s3181 + $0x1ec] sm:%s3174]
        %3422 = vst [vmem:[%s3182 + $0x1dc] sm:%s3174] %v3421
        %v3423 = vld [vmem:[%s3181 + $0x1d0] sm:%s3174]
        %3424 = vst [vmem:[%s3182 + $0x1e0] sm:%s3174] %v3423
        %v3425 = vld [vmem:[%s3181 + $0x1f0] sm:%s3174]
        %3426 = vst [vmem:[%s3182 + $0x1e4] sm:%s3174] %v3425
        %v3427 = vld [vmem:[%s3181 + $0x1d4] sm:%s3174]
        %3428 = vst [vmem:[%s3182 + $0x1e8] sm:%s3174] %v3427
        %v3429 = vld [vmem:[%s3181 + $0x1f4] sm:%s3174]
        %3430 = vst [vmem:[%s3182 + $0x1ec] sm:%s3174] %v3429
        %v3431 = vld [vmem:[%s3181 + $0x1d8] sm:%s3174]
        %3432 = vst [vmem:[%s3182 + $0x1f0] sm:%s3174] %v3431
        %v3433 = vld [vmem:[%s3181 + $0x1f8] sm:%s3174]
        %3434 = vst [vmem:[%s3182 + $0x1f4] sm:%s3174] %v3433
        %v3435 = vld [vmem:[%s3181 + $0x1dc] sm:%s3174]
        %3436 = vst [vmem:[%s3182 + $0x1f8] sm:%s3174] %v3435
        %v3437 = vld [vmem:[%s3181 + $0x1fc] sm:%s3174]
        %3438 = vst [vmem:[%s3182 + $0x1fc] sm:%s3174] %v3437
        %v3439 = vld [vmem:[%s3181 + $0x200] sm:%s3174]
        %3440 = vst [vmem:[%s3182 + $0x200] sm:%s3174] %v3439
        %v3441 = vld [vmem:[%s3181 + $0x220] sm:%s3174]
        %3442 = vst [vmem:[%s3182 + $0x204] sm:%s3174] %v3441
        %v3443 = vld [vmem:[%s3181 + $0x204] sm:%s3174]
        %3444 = vst [vmem:[%s3182 + $0x208] sm:%s3174] %v3443
        %v3445 = vld [vmem:[%s3181 + $0x224] sm:%s3174]
        %3446 = vst [vmem:[%s3182 + $0x20c] sm:%s3174] %v3445
        %v3447 = vld [vmem:[%s3181 + $0x208] sm:%s3174]
        %3448 = vst [vmem:[%s3182 + $0x210] sm:%s3174] %v3447
        %v3449 = vld [vmem:[%s3181 + $0x228] sm:%s3174]
        %3450 = vst [vmem:[%s3182 + $0x214] sm:%s3174] %v3449
        %v3451 = vld [vmem:[%s3181 + $0x20c] sm:%s3174]
        %3452 = vst [vmem:[%s3182 + $0x218] sm:%s3174] %v3451
        %v3453 = vld [vmem:[%s3181 + $0x22c] sm:%s3174]
        %3454 = vst [vmem:[%s3182 + $0x21c] sm:%s3174] %v3453
        %v3455 = vld [vmem:[%s3181 + $0x210] sm:%s3174]
        %3456 = vst [vmem:[%s3182 + $0x220] sm:%s3174] %v3455
        %v3457 = vld [vmem:[%s3181 + $0x230] sm:%s3174]
        %3458 = vst [vmem:[%s3182 + $0x224] sm:%s3174] %v3457
        %v3459 = vld [vmem:[%s3181 + $0x214] sm:%s3174]
        %3460 = vst [vmem:[%s3182 + $0x228] sm:%s3174] %v3459
        %v3461 = vld [vmem:[%s3181 + $0x234] sm:%s3174]
        %3462 = vst [vmem:[%s3182 + $0x22c] sm:%s3174] %v3461
        %v3463 = vld [vmem:[%s3181 + $0x218] sm:%s3174]
        %3464 = vst [vmem:[%s3182 + $0x230] sm:%s3174] %v3463
        %v3465 = vld [vmem:[%s3181 + $0x238] sm:%s3174]
        %3466 = vst [vmem:[%s3182 + $0x234] sm:%s3174] %v3465
        %v3467 = vld [vmem:[%s3181 + $0x21c] sm:%s3174]
        %3468 = vst [vmem:[%s3182 + $0x238] sm:%s3174] %v3467
        %v3469 = vld [vmem:[%s3181 + $0x23c] sm:%s3174]
        %3470 = vst [vmem:[%s3182 + $0x23c] sm:%s3174] %v3469
        %v3471 = vld [vmem:[%s3181 + $0x240] sm:%s3174]
        %3472 = vst [vmem:[%s3182 + $0x240] sm:%s3174] %v3471
        %v3473 = vld [vmem:[%s3181 + $0x260] sm:%s3174]
        %3474 = vst [vmem:[%s3182 + $0x244] sm:%s3174] %v3473
        %v3475 = vld [vmem:[%s3181 + $0x244] sm:%s3174]
        %3476 = vst [vmem:[%s3182 + $0x248] sm:%s3174] %v3475
        %v3477 = vld [vmem:[%s3181 + $0x264] sm:%s3174]
        %3478 = vst [vmem:[%s3182 + $0x24c] sm:%s3174] %v3477
        %v3479 = vld [vmem:[%s3181 + $0x248] sm:%s3174]
        %3480 = vst [vmem:[%s3182 + $0x250] sm:%s3174] %v3479
        %v3481 = vld [vmem:[%s3181 + $0x268] sm:%s3174]
        %3482 = vst [vmem:[%s3182 + $0x254] sm:%s3174] %v3481
        %v3483 = vld [vmem:[%s3181 + $0x24c] sm:%s3174]
        %3484 = vst [vmem:[%s3182 + $0x258] sm:%s3174] %v3483
        %v3485 = vld [vmem:[%s3181 + $0x26c] sm:%s3174]
        %3486 = vst [vmem:[%s3182 + $0x25c] sm:%s3174] %v3485
        %v3487 = vld [vmem:[%s3181 + $0x250] sm:%s3174]
        %3488 = vst [vmem:[%s3182 + $0x260] sm:%s3174] %v3487
        %v3489 = vld [vmem:[%s3181 + $0x270] sm:%s3174]
        %3490 = vst [vmem:[%s3182 + $0x264] sm:%s3174] %v3489
        %v3491 = vld [vmem:[%s3181 + $0x254] sm:%s3174]
        %3492 = vst [vmem:[%s3182 + $0x268] sm:%s3174] %v3491
        %v3493 = vld [vmem:[%s3181 + $0x274] sm:%s3174]
        %3494 = vst [vmem:[%s3182 + $0x26c] sm:%s3174] %v3493
        %v3495 = vld [vmem:[%s3181 + $0x258] sm:%s3174]
        %3496 = vst [vmem:[%s3182 + $0x270] sm:%s3174] %v3495
        %v3497 = vld [vmem:[%s3181 + $0x278] sm:%s3174]
        %3498 = vst [vmem:[%s3182 + $0x274] sm:%s3174] %v3497
        %v3499 = vld [vmem:[%s3181 + $0x25c] sm:%s3174]
        %3500 = vst [vmem:[%s3182 + $0x278] sm:%s3174] %v3499
        %v3501 = vld [vmem:[%s3181 + $0x27c] sm:%s3174]
        %3502 = vst [vmem:[%s3182 + $0x27c] sm:%s3174] %v3501
        %v3503 = vld [vmem:[%s3181 + $0x280] sm:%s3174]
        %3504 = vst [vmem:[%s3182 + $0x280] sm:%s3174] %v3503
        %v3505 = vld [vmem:[%s3181 + $0x2a0] sm:%s3174]
        %3506 = vst [vmem:[%s3182 + $0x284] sm:%s3174] %v3505
        %v3507 = vld [vmem:[%s3181 + $0x284] sm:%s3174]
        %3508 = vst [vmem:[%s3182 + $0x288] sm:%s3174] %v3507
        %v3509 = vld [vmem:[%s3181 + $0x2a4] sm:%s3174]
        %3510 = vst [vmem:[%s3182 + $0x28c] sm:%s3174] %v3509
        %v3511 = vld [vmem:[%s3181 + $0x288] sm:%s3174]
        %3512 = vst [vmem:[%s3182 + $0x290] sm:%s3174] %v3511
        %v3513 = vld [vmem:[%s3181 + $0x2a8] sm:%s3174]
        %3514 = vst [vmem:[%s3182 + $0x294] sm:%s3174] %v3513
        %v3515 = vld [vmem:[%s3181 + $0x28c] sm:%s3174]
        %3516 = vst [vmem:[%s3182 + $0x298] sm:%s3174] %v3515
        %v3517 = vld [vmem:[%s3181 + $0x2ac] sm:%s3174]
        %3518 = vst [vmem:[%s3182 + $0x29c] sm:%s3174] %v3517
        %v3519 = vld [vmem:[%s3181 + $0x290] sm:%s3174]
        %3520 = vst [vmem:[%s3182 + $0x2a0] sm:%s3174] %v3519
        %v3521 = vld [vmem:[%s3181 + $0x2b0] sm:%s3174]
        %3522 = vst [vmem:[%s3182 + $0x2a4] sm:%s3174] %v3521
        %v3523 = vld [vmem:[%s3181 + $0x294] sm:%s3174]
        %3524 = vst [vmem:[%s3182 + $0x2a8] sm:%s3174] %v3523
        %v3525 = vld [vmem:[%s3181 + $0x2b4] sm:%s3174]
        %3526 = vst [vmem:[%s3182 + $0x2ac] sm:%s3174] %v3525
        %v3527 = vld [vmem:[%s3181 + $0x298] sm:%s3174]
        %3528 = vst [vmem:[%s3182 + $0x2b0] sm:%s3174] %v3527
        %v3529 = vld [vmem:[%s3181 + $0x2b8] sm:%s3174]
        %3530 = vst [vmem:[%s3182 + $0x2b4] sm:%s3174] %v3529
        %v3531 = vld [vmem:[%s3181 + $0x29c] sm:%s3174]
        %3532 = vst [vmem:[%s3182 + $0x2b8] sm:%s3174] %v3531
        %v3533 = vld [vmem:[%s3181 + $0x2bc] sm:%s3174]
        %3534 = vst [vmem:[%s3182 + $0x2bc] sm:%s3174] %v3533
        %v3535 = vld [vmem:[%s3181 + $0x2c0] sm:%s3174]
        %3536 = vst [vmem:[%s3182 + $0x2c0] sm:%s3174] %v3535
        %v3537 = vld [vmem:[%s3181 + $0x2e0] sm:%s3174]
        %3538 = vst [vmem:[%s3182 + $0x2c4] sm:%s3174] %v3537
        %v3539 = vld [vmem:[%s3181 + $0x2c4] sm:%s3174]
        %3540 = vst [vmem:[%s3182 + $0x2c8] sm:%s3174] %v3539
        %v3541 = vld [vmem:[%s3181 + $0x2e4] sm:%s3174]
        %3542 = vst [vmem:[%s3182 + $0x2cc] sm:%s3174] %v3541
        %v3543 = vld [vmem:[%s3181 + $0x2c8] sm:%s3174]
        %3544 = vst [vmem:[%s3182 + $0x2d0] sm:%s3174] %v3543
        %v3545 = vld [vmem:[%s3181 + $0x2e8] sm:%s3174]
        %3546 = vst [vmem:[%s3182 + $0x2d4] sm:%s3174] %v3545
        %v3547 = vld [vmem:[%s3181 + $0x2cc] sm:%s3174]
        %3548 = vst [vmem:[%s3182 + $0x2d8] sm:%s3174] %v3547
        %v3549 = vld [vmem:[%s3181 + $0x2ec] sm:%s3174]
        %3550 = vst [vmem:[%s3182 + $0x2dc] sm:%s3174] %v3549
        %v3551 = vld [vmem:[%s3181 + $0x2d0] sm:%s3174]
        %3552 = vst [vmem:[%s3182 + $0x2e0] sm:%s3174] %v3551
        %v3553 = vld [vmem:[%s3181 + $0x2f0] sm:%s3174]
        %3554 = vst [vmem:[%s3182 + $0x2e4] sm:%s3174] %v3553
        %v3555 = vld [vmem:[%s3181 + $0x2d4] sm:%s3174]
        %3556 = vst [vmem:[%s3182 + $0x2e8] sm:%s3174] %v3555
        %v3557 = vld [vmem:[%s3181 + $0x2f4] sm:%s3174]
        %3558 = vst [vmem:[%s3182 + $0x2ec] sm:%s3174] %v3557
        %v3559 = vld [vmem:[%s3181 + $0x2d8] sm:%s3174]
        %3560 = vst [vmem:[%s3182 + $0x2f0] sm:%s3174] %v3559
        %v3561 = vld [vmem:[%s3181 + $0x2f8] sm:%s3174]
        %3562 = vst [vmem:[%s3182 + $0x2f4] sm:%s3174] %v3561
        %v3563 = vld [vmem:[%s3181 + $0x2dc] sm:%s3174]
        %3564 = vst [vmem:[%s3182 + $0x2f8] sm:%s3174] %v3563
        %v3565 = vld [vmem:[%s3181 + $0x2fc] sm:%s3174]
        %3566 = vst [vmem:[%s3182 + $0x2fc] sm:%s3174] %v3565
        %v3567 = vld [vmem:[%s3181 + $0x300] sm:%s3174]
        %3568 = vst [vmem:[%s3182 + $0x300] sm:%s3174] %v3567
        %v3569 = vld [vmem:[%s3181 + $0x320] sm:%s3174]
        %3570 = vst [vmem:[%s3182 + $0x304] sm:%s3174] %v3569
        %v3571 = vld [vmem:[%s3181 + $0x304] sm:%s3174]
        %3572 = vst [vmem:[%s3182 + $0x308] sm:%s3174] %v3571
        %v3573 = vld [vmem:[%s3181 + $0x324] sm:%s3174]
        %3574 = vst [vmem:[%s3182 + $0x30c] sm:%s3174] %v3573
        %v3575 = vld [vmem:[%s3181 + $0x308] sm:%s3174]
        %3576 = vst [vmem:[%s3182 + $0x310] sm:%s3174] %v3575
        %v3577 = vld [vmem:[%s3181 + $0x328] sm:%s3174]
        %3578 = vst [vmem:[%s3182 + $0x314] sm:%s3174] %v3577
        %v3579 = vld [vmem:[%s3181 + $0x30c] sm:%s3174]
        %3580 = vst [vmem:[%s3182 + $0x318] sm:%s3174] %v3579
        %v3581 = vld [vmem:[%s3181 + $0x32c] sm:%s3174]
        %3582 = vst [vmem:[%s3182 + $0x31c] sm:%s3174] %v3581
        %v3583 = vld [vmem:[%s3181 + $0x310] sm:%s3174]
        %3584 = vst [vmem:[%s3182 + $0x320] sm:%s3174] %v3583
        %v3585 = vld [vmem:[%s3181 + $0x330] sm:%s3174]
        %3586 = vst [vmem:[%s3182 + $0x324] sm:%s3174] %v3585
        %v3587 = vld [vmem:[%s3181 + $0x314] sm:%s3174]
        %3588 = vst [vmem:[%s3182 + $0x328] sm:%s3174] %v3587
        %v3589 = vld [vmem:[%s3181 + $0x334] sm:%s3174]
        %3590 = vst [vmem:[%s3182 + $0x32c] sm:%s3174] %v3589
        %v3591 = vld [vmem:[%s3181 + $0x318] sm:%s3174]
        %3592 = vst [vmem:[%s3182 + $0x330] sm:%s3174] %v3591
        %v3593 = vld [vmem:[%s3181 + $0x338] sm:%s3174]
        %3594 = vst [vmem:[%s3182 + $0x334] sm:%s3174] %v3593
        %v3595 = vld [vmem:[%s3181 + $0x31c] sm:%s3174]
        %3596 = vst [vmem:[%s3182 + $0x338] sm:%s3174] %v3595
        %v3597 = vld [vmem:[%s3181 + $0x33c] sm:%s3174]
        %3598 = vst [vmem:[%s3182 + $0x33c] sm:%s3174] %v3597
        %v3599 = vld [vmem:[%s3181 + $0x340] sm:%s3174]
        %3600 = vst [vmem:[%s3182 + $0x340] sm:%s3174] %v3599
        %v3601 = vld [vmem:[%s3181 + $0x360] sm:%s3174]
        %3602 = vst [vmem:[%s3182 + $0x344] sm:%s3174] %v3601
        %v3603 = vld [vmem:[%s3181 + $0x344] sm:%s3174]
        %3604 = vst [vmem:[%s3182 + $0x348] sm:%s3174] %v3603
        %v3605 = vld [vmem:[%s3181 + $0x364] sm:%s3174]
        %3606 = vst [vmem:[%s3182 + $0x34c] sm:%s3174] %v3605
        %v3607 = vld [vmem:[%s3181 + $0x348] sm:%s3174]
        %3608 = vst [vmem:[%s3182 + $0x350] sm:%s3174] %v3607
        %v3609 = vld [vmem:[%s3181 + $0x368] sm:%s3174]
        %3610 = vst [vmem:[%s3182 + $0x354] sm:%s3174] %v3609
        %v3611 = vld [vmem:[%s3181 + $0x34c] sm:%s3174]
        %3612 = vst [vmem:[%s3182 + $0x358] sm:%s3174] %v3611
        %v3613 = vld [vmem:[%s3181 + $0x36c] sm:%s3174]
        %3614 = vst [vmem:[%s3182 + $0x35c] sm:%s3174] %v3613
        %v3615 = vld [vmem:[%s3181 + $0x350] sm:%s3174]
        %3616 = vst [vmem:[%s3182 + $0x360] sm:%s3174] %v3615
        %v3617 = vld [vmem:[%s3181 + $0x370] sm:%s3174]
        %3618 = vst [vmem:[%s3182 + $0x364] sm:%s3174] %v3617
        %v3619 = vld [vmem:[%s3181 + $0x354] sm:%s3174]
        %3620 = vst [vmem:[%s3182 + $0x368] sm:%s3174] %v3619
        %v3621 = vld [vmem:[%s3181 + $0x374] sm:%s3174]
        %3622 = vst [vmem:[%s3182 + $0x36c] sm:%s3174] %v3621
        %v3623 = vld [vmem:[%s3181 + $0x358] sm:%s3174]
        %3624 = vst [vmem:[%s3182 + $0x370] sm:%s3174] %v3623
        %v3625 = vld [vmem:[%s3181 + $0x378] sm:%s3174]
        %3626 = vst [vmem:[%s3182 + $0x374] sm:%s3174] %v3625
        %v3627 = vld [vmem:[%s3181 + $0x35c] sm:%s3174]
        %3628 = vst [vmem:[%s3182 + $0x378] sm:%s3174] %v3627
        %v3629 = vld [vmem:[%s3181 + $0x37c] sm:%s3174]
        %3630 = vst [vmem:[%s3182 + $0x37c] sm:%s3174] %v3629
        %v3631 = vld [vmem:[%s3181 + $0x380] sm:%s3174]
        %3632 = vst [vmem:[%s3182 + $0x380] sm:%s3174] %v3631
        %v3633 = vld [vmem:[%s3181 + $0x3a0] sm:%s3174]
        %3634 = vst [vmem:[%s3182 + $0x384] sm:%s3174] %v3633
        %v3635 = vld [vmem:[%s3181 + $0x384] sm:%s3174]
        %3636 = vst [vmem:[%s3182 + $0x388] sm:%s3174] %v3635
        %v3637 = vld [vmem:[%s3181 + $0x3a4] sm:%s3174]
        %3638 = vst [vmem:[%s3182 + $0x38c] sm:%s3174] %v3637
        %v3639 = vld [vmem:[%s3181 + $0x388] sm:%s3174]
        %3640 = vst [vmem:[%s3182 + $0x390] sm:%s3174] %v3639
        %v3641 = vld [vmem:[%s3181 + $0x3a8] sm:%s3174]
        %3642 = vst [vmem:[%s3182 + $0x394] sm:%s3174] %v3641
        %v3643 = vld [vmem:[%s3181 + $0x38c] sm:%s3174]
        %3644 = vst [vmem:[%s3182 + $0x398] sm:%s3174] %v3643
        %v3645 = vld [vmem:[%s3181 + $0x3ac] sm:%s3174]
        %3646 = vst [vmem:[%s3182 + $0x39c] sm:%s3174] %v3645
        %v3647 = vld [vmem:[%s3181 + $0x390] sm:%s3174]
        %3648 = vst [vmem:[%s3182 + $0x3a0] sm:%s3174] %v3647
        %v3649 = vld [vmem:[%s3181 + $0x3b0] sm:%s3174]
        %3650 = vst [vmem:[%s3182 + $0x3a4] sm:%s3174] %v3649
        %v3651 = vld [vmem:[%s3181 + $0x394] sm:%s3174]
        %3652 = vst [vmem:[%s3182 + $0x3a8] sm:%s3174] %v3651
        %v3653 = vld [vmem:[%s3181 + $0x3b4] sm:%s3174]
        %3654 = vst [vmem:[%s3182 + $0x3ac] sm:%s3174] %v3653
        %v3655 = vld [vmem:[%s3181 + $0x398] sm:%s3174]
        %3656 = vst [vmem:[%s3182 + $0x3b0] sm:%s3174] %v3655
        %v3657 = vld [vmem:[%s3181 + $0x3b8] sm:%s3174]
        %3658 = vst [vmem:[%s3182 + $0x3b4] sm:%s3174] %v3657
        %v3659 = vld [vmem:[%s3181 + $0x39c] sm:%s3174]
        %3660 = vst [vmem:[%s3182 + $0x3b8] sm:%s3174] %v3659
        %v3661 = vld [vmem:[%s3181 + $0x3bc] sm:%s3174]
        %3662 = vst [vmem:[%s3182 + $0x3bc] sm:%s3174] %v3661
        %v3663 = vld [vmem:[%s3181 + $0x3c0] sm:%s3174]
        %3664 = vst [vmem:[%s3182 + $0x3c0] sm:%s3174] %v3663
        %v3665 = vld [vmem:[%s3181 + $0x3e0] sm:%s3174]
        %3666 = vst [vmem:[%s3182 + $0x3c4] sm:%s3174] %v3665
        %v3667 = vld [vmem:[%s3181 + $0x3c4] sm:%s3174]
        %3668 = vst [vmem:[%s3182 + $0x3c8] sm:%s3174] %v3667
        %v3669 = vld [vmem:[%s3181 + $0x3e4] sm:%s3174]
        %3670 = vst [vmem:[%s3182 + $0x3cc] sm:%s3174] %v3669
        %v3671 = vld [vmem:[%s3181 + $0x3c8] sm:%s3174]
        %3672 = vst [vmem:[%s3182 + $0x3d0] sm:%s3174] %v3671
        %v3673 = vld [vmem:[%s3181 + $0x3e8] sm:%s3174]
        %3674 = vst [vmem:[%s3182 + $0x3d4] sm:%s3174] %v3673
        %v3675 = vld [vmem:[%s3181 + $0x3cc] sm:%s3174]
        %3676 = vst [vmem:[%s3182 + $0x3d8] sm:%s3174] %v3675
        %v3677 = vld [vmem:[%s3181 + $0x3ec] sm:%s3174]
        %3678 = vst [vmem:[%s3182 + $0x3dc] sm:%s3174] %v3677
        %v3679 = vld [vmem:[%s3181 + $0x3d0] sm:%s3174]
        %3680 = vst [vmem:[%s3182 + $0x3e0] sm:%s3174] %v3679
        %v3681 = vld [vmem:[%s3181 + $0x3f0] sm:%s3174]
        %3682 = vst [vmem:[%s3182 + $0x3e4] sm:%s3174] %v3681
        %v3683 = vld [vmem:[%s3181 + $0x3d4] sm:%s3174]
        %3684 = vst [vmem:[%s3182 + $0x3e8] sm:%s3174] %v3683
        %v3685 = vld [vmem:[%s3181 + $0x3f4] sm:%s3174]
        %3686 = vst [vmem:[%s3182 + $0x3ec] sm:%s3174] %v3685
        %v3687 = vld [vmem:[%s3181 + $0x3d8] sm:%s3174]
        %3688 = vst [vmem:[%s3182 + $0x3f0] sm:%s3174] %v3687
        %v3689 = vld [vmem:[%s3181 + $0x3f8] sm:%s3174]
        %3690 = vst [vmem:[%s3182 + $0x3f4] sm:%s3174] %v3689
        %v3691 = vld [vmem:[%s3181 + $0x3dc] sm:%s3174]
        %3692 = vst [vmem:[%s3182 + $0x3f8] sm:%s3174] %v3691
        %v3693 = vld [vmem:[%s3181 + $0x3fc] sm:%s3174]
        %3694 = vst [vmem:[%s3182 + $0x3fc] sm:%s3174] %v3693
        %v3695 = vld [vmem:[%s3181 + $0x400] sm:%s3174]
        %3696 = vst [vmem:[%s3182 + $0x400] sm:%s3174] %v3695
        %v3697 = vld [vmem:[%s3181 + $0x420] sm:%s3174]
        %3698 = vst [vmem:[%s3182 + $0x404] sm:%s3174] %v3697
        %v3699 = vld [vmem:[%s3181 + $0x404] sm:%s3174]
        %3700 = vst [vmem:[%s3182 + $0x408] sm:%s3174] %v3699
        %v3701 = vld [vmem:[%s3181 + $0x424] sm:%s3174]
        %3702 = vst [vmem:[%s3182 + $0x40c] sm:%s3174] %v3701
        %v3703 = vld [vmem:[%s3181 + $0x408] sm:%s3174]
        %3704 = vst [vmem:[%s3182 + $0x410] sm:%s3174] %v3703
        %v3705 = vld [vmem:[%s3181 + $0x428] sm:%s3174]
        %3706 = vst [vmem:[%s3182 + $0x414] sm:%s3174] %v3705
        %v3707 = vld [vmem:[%s3181 + $0x40c] sm:%s3174]
        %3708 = vst [vmem:[%s3182 + $0x418] sm:%s3174] %v3707
        %v3709 = vld [vmem:[%s3181 + $0x42c] sm:%s3174]
        %3710 = vst [vmem:[%s3182 + $0x41c] sm:%s3174] %v3709
        %v3711 = vld [vmem:[%s3181 + $0x410] sm:%s3174]
        %3712 = vst [vmem:[%s3182 + $0x420] sm:%s3174] %v3711
        %v3713 = vld [vmem:[%s3181 + $0x430] sm:%s3174]
        %3714 = vst [vmem:[%s3182 + $0x424] sm:%s3174] %v3713
        %v3715 = vld [vmem:[%s3181 + $0x414] sm:%s3174]
        %3716 = vst [vmem:[%s3182 + $0x428] sm:%s3174] %v3715
        %v3717 = vld [vmem:[%s3181 + $0x434] sm:%s3174]
        %3718 = vst [vmem:[%s3182 + $0x42c] sm:%s3174] %v3717
        %v3719 = vld [vmem:[%s3181 + $0x418] sm:%s3174]
        %3720 = vst [vmem:[%s3182 + $0x430] sm:%s3174] %v3719
        %v3721 = vld [vmem:[%s3181 + $0x438] sm:%s3174]
        %3722 = vst [vmem:[%s3182 + $0x434] sm:%s3174] %v3721
        %v3723 = vld [vmem:[%s3181 + $0x41c] sm:%s3174]
        %3724 = vst [vmem:[%s3182 + $0x438] sm:%s3174] %v3723
        %v3725 = vld [vmem:[%s3181 + $0x43c] sm:%s3174]
        %3726 = vst [vmem:[%s3182 + $0x43c] sm:%s3174] %v3725
        %v3727 = vld [vmem:[%s3181 + $0x440] sm:%s3174]
        %3728 = vst [vmem:[%s3182 + $0x440] sm:%s3174] %v3727
        %v3729 = vld [vmem:[%s3181 + $0x460] sm:%s3174]
        %3730 = vst [vmem:[%s3182 + $0x444] sm:%s3174] %v3729
        %v3731 = vld [vmem:[%s3181 + $0x444] sm:%s3174]
        %3732 = vst [vmem:[%s3182 + $0x448] sm:%s3174] %v3731
        %v3733 = vld [vmem:[%s3181 + $0x464] sm:%s3174]
        %3734 = vst [vmem:[%s3182 + $0x44c] sm:%s3174] %v3733
        %v3735 = vld [vmem:[%s3181 + $0x448] sm:%s3174]
        %3736 = vst [vmem:[%s3182 + $0x450] sm:%s3174] %v3735
        %v3737 = vld [vmem:[%s3181 + $0x468] sm:%s3174]
        %3738 = vst [vmem:[%s3182 + $0x454] sm:%s3174] %v3737
        %v3739 = vld [vmem:[%s3181 + $0x44c] sm:%s3174]
        %3740 = vst [vmem:[%s3182 + $0x458] sm:%s3174] %v3739
        %v3741 = vld [vmem:[%s3181 + $0x46c] sm:%s3174]
        %3742 = vst [vmem:[%s3182 + $0x45c] sm:%s3174] %v3741
        %v3743 = vld [vmem:[%s3181 + $0x450] sm:%s3174]
        %3744 = vst [vmem:[%s3182 + $0x460] sm:%s3174] %v3743
        %v3745 = vld [vmem:[%s3181 + $0x470] sm:%s3174]
        %3746 = vst [vmem:[%s3182 + $0x464] sm:%s3174] %v3745
        %v3747 = vld [vmem:[%s3181 + $0x454] sm:%s3174]
        %3748 = vst [vmem:[%s3182 + $0x468] sm:%s3174] %v3747
        %v3749 = vld [vmem:[%s3181 + $0x474] sm:%s3174]
        %3750 = vst [vmem:[%s3182 + $0x46c] sm:%s3174] %v3749
        %v3751 = vld [vmem:[%s3181 + $0x458] sm:%s3174]
        %3752 = vst [vmem:[%s3182 + $0x470] sm:%s3174] %v3751
        %v3753 = vld [vmem:[%s3181 + $0x478] sm:%s3174]
        %3754 = vst [vmem:[%s3182 + $0x474] sm:%s3174] %v3753
        %v3755 = vld [vmem:[%s3181 + $0x45c] sm:%s3174]
        %3756 = vst [vmem:[%s3182 + $0x478] sm:%s3174] %v3755
        %v3757 = vld [vmem:[%s3181 + $0x47c] sm:%s3174]
        %3758 = vst [vmem:[%s3182 + $0x47c] sm:%s3174] %v3757
        %v3759 = vld [vmem:[%s3181 + $0x480] sm:%s3174]
        %3760 = vst [vmem:[%s3182 + $0x480] sm:%s3174] %v3759
        %v3761 = vld [vmem:[%s3181 + $0x4a0] sm:%s3174]
        %3762 = vst [vmem:[%s3182 + $0x484] sm:%s3174] %v3761
        %v3763 = vld [vmem:[%s3181 + $0x484] sm:%s3174]
        %3764 = vst [vmem:[%s3182 + $0x488] sm:%s3174] %v3763
        %v3765 = vld [vmem:[%s3181 + $0x4a4] sm:%s3174]
        %3766 = vst [vmem:[%s3182 + $0x48c] sm:%s3174] %v3765
        %v3767 = vld [vmem:[%s3181 + $0x488] sm:%s3174]
        %3768 = vst [vmem:[%s3182 + $0x490] sm:%s3174] %v3767
        %v3769 = vld [vmem:[%s3181 + $0x4a8] sm:%s3174]
        %3770 = vst [vmem:[%s3182 + $0x494] sm:%s3174] %v3769
        %v3771 = vld [vmem:[%s3181 + $0x48c] sm:%s3174]
        %3772 = vst [vmem:[%s3182 + $0x498] sm:%s3174] %v3771
        %v3773 = vld [vmem:[%s3181 + $0x4ac] sm:%s3174]
        %3774 = vst [vmem:[%s3182 + $0x49c] sm:%s3174] %v3773
        %v3775 = vld [vmem:[%s3181 + $0x490] sm:%s3174]
        %3776 = vst [vmem:[%s3182 + $0x4a0] sm:%s3174] %v3775
        %v3777 = vld [vmem:[%s3181 + $0x4b0] sm:%s3174]
        %3778 = vst [vmem:[%s3182 + $0x4a4] sm:%s3174] %v3777
        %v3779 = vld [vmem:[%s3181 + $0x494] sm:%s3174]
        %3780 = vst [vmem:[%s3182 + $0x4a8] sm:%s3174] %v3779
        %v3781 = vld [vmem:[%s3181 + $0x4b4] sm:%s3174]
        %3782 = vst [vmem:[%s3182 + $0x4ac] sm:%s3174] %v3781
        %v3783 = vld [vmem:[%s3181 + $0x498] sm:%s3174]
        %3784 = vst [vmem:[%s3182 + $0x4b0] sm:%s3174] %v3783
        %v3785 = vld [vmem:[%s3181 + $0x4b8] sm:%s3174]
        %3786 = vst [vmem:[%s3182 + $0x4b4] sm:%s3174] %v3785
        %v3787 = vld [vmem:[%s3181 + $0x49c] sm:%s3174]
        %3788 = vst [vmem:[%s3182 + $0x4b8] sm:%s3174] %v3787
        %v3789 = vld [vmem:[%s3181 + $0x4bc] sm:%s3174]
        %3790 = vst [vmem:[%s3182 + $0x4bc] sm:%s3174] %v3789
        %v3791 = vld [vmem:[%s3181 + $0x4c0] sm:%s3174]
        %3792 = vst [vmem:[%s3182 + $0x4c0] sm:%s3174] %v3791
        %v3793 = vld [vmem:[%s3181 + $0x4e0] sm:%s3174]
        %3794 = vst [vmem:[%s3182 + $0x4c4] sm:%s3174] %v3793
        %v3795 = vld [vmem:[%s3181 + $0x4c4] sm:%s3174]
        %3796 = vst [vmem:[%s3182 + $0x4c8] sm:%s3174] %v3795
        %v3797 = vld [vmem:[%s3181 + $0x4e4] sm:%s3174]
        %3798 = vst [vmem:[%s3182 + $0x4cc] sm:%s3174] %v3797
        %v3799 = vld [vmem:[%s3181 + $0x4c8] sm:%s3174]
        %3800 = vst [vmem:[%s3182 + $0x4d0] sm:%s3174] %v3799
        %v3801 = vld [vmem:[%s3181 + $0x4e8] sm:%s3174]
        %3802 = vst [vmem:[%s3182 + $0x4d4] sm:%s3174] %v3801
        %v3803 = vld [vmem:[%s3181 + $0x4cc] sm:%s3174]
        %3804 = vst [vmem:[%s3182 + $0x4d8] sm:%s3174] %v3803
        %v3805 = vld [vmem:[%s3181 + $0x4ec] sm:%s3174]
        %3806 = vst [vmem:[%s3182 + $0x4dc] sm:%s3174] %v3805
        %v3807 = vld [vmem:[%s3181 + $0x4d0] sm:%s3174]
        %3808 = vst [vmem:[%s3182 + $0x4e0] sm:%s3174] %v3807
        %v3809 = vld [vmem:[%s3181 + $0x4f0] sm:%s3174]
        %3810 = vst [vmem:[%s3182 + $0x4e4] sm:%s3174] %v3809
        %v3811 = vld [vmem:[%s3181 + $0x4d4] sm:%s3174]
        %3812 = vst [vmem:[%s3182 + $0x4e8] sm:%s3174] %v3811
        %v3813 = vld [vmem:[%s3181 + $0x4f4] sm:%s3174]
        %3814 = vst [vmem:[%s3182 + $0x4ec] sm:%s3174] %v3813
        %v3815 = vld [vmem:[%s3181 + $0x4d8] sm:%s3174]
        %3816 = vst [vmem:[%s3182 + $0x4f0] sm:%s3174] %v3815
        %v3817 = vld [vmem:[%s3181 + $0x4f8] sm:%s3174]
        %3818 = vst [vmem:[%s3182 + $0x4f4] sm:%s3174] %v3817
        %v3819 = vld [vmem:[%s3181 + $0x4dc] sm:%s3174]
        %3820 = vst [vmem:[%s3182 + $0x4f8] sm:%s3174] %v3819
        %v3821 = vld [vmem:[%s3181 + $0x4fc] sm:%s3174]
        %3822 = vst [vmem:[%s3182 + $0x4fc] sm:%s3174] %v3821
        %v3823 = vld [vmem:[%s3181 + $0x500] sm:%s3174]
        %3824 = vst [vmem:[%s3182 + $0x500] sm:%s3174] %v3823
        %v3825 = vld [vmem:[%s3181 + $0x520] sm:%s3174]
        %3826 = vst [vmem:[%s3182 + $0x504] sm:%s3174] %v3825
        %v3827 = vld [vmem:[%s3181 + $0x504] sm:%s3174]
        %3828 = vst [vmem:[%s3182 + $0x508] sm:%s3174] %v3827
        %v3829 = vld [vmem:[%s3181 + $0x524] sm:%s3174]
        %3830 = vst [vmem:[%s3182 + $0x50c] sm:%s3174] %v3829
        %v3831 = vld [vmem:[%s3181 + $0x508] sm:%s3174]
        %3832 = vst [vmem:[%s3182 + $0x510] sm:%s3174] %v3831
        %v3833 = vld [vmem:[%s3181 + $0x528] sm:%s3174]
        %3834 = vst [vmem:[%s3182 + $0x514] sm:%s3174] %v3833
        %v3835 = vld [vmem:[%s3181 + $0x50c] sm:%s3174]
        %3836 = vst [vmem:[%s3182 + $0x518] sm:%s3174] %v3835
        %v3837 = vld [vmem:[%s3181 + $0x52c] sm:%s3174]
        %3838 = vst [vmem:[%s3182 + $0x51c] sm:%s3174] %v3837
        %v3839 = vld [vmem:[%s3181 + $0x510] sm:%s3174]
        %3840 = vst [vmem:[%s3182 + $0x520] sm:%s3174] %v3839
        %v3841 = vld [vmem:[%s3181 + $0x530] sm:%s3174]
        %3842 = vst [vmem:[%s3182 + $0x524] sm:%s3174] %v3841
        %v3843 = vld [vmem:[%s3181 + $0x514] sm:%s3174]
        %3844 = vst [vmem:[%s3182 + $0x528] sm:%s3174] %v3843
        %v3845 = vld [vmem:[%s3181 + $0x534] sm:%s3174]
        %3846 = vst [vmem:[%s3182 + $0x52c] sm:%s3174] %v3845
        %v3847 = vld [vmem:[%s3181 + $0x518] sm:%s3174]
        %3848 = vst [vmem:[%s3182 + $0x530] sm:%s3174] %v3847
        %v3849 = vld [vmem:[%s3181 + $0x538] sm:%s3174]
        %3850 = vst [vmem:[%s3182 + $0x534] sm:%s3174] %v3849
        %v3851 = vld [vmem:[%s3181 + $0x51c] sm:%s3174]
        %3852 = vst [vmem:[%s3182 + $0x538] sm:%s3174] %v3851
        %v3853 = vld [vmem:[%s3181 + $0x53c] sm:%s3174]
        %3854 = vst [vmem:[%s3182 + $0x53c] sm:%s3174] %v3853
        %v3855 = vld [vmem:[%s3181 + $0x540] sm:%s3174]
        %3856 = vst [vmem:[%s3182 + $0x540] sm:%s3174] %v3855
        %v3857 = vld [vmem:[%s3181 + $0x560] sm:%s3174]
        %3858 = vst [vmem:[%s3182 + $0x544] sm:%s3174] %v3857
        %v3859 = vld [vmem:[%s3181 + $0x544] sm:%s3174]
        %3860 = vst [vmem:[%s3182 + $0x548] sm:%s3174] %v3859
        %v3861 = vld [vmem:[%s3181 + $0x564] sm:%s3174]
        %3862 = vst [vmem:[%s3182 + $0x54c] sm:%s3174] %v3861
        %v3863 = vld [vmem:[%s3181 + $0x548] sm:%s3174]
        %3864 = vst [vmem:[%s3182 + $0x550] sm:%s3174] %v3863
        %v3865 = vld [vmem:[%s3181 + $0x568] sm:%s3174]
        %3866 = vst [vmem:[%s3182 + $0x554] sm:%s3174] %v3865
        %v3867 = vld [vmem:[%s3181 + $0x54c] sm:%s3174]
        %3868 = vst [vmem:[%s3182 + $0x558] sm:%s3174] %v3867
        %v3869 = vld [vmem:[%s3181 + $0x56c] sm:%s3174]
        %3870 = vst [vmem:[%s3182 + $0x55c] sm:%s3174] %v3869
        %v3871 = vld [vmem:[%s3181 + $0x550] sm:%s3174]
        %3872 = vst [vmem:[%s3182 + $0x560] sm:%s3174] %v3871
        %v3873 = vld [vmem:[%s3181 + $0x570] sm:%s3174]
        %3874 = vst [vmem:[%s3182 + $0x564] sm:%s3174] %v3873
        %v3875 = vld [vmem:[%s3181 + $0x554] sm:%s3174]
        %3876 = vst [vmem:[%s3182 + $0x568] sm:%s3174] %v3875
        %v3877 = vld [vmem:[%s3181 + $0x574] sm:%s3174]
        %3878 = vst [vmem:[%s3182 + $0x56c] sm:%s3174] %v3877
        %v3879 = vld [vmem:[%s3181 + $0x558] sm:%s3174]
        %3880 = vst [vmem:[%s3182 + $0x570] sm:%s3174] %v3879
        %v3881 = vld [vmem:[%s3181 + $0x578] sm:%s3174]
        %3882 = vst [vmem:[%s3182 + $0x574] sm:%s3174] %v3881
        %v3883 = vld [vmem:[%s3181 + $0x55c] sm:%s3174]
        %3884 = vst [vmem:[%s3182 + $0x578] sm:%s3174] %v3883
        %v3885 = vld [vmem:[%s3181 + $0x57c] sm:%s3174]
        %3886 = vst [vmem:[%s3182 + $0x57c] sm:%s3174] %v3885
        %v3887 = vld [vmem:[%s3181 + $0x580] sm:%s3174]
        %3888 = vst [vmem:[%s3182 + $0x580] sm:%s3174] %v3887
        %v3889 = vld [vmem:[%s3181 + $0x5a0] sm:%s3174]
        %3890 = vst [vmem:[%s3182 + $0x584] sm:%s3174] %v3889
        %v3891 = vld [vmem:[%s3181 + $0x584] sm:%s3174]
        %3892 = vst [vmem:[%s3182 + $0x588] sm:%s3174] %v3891
        %v3893 = vld [vmem:[%s3181 + $0x5a4] sm:%s3174]
        %3894 = vst [vmem:[%s3182 + $0x58c] sm:%s3174] %v3893
        %v3895 = vld [vmem:[%s3181 + $0x588] sm:%s3174]
        %3896 = vst [vmem:[%s3182 + $0x590] sm:%s3174] %v3895
        %v3897 = vld [vmem:[%s3181 + $0x5a8] sm:%s3174]
        %3898 = vst [vmem:[%s3182 + $0x594] sm:%s3174] %v3897
        %v3899 = vld [vmem:[%s3181 + $0x58c] sm:%s3174]
        %3900 = vst [vmem:[%s3182 + $0x598] sm:%s3174] %v3899
        %v3901 = vld [vmem:[%s3181 + $0x5ac] sm:%s3174]
        %3902 = vst [vmem:[%s3182 + $0x59c] sm:%s3174] %v3901
        %v3903 = vld [vmem:[%s3181 + $0x590] sm:%s3174]
        %3904 = vst [vmem:[%s3182 + $0x5a0] sm:%s3174] %v3903
        %v3905 = vld [vmem:[%s3181 + $0x5b0] sm:%s3174]
        %3906 = vst [vmem:[%s3182 + $0x5a4] sm:%s3174] %v3905
        %v3907 = vld [vmem:[%s3181 + $0x594] sm:%s3174]
        %3908 = vst [vmem:[%s3182 + $0x5a8] sm:%s3174] %v3907
        %v3909 = vld [vmem:[%s3181 + $0x5b4] sm:%s3174]
        %3910 = vst [vmem:[%s3182 + $0x5ac] sm:%s3174] %v3909
        %v3911 = vld [vmem:[%s3181 + $0x598] sm:%s3174]
        %3912 = vst [vmem:[%s3182 + $0x5b0] sm:%s3174] %v3911
        %v3913 = vld [vmem:[%s3181 + $0x5b8] sm:%s3174]
        %3914 = vst [vmem:[%s3182 + $0x5b4] sm:%s3174] %v3913
        %v3915 = vld [vmem:[%s3181 + $0x59c] sm:%s3174]
        %3916 = vst [vmem:[%s3182 + $0x5b8] sm:%s3174] %v3915
        %v3917 = vld [vmem:[%s3181 + $0x5bc] sm:%s3174]
        %3918 = vst [vmem:[%s3182 + $0x5bc] sm:%s3174] %v3917
        %v3919 = vld [vmem:[%s3181 + $0x5c0] sm:%s3174]
        %3920 = vst [vmem:[%s3182 + $0x5c0] sm:%s3174] %v3919
        %v3921 = vld [vmem:[%s3181 + $0x5e0] sm:%s3174]
        %3922 = vst [vmem:[%s3182 + $0x5c4] sm:%s3174] %v3921
        %v3923 = vld [vmem:[%s3181 + $0x5c4] sm:%s3174]
        %3924 = vst [vmem:[%s3182 + $0x5c8] sm:%s3174] %v3923
        %v3925 = vld [vmem:[%s3181 + $0x5e4] sm:%s3174]
        %3926 = vst [vmem:[%s3182 + $0x5cc] sm:%s3174] %v3925
        %v3927 = vld [vmem:[%s3181 + $0x5c8] sm:%s3174]
        %3928 = vst [vmem:[%s3182 + $0x5d0] sm:%s3174] %v3927
        %v3929 = vld [vmem:[%s3181 + $0x5e8] sm:%s3174]
        %3930 = vst [vmem:[%s3182 + $0x5d4] sm:%s3174] %v3929
        %v3931 = vld [vmem:[%s3181 + $0x5cc] sm:%s3174]
        %3932 = vst [vmem:[%s3182 + $0x5d8] sm:%s3174] %v3931
        %v3933 = vld [vmem:[%s3181 + $0x5ec] sm:%s3174]
        %3934 = vst [vmem:[%s3182 + $0x5dc] sm:%s3174] %v3933
        %v3935 = vld [vmem:[%s3181 + $0x5d0] sm:%s3174]
        %3936 = vst [vmem:[%s3182 + $0x5e0] sm:%s3174] %v3935
        %v3937 = vld [vmem:[%s3181 + $0x5f0] sm:%s3174]
        %3938 = vst [vmem:[%s3182 + $0x5e4] sm:%s3174] %v3937
        %v3939 = vld [vmem:[%s3181 + $0x5d4] sm:%s3174]
        %3940 = vst [vmem:[%s3182 + $0x5e8] sm:%s3174] %v3939
        %v3941 = vld [vmem:[%s3181 + $0x5f4] sm:%s3174]
        %3942 = vst [vmem:[%s3182 + $0x5ec] sm:%s3174] %v3941
        %v3943 = vld [vmem:[%s3181 + $0x5d8] sm:%s3174]
        %3944 = vst [vmem:[%s3182 + $0x5f0] sm:%s3174] %v3943
        %v3945 = vld [vmem:[%s3181 + $0x5f8] sm:%s3174]
        %3946 = vst [vmem:[%s3182 + $0x5f4] sm:%s3174] %v3945
        %v3947 = vld [vmem:[%s3181 + $0x5dc] sm:%s3174]
        %3948 = vst [vmem:[%s3182 + $0x5f8] sm:%s3174] %v3947
        %v3949 = vld [vmem:[%s3181 + $0x5fc] sm:%s3174]
        %3950 = vst [vmem:[%s3182 + $0x5fc] sm:%s3174] %v3949
        %v3951 = vld [vmem:[%s3181 + $0x600] sm:%s3174]
        %3952 = vst [vmem:[%s3182 + $0x600] sm:%s3174] %v3951
        %v3953 = vld [vmem:[%s3181 + $0x620] sm:%s3174]
        %3954 = vst [vmem:[%s3182 + $0x604] sm:%s3174] %v3953
        %v3955 = vld [vmem:[%s3181 + $0x604] sm:%s3174]
        %3956 = vst [vmem:[%s3182 + $0x608] sm:%s3174] %v3955
        %v3957 = vld [vmem:[%s3181 + $0x624] sm:%s3174]
        %3958 = vst [vmem:[%s3182 + $0x60c] sm:%s3174] %v3957
        %v3959 = vld [vmem:[%s3181 + $0x608] sm:%s3174]
        %3960 = vst [vmem:[%s3182 + $0x610] sm:%s3174] %v3959
        %v3961 = vld [vmem:[%s3181 + $0x628] sm:%s3174]
        %3962 = vst [vmem:[%s3182 + $0x614] sm:%s3174] %v3961
        %v3963 = vld [vmem:[%s3181 + $0x60c] sm:%s3174]
        %3964 = vst [vmem:[%s3182 + $0x618] sm:%s3174] %v3963
        %v3965 = vld [vmem:[%s3181 + $0x62c] sm:%s3174]
        %3966 = vst [vmem:[%s3182 + $0x61c] sm:%s3174] %v3965
        %v3967 = vld [vmem:[%s3181 + $0x610] sm:%s3174]
        %3968 = vst [vmem:[%s3182 + $0x620] sm:%s3174] %v3967
        %v3969 = vld [vmem:[%s3181 + $0x630] sm:%s3174]
        %3970 = vst [vmem:[%s3182 + $0x624] sm:%s3174] %v3969
        %v3971 = vld [vmem:[%s3181 + $0x614] sm:%s3174]
        %3972 = vst [vmem:[%s3182 + $0x628] sm:%s3174] %v3971
        %v3973 = vld [vmem:[%s3181 + $0x634] sm:%s3174]
        %3974 = vst [vmem:[%s3182 + $0x62c] sm:%s3174] %v3973
        %v3975 = vld [vmem:[%s3181 + $0x618] sm:%s3174]
        %3976 = vst [vmem:[%s3182 + $0x630] sm:%s3174] %v3975
        %v3977 = vld [vmem:[%s3181 + $0x638] sm:%s3174]
        %3978 = vst [vmem:[%s3182 + $0x634] sm:%s3174] %v3977
        %v3979 = vld [vmem:[%s3181 + $0x61c] sm:%s3174]
        %3980 = vst [vmem:[%s3182 + $0x638] sm:%s3174] %v3979
        %v3981 = vld [vmem:[%s3181 + $0x63c] sm:%s3174]
        %3982 = vst [vmem:[%s3182 + $0x63c] sm:%s3174] %v3981
        %v3983 = vld [vmem:[%s3181 + $0x640] sm:%s3174]
        %3984 = vst [vmem:[%s3182 + $0x640] sm:%s3174] %v3983
        %v3985 = vld [vmem:[%s3181 + $0x660] sm:%s3174]
        %3986 = vst [vmem:[%s3182 + $0x644] sm:%s3174] %v3985
        %v3987 = vld [vmem:[%s3181 + $0x644] sm:%s3174]
        %3988 = vst [vmem:[%s3182 + $0x648] sm:%s3174] %v3987
        %v3989 = vld [vmem:[%s3181 + $0x664] sm:%s3174]
        %3990 = vst [vmem:[%s3182 + $0x64c] sm:%s3174] %v3989
        %v3991 = vld [vmem:[%s3181 + $0x648] sm:%s3174]
        %3992 = vst [vmem:[%s3182 + $0x650] sm:%s3174] %v3991
        %v3993 = vld [vmem:[%s3181 + $0x668] sm:%s3174]
        %3994 = vst [vmem:[%s3182 + $0x654] sm:%s3174] %v3993
        %v3995 = vld [vmem:[%s3181 + $0x64c] sm:%s3174]
        %3996 = vst [vmem:[%s3182 + $0x658] sm:%s3174] %v3995
        %v3997 = vld [vmem:[%s3181 + $0x66c] sm:%s3174]
        %3998 = vst [vmem:[%s3182 + $0x65c] sm:%s3174] %v3997
        %v3999 = vld [vmem:[%s3181 + $0x650] sm:%s3174]
        %4000 = vst [vmem:[%s3182 + $0x660] sm:%s3174] %v3999
        %v4001 = vld [vmem:[%s3181 + $0x670] sm:%s3174]
        %4002 = vst [vmem:[%s3182 + $0x664] sm:%s3174] %v4001
        %v4003 = vld [vmem:[%s3181 + $0x654] sm:%s3174]
        %4004 = vst [vmem:[%s3182 + $0x668] sm:%s3174] %v4003
        %v4005 = vld [vmem:[%s3181 + $0x674] sm:%s3174]
        %4006 = vst [vmem:[%s3182 + $0x66c] sm:%s3174] %v4005
        %v4007 = vld [vmem:[%s3181 + $0x658] sm:%s3174]
        %4008 = vst [vmem:[%s3182 + $0x670] sm:%s3174] %v4007
        %v4009 = vld [vmem:[%s3181 + $0x678] sm:%s3174]
        %4010 = vst [vmem:[%s3182 + $0x674] sm:%s3174] %v4009
        %v4011 = vld [vmem:[%s3181 + $0x65c] sm:%s3174]
        %4012 = vst [vmem:[%s3182 + $0x678] sm:%s3174] %v4011
        %v4013 = vld [vmem:[%s3181 + $0x67c] sm:%s3174]
        %4014 = vst [vmem:[%s3182 + $0x67c] sm:%s3174] %v4013
        %v4015 = vld [vmem:[%s3181 + $0x680] sm:%s3174]
        %4016 = vst [vmem:[%s3182 + $0x680] sm:%s3174] %v4015
        %v4017 = vld [vmem:[%s3181 + $0x6a0] sm:%s3174]
        %4018 = vst [vmem:[%s3182 + $0x684] sm:%s3174] %v4017
        %v4019 = vld [vmem:[%s3181 + $0x684] sm:%s3174]
        %4020 = vst [vmem:[%s3182 + $0x688] sm:%s3174] %v4019
        %v4021 = vld [vmem:[%s3181 + $0x6a4] sm:%s3174]
        %4022 = vst [vmem:[%s3182 + $0x68c] sm:%s3174] %v4021
        %v4023 = vld [vmem:[%s3181 + $0x688] sm:%s3174]
        %4024 = vst [vmem:[%s3182 + $0x690] sm:%s3174] %v4023
        %v4025 = vld [vmem:[%s3181 + $0x6a8] sm:%s3174]
        %4026 = vst [vmem:[%s3182 + $0x694] sm:%s3174] %v4025
        %v4027 = vld [vmem:[%s3181 + $0x68c] sm:%s3174]
        %4028 = vst [vmem:[%s3182 + $0x698] sm:%s3174] %v4027
        %v4029 = vld [vmem:[%s3181 + $0x6ac] sm:%s3174]
        %4030 = vst [vmem:[%s3182 + $0x69c] sm:%s3174] %v4029
        %v4031 = vld [vmem:[%s3181 + $0x690] sm:%s3174]
        %4032 = vst [vmem:[%s3182 + $0x6a0] sm:%s3174] %v4031
        %v4033 = vld [vmem:[%s3181 + $0x6b0] sm:%s3174]
        %4034 = vst [vmem:[%s3182 + $0x6a4] sm:%s3174] %v4033
        %v4035 = vld [vmem:[%s3181 + $0x694] sm:%s3174]
        %4036 = vst [vmem:[%s3182 + $0x6a8] sm:%s3174] %v4035
        %v4037 = vld [vmem:[%s3181 + $0x6b4] sm:%s3174]
        %4038 = vst [vmem:[%s3182 + $0x6ac] sm:%s3174] %v4037
        %v4039 = vld [vmem:[%s3181 + $0x698] sm:%s3174]
        %4040 = vst [vmem:[%s3182 + $0x6b0] sm:%s3174] %v4039
        %v4041 = vld [vmem:[%s3181 + $0x6b8] sm:%s3174]
        %4042 = vst [vmem:[%s3182 + $0x6b4] sm:%s3174] %v4041
        %v4043 = vld [vmem:[%s3181 + $0x69c] sm:%s3174]
        %4044 = vst [vmem:[%s3182 + $0x6b8] sm:%s3174] %v4043
        %v4045 = vld [vmem:[%s3181 + $0x6bc] sm:%s3174]
        %4046 = vst [vmem:[%s3182 + $0x6bc] sm:%s3174] %v4045
        %v4047 = vld [vmem:[%s3181 + $0x6c0] sm:%s3174]
        %4048 = vst [vmem:[%s3182 + $0x6c0] sm:%s3174] %v4047
        %v4049 = vld [vmem:[%s3181 + $0x6e0] sm:%s3174]
        %4050 = vst [vmem:[%s3182 + $0x6c4] sm:%s3174] %v4049
        %v4051 = vld [vmem:[%s3181 + $0x6c4] sm:%s3174]
        %4052 = vst [vmem:[%s3182 + $0x6c8] sm:%s3174] %v4051
        %v4053 = vld [vmem:[%s3181 + $0x6e4] sm:%s3174]
        %4054 = vst [vmem:[%s3182 + $0x6cc] sm:%s3174] %v4053
        %v4055 = vld [vmem:[%s3181 + $0x6c8] sm:%s3174]
        %4056 = vst [vmem:[%s3182 + $0x6d0] sm:%s3174] %v4055
        %v4057 = vld [vmem:[%s3181 + $0x6e8] sm:%s3174]
        %4058 = vst [vmem:[%s3182 + $0x6d4] sm:%s3174] %v4057
        %v4059 = vld [vmem:[%s3181 + $0x6cc] sm:%s3174]
        %4060 = vst [vmem:[%s3182 + $0x6d8] sm:%s3174] %v4059
        %v4061 = vld [vmem:[%s3181 + $0x6ec] sm:%s3174]
        %4062 = vst [vmem:[%s3182 + $0x6dc] sm:%s3174] %v4061
        %v4063 = vld [vmem:[%s3181 + $0x6d0] sm:%s3174]
        %4064 = vst [vmem:[%s3182 + $0x6e0] sm:%s3174] %v4063
        %v4065 = vld [vmem:[%s3181 + $0x6f0] sm:%s3174]
        %4066 = vst [vmem:[%s3182 + $0x6e4] sm:%s3174] %v4065
        %v4067 = vld [vmem:[%s3181 + $0x6d4] sm:%s3174]
        %4068 = vst [vmem:[%s3182 + $0x6e8] sm:%s3174] %v4067
        %v4069 = vld [vmem:[%s3181 + $0x6f4] sm:%s3174]
        %4070 = vst [vmem:[%s3182 + $0x6ec] sm:%s3174] %v4069
        %v4071 = vld [vmem:[%s3181 + $0x6d8] sm:%s3174]
        %4072 = vst [vmem:[%s3182 + $0x6f0] sm:%s3174] %v4071
        %v4073 = vld [vmem:[%s3181 + $0x6f8] sm:%s3174]
        %4074 = vst [vmem:[%s3182 + $0x6f4] sm:%s3174] %v4073
        %v4075 = vld [vmem:[%s3181 + $0x6dc] sm:%s3174]
        %4076 = vst [vmem:[%s3182 + $0x6f8] sm:%s3174] %v4075
        %v4077 = vld [vmem:[%s3181 + $0x6fc] sm:%s3174]
        %4078 = vst [vmem:[%s3182 + $0x6fc] sm:%s3174] %v4077
        %v4079 = vld [vmem:[%s3181 + $0x700] sm:%s3174]
        %4080 = vst [vmem:[%s3182 + $0x700] sm:%s3174] %v4079
        %v4081 = vld [vmem:[%s3181 + $0x720] sm:%s3174]
        %4082 = vst [vmem:[%s3182 + $0x704] sm:%s3174] %v4081
        %v4083 = vld [vmem:[%s3181 + $0x704] sm:%s3174]
        %4084 = vst [vmem:[%s3182 + $0x708] sm:%s3174] %v4083
        %v4085 = vld [vmem:[%s3181 + $0x724] sm:%s3174]
        %4086 = vst [vmem:[%s3182 + $0x70c] sm:%s3174] %v4085
        %v4087 = vld [vmem:[%s3181 + $0x708] sm:%s3174]
        %4088 = vst [vmem:[%s3182 + $0x710] sm:%s3174] %v4087
        %v4089 = vld [vmem:[%s3181 + $0x728] sm:%s3174]
        %4090 = vst [vmem:[%s3182 + $0x714] sm:%s3174] %v4089
        %v4091 = vld [vmem:[%s3181 + $0x70c] sm:%s3174]
        %4092 = vst [vmem:[%s3182 + $0x718] sm:%s3174] %v4091
        %v4093 = vld [vmem:[%s3181 + $0x72c] sm:%s3174]
        %4094 = vst [vmem:[%s3182 + $0x71c] sm:%s3174] %v4093
        %v4095 = vld [vmem:[%s3181 + $0x710] sm:%s3174]
        %4096 = vst [vmem:[%s3182 + $0x720] sm:%s3174] %v4095
        %v4097 = vld [vmem:[%s3181 + $0x730] sm:%s3174]
        %4098 = vst [vmem:[%s3182 + $0x724] sm:%s3174] %v4097
        %v4099 = vld [vmem:[%s3181 + $0x714] sm:%s3174]
        %4100 = vst [vmem:[%s3182 + $0x728] sm:%s3174] %v4099
        %v4101 = vld [vmem:[%s3181 + $0x734] sm:%s3174]
        %4102 = vst [vmem:[%s3182 + $0x72c] sm:%s3174] %v4101
        %v4103 = vld [vmem:[%s3181 + $0x718] sm:%s3174]
        %4104 = vst [vmem:[%s3182 + $0x730] sm:%s3174] %v4103
        %v4105 = vld [vmem:[%s3181 + $0x738] sm:%s3174]
        %4106 = vst [vmem:[%s3182 + $0x734] sm:%s3174] %v4105
        %v4107 = vld [vmem:[%s3181 + $0x71c] sm:%s3174]
        %4108 = vst [vmem:[%s3182 + $0x738] sm:%s3174] %v4107
        %v4109 = vld [vmem:[%s3181 + $0x73c] sm:%s3174]
        %4110 = vst [vmem:[%s3182 + $0x73c] sm:%s3174] %v4109
        %v4111 = vld [vmem:[%s3181 + $0x740] sm:%s3174]
        %4112 = vst [vmem:[%s3182 + $0x740] sm:%s3174] %v4111
        %v4113 = vld [vmem:[%s3181 + $0x760] sm:%s3174]
        %4114 = vst [vmem:[%s3182 + $0x744] sm:%s3174] %v4113
        %v4115 = vld [vmem:[%s3181 + $0x744] sm:%s3174]
        %4116 = vst [vmem:[%s3182 + $0x748] sm:%s3174] %v4115
        %v4117 = vld [vmem:[%s3181 + $0x764] sm:%s3174]
        %4118 = vst [vmem:[%s3182 + $0x74c] sm:%s3174] %v4117
        %v4119 = vld [vmem:[%s3181 + $0x748] sm:%s3174]
        %4120 = vst [vmem:[%s3182 + $0x750] sm:%s3174] %v4119
        %v4121 = vld [vmem:[%s3181 + $0x768] sm:%s3174]
        %4122 = vst [vmem:[%s3182 + $0x754] sm:%s3174] %v4121
        %v4123 = vld [vmem:[%s3181 + $0x74c] sm:%s3174]
        %4124 = vst [vmem:[%s3182 + $0x758] sm:%s3174] %v4123
        %v4125 = vld [vmem:[%s3181 + $0x76c] sm:%s3174]
        %4126 = vst [vmem:[%s3182 + $0x75c] sm:%s3174] %v4125
        %v4127 = vld [vmem:[%s3181 + $0x750] sm:%s3174]
        %4128 = vst [vmem:[%s3182 + $0x760] sm:%s3174] %v4127
        %v4129 = vld [vmem:[%s3181 + $0x770] sm:%s3174]
        %4130 = vst [vmem:[%s3182 + $0x764] sm:%s3174] %v4129
        %v4131 = vld [vmem:[%s3181 + $0x754] sm:%s3174]
        %4132 = vst [vmem:[%s3182 + $0x768] sm:%s3174] %v4131
        %v4133 = vld [vmem:[%s3181 + $0x774] sm:%s3174]
        %4134 = vst [vmem:[%s3182 + $0x76c] sm:%s3174] %v4133
        %v4135 = vld [vmem:[%s3181 + $0x758] sm:%s3174]
        %4136 = vst [vmem:[%s3182 + $0x770] sm:%s3174] %v4135
        %v4137 = vld [vmem:[%s3181 + $0x778] sm:%s3174]
        %4138 = vst [vmem:[%s3182 + $0x774] sm:%s3174] %v4137
        %v4139 = vld [vmem:[%s3181 + $0x75c] sm:%s3174]
        %4140 = vst [vmem:[%s3182 + $0x778] sm:%s3174] %v4139
        %v4141 = vld [vmem:[%s3181 + $0x77c] sm:%s3174]
        %4142 = vst [vmem:[%s3182 + $0x77c] sm:%s3174] %v4141
        %v4143 = vld [vmem:[%s3181 + $0x780] sm:%s3174]
        %4144 = vst [vmem:[%s3182 + $0x780] sm:%s3174] %v4143
        %v4145 = vld [vmem:[%s3181 + $0x7a0] sm:%s3174]
        %4146 = vst [vmem:[%s3182 + $0x784] sm:%s3174] %v4145
        %v4147 = vld [vmem:[%s3181 + $0x784] sm:%s3174]
        %4148 = vst [vmem:[%s3182 + $0x788] sm:%s3174] %v4147
        %v4149 = vld [vmem:[%s3181 + $0x7a4] sm:%s3174]
        %4150 = vst [vmem:[%s3182 + $0x78c] sm:%s3174] %v4149
        %v4151 = vld [vmem:[%s3181 + $0x788] sm:%s3174]
        %4152 = vst [vmem:[%s3182 + $0x790] sm:%s3174] %v4151
        %v4153 = vld [vmem:[%s3181 + $0x7a8] sm:%s3174]
        %4154 = vst [vmem:[%s3182 + $0x794] sm:%s3174] %v4153
        %v4155 = vld [vmem:[%s3181 + $0x78c] sm:%s3174]
        %4156 = vst [vmem:[%s3182 + $0x798] sm:%s3174] %v4155
        %v4157 = vld [vmem:[%s3181 + $0x7ac] sm:%s3174]
        %4158 = vst [vmem:[%s3182 + $0x79c] sm:%s3174] %v4157
        %v4159 = vld [vmem:[%s3181 + $0x790] sm:%s3174]
        %4160 = vst [vmem:[%s3182 + $0x7a0] sm:%s3174] %v4159
        %v4161 = vld [vmem:[%s3181 + $0x7b0] sm:%s3174]
        %4162 = vst [vmem:[%s3182 + $0x7a4] sm:%s3174] %v4161
        %v4163 = vld [vmem:[%s3181 + $0x794] sm:%s3174]
        %4164 = vst [vmem:[%s3182 + $0x7a8] sm:%s3174] %v4163
        %v4165 = vld [vmem:[%s3181 + $0x7b4] sm:%s3174]
        %4166 = vst [vmem:[%s3182 + $0x7ac] sm:%s3174] %v4165
        %v4167 = vld [vmem:[%s3181 + $0x798] sm:%s3174]
        %4168 = vst [vmem:[%s3182 + $0x7b0] sm:%s3174] %v4167
        %v4169 = vld [vmem:[%s3181 + $0x7b8] sm:%s3174]
        %4170 = vst [vmem:[%s3182 + $0x7b4] sm:%s3174] %v4169
        %v4171 = vld [vmem:[%s3181 + $0x79c] sm:%s3174]
        %4172 = vst [vmem:[%s3182 + $0x7b8] sm:%s3174] %v4171
        %v4173 = vld [vmem:[%s3181 + $0x7bc] sm:%s3174]
        %4174 = vst [vmem:[%s3182 + $0x7bc] sm:%s3174] %v4173
        %v4175 = vld [vmem:[%s3181 + $0x7c0] sm:%s3174]
        %4176 = vst [vmem:[%s3182 + $0x7c0] sm:%s3174] %v4175
        %v4177 = vld [vmem:[%s3181 + $0x7e0] sm:%s3174]
        %4178 = vst [vmem:[%s3182 + $0x7c4] sm:%s3174] %v4177
        %v4179 = vld [vmem:[%s3181 + $0x7c4] sm:%s3174]
        %4180 = vst [vmem:[%s3182 + $0x7c8] sm:%s3174] %v4179
        %v4181 = vld [vmem:[%s3181 + $0x7e4] sm:%s3174]
        %4182 = vst [vmem:[%s3182 + $0x7cc] sm:%s3174] %v4181
        %v4183 = vld [vmem:[%s3181 + $0x7c8] sm:%s3174]
        %4184 = vst [vmem:[%s3182 + $0x7d0] sm:%s3174] %v4183
        %v4185 = vld [vmem:[%s3181 + $0x7e8] sm:%s3174]
        %4186 = vst [vmem:[%s3182 + $0x7d4] sm:%s3174] %v4185
        %v4187 = vld [vmem:[%s3181 + $0x7cc] sm:%s3174]
        %4188 = vst [vmem:[%s3182 + $0x7d8] sm:%s3174] %v4187
        %v4189 = vld [vmem:[%s3181 + $0x7ec] sm:%s3174]
        %4190 = vst [vmem:[%s3182 + $0x7dc] sm:%s3174] %v4189
        %v4191 = vld [vmem:[%s3181 + $0x7d0] sm:%s3174]
        %4192 = vst [vmem:[%s3182 + $0x7e0] sm:%s3174] %v4191
        %v4193 = vld [vmem:[%s3181 + $0x7f0] sm:%s3174]
        %4194 = vst [vmem:[%s3182 + $0x7e4] sm:%s3174] %v4193
        %v4195 = vld [vmem:[%s3181 + $0x7d4] sm:%s3174]
        %4196 = vst [vmem:[%s3182 + $0x7e8] sm:%s3174] %v4195
        %v4197 = vld [vmem:[%s3181 + $0x7f4] sm:%s3174]
        %4198 = vst [vmem:[%s3182 + $0x7ec] sm:%s3174] %v4197
        %v4199 = vld [vmem:[%s3181 + $0x7d8] sm:%s3174]
        %4200 = vst [vmem:[%s3182 + $0x7f0] sm:%s3174] %v4199
        %v4201 = vld [vmem:[%s3181 + $0x7f8] sm:%s3174]
        %4202 = vst [vmem:[%s3182 + $0x7f4] sm:%s3174] %v4201
        %v4203 = vld [vmem:[%s3181 + $0x7dc] sm:%s3174]
        %4204 = vst [vmem:[%s3182 + $0x7f8] sm:%s3174] %v4203
        %v4205 = vld [vmem:[%s3181 + $0x7fc] sm:%s3174]
        %4206 = vst [vmem:[%s3182 + $0x7fc] sm:%s3174] %v4205
      $region79: #{_lambda_.1} parent=66 // loop_footer
        %s3180 = sadd.s32 1, %s3176
      $region80: #{_lambda_.1} parent=66 // loop_footer_branch
        %3175 = sbr.rel target = $region76
      $region81: #{_lambda_.1} parent=66 // loop_exit
        _
    $region67: #{_lambda_.1} parent=40 // pred_fallthru
      _
  $region41: #{_lambda_.1} parent=0 // pred_fallthru
    _
  // Predicated region
  $region42: #{_lambda_.1} parent=0 // pred_check
    %p39 = pneg %p35
  $region43: #{_lambda_.1} parent=0 // pred_check_branch
    %41 = sbr.rel (%p39) target = $region45
  $region44: #{_lambda_.1} parent=0 // pred_region
    %s42 = sshllo.u32 0, 4
    loop: start=0, step=1, limit=1
    $region46: #{_lambda_.1} parent=44 // loop_pre_header
      _
    $region47: #{_lambda_.1} parent=44 // loop_header
      %s44 = sphi 0, %s48
      %p45 = scmp.ge.s32.totalorder %s44, 1
      %s49 = sphi %s9, %s9
      %s50 = sphi [#allocation2], [#allocation2]
    $region48: #{_lambda_.1} parent=44 // loop_header_branch
      %47 = sbr.rel (%p45) target = $region52
    $region49: #{_lambda_.1} parent=44 // loop_body
      %v51 = vld [vmem:[%s49] sm:%s42]
      %52 = vst [vmem:[%s50] sm:%s42] %v51
      %v53 = vld [vmem:[%s49 + $0x20] sm:%s42]
      %54 = vst [vmem:[%s50 + $0x4] sm:%s42] %v53
      %v55 = vld [vmem:[%s49 + $0x4] sm:%s42]
      %56 = vst [vmem:[%s50 + $0x8] sm:%s42] %v55
      %v57 = vld [vmem:[%s49 + $0x24] sm:%s42]
      %58 = vst [vmem:[%s50 + $0xc] sm:%s42] %v57
      %v59 = vld [vmem:[%s49 + $0x8] sm:%s42]
      %60 = vst [vmem:[%s50 + $0x10] sm:%s42] %v59
      %v61 = vld [vmem:[%s49 + $0x28] sm:%s42]
      %62 = vst [vmem:[%s50 + $0x14] sm:%s42] %v61
      %v63 = vld [vmem:[%s49 + $0xc] sm:%s42]
      %64 = vst [vmem:[%s50 + $0x18] sm:%s42] %v63
      %v65 = vld [vmem:[%s49 + $0x2c] sm:%s42]
      %66 = vst [vmem:[%s50 + $0x1c] sm:%s42] %v65
      %v67 = vld [vmem:[%s49 + $0x10] sm:%s42]
      %68 = vst [vmem:[%s50 + $0x20] sm:%s42] %v67
      %v69 = vld [vmem:[%s49 + $0x30] sm:%s42]
      %70 = vst [vmem:[%s50 + $0x24] sm:%s42] %v69
      %v71 = vld [vmem:[%s49 + $0x14] sm:%s42]
      %72 = vst [vmem:[%s50 + $0x28] sm:%s42] %v71
      %v73 = vld [vmem:[%s49 + $0x34] sm:%s42]
      %74 = vst [vmem:[%s50 + $0x2c] sm:%s42] %v73
      %v75 = vld [vmem:[%s49 + $0x18] sm:%s42]
      %76 = vst [vmem:[%s50 + $0x30] sm:%s42] %v75
      %v77 = vld [vmem:[%s49 + $0x38] sm:%s42]
      %78 = vst [vmem:[%s50 + $0x34] sm:%s42] %v77
      %v79 = vld [vmem:[%s49 + $0x1c] sm:%s42]
      %80 = vst [vmem:[%s50 + $0x38] sm:%s42] %v79
      %v81 = vld [vmem:[%s49 + $0x3c] sm:%s42]
      %82 = vst [vmem:[%s50 + $0x3c] sm:%s42] %v81
      %v83 = vld [vmem:[%s49 + $0x40] sm:%s42]
      %84 = vst [vmem:[%s50 + $0x40] sm:%s42] %v83
      %v85 = vld [vmem:[%s49 + $0x60] sm:%s42]
      %86 = vst [vmem:[%s50 + $0x44] sm:%s42] %v85
      %v87 = vld [vmem:[%s49 + $0x44] sm:%s42]
      %88 = vst [vmem:[%s50 + $0x48] sm:%s42] %v87
      %v89 = vld [vmem:[%s49 + $0x64] sm:%s42]
      %90 = vst [vmem:[%s50 + $0x4c] sm:%s42] %v89
      %v91 = vld [vmem:[%s49 + $0x48] sm:%s42]
      %92 = vst [vmem:[%s50 + $0x50] sm:%s42] %v91
      %v93 = vld [vmem:[%s49 + $0x68] sm:%s42]
      %94 = vst [vmem:[%s50 + $0x54] sm:%s42] %v93
      %v95 = vld [vmem:[%s49 + $0x4c] sm:%s42]
      %96 = vst [vmem:[%s50 + $0x58] sm:%s42] %v95
      %v97 = vld [vmem:[%s49 + $0x6c] sm:%s42]
      %98 = vst [vmem:[%s50 + $0x5c] sm:%s42] %v97
      %v99 = vld [vmem:[%s49 + $0x50] sm:%s42]
      %100 = vst [vmem:[%s50 + $0x60] sm:%s42] %v99
      %v101 = vld [vmem:[%s49 + $0x70] sm:%s42]
      %102 = vst [vmem:[%s50 + $0x64] sm:%s42] %v101
      %v103 = vld [vmem:[%s49 + $0x54] sm:%s42]
      %104 = vst [vmem:[%s50 + $0x68] sm:%s42] %v103
      %v105 = vld [vmem:[%s49 + $0x74] sm:%s42]
      %106 = vst [vmem:[%s50 + $0x6c] sm:%s42] %v105
      %v107 = vld [vmem:[%s49 + $0x58] sm:%s42]
      %108 = vst [vmem:[%s50 + $0x70] sm:%s42] %v107
      %v109 = vld [vmem:[%s49 + $0x78] sm:%s42]
      %110 = vst [vmem:[%s50 + $0x74] sm:%s42] %v109
      %v111 = vld [vmem:[%s49 + $0x5c] sm:%s42]
      %112 = vst [vmem:[%s50 + $0x78] sm:%s42] %v111
      %v113 = vld [vmem:[%s49 + $0x7c] sm:%s42]
      %114 = vst [vmem:[%s50 + $0x7c] sm:%s42] %v113
      %v115 = vld [vmem:[%s49 + $0x80] sm:%s42]
      %116 = vst [vmem:[%s50 + $0x80] sm:%s42] %v115
      %v117 = vld [vmem:[%s49 + $0xa0] sm:%s42]
      %118 = vst [vmem:[%s50 + $0x84] sm:%s42] %v117
      %v119 = vld [vmem:[%s49 + $0x84] sm:%s42]
      %120 = vst [vmem:[%s50 + $0x88] sm:%s42] %v119
      %v121 = vld [vmem:[%s49 + $0xa4] sm:%s42]
      %122 = vst [vmem:[%s50 + $0x8c] sm:%s42] %v121
      %v123 = vld [vmem:[%s49 + $0x88] sm:%s42]
      %124 = vst [vmem:[%s50 + $0x90] sm:%s42] %v123
      %v125 = vld [vmem:[%s49 + $0xa8] sm:%s42]
      %126 = vst [vmem:[%s50 + $0x94] sm:%s42] %v125
      %v127 = vld [vmem:[%s49 + $0x8c] sm:%s42]
      %128 = vst [vmem:[%s50 + $0x98] sm:%s42] %v127
      %v129 = vld [vmem:[%s49 + $0xac] sm:%s42]
      %130 = vst [vmem:[%s50 + $0x9c] sm:%s42] %v129
      %v131 = vld [vmem:[%s49 + $0x90] sm:%s42]
      %132 = vst [vmem:[%s50 + $0xa0] sm:%s42] %v131
      %v133 = vld [vmem:[%s49 + $0xb0] sm:%s42]
      %134 = vst [vmem:[%s50 + $0xa4] sm:%s42] %v133
      %v135 = vld [vmem:[%s49 + $0x94] sm:%s42]
      %136 = vst [vmem:[%s50 + $0xa8] sm:%s42] %v135
      %v137 = vld [vmem:[%s49 + $0xb4] sm:%s42]
      %138 = vst [vmem:[%s50 + $0xac] sm:%s42] %v137
      %v139 = vld [vmem:[%s49 + $0x98] sm:%s42]
      %140 = vst [vmem:[%s50 + $0xb0] sm:%s42] %v139
      %v141 = vld [vmem:[%s49 + $0xb8] sm:%s42]
      %142 = vst [vmem:[%s50 + $0xb4] sm:%s42] %v141
      %v143 = vld [vmem:[%s49 + $0x9c] sm:%s42]
      %144 = vst [vmem:[%s50 + $0xb8] sm:%s42] %v143
      %v145 = vld [vmem:[%s49 + $0xbc] sm:%s42]
      %146 = vst [vmem:[%s50 + $0xbc] sm:%s42] %v145
      %v147 = vld [vmem:[%s49 + $0xc0] sm:%s42]
      %148 = vst [vmem:[%s50 + $0xc0] sm:%s42] %v147
      %v149 = vld [vmem:[%s49 + $0xe0] sm:%s42]
      %150 = vst [vmem:[%s50 + $0xc4] sm:%s42] %v149
      %v151 = vld [vmem:[%s49 + $0xc4] sm:%s42]
      %152 = vst [vmem:[%s50 + $0xc8] sm:%s42] %v151
      %v153 = vld [vmem:[%s49 + $0xe4] sm:%s42]
      %154 = vst [vmem:[%s50 + $0xcc] sm:%s42] %v153
      %v155 = vld [vmem:[%s49 + $0xc8] sm:%s42]
      %156 = vst [vmem:[%s50 + $0xd0] sm:%s42] %v155
      %v157 = vld [vmem:[%s49 + $0xe8] sm:%s42]
      %158 = vst [vmem:[%s50 + $0xd4] sm:%s42] %v157
      %v159 = vld [vmem:[%s49 + $0xcc] sm:%s42]
      %160 = vst [vmem:[%s50 + $0xd8] sm:%s42] %v159
      %v161 = vld [vmem:[%s49 + $0xec] sm:%s42]
      %162 = vst [vmem:[%s50 + $0xdc] sm:%s42] %v161
      %v163 = vld [vmem:[%s49 + $0xd0] sm:%s42]
      %164 = vst [vmem:[%s50 + $0xe0] sm:%s42] %v163
      %v165 = vld [vmem:[%s49 + $0xf0] sm:%s42]
      %166 = vst [vmem:[%s50 + $0xe4] sm:%s42] %v165
      %v167 = vld [vmem:[%s49 + $0xd4] sm:%s42]
      %168 = vst [vmem:[%s50 + $0xe8] sm:%s42] %v167
      %v169 = vld [vmem:[%s49 + $0xf4] sm:%s42]
      %170 = vst [vmem:[%s50 + $0xec] sm:%s42] %v169
      %v171 = vld [vmem:[%s49 + $0xd8] sm:%s42]
      %172 = vst [vmem:[%s50 + $0xf0] sm:%s42] %v171
      %v173 = vld [vmem:[%s49 + $0xf8] sm:%s42]
      %174 = vst [vmem:[%s50 + $0xf4] sm:%s42] %v173
      %v175 = vld [vmem:[%s49 + $0xdc] sm:%s42]
      %176 = vst [vmem:[%s50 + $0xf8] sm:%s42] %v175
      %v177 = vld [vmem:[%s49 + $0xfc] sm:%s42]
      %178 = vst [vmem:[%s50 + $0xfc] sm:%s42] %v177
      %v179 = vld [vmem:[%s49 + $0x100] sm:%s42]
      %180 = vst [vmem:[%s50 + $0x100] sm:%s42] %v179
      %v181 = vld [vmem:[%s49 + $0x120] sm:%s42]
      %182 = vst [vmem:[%s50 + $0x104] sm:%s42] %v181
      %v183 = vld [vmem:[%s49 + $0x104] sm:%s42]
      %184 = vst [vmem:[%s50 + $0x108] sm:%s42] %v183
      %v185 = vld [vmem:[%s49 + $0x124] sm:%s42]
      %186 = vst [vmem:[%s50 + $0x10c] sm:%s42] %v185
      %v187 = vld [vmem:[%s49 + $0x108] sm:%s42]
      %188 = vst [vmem:[%s50 + $0x110] sm:%s42] %v187
      %v189 = vld [vmem:[%s49 + $0x128] sm:%s42]
      %190 = vst [vmem:[%s50 + $0x114] sm:%s42] %v189
      %v191 = vld [vmem:[%s49 + $0x10c] sm:%s42]
      %192 = vst [vmem:[%s50 + $0x118] sm:%s42] %v191
      %v193 = vld [vmem:[%s49 + $0x12c] sm:%s42]
      %194 = vst [vmem:[%s50 + $0x11c] sm:%s42] %v193
      %v195 = vld [vmem:[%s49 + $0x110] sm:%s42]
      %196 = vst [vmem:[%s50 + $0x120] sm:%s42] %v195
      %v197 = vld [vmem:[%s49 + $0x130] sm:%s42]
      %198 = vst [vmem:[%s50 + $0x124] sm:%s42] %v197
      %v199 = vld [vmem:[%s49 + $0x114] sm:%s42]
      %200 = vst [vmem:[%s50 + $0x128] sm:%s42] %v199
      %v201 = vld [vmem:[%s49 + $0x134] sm:%s42]
      %202 = vst [vmem:[%s50 + $0x12c] sm:%s42] %v201
      %v203 = vld [vmem:[%s49 + $0x118] sm:%s42]
      %204 = vst [vmem:[%s50 + $0x130] sm:%s42] %v203
      %v205 = vld [vmem:[%s49 + $0x138] sm:%s42]
      %206 = vst [vmem:[%s50 + $0x134] sm:%s42] %v205
      %v207 = vld [vmem:[%s49 + $0x11c] sm:%s42]
      %208 = vst [vmem:[%s50 + $0x138] sm:%s42] %v207
      %v209 = vld [vmem:[%s49 + $0x13c] sm:%s42]
      %210 = vst [vmem:[%s50 + $0x13c] sm:%s42] %v209
      %v211 = vld [vmem:[%s49 + $0x140] sm:%s42]
      %212 = vst [vmem:[%s50 + $0x140] sm:%s42] %v211
      %v213 = vld [vmem:[%s49 + $0x160] sm:%s42]
      %214 = vst [vmem:[%s50 + $0x144] sm:%s42] %v213
      %v215 = vld [vmem:[%s49 + $0x144] sm:%s42]
      %216 = vst [vmem:[%s50 + $0x148] sm:%s42] %v215
      %v217 = vld [vmem:[%s49 + $0x164] sm:%s42]
      %218 = vst [vmem:[%s50 + $0x14c] sm:%s42] %v217
      %v219 = vld [vmem:[%s49 + $0x148] sm:%s42]
      %220 = vst [vmem:[%s50 + $0x150] sm:%s42] %v219
      %v221 = vld [vmem:[%s49 + $0x168] sm:%s42]
      %222 = vst [vmem:[%s50 + $0x154] sm:%s42] %v221
      %v223 = vld [vmem:[%s49 + $0x14c] sm:%s42]
      %224 = vst [vmem:[%s50 + $0x158] sm:%s42] %v223
      %v225 = vld [vmem:[%s49 + $0x16c] sm:%s42]
      %226 = vst [vmem:[%s50 + $0x15c] sm:%s42] %v225
      %v227 = vld [vmem:[%s49 + $0x150] sm:%s42]
      %228 = vst [vmem:[%s50 + $0x160] sm:%s42] %v227
      %v229 = vld [vmem:[%s49 + $0x170] sm:%s42]
      %230 = vst [vmem:[%s50 + $0x164] sm:%s42] %v229
      %v231 = vld [vmem:[%s49 + $0x154] sm:%s42]
      %232 = vst [vmem:[%s50 + $0x168] sm:%s42] %v231
      %v233 = vld [vmem:[%s49 + $0x174] sm:%s42]
      %234 = vst [vmem:[%s50 + $0x16c] sm:%s42] %v233
      %v235 = vld [vmem:[%s49 + $0x158] sm:%s42]
      %236 = vst [vmem:[%s50 + $0x170] sm:%s42] %v235
      %v237 = vld [vmem:[%s49 + $0x178] sm:%s42]
      %238 = vst [vmem:[%s50 + $0x174] sm:%s42] %v237
      %v239 = vld [vmem:[%s49 + $0x15c] sm:%s42]
      %240 = vst [vmem:[%s50 + $0x178] sm:%s42] %v239
      %v241 = vld [vmem:[%s49 + $0x17c] sm:%s42]
      %242 = vst [vmem:[%s50 + $0x17c] sm:%s42] %v241
      %v243 = vld [vmem:[%s49 + $0x180] sm:%s42]
      %244 = vst [vmem:[%s50 + $0x180] sm:%s42] %v243
      %v245 = vld [vmem:[%s49 + $0x1a0] sm:%s42]
      %246 = vst [vmem:[%s50 + $0x184] sm:%s42] %v245
      %v247 = vld [vmem:[%s49 + $0x184] sm:%s42]
      %248 = vst [vmem:[%s50 + $0x188] sm:%s42] %v247
      %v249 = vld [vmem:[%s49 + $0x1a4] sm:%s42]
      %250 = vst [vmem:[%s50 + $0x18c] sm:%s42] %v249
      %v251 = vld [vmem:[%s49 + $0x188] sm:%s42]
      %252 = vst [vmem:[%s50 + $0x190] sm:%s42] %v251
      %v253 = vld [vmem:[%s49 + $0x1a8] sm:%s42]
      %254 = vst [vmem:[%s50 + $0x194] sm:%s42] %v253
      %v255 = vld [vmem:[%s49 + $0x18c] sm:%s42]
      %256 = vst [vmem:[%s50 + $0x198] sm:%s42] %v255
      %v257 = vld [vmem:[%s49 + $0x1ac] sm:%s42]
      %258 = vst [vmem:[%s50 + $0x19c] sm:%s42] %v257
      %v259 = vld [vmem:[%s49 + $0x190] sm:%s42]
      %260 = vst [vmem:[%s50 + $0x1a0] sm:%s42] %v259
      %v261 = vld [vmem:[%s49 + $0x1b0] sm:%s42]
      %262 = vst [vmem:[%s50 + $0x1a4] sm:%s42] %v261
      %v263 = vld [vmem:[%s49 + $0x194] sm:%s42]
      %264 = vst [vmem:[%s50 + $0x1a8] sm:%s42] %v263
      %v265 = vld [vmem:[%s49 + $0x1b4] sm:%s42]
      %266 = vst [vmem:[%s50 + $0x1ac] sm:%s42] %v265
      %v267 = vld [vmem:[%s49 + $0x198] sm:%s42]
      %268 = vst [vmem:[%s50 + $0x1b0] sm:%s42] %v267
      %v269 = vld [vmem:[%s49 + $0x1b8] sm:%s42]
      %270 = vst [vmem:[%s50 + $0x1b4] sm:%s42] %v269
      %v271 = vld [vmem:[%s49 + $0x19c] sm:%s42]
      %272 = vst [vmem:[%s50 + $0x1b8] sm:%s42] %v271
      %v273 = vld [vmem:[%s49 + $0x1bc] sm:%s42]
      %274 = vst [vmem:[%s50 + $0x1bc] sm:%s42] %v273
      %v275 = vld [vmem:[%s49 + $0x1c0] sm:%s42]
      %276 = vst [vmem:[%s50 + $0x1c0] sm:%s42] %v275
      %v277 = vld [vmem:[%s49 + $0x1e0] sm:%s42]
      %278 = vst [vmem:[%s50 + $0x1c4] sm:%s42] %v277
      %v279 = vld [vmem:[%s49 + $0x1c4] sm:%s42]
      %280 = vst [vmem:[%s50 + $0x1c8] sm:%s42] %v279
      %v281 = vld [vmem:[%s49 + $0x1e4] sm:%s42]
      %282 = vst [vmem:[%s50 + $0x1cc] sm:%s42] %v281
      %v283 = vld [vmem:[%s49 + $0x1c8] sm:%s42]
      %284 = vst [vmem:[%s50 + $0x1d0] sm:%s42] %v283
      %v285 = vld [vmem:[%s49 + $0x1e8] sm:%s42]
      %286 = vst [vmem:[%s50 + $0x1d4] sm:%s42] %v285
      %v287 = vld [vmem:[%s49 + $0x1cc] sm:%s42]
      %288 = vst [vmem:[%s50 + $0x1d8] sm:%s42] %v287
      %v289 = vld [vmem:[%s49 + $0x1ec] sm:%s42]
      %290 = vst [vmem:[%s50 + $0x1dc] sm:%s42] %v289
      %v291 = vld [vmem:[%s49 + $0x1d0] sm:%s42]
      %292 = vst [vmem:[%s50 + $0x1e0] sm:%s42] %v291
      %v293 = vld [vmem:[%s49 + $0x1f0] sm:%s42]
      %294 = vst [vmem:[%s50 + $0x1e4] sm:%s42] %v293
      %v295 = vld [vmem:[%s49 + $0x1d4] sm:%s42]
      %296 = vst [vmem:[%s50 + $0x1e8] sm:%s42] %v295
      %v297 = vld [vmem:[%s49 + $0x1f4] sm:%s42]
      %298 = vst [vmem:[%s50 + $0x1ec] sm:%s42] %v297
      %v299 = vld [vmem:[%s49 + $0x1d8] sm:%s42]
      %300 = vst [vmem:[%s50 + $0x1f0] sm:%s42] %v299
      %v301 = vld [vmem:[%s49 + $0x1f8] sm:%s42]
      %302 = vst [vmem:[%s50 + $0x1f4] sm:%s42] %v301
      %v303 = vld [vmem:[%s49 + $0x1dc] sm:%s42]
      %304 = vst [vmem:[%s50 + $0x1f8] sm:%s42] %v303
      %v305 = vld [vmem:[%s49 + $0x1fc] sm:%s42]
      %306 = vst [vmem:[%s50 + $0x1fc] sm:%s42] %v305
      %v307 = vld [vmem:[%s49 + $0x200] sm:%s42]
      %308 = vst [vmem:[%s50 + $0x200] sm:%s42] %v307
      %v309 = vld [vmem:[%s49 + $0x220] sm:%s42]
      %310 = vst [vmem:[%s50 + $0x204] sm:%s42] %v309
      %v311 = vld [vmem:[%s49 + $0x204] sm:%s42]
      %312 = vst [vmem:[%s50 + $0x208] sm:%s42] %v311
      %v313 = vld [vmem:[%s49 + $0x224] sm:%s42]
      %314 = vst [vmem:[%s50 + $0x20c] sm:%s42] %v313
      %v315 = vld [vmem:[%s49 + $0x208] sm:%s42]
      %316 = vst [vmem:[%s50 + $0x210] sm:%s42] %v315
      %v317 = vld [vmem:[%s49 + $0x228] sm:%s42]
      %318 = vst [vmem:[%s50 + $0x214] sm:%s42] %v317
      %v319 = vld [vmem:[%s49 + $0x20c] sm:%s42]
      %320 = vst [vmem:[%s50 + $0x218] sm:%s42] %v319
      %v321 = vld [vmem:[%s49 + $0x22c] sm:%s42]
      %322 = vst [vmem:[%s50 + $0x21c] sm:%s42] %v321
      %v323 = vld [vmem:[%s49 + $0x210] sm:%s42]
      %324 = vst [vmem:[%s50 + $0x220] sm:%s42] %v323
      %v325 = vld [vmem:[%s49 + $0x230] sm:%s42]
      %326 = vst [vmem:[%s50 + $0x224] sm:%s42] %v325
      %v327 = vld [vmem:[%s49 + $0x214] sm:%s42]
      %328 = vst [vmem:[%s50 + $0x228] sm:%s42] %v327
      %v329 = vld [vmem:[%s49 + $0x234] sm:%s42]
      %330 = vst [vmem:[%s50 + $0x22c] sm:%s42] %v329
      %v331 = vld [vmem:[%s49 + $0x218] sm:%s42]
      %332 = vst [vmem:[%s50 + $0x230] sm:%s42] %v331
      %v333 = vld [vmem:[%s49 + $0x238] sm:%s42]
      %334 = vst [vmem:[%s50 + $0x234] sm:%s42] %v333
      %v335 = vld [vmem:[%s49 + $0x21c] sm:%s42]
      %336 = vst [vmem:[%s50 + $0x238] sm:%s42] %v335
      %v337 = vld [vmem:[%s49 + $0x23c] sm:%s42]
      %338 = vst [vmem:[%s50 + $0x23c] sm:%s42] %v337
      %v339 = vld [vmem:[%s49 + $0x240] sm:%s42]
      %340 = vst [vmem:[%s50 + $0x240] sm:%s42] %v339
      %v341 = vld [vmem:[%s49 + $0x260] sm:%s42]
      %342 = vst [vmem:[%s50 + $0x244] sm:%s42] %v341
      %v343 = vld [vmem:[%s49 + $0x244] sm:%s42]
      %344 = vst [vmem:[%s50 + $0x248] sm:%s42] %v343
      %v345 = vld [vmem:[%s49 + $0x264] sm:%s42]
      %346 = vst [vmem:[%s50 + $0x24c] sm:%s42] %v345
      %v347 = vld [vmem:[%s49 + $0x248] sm:%s42]
      %348 = vst [vmem:[%s50 + $0x250] sm:%s42] %v347
      %v349 = vld [vmem:[%s49 + $0x268] sm:%s42]
      %350 = vst [vmem:[%s50 + $0x254] sm:%s42] %v349
      %v351 = vld [vmem:[%s49 + $0x24c] sm:%s42]
      %352 = vst [vmem:[%s50 + $0x258] sm:%s42] %v351
      %v353 = vld [vmem:[%s49 + $0x26c] sm:%s42]
      %354 = vst [vmem:[%s50 + $0x25c] sm:%s42] %v353
      %v355 = vld [vmem:[%s49 + $0x250] sm:%s42]
      %356 = vst [vmem:[%s50 + $0x260] sm:%s42] %v355
      %v357 = vld [vmem:[%s49 + $0x270] sm:%s42]
      %358 = vst [vmem:[%s50 + $0x264] sm:%s42] %v357
      %v359 = vld [vmem:[%s49 + $0x254] sm:%s42]
      %360 = vst [vmem:[%s50 + $0x268] sm:%s42] %v359
      %v361 = vld [vmem:[%s49 + $0x274] sm:%s42]
      %362 = vst [vmem:[%s50 + $0x26c] sm:%s42] %v361
      %v363 = vld [vmem:[%s49 + $0x258] sm:%s42]
      %364 = vst [vmem:[%s50 + $0x270] sm:%s42] %v363
      %v365 = vld [vmem:[%s49 + $0x278] sm:%s42]
      %366 = vst [vmem:[%s50 + $0x274] sm:%s42] %v365
      %v367 = vld [vmem:[%s49 + $0x25c] sm:%s42]
      %368 = vst [vmem:[%s50 + $0x278] sm:%s42] %v367
      %v369 = vld [vmem:[%s49 + $0x27c] sm:%s42]
      %370 = vst [vmem:[%s50 + $0x27c] sm:%s42] %v369
      %v371 = vld [vmem:[%s49 + $0x280] sm:%s42]
      %372 = vst [vmem:[%s50 + $0x280] sm:%s42] %v371
      %v373 = vld [vmem:[%s49 + $0x2a0] sm:%s42]
      %374 = vst [vmem:[%s50 + $0x284] sm:%s42] %v373
      %v375 = vld [vmem:[%s49 + $0x284] sm:%s42]
      %376 = vst [vmem:[%s50 + $0x288] sm:%s42] %v375
      %v377 = vld [vmem:[%s49 + $0x2a4] sm:%s42]
      %378 = vst [vmem:[%s50 + $0x28c] sm:%s42] %v377
      %v379 = vld [vmem:[%s49 + $0x288] sm:%s42]
      %380 = vst [vmem:[%s50 + $0x290] sm:%s42] %v379
      %v381 = vld [vmem:[%s49 + $0x2a8] sm:%s42]
      %382 = vst [vmem:[%s50 + $0x294] sm:%s42] %v381
      %v383 = vld [vmem:[%s49 + $0x28c] sm:%s42]
      %384 = vst [vmem:[%s50 + $0x298] sm:%s42] %v383
      %v385 = vld [vmem:[%s49 + $0x2ac] sm:%s42]
      %386 = vst [vmem:[%s50 + $0x29c] sm:%s42] %v385
      %v387 = vld [vmem:[%s49 + $0x290] sm:%s42]
      %388 = vst [vmem:[%s50 + $0x2a0] sm:%s42] %v387
      %v389 = vld [vmem:[%s49 + $0x2b0] sm:%s42]
      %390 = vst [vmem:[%s50 + $0x2a4] sm:%s42] %v389
      %v391 = vld [vmem:[%s49 + $0x294] sm:%s42]
      %392 = vst [vmem:[%s50 + $0x2a8] sm:%s42] %v391
      %v393 = vld [vmem:[%s49 + $0x2b4] sm:%s42]
      %394 = vst [vmem:[%s50 + $0x2ac] sm:%s42] %v393
      %v395 = vld [vmem:[%s49 + $0x298] sm:%s42]
      %396 = vst [vmem:[%s50 + $0x2b0] sm:%s42] %v395
      %v397 = vld [vmem:[%s49 + $0x2b8] sm:%s42]
      %398 = vst [vmem:[%s50 + $0x2b4] sm:%s42] %v397
      %v399 = vld [vmem:[%s49 + $0x29c] sm:%s42]
      %400 = vst [vmem:[%s50 + $0x2b8] sm:%s42] %v399
      %v401 = vld [vmem:[%s49 + $0x2bc] sm:%s42]
      %402 = vst [vmem:[%s50 + $0x2bc] sm:%s42] %v401
      %v403 = vld [vmem:[%s49 + $0x2c0] sm:%s42]
      %404 = vst [vmem:[%s50 + $0x2c0] sm:%s42] %v403
      %v405 = vld [vmem:[%s49 + $0x2e0] sm:%s42]
      %406 = vst [vmem:[%s50 + $0x2c4] sm:%s42] %v405
      %v407 = vld [vmem:[%s49 + $0x2c4] sm:%s42]
      %408 = vst [vmem:[%s50 + $0x2c8] sm:%s42] %v407
      %v409 = vld [vmem:[%s49 + $0x2e4] sm:%s42]
      %410 = vst [vmem:[%s50 + $0x2cc] sm:%s42] %v409
      %v411 = vld [vmem:[%s49 + $0x2c8] sm:%s42]
      %412 = vst [vmem:[%s50 + $0x2d0] sm:%s42] %v411
      %v413 = vld [vmem:[%s49 + $0x2e8] sm:%s42]
      %414 = vst [vmem:[%s50 + $0x2d4] sm:%s42] %v413
      %v415 = vld [vmem:[%s49 + $0x2cc] sm:%s42]
      %416 = vst [vmem:[%s50 + $0x2d8] sm:%s42] %v415
      %v417 = vld [vmem:[%s49 + $0x2ec] sm:%s42]
      %418 = vst [vmem:[%s50 + $0x2dc] sm:%s42] %v417
      %v419 = vld [vmem:[%s49 + $0x2d0] sm:%s42]
      %420 = vst [vmem:[%s50 + $0x2e0] sm:%s42] %v419
      %v421 = vld [vmem:[%s49 + $0x2f0] sm:%s42]
      %422 = vst [vmem:[%s50 + $0x2e4] sm:%s42] %v421
      %v423 = vld [vmem:[%s49 + $0x2d4] sm:%s42]
      %424 = vst [vmem:[%s50 + $0x2e8] sm:%s42] %v423
      %v425 = vld [vmem:[%s49 + $0x2f4] sm:%s42]
      %426 = vst [vmem:[%s50 + $0x2ec] sm:%s42] %v425
      %v427 = vld [vmem:[%s49 + $0x2d8] sm:%s42]
      %428 = vst [vmem:[%s50 + $0x2f0] sm:%s42] %v427
      %v429 = vld [vmem:[%s49 + $0x2f8] sm:%s42]
      %430 = vst [vmem:[%s50 + $0x2f4] sm:%s42] %v429
      %v431 = vld [vmem:[%s49 + $0x2dc] sm:%s42]
      %432 = vst [vmem:[%s50 + $0x2f8] sm:%s42] %v431
      %v433 = vld [vmem:[%s49 + $0x2fc] sm:%s42]
      %434 = vst [vmem:[%s50 + $0x2fc] sm:%s42] %v433
      %v435 = vld [vmem:[%s49 + $0x300] sm:%s42]
      %436 = vst [vmem:[%s50 + $0x300] sm:%s42] %v435
      %v437 = vld [vmem:[%s49 + $0x320] sm:%s42]
      %438 = vst [vmem:[%s50 + $0x304] sm:%s42] %v437
      %v439 = vld [vmem:[%s49 + $0x304] sm:%s42]
      %440 = vst [vmem:[%s50 + $0x308] sm:%s42] %v439
      %v441 = vld [vmem:[%s49 + $0x324] sm:%s42]
      %442 = vst [vmem:[%s50 + $0x30c] sm:%s42] %v441
      %v443 = vld [vmem:[%s49 + $0x308] sm:%s42]
      %444 = vst [vmem:[%s50 + $0x310] sm:%s42] %v443
      %v445 = vld [vmem:[%s49 + $0x328] sm:%s42]
      %446 = vst [vmem:[%s50 + $0x314] sm:%s42] %v445
      %v447 = vld [vmem:[%s49 + $0x30c] sm:%s42]
      %448 = vst [vmem:[%s50 + $0x318] sm:%s42] %v447
      %v449 = vld [vmem:[%s49 + $0x32c] sm:%s42]
      %450 = vst [vmem:[%s50 + $0x31c] sm:%s42] %v449
      %v451 = vld [vmem:[%s49 + $0x310] sm:%s42]
      %452 = vst [vmem:[%s50 + $0x320] sm:%s42] %v451
      %v453 = vld [vmem:[%s49 + $0x330] sm:%s42]
      %454 = vst [vmem:[%s50 + $0x324] sm:%s42] %v453
      %v455 = vld [vmem:[%s49 + $0x314] sm:%s42]
      %456 = vst [vmem:[%s50 + $0x328] sm:%s42] %v455
      %v457 = vld [vmem:[%s49 + $0x334] sm:%s42]
      %458 = vst [vmem:[%s50 + $0x32c] sm:%s42] %v457
      %v459 = vld [vmem:[%s49 + $0x318] sm:%s42]
      %460 = vst [vmem:[%s50 + $0x330] sm:%s42] %v459
      %v461 = vld [vmem:[%s49 + $0x338] sm:%s42]
      %462 = vst [vmem:[%s50 + $0x334] sm:%s42] %v461
      %v463 = vld [vmem:[%s49 + $0x31c] sm:%s42]
      %464 = vst [vmem:[%s50 + $0x338] sm:%s42] %v463
      %v465 = vld [vmem:[%s49 + $0x33c] sm:%s42]
      %466 = vst [vmem:[%s50 + $0x33c] sm:%s42] %v465
      %v467 = vld [vmem:[%s49 + $0x340] sm:%s42]
      %468 = vst [vmem:[%s50 + $0x340] sm:%s42] %v467
      %v469 = vld [vmem:[%s49 + $0x360] sm:%s42]
      %470 = vst [vmem:[%s50 + $0x344] sm:%s42] %v469
      %v471 = vld [vmem:[%s49 + $0x344] sm:%s42]
      %472 = vst [vmem:[%s50 + $0x348] sm:%s42] %v471
      %v473 = vld [vmem:[%s49 + $0x364] sm:%s42]
      %474 = vst [vmem:[%s50 + $0x34c] sm:%s42] %v473
      %v475 = vld [vmem:[%s49 + $0x348] sm:%s42]
      %476 = vst [vmem:[%s50 + $0x350] sm:%s42] %v475
      %v477 = vld [vmem:[%s49 + $0x368] sm:%s42]
      %478 = vst [vmem:[%s50 + $0x354] sm:%s42] %v477
      %v479 = vld [vmem:[%s49 + $0x34c] sm:%s42]
      %480 = vst [vmem:[%s50 + $0x358] sm:%s42] %v479
      %v481 = vld [vmem:[%s49 + $0x36c] sm:%s42]
      %482 = vst [vmem:[%s50 + $0x35c] sm:%s42] %v481
      %v483 = vld [vmem:[%s49 + $0x350] sm:%s42]
      %484 = vst [vmem:[%s50 + $0x360] sm:%s42] %v483
      %v485 = vld [vmem:[%s49 + $0x370] sm:%s42]
      %486 = vst [vmem:[%s50 + $0x364] sm:%s42] %v485
      %v487 = vld [vmem:[%s49 + $0x354] sm:%s42]
      %488 = vst [vmem:[%s50 + $0x368] sm:%s42] %v487
      %v489 = vld [vmem:[%s49 + $0x374] sm:%s42]
      %490 = vst [vmem:[%s50 + $0x36c] sm:%s42] %v489
      %v491 = vld [vmem:[%s49 + $0x358] sm:%s42]
      %492 = vst [vmem:[%s50 + $0x370] sm:%s42] %v491
      %v493 = vld [vmem:[%s49 + $0x378] sm:%s42]
      %494 = vst [vmem:[%s50 + $0x374] sm:%s42] %v493
      %v495 = vld [vmem:[%s49 + $0x35c] sm:%s42]
      %496 = vst [vmem:[%s50 + $0x378] sm:%s42] %v495
      %v497 = vld [vmem:[%s49 + $0x37c] sm:%s42]
      %498 = vst [vmem:[%s50 + $0x37c] sm:%s42] %v497
      %v499 = vld [vmem:[%s49 + $0x380] sm:%s42]
      %500 = vst [vmem:[%s50 + $0x380] sm:%s42] %v499
      %v501 = vld [vmem:[%s49 + $0x3a0] sm:%s42]
      %502 = vst [vmem:[%s50 + $0x384] sm:%s42] %v501
      %v503 = vld [vmem:[%s49 + $0x384] sm:%s42]
      %504 = vst [vmem:[%s50 + $0x388] sm:%s42] %v503
      %v505 = vld [vmem:[%s49 + $0x3a4] sm:%s42]
      %506 = vst [vmem:[%s50 + $0x38c] sm:%s42] %v505
      %v507 = vld [vmem:[%s49 + $0x388] sm:%s42]
      %508 = vst [vmem:[%s50 + $0x390] sm:%s42] %v507
      %v509 = vld [vmem:[%s49 + $0x3a8] sm:%s42]
      %510 = vst [vmem:[%s50 + $0x394] sm:%s42] %v509
      %v511 = vld [vmem:[%s49 + $0x38c] sm:%s42]
      %512 = vst [vmem:[%s50 + $0x398] sm:%s42] %v511
      %v513 = vld [vmem:[%s49 + $0x3ac] sm:%s42]
      %514 = vst [vmem:[%s50 + $0x39c] sm:%s42] %v513
      %v515 = vld [vmem:[%s49 + $0x390] sm:%s42]
      %516 = vst [vmem:[%s50 + $0x3a0] sm:%s42] %v515
      %v517 = vld [vmem:[%s49 + $0x3b0] sm:%s42]
      %518 = vst [vmem:[%s50 + $0x3a4] sm:%s42] %v517
      %v519 = vld [vmem:[%s49 + $0x394] sm:%s42]
      %520 = vst [vmem:[%s50 + $0x3a8] sm:%s42] %v519
      %v521 = vld [vmem:[%s49 + $0x3b4] sm:%s42]
      %522 = vst [vmem:[%s50 + $0x3ac] sm:%s42] %v521
      %v523 = vld [vmem:[%s49 + $0x398] sm:%s42]
      %524 = vst [vmem:[%s50 + $0x3b0] sm:%s42] %v523
      %v525 = vld [vmem:[%s49 + $0x3b8] sm:%s42]
      %526 = vst [vmem:[%s50 + $0x3b4] sm:%s42] %v525
      %v527 = vld [vmem:[%s49 + $0x39c] sm:%s42]
      %528 = vst [vmem:[%s50 + $0x3b8] sm:%s42] %v527
      %v529 = vld [vmem:[%s49 + $0x3bc] sm:%s42]
      %530 = vst [vmem:[%s50 + $0x3bc] sm:%s42] %v529
      %v531 = vld [vmem:[%s49 + $0x3c0] sm:%s42]
      %532 = vst [vmem:[%s50 + $0x3c0] sm:%s42] %v531
      %v533 = vld [vmem:[%s49 + $0x3e0] sm:%s42]
      %534 = vst [vmem:[%s50 + $0x3c4] sm:%s42] %v533
      %v535 = vld [vmem:[%s49 + $0x3c4] sm:%s42]
      %536 = vst [vmem:[%s50 + $0x3c8] sm:%s42] %v535
      %v537 = vld [vmem:[%s49 + $0x3e4] sm:%s42]
      %538 = vst [vmem:[%s50 + $0x3cc] sm:%s42] %v537
      %v539 = vld [vmem:[%s49 + $0x3c8] sm:%s42]
      %540 = vst [vmem:[%s50 + $0x3d0] sm:%s42] %v539
      %v541 = vld [vmem:[%s49 + $0x3e8] sm:%s42]
      %542 = vst [vmem:[%s50 + $0x3d4] sm:%s42] %v541
      %v543 = vld [vmem:[%s49 + $0x3cc] sm:%s42]
      %544 = vst [vmem:[%s50 + $0x3d8] sm:%s42] %v543
      %v545 = vld [vmem:[%s49 + $0x3ec] sm:%s42]
      %546 = vst [vmem:[%s50 + $0x3dc] sm:%s42] %v545
      %v547 = vld [vmem:[%s49 + $0x3d0] sm:%s42]
      %548 = vst [vmem:[%s50 + $0x3e0] sm:%s42] %v547
      %v549 = vld [vmem:[%s49 + $0x3f0] sm:%s42]
      %550 = vst [vmem:[%s50 + $0x3e4] sm:%s42] %v549
      %v551 = vld [vmem:[%s49 + $0x3d4] sm:%s42]
      %552 = vst [vmem:[%s50 + $0x3e8] sm:%s42] %v551
      %v553 = vld [vmem:[%s49 + $0x3f4] sm:%s42]
      %554 = vst [vmem:[%s50 + $0x3ec] sm:%s42] %v553
      %v555 = vld [vmem:[%s49 + $0x3d8] sm:%s42]
      %556 = vst [vmem:[%s50 + $0x3f0] sm:%s42] %v555
      %v557 = vld [vmem:[%s49 + $0x3f8] sm:%s42]
      %558 = vst [vmem:[%s50 + $0x3f4] sm:%s42] %v557
      %v559 = vld [vmem:[%s49 + $0x3dc] sm:%s42]
      %560 = vst [vmem:[%s50 + $0x3f8] sm:%s42] %v559
      %v561 = vld [vmem:[%s49 + $0x3fc] sm:%s42]
      %562 = vst [vmem:[%s50 + $0x3fc] sm:%s42] %v561
      %v563 = vld [vmem:[%s49 + $0x400] sm:%s42]
      %564 = vst [vmem:[%s50 + $0x400] sm:%s42] %v563
      %v565 = vld [vmem:[%s49 + $0x420] sm:%s42]
      %566 = vst [vmem:[%s50 + $0x404] sm:%s42] %v565
      %v567 = vld [vmem:[%s49 + $0x404] sm:%s42]
      %568 = vst [vmem:[%s50 + $0x408] sm:%s42] %v567
      %v569 = vld [vmem:[%s49 + $0x424] sm:%s42]
      %570 = vst [vmem:[%s50 + $0x40c] sm:%s42] %v569
      %v571 = vld [vmem:[%s49 + $0x408] sm:%s42]
      %572 = vst [vmem:[%s50 + $0x410] sm:%s42] %v571
      %v573 = vld [vmem:[%s49 + $0x428] sm:%s42]
      %574 = vst [vmem:[%s50 + $0x414] sm:%s42] %v573
      %v575 = vld [vmem:[%s49 + $0x40c] sm:%s42]
      %576 = vst [vmem:[%s50 + $0x418] sm:%s42] %v575
      %v577 = vld [vmem:[%s49 + $0x42c] sm:%s42]
      %578 = vst [vmem:[%s50 + $0x41c] sm:%s42] %v577
      %v579 = vld [vmem:[%s49 + $0x410] sm:%s42]
      %580 = vst [vmem:[%s50 + $0x420] sm:%s42] %v579
      %v581 = vld [vmem:[%s49 + $0x430] sm:%s42]
      %582 = vst [vmem:[%s50 + $0x424] sm:%s42] %v581
      %v583 = vld [vmem:[%s49 + $0x414] sm:%s42]
      %584 = vst [vmem:[%s50 + $0x428] sm:%s42] %v583
      %v585 = vld [vmem:[%s49 + $0x434] sm:%s42]
      %586 = vst [vmem:[%s50 + $0x42c] sm:%s42] %v585
      %v587 = vld [vmem:[%s49 + $0x418] sm:%s42]
      %588 = vst [vmem:[%s50 + $0x430] sm:%s42] %v587
      %v589 = vld [vmem:[%s49 + $0x438] sm:%s42]
      %590 = vst [vmem:[%s50 + $0x434] sm:%s42] %v589
      %v591 = vld [vmem:[%s49 + $0x41c] sm:%s42]
      %592 = vst [vmem:[%s50 + $0x438] sm:%s42] %v591
      %v593 = vld [vmem:[%s49 + $0x43c] sm:%s42]
      %594 = vst [vmem:[%s50 + $0x43c] sm:%s42] %v593
      %v595 = vld [vmem:[%s49 + $0x440] sm:%s42]
      %596 = vst [vmem:[%s50 + $0x440] sm:%s42] %v595
      %v597 = vld [vmem:[%s49 + $0x460] sm:%s42]
      %598 = vst [vmem:[%s50 + $0x444] sm:%s42] %v597
      %v599 = vld [vmem:[%s49 + $0x444] sm:%s42]
      %600 = vst [vmem:[%s50 + $0x448] sm:%s42] %v599
      %v601 = vld [vmem:[%s49 + $0x464] sm:%s42]
      %602 = vst [vmem:[%s50 + $0x44c] sm:%s42] %v601
      %v603 = vld [vmem:[%s49 + $0x448] sm:%s42]
      %604 = vst [vmem:[%s50 + $0x450] sm:%s42] %v603
      %v605 = vld [vmem:[%s49 + $0x468] sm:%s42]
      %606 = vst [vmem:[%s50 + $0x454] sm:%s42] %v605
      %v607 = vld [vmem:[%s49 + $0x44c] sm:%s42]
      %608 = vst [vmem:[%s50 + $0x458] sm:%s42] %v607
      %v609 = vld [vmem:[%s49 + $0x46c] sm:%s42]
      %610 = vst [vmem:[%s50 + $0x45c] sm:%s42] %v609
      %v611 = vld [vmem:[%s49 + $0x450] sm:%s42]
      %612 = vst [vmem:[%s50 + $0x460] sm:%s42] %v611
      %v613 = vld [vmem:[%s49 + $0x470] sm:%s42]
      %614 = vst [vmem:[%s50 + $0x464] sm:%s42] %v613
      %v615 = vld [vmem:[%s49 + $0x454] sm:%s42]
      %616 = vst [vmem:[%s50 + $0x468] sm:%s42] %v615
      %v617 = vld [vmem:[%s49 + $0x474] sm:%s42]
      %618 = vst [vmem:[%s50 + $0x46c] sm:%s42] %v617
      %v619 = vld [vmem:[%s49 + $0x458] sm:%s42]
      %620 = vst [vmem:[%s50 + $0x470] sm:%s42] %v619
      %v621 = vld [vmem:[%s49 + $0x478] sm:%s42]
      %622 = vst [vmem:[%s50 + $0x474] sm:%s42] %v621
      %v623 = vld [vmem:[%s49 + $0x45c] sm:%s42]
      %624 = vst [vmem:[%s50 + $0x478] sm:%s42] %v623
      %v625 = vld [vmem:[%s49 + $0x47c] sm:%s42]
      %626 = vst [vmem:[%s50 + $0x47c] sm:%s42] %v625
      %v627 = vld [vmem:[%s49 + $0x480] sm:%s42]
      %628 = vst [vmem:[%s50 + $0x480] sm:%s42] %v627
      %v629 = vld [vmem:[%s49 + $0x4a0] sm:%s42]
      %630 = vst [vmem:[%s50 + $0x484] sm:%s42] %v629
      %v631 = vld [vmem:[%s49 + $0x484] sm:%s42]
      %632 = vst [vmem:[%s50 + $0x488] sm:%s42] %v631
      %v633 = vld [vmem:[%s49 + $0x4a4] sm:%s42]
      %634 = vst [vmem:[%s50 + $0x48c] sm:%s42] %v633
      %v635 = vld [vmem:[%s49 + $0x488] sm:%s42]
      %636 = vst [vmem:[%s50 + $0x490] sm:%s42] %v635
      %v637 = vld [vmem:[%s49 + $0x4a8] sm:%s42]
      %638 = vst [vmem:[%s50 + $0x494] sm:%s42] %v637
      %v639 = vld [vmem:[%s49 + $0x48c] sm:%s42]
      %640 = vst [vmem:[%s50 + $0x498] sm:%s42] %v639
      %v641 = vld [vmem:[%s49 + $0x4ac] sm:%s42]
      %642 = vst [vmem:[%s50 + $0x49c] sm:%s42] %v641
      %v643 = vld [vmem:[%s49 + $0x490] sm:%s42]
      %644 = vst [vmem:[%s50 + $0x4a0] sm:%s42] %v643
      %v645 = vld [vmem:[%s49 + $0x4b0] sm:%s42]
      %646 = vst [vmem:[%s50 + $0x4a4] sm:%s42] %v645
      %v647 = vld [vmem:[%s49 + $0x494] sm:%s42]
      %648 = vst [vmem:[%s50 + $0x4a8] sm:%s42] %v647
      %v649 = vld [vmem:[%s49 + $0x4b4] sm:%s42]
      %650 = vst [vmem:[%s50 + $0x4ac] sm:%s42] %v649
      %v651 = vld [vmem:[%s49 + $0x498] sm:%s42]
      %652 = vst [vmem:[%s50 + $0x4b0] sm:%s42] %v651
      %v653 = vld [vmem:[%s49 + $0x4b8] sm:%s42]
      %654 = vst [vmem:[%s50 + $0x4b4] sm:%s42] %v653
      %v655 = vld [vmem:[%s49 + $0x49c] sm:%s42]
      %656 = vst [vmem:[%s50 + $0x4b8] sm:%s42] %v655
      %v657 = vld [vmem:[%s49 + $0x4bc] sm:%s42]
      %658 = vst [vmem:[%s50 + $0x4bc] sm:%s42] %v657
      %v659 = vld [vmem:[%s49 + $0x4c0] sm:%s42]
      %660 = vst [vmem:[%s50 + $0x4c0] sm:%s42] %v659
      %v661 = vld [vmem:[%s49 + $0x4e0] sm:%s42]
      %662 = vst [vmem:[%s50 + $0x4c4] sm:%s42] %v661
      %v663 = vld [vmem:[%s49 + $0x4c4] sm:%s42]
      %664 = vst [vmem:[%s50 + $0x4c8] sm:%s42] %v663
      %v665 = vld [vmem:[%s49 + $0x4e4] sm:%s42]
      %666 = vst [vmem:[%s50 + $0x4cc] sm:%s42] %v665
      %v667 = vld [vmem:[%s49 + $0x4c8] sm:%s42]
      %668 = vst [vmem:[%s50 + $0x4d0] sm:%s42] %v667
      %v669 = vld [vmem:[%s49 + $0x4e8] sm:%s42]
      %670 = vst [vmem:[%s50 + $0x4d4] sm:%s42] %v669
      %v671 = vld [vmem:[%s49 + $0x4cc] sm:%s42]
      %672 = vst [vmem:[%s50 + $0x4d8] sm:%s42] %v671
      %v673 = vld [vmem:[%s49 + $0x4ec] sm:%s42]
      %674 = vst [vmem:[%s50 + $0x4dc] sm:%s42] %v673
      %v675 = vld [vmem:[%s49 + $0x4d0] sm:%s42]
      %676 = vst [vmem:[%s50 + $0x4e0] sm:%s42] %v675
      %v677 = vld [vmem:[%s49 + $0x4f0] sm:%s42]
      %678 = vst [vmem:[%s50 + $0x4e4] sm:%s42] %v677
      %v679 = vld [vmem:[%s49 + $0x4d4] sm:%s42]
      %680 = vst [vmem:[%s50 + $0x4e8] sm:%s42] %v679
      %v681 = vld [vmem:[%s49 + $0x4f4] sm:%s42]
      %682 = vst [vmem:[%s50 + $0x4ec] sm:%s42] %v681
      %v683 = vld [vmem:[%s49 + $0x4d8] sm:%s42]
      %684 = vst [vmem:[%s50 + $0x4f0] sm:%s42] %v683
      %v685 = vld [vmem:[%s49 + $0x4f8] sm:%s42]
      %686 = vst [vmem:[%s50 + $0x4f4] sm:%s42] %v685
      %v687 = vld [vmem:[%s49 + $0x4dc] sm:%s42]
      %688 = vst [vmem:[%s50 + $0x4f8] sm:%s42] %v687
      %v689 = vld [vmem:[%s49 + $0x4fc] sm:%s42]
      %690 = vst [vmem:[%s50 + $0x4fc] sm:%s42] %v689
      %v691 = vld [vmem:[%s49 + $0x500] sm:%s42]
      %692 = vst [vmem:[%s50 + $0x500] sm:%s42] %v691
      %v693 = vld [vmem:[%s49 + $0x520] sm:%s42]
      %694 = vst [vmem:[%s50 + $0x504] sm:%s42] %v693
      %v695 = vld [vmem:[%s49 + $0x504] sm:%s42]
      %696 = vst [vmem:[%s50 + $0x508] sm:%s42] %v695
      %v697 = vld [vmem:[%s49 + $0x524] sm:%s42]
      %698 = vst [vmem:[%s50 + $0x50c] sm:%s42] %v697
      %v699 = vld [vmem:[%s49 + $0x508] sm:%s42]
      %700 = vst [vmem:[%s50 + $0x510] sm:%s42] %v699
      %v701 = vld [vmem:[%s49 + $0x528] sm:%s42]
      %702 = vst [vmem:[%s50 + $0x514] sm:%s42] %v701
      %v703 = vld [vmem:[%s49 + $0x50c] sm:%s42]
      %704 = vst [vmem:[%s50 + $0x518] sm:%s42] %v703
      %v705 = vld [vmem:[%s49 + $0x52c] sm:%s42]
      %706 = vst [vmem:[%s50 + $0x51c] sm:%s42] %v705
      %v707 = vld [vmem:[%s49 + $0x510] sm:%s42]
      %708 = vst [vmem:[%s50 + $0x520] sm:%s42] %v707
      %v709 = vld [vmem:[%s49 + $0x530] sm:%s42]
      %710 = vst [vmem:[%s50 + $0x524] sm:%s42] %v709
      %v711 = vld [vmem:[%s49 + $0x514] sm:%s42]
      %712 = vst [vmem:[%s50 + $0x528] sm:%s42] %v711
      %v713 = vld [vmem:[%s49 + $0x534] sm:%s42]
      %714 = vst [vmem:[%s50 + $0x52c] sm:%s42] %v713
      %v715 = vld [vmem:[%s49 + $0x518] sm:%s42]
      %716 = vst [vmem:[%s50 + $0x530] sm:%s42] %v715
      %v717 = vld [vmem:[%s49 + $0x538] sm:%s42]
      %718 = vst [vmem:[%s50 + $0x534] sm:%s42] %v717
      %v719 = vld [vmem:[%s49 + $0x51c] sm:%s42]
      %720 = vst [vmem:[%s50 + $0x538] sm:%s42] %v719
      %v721 = vld [vmem:[%s49 + $0x53c] sm:%s42]
      %722 = vst [vmem:[%s50 + $0x53c] sm:%s42] %v721
      %v723 = vld [vmem:[%s49 + $0x540] sm:%s42]
      %724 = vst [vmem:[%s50 + $0x540] sm:%s42] %v723
      %v725 = vld [vmem:[%s49 + $0x560] sm:%s42]
      %726 = vst [vmem:[%s50 + $0x544] sm:%s42] %v725
      %v727 = vld [vmem:[%s49 + $0x544] sm:%s42]
      %728 = vst [vmem:[%s50 + $0x548] sm:%s42] %v727
      %v729 = vld [vmem:[%s49 + $0x564] sm:%s42]
      %730 = vst [vmem:[%s50 + $0x54c] sm:%s42] %v729
      %v731 = vld [vmem:[%s49 + $0x548] sm:%s42]
      %732 = vst [vmem:[%s50 + $0x550] sm:%s42] %v731
      %v733 = vld [vmem:[%s49 + $0x568] sm:%s42]
      %734 = vst [vmem:[%s50 + $0x554] sm:%s42] %v733
      %v735 = vld [vmem:[%s49 + $0x54c] sm:%s42]
      %736 = vst [vmem:[%s50 + $0x558] sm:%s42] %v735
      %v737 = vld [vmem:[%s49 + $0x56c] sm:%s42]
      %738 = vst [vmem:[%s50 + $0x55c] sm:%s42] %v737
      %v739 = vld [vmem:[%s49 + $0x550] sm:%s42]
      %740 = vst [vmem:[%s50 + $0x560] sm:%s42] %v739
      %v741 = vld [vmem:[%s49 + $0x570] sm:%s42]
      %742 = vst [vmem:[%s50 + $0x564] sm:%s42] %v741
      %v743 = vld [vmem:[%s49 + $0x554] sm:%s42]
      %744 = vst [vmem:[%s50 + $0x568] sm:%s42] %v743
      %v745 = vld [vmem:[%s49 + $0x574] sm:%s42]
      %746 = vst [vmem:[%s50 + $0x56c] sm:%s42] %v745
      %v747 = vld [vmem:[%s49 + $0x558] sm:%s42]
      %748 = vst [vmem:[%s50 + $0x570] sm:%s42] %v747
      %v749 = vld [vmem:[%s49 + $0x578] sm:%s42]
      %750 = vst [vmem:[%s50 + $0x574] sm:%s42] %v749
      %v751 = vld [vmem:[%s49 + $0x55c] sm:%s42]
      %752 = vst [vmem:[%s50 + $0x578] sm:%s42] %v751
      %v753 = vld [vmem:[%s49 + $0x57c] sm:%s42]
      %754 = vst [vmem:[%s50 + $0x57c] sm:%s42] %v753
      %v755 = vld [vmem:[%s49 + $0x580] sm:%s42]
      %756 = vst [vmem:[%s50 + $0x580] sm:%s42] %v755
      %v757 = vld [vmem:[%s49 + $0x5a0] sm:%s42]
      %758 = vst [vmem:[%s50 + $0x584] sm:%s42] %v757
      %v759 = vld [vmem:[%s49 + $0x584] sm:%s42]
      %760 = vst [vmem:[%s50 + $0x588] sm:%s42] %v759
      %v761 = vld [vmem:[%s49 + $0x5a4] sm:%s42]
      %762 = vst [vmem:[%s50 + $0x58c] sm:%s42] %v761
      %v763 = vld [vmem:[%s49 + $0x588] sm:%s42]
      %764 = vst [vmem:[%s50 + $0x590] sm:%s42] %v763
      %v765 = vld [vmem:[%s49 + $0x5a8] sm:%s42]
      %766 = vst [vmem:[%s50 + $0x594] sm:%s42] %v765
      %v767 = vld [vmem:[%s49 + $0x58c] sm:%s42]
      %768 = vst [vmem:[%s50 + $0x598] sm:%s42] %v767
      %v769 = vld [vmem:[%s49 + $0x5ac] sm:%s42]
      %770 = vst [vmem:[%s50 + $0x59c] sm:%s42] %v769
      %v771 = vld [vmem:[%s49 + $0x590] sm:%s42]
      %772 = vst [vmem:[%s50 + $0x5a0] sm:%s42] %v771
      %v773 = vld [vmem:[%s49 + $0x5b0] sm:%s42]
      %774 = vst [vmem:[%s50 + $0x5a4] sm:%s42] %v773
      %v775 = vld [vmem:[%s49 + $0x594] sm:%s42]
      %776 = vst [vmem:[%s50 + $0x5a8] sm:%s42] %v775
      %v777 = vld [vmem:[%s49 + $0x5b4] sm:%s42]
      %778 = vst [vmem:[%s50 + $0x5ac] sm:%s42] %v777
      %v779 = vld [vmem:[%s49 + $0x598] sm:%s42]
      %780 = vst [vmem:[%s50 + $0x5b0] sm:%s42] %v779
      %v781 = vld [vmem:[%s49 + $0x5b8] sm:%s42]
      %782 = vst [vmem:[%s50 + $0x5b4] sm:%s42] %v781
      %v783 = vld [vmem:[%s49 + $0x59c] sm:%s42]
      %784 = vst [vmem:[%s50 + $0x5b8] sm:%s42] %v783
      %v785 = vld [vmem:[%s49 + $0x5bc] sm:%s42]
      %786 = vst [vmem:[%s50 + $0x5bc] sm:%s42] %v785
      %v787 = vld [vmem:[%s49 + $0x5c0] sm:%s42]
      %788 = vst [vmem:[%s50 + $0x5c0] sm:%s42] %v787
      %v789 = vld [vmem:[%s49 + $0x5e0] sm:%s42]
      %790 = vst [vmem:[%s50 + $0x5c4] sm:%s42] %v789
      %v791 = vld [vmem:[%s49 + $0x5c4] sm:%s42]
      %792 = vst [vmem:[%s50 + $0x5c8] sm:%s42] %v791
      %v793 = vld [vmem:[%s49 + $0x5e4] sm:%s42]
      %794 = vst [vmem:[%s50 + $0x5cc] sm:%s42] %v793
      %v795 = vld [vmem:[%s49 + $0x5c8] sm:%s42]
      %796 = vst [vmem:[%s50 + $0x5d0] sm:%s42] %v795
      %v797 = vld [vmem:[%s49 + $0x5e8] sm:%s42]
      %798 = vst [vmem:[%s50 + $0x5d4] sm:%s42] %v797
      %v799 = vld [vmem:[%s49 + $0x5cc] sm:%s42]
      %800 = vst [vmem:[%s50 + $0x5d8] sm:%s42] %v799
      %v801 = vld [vmem:[%s49 + $0x5ec] sm:%s42]
      %802 = vst [vmem:[%s50 + $0x5dc] sm:%s42] %v801
      %v803 = vld [vmem:[%s49 + $0x5d0] sm:%s42]
      %804 = vst [vmem:[%s50 + $0x5e0] sm:%s42] %v803
      %v805 = vld [vmem:[%s49 + $0x5f0] sm:%s42]
      %806 = vst [vmem:[%s50 + $0x5e4] sm:%s42] %v805
      %v807 = vld [vmem:[%s49 + $0x5d4] sm:%s42]
      %808 = vst [vmem:[%s50 + $0x5e8] sm:%s42] %v807
      %v809 = vld [vmem:[%s49 + $0x5f4] sm:%s42]
      %810 = vst [vmem:[%s50 + $0x5ec] sm:%s42] %v809
      %v811 = vld [vmem:[%s49 + $0x5d8] sm:%s42]
      %812 = vst [vmem:[%s50 + $0x5f0] sm:%s42] %v811
      %v813 = vld [vmem:[%s49 + $0x5f8] sm:%s42]
      %814 = vst [vmem:[%s50 + $0x5f4] sm:%s42] %v813
      %v815 = vld [vmem:[%s49 + $0x5dc] sm:%s42]
      %816 = vst [vmem:[%s50 + $0x5f8] sm:%s42] %v815
      %v817 = vld [vmem:[%s49 + $0x5fc] sm:%s42]
      %818 = vst [vmem:[%s50 + $0x5fc] sm:%s42] %v817
      %v819 = vld [vmem:[%s49 + $0x600] sm:%s42]
      %820 = vst [vmem:[%s50 + $0x600] sm:%s42] %v819
      %v821 = vld [vmem:[%s49 + $0x620] sm:%s42]
      %822 = vst [vmem:[%s50 + $0x604] sm:%s42] %v821
      %v823 = vld [vmem:[%s49 + $0x604] sm:%s42]
      %824 = vst [vmem:[%s50 + $0x608] sm:%s42] %v823
      %v825 = vld [vmem:[%s49 + $0x624] sm:%s42]
      %826 = vst [vmem:[%s50 + $0x60c] sm:%s42] %v825
      %v827 = vld [vmem:[%s49 + $0x608] sm:%s42]
      %828 = vst [vmem:[%s50 + $0x610] sm:%s42] %v827
      %v829 = vld [vmem:[%s49 + $0x628] sm:%s42]
      %830 = vst [vmem:[%s50 + $0x614] sm:%s42] %v829
      %v831 = vld [vmem:[%s49 + $0x60c] sm:%s42]
      %832 = vst [vmem:[%s50 + $0x618] sm:%s42] %v831
      %v833 = vld [vmem:[%s49 + $0x62c] sm:%s42]
      %834 = vst [vmem:[%s50 + $0x61c] sm:%s42] %v833
      %v835 = vld [vmem:[%s49 + $0x610] sm:%s42]
      %836 = vst [vmem:[%s50 + $0x620] sm:%s42] %v835
      %v837 = vld [vmem:[%s49 + $0x630] sm:%s42]
      %838 = vst [vmem:[%s50 + $0x624] sm:%s42] %v837
      %v839 = vld [vmem:[%s49 + $0x614] sm:%s42]
      %840 = vst [vmem:[%s50 + $0x628] sm:%s42] %v839
      %v841 = vld [vmem:[%s49 + $0x634] sm:%s42]
      %842 = vst [vmem:[%s50 + $0x62c] sm:%s42] %v841
      %v843 = vld [vmem:[%s49 + $0x618] sm:%s42]
      %844 = vst [vmem:[%s50 + $0x630] sm:%s42] %v843
      %v845 = vld [vmem:[%s49 + $0x638] sm:%s42]
      %846 = vst [vmem:[%s50 + $0x634] sm:%s42] %v845
      %v847 = vld [vmem:[%s49 + $0x61c] sm:%s42]
      %848 = vst [vmem:[%s50 + $0x638] sm:%s42] %v847
      %v849 = vld [vmem:[%s49 + $0x63c] sm:%s42]
      %850 = vst [vmem:[%s50 + $0x63c] sm:%s42] %v849
      %v851 = vld [vmem:[%s49 + $0x640] sm:%s42]
      %852 = vst [vmem:[%s50 + $0x640] sm:%s42] %v851
      %v853 = vld [vmem:[%s49 + $0x660] sm:%s42]
      %854 = vst [vmem:[%s50 + $0x644] sm:%s42] %v853
      %v855 = vld [vmem:[%s49 + $0x644] sm:%s42]
      %856 = vst [vmem:[%s50 + $0x648] sm:%s42] %v855
      %v857 = vld [vmem:[%s49 + $0x664] sm:%s42]
      %858 = vst [vmem:[%s50 + $0x64c] sm:%s42] %v857
      %v859 = vld [vmem:[%s49 + $0x648] sm:%s42]
      %860 = vst [vmem:[%s50 + $0x650] sm:%s42] %v859
      %v861 = vld [vmem:[%s49 + $0x668] sm:%s42]
      %862 = vst [vmem:[%s50 + $0x654] sm:%s42] %v861
      %v863 = vld [vmem:[%s49 + $0x64c] sm:%s42]
      %864 = vst [vmem:[%s50 + $0x658] sm:%s42] %v863
      %v865 = vld [vmem:[%s49 + $0x66c] sm:%s42]
      %866 = vst [vmem:[%s50 + $0x65c] sm:%s42] %v865
      %v867 = vld [vmem:[%s49 + $0x650] sm:%s42]
      %868 = vst [vmem:[%s50 + $0x660] sm:%s42] %v867
      %v869 = vld [vmem:[%s49 + $0x670] sm:%s42]
      %870 = vst [vmem:[%s50 + $0x664] sm:%s42] %v869
      %v871 = vld [vmem:[%s49 + $0x654] sm:%s42]
      %872 = vst [vmem:[%s50 + $0x668] sm:%s42] %v871
      %v873 = vld [vmem:[%s49 + $0x674] sm:%s42]
      %874 = vst [vmem:[%s50 + $0x66c] sm:%s42] %v873
      %v875 = vld [vmem:[%s49 + $0x658] sm:%s42]
      %876 = vst [vmem:[%s50 + $0x670] sm:%s42] %v875
      %v877 = vld [vmem:[%s49 + $0x678] sm:%s42]
      %878 = vst [vmem:[%s50 + $0x674] sm:%s42] %v877
      %v879 = vld [vmem:[%s49 + $0x65c] sm:%s42]
      %880 = vst [vmem:[%s50 + $0x678] sm:%s42] %v879
      %v881 = vld [vmem:[%s49 + $0x67c] sm:%s42]
      %882 = vst [vmem:[%s50 + $0x67c] sm:%s42] %v881
      %v883 = vld [vmem:[%s49 + $0x680] sm:%s42]
      %884 = vst [vmem:[%s50 + $0x680] sm:%s42] %v883
      %v885 = vld [vmem:[%s49 + $0x6a0] sm:%s42]
      %886 = vst [vmem:[%s50 + $0x684] sm:%s42] %v885
      %v887 = vld [vmem:[%s49 + $0x684] sm:%s42]
      %888 = vst [vmem:[%s50 + $0x688] sm:%s42] %v887
      %v889 = vld [vmem:[%s49 + $0x6a4] sm:%s42]
      %890 = vst [vmem:[%s50 + $0x68c] sm:%s42] %v889
      %v891 = vld [vmem:[%s49 + $0x688] sm:%s42]
      %892 = vst [vmem:[%s50 + $0x690] sm:%s42] %v891
      %v893 = vld [vmem:[%s49 + $0x6a8] sm:%s42]
      %894 = vst [vmem:[%s50 + $0x694] sm:%s42] %v893
      %v895 = vld [vmem:[%s49 + $0x68c] sm:%s42]
      %896 = vst [vmem:[%s50 + $0x698] sm:%s42] %v895
      %v897 = vld [vmem:[%s49 + $0x6ac] sm:%s42]
      %898 = vst [vmem:[%s50 + $0x69c] sm:%s42] %v897
      %v899 = vld [vmem:[%s49 + $0x690] sm:%s42]
      %900 = vst [vmem:[%s50 + $0x6a0] sm:%s42] %v899
      %v901 = vld [vmem:[%s49 + $0x6b0] sm:%s42]
      %902 = vst [vmem:[%s50 + $0x6a4] sm:%s42] %v901
      %v903 = vld [vmem:[%s49 + $0x694] sm:%s42]
      %904 = vst [vmem:[%s50 + $0x6a8] sm:%s42] %v903
      %v905 = vld [vmem:[%s49 + $0x6b4] sm:%s42]
      %906 = vst [vmem:[%s50 + $0x6ac] sm:%s42] %v905
      %v907 = vld [vmem:[%s49 + $0x698] sm:%s42]
      %908 = vst [vmem:[%s50 + $0x6b0] sm:%s42] %v907
      %v909 = vld [vmem:[%s49 + $0x6b8] sm:%s42]
      %910 = vst [vmem:[%s50 + $0x6b4] sm:%s42] %v909
      %v911 = vld [vmem:[%s49 + $0x69c] sm:%s42]
      %912 = vst [vmem:[%s50 + $0x6b8] sm:%s42] %v911
      %v913 = vld [vmem:[%s49 + $0x6bc] sm:%s42]
      %914 = vst [vmem:[%s50 + $0x6bc] sm:%s42] %v913
      %v915 = vld [vmem:[%s49 + $0x6c0] sm:%s42]
      %916 = vst [vmem:[%s50 + $0x6c0] sm:%s42] %v915
      %v917 = vld [vmem:[%s49 + $0x6e0] sm:%s42]
      %918 = vst [vmem:[%s50 + $0x6c4] sm:%s42] %v917
      %v919 = vld [vmem:[%s49 + $0x6c4] sm:%s42]
      %920 = vst [vmem:[%s50 + $0x6c8] sm:%s42] %v919
      %v921 = vld [vmem:[%s49 + $0x6e4] sm:%s42]
      %922 = vst [vmem:[%s50 + $0x6cc] sm:%s42] %v921
      %v923 = vld [vmem:[%s49 + $0x6c8] sm:%s42]
      %924 = vst [vmem:[%s50 + $0x6d0] sm:%s42] %v923
      %v925 = vld [vmem:[%s49 + $0x6e8] sm:%s42]
      %926 = vst [vmem:[%s50 + $0x6d4] sm:%s42] %v925
      %v927 = vld [vmem:[%s49 + $0x6cc] sm:%s42]
      %928 = vst [vmem:[%s50 + $0x6d8] sm:%s42] %v927
      %v929 = vld [vmem:[%s49 + $0x6ec] sm:%s42]
      %930 = vst [vmem:[%s50 + $0x6dc] sm:%s42] %v929
      %v931 = vld [vmem:[%s49 + $0x6d0] sm:%s42]
      %932 = vst [vmem:[%s50 + $0x6e0] sm:%s42] %v931
      %v933 = vld [vmem:[%s49 + $0x6f0] sm:%s42]
      %934 = vst [vmem:[%s50 + $0x6e4] sm:%s42] %v933
      %v935 = vld [vmem:[%s49 + $0x6d4] sm:%s42]
      %936 = vst [vmem:[%s50 + $0x6e8] sm:%s42] %v935
      %v937 = vld [vmem:[%s49 + $0x6f4] sm:%s42]
      %938 = vst [vmem:[%s50 + $0x6ec] sm:%s42] %v937
      %v939 = vld [vmem:[%s49 + $0x6d8] sm:%s42]
      %940 = vst [vmem:[%s50 + $0x6f0] sm:%s42] %v939
      %v941 = vld [vmem:[%s49 + $0x6f8] sm:%s42]
      %942 = vst [vmem:[%s50 + $0x6f4] sm:%s42] %v941
      %v943 = vld [vmem:[%s49 + $0x6dc] sm:%s42]
      %944 = vst [vmem:[%s50 + $0x6f8] sm:%s42] %v943
      %v945 = vld [vmem:[%s49 + $0x6fc] sm:%s42]
      %946 = vst [vmem:[%s50 + $0x6fc] sm:%s42] %v945
      %v947 = vld [vmem:[%s49 + $0x700] sm:%s42]
      %948 = vst [vmem:[%s50 + $0x700] sm:%s42] %v947
      %v949 = vld [vmem:[%s49 + $0x720] sm:%s42]
      %950 = vst [vmem:[%s50 + $0x704] sm:%s42] %v949
      %v951 = vld [vmem:[%s49 + $0x704] sm:%s42]
      %952 = vst [vmem:[%s50 + $0x708] sm:%s42] %v951
      %v953 = vld [vmem:[%s49 + $0x724] sm:%s42]
      %954 = vst [vmem:[%s50 + $0x70c] sm:%s42] %v953
      %v955 = vld [vmem:[%s49 + $0x708] sm:%s42]
      %956 = vst [vmem:[%s50 + $0x710] sm:%s42] %v955
      %v957 = vld [vmem:[%s49 + $0x728] sm:%s42]
      %958 = vst [vmem:[%s50 + $0x714] sm:%s42] %v957
      %v959 = vld [vmem:[%s49 + $0x70c] sm:%s42]
      %960 = vst [vmem:[%s50 + $0x718] sm:%s42] %v959
      %v961 = vld [vmem:[%s49 + $0x72c] sm:%s42]
      %962 = vst [vmem:[%s50 + $0x71c] sm:%s42] %v961
      %v963 = vld [vmem:[%s49 + $0x710] sm:%s42]
      %964 = vst [vmem:[%s50 + $0x720] sm:%s42] %v963
      %v965 = vld [vmem:[%s49 + $0x730] sm:%s42]
      %966 = vst [vmem:[%s50 + $0x724] sm:%s42] %v965
      %v967 = vld [vmem:[%s49 + $0x714] sm:%s42]
      %968 = vst [vmem:[%s50 + $0x728] sm:%s42] %v967
      %v969 = vld [vmem:[%s49 + $0x734] sm:%s42]
      %970 = vst [vmem:[%s50 + $0x72c] sm:%s42] %v969
      %v971 = vld [vmem:[%s49 + $0x718] sm:%s42]
      %972 = vst [vmem:[%s50 + $0x730] sm:%s42] %v971
      %v973 = vld [vmem:[%s49 + $0x738] sm:%s42]
      %974 = vst [vmem:[%s50 + $0x734] sm:%s42] %v973
      %v975 = vld [vmem:[%s49 + $0x71c] sm:%s42]
      %976 = vst [vmem:[%s50 + $0x738] sm:%s42] %v975
      %v977 = vld [vmem:[%s49 + $0x73c] sm:%s42]
      %978 = vst [vmem:[%s50 + $0x73c] sm:%s42] %v977
      %v979 = vld [vmem:[%s49 + $0x740] sm:%s42]
      %980 = vst [vmem:[%s50 + $0x740] sm:%s42] %v979
      %v981 = vld [vmem:[%s49 + $0x760] sm:%s42]
      %982 = vst [vmem:[%s50 + $0x744] sm:%s42] %v981
      %v983 = vld [vmem:[%s49 + $0x744] sm:%s42]
      %984 = vst [vmem:[%s50 + $0x748] sm:%s42] %v983
      %v985 = vld [vmem:[%s49 + $0x764] sm:%s42]
      %986 = vst [vmem:[%s50 + $0x74c] sm:%s42] %v985
      %v987 = vld [vmem:[%s49 + $0x748] sm:%s42]
      %988 = vst [vmem:[%s50 + $0x750] sm:%s42] %v987
      %v989 = vld [vmem:[%s49 + $0x768] sm:%s42]
      %990 = vst [vmem:[%s50 + $0x754] sm:%s42] %v989
      %v991 = vld [vmem:[%s49 + $0x74c] sm:%s42]
      %992 = vst [vmem:[%s50 + $0x758] sm:%s42] %v991
      %v993 = vld [vmem:[%s49 + $0x76c] sm:%s42]
      %994 = vst [vmem:[%s50 + $0x75c] sm:%s42] %v993
      %v995 = vld [vmem:[%s49 + $0x750] sm:%s42]
      %996 = vst [vmem:[%s50 + $0x760] sm:%s42] %v995
      %v997 = vld [vmem:[%s49 + $0x770] sm:%s42]
      %998 = vst [vmem:[%s50 + $0x764] sm:%s42] %v997
      %v999 = vld [vmem:[%s49 + $0x754] sm:%s42]
      %1000 = vst [vmem:[%s50 + $0x768] sm:%s42] %v999
      %v1001 = vld [vmem:[%s49 + $0x774] sm:%s42]
      %1002 = vst [vmem:[%s50 + $0x76c] sm:%s42] %v1001
      %v1003 = vld [vmem:[%s49 + $0x758] sm:%s42]
      %1004 = vst [vmem:[%s50 + $0x770] sm:%s42] %v1003
      %v1005 = vld [vmem:[%s49 + $0x778] sm:%s42]
      %1006 = vst [vmem:[%s50 + $0x774] sm:%s42] %v1005
      %v1007 = vld [vmem:[%s49 + $0x75c] sm:%s42]
      %1008 = vst [vmem:[%s50 + $0x778] sm:%s42] %v1007
      %v1009 = vld [vmem:[%s49 + $0x77c] sm:%s42]
      %1010 = vst [vmem:[%s50 + $0x77c] sm:%s42] %v1009
      %v1011 = vld [vmem:[%s49 + $0x780] sm:%s42]
      %1012 = vst [vmem:[%s50 + $0x780] sm:%s42] %v1011
      %v1013 = vld [vmem:[%s49 + $0x7a0] sm:%s42]
      %1014 = vst [vmem:[%s50 + $0x784] sm:%s42] %v1013
      %v1015 = vld [vmem:[%s49 + $0x784] sm:%s42]
      %1016 = vst [vmem:[%s50 + $0x788] sm:%s42] %v1015
      %v1017 = vld [vmem:[%s49 + $0x7a4] sm:%s42]
      %1018 = vst [vmem:[%s50 + $0x78c] sm:%s42] %v1017
      %v1019 = vld [vmem:[%s49 + $0x788] sm:%s42]
      %1020 = vst [vmem:[%s50 + $0x790] sm:%s42] %v1019
      %v1021 = vld [vmem:[%s49 + $0x7a8] sm:%s42]
      %1022 = vst [vmem:[%s50 + $0x794] sm:%s42] %v1021
      %v1023 = vld [vmem:[%s49 + $0x78c] sm:%s42]
      %1024 = vst [vmem:[%s50 + $0x798] sm:%s42] %v1023
      %v1025 = vld [vmem:[%s49 + $0x7ac] sm:%s42]
      %1026 = vst [vmem:[%s50 + $0x79c] sm:%s42] %v1025
      %v1027 = vld [vmem:[%s49 + $0x790] sm:%s42]
      %1028 = vst [vmem:[%s50 + $0x7a0] sm:%s42] %v1027
      %v1029 = vld [vmem:[%s49 + $0x7b0] sm:%s42]
      %1030 = vst [vmem:[%s50 + $0x7a4] sm:%s42] %v1029
      %v1031 = vld [vmem:[%s49 + $0x794] sm:%s42]
      %1032 = vst [vmem:[%s50 + $0x7a8] sm:%s42] %v1031
      %v1033 = vld [vmem:[%s49 + $0x7b4] sm:%s42]
      %1034 = vst [vmem:[%s50 + $0x7ac] sm:%s42] %v1033
      %v1035 = vld [vmem:[%s49 + $0x798] sm:%s42]
      %1036 = vst [vmem:[%s50 + $0x7b0] sm:%s42] %v1035
      %v1037 = vld [vmem:[%s49 + $0x7b8] sm:%s42]
      %1038 = vst [vmem:[%s50 + $0x7b4] sm:%s42] %v1037
      %v1039 = vld [vmem:[%s49 + $0x79c] sm:%s42]
      %1040 = vst [vmem:[%s50 + $0x7b8] sm:%s42] %v1039
      %v1041 = vld [vmem:[%s49 + $0x7bc] sm:%s42]
      %1042 = vst [vmem:[%s50 + $0x7bc] sm:%s42] %v1041
      %v1043 = vld [vmem:[%s49 + $0x7c0] sm:%s42]
      %1044 = vst [vmem:[%s50 + $0x7c0] sm:%s42] %v1043
      %v1045 = vld [vmem:[%s49 + $0x7e0] sm:%s42]
      %1046 = vst [vmem:[%s50 + $0x7c4] sm:%s42] %v1045
      %v1047 = vld [vmem:[%s49 + $0x7c4] sm:%s42]
      %1048 = vst [vmem:[%s50 + $0x7c8] sm:%s42] %v1047
      %v1049 = vld [vmem:[%s49 + $0x7e4] sm:%s42]
      %1050 = vst [vmem:[%s50 + $0x7cc] sm:%s42] %v1049
      %v1051 = vld [vmem:[%s49 + $0x7c8] sm:%s42]
      %1052 = vst [vmem:[%s50 + $0x7d0] sm:%s42] %v1051
      %v1053 = vld [vmem:[%s49 + $0x7e8] sm:%s42]
      %1054 = vst [vmem:[%s50 + $0x7d4] sm:%s42] %v1053
      %v1055 = vld [vmem:[%s49 + $0x7cc] sm:%s42]
      %1056 = vst [vmem:[%s50 + $0x7d8] sm:%s42] %v1055
      %v1057 = vld [vmem:[%s49 + $0x7ec] sm:%s42]
      %1058 = vst [vmem:[%s50 + $0x7dc] sm:%s42] %v1057
      %v1059 = vld [vmem:[%s49 + $0x7d0] sm:%s42]
      %1060 = vst [vmem:[%s50 + $0x7e0] sm:%s42] %v1059
      %v1061 = vld [vmem:[%s49 + $0x7f0] sm:%s42]
      %1062 = vst [vmem:[%s50 + $0x7e4] sm:%s42] %v1061
      %v1063 = vld [vmem:[%s49 + $0x7d4] sm:%s42]
      %1064 = vst [vmem:[%s50 + $0x7e8] sm:%s42] %v1063
      %v1065 = vld [vmem:[%s49 + $0x7f4] sm:%s42]
      %1066 = vst [vmem:[%s50 + $0x7ec] sm:%s42] %v1065
      %v1067 = vld [vmem:[%s49 + $0x7d8] sm:%s42]
      %1068 = vst [vmem:[%s50 + $0x7f0] sm:%s42] %v1067
      %v1069 = vld [vmem:[%s49 + $0x7f8] sm:%s42]
      %1070 = vst [vmem:[%s50 + $0x7f4] sm:%s42] %v1069
      %v1071 = vld [vmem:[%s49 + $0x7dc] sm:%s42]
      %1072 = vst [vmem:[%s50 + $0x7f8] sm:%s42] %v1071
      %v1073 = vld [vmem:[%s49 + $0x7fc] sm:%s42]
      %1074 = vst [vmem:[%s50 + $0x7fc] sm:%s42] %v1073
    $region50: #{_lambda_.1} parent=44 // loop_footer
      %s48 = sadd.s32 1, %s44
    $region51: #{_lambda_.1} parent=44 // loop_footer_branch
      %43 = sbr.rel target = $region47
    $region52: #{_lambda_.1} parent=44 // loop_exit
      _
  $region45: #{_lambda_.1} parent=0 // pred_fallthru
    _
  // Predicated region
  $region82: #{_lambda_.1} parent=0 // pred_check
    _
  $region83: #{_lambda_.1} parent=0 // pred_check_branch
    %4209 = sbr.rel (0) target = $region85
  $region84: #{_lambda_.1} parent=0 // pred_region
    %4210 = vsyncadd [#allocation3], 32768
  $region85: #{_lambda_.1} parent=0 // pred_fallthru
    _
  %v4211 = vld [vmem:[%s0] sm:$0xff]
  %v4212 = vld [vmem:[%s2] sm:$0xff]
  %v4213 = vld [vmem:[%s2 + $0x8] sm:$0xff]
  %v4214 = vld [vmem:[%s2 + $0x10] sm:$0xff]
  %v4215 = vld [vmem:[%s2 + $0x18] sm:$0xff]
  %v4216 = vld [vmem:[%s2 + $0x20] sm:$0xff]
  %v4217 = vld [vmem:[%s2 + $0x28] sm:$0xff]
  %v4218 = vld [vmem:[%s2 + $0x30] sm:$0xff]
  %v4219 = vld [vmem:[%s2 + $0x38] sm:$0xff]
  %v4220 = vld [vmem:[%s2 + $0x40] sm:$0xff]
  %v4221 = vld [vmem:[%s2 + $0x48] sm:$0xff]
  %v4222 = vld [vmem:[%s2 + $0x50] sm:$0xff]
  %v4223 = vld [vmem:[%s2 + $0x58] sm:$0xff]
  %v4224 = vld [vmem:[%s2 + $0x60] sm:$0xff]
  %v4225 = vld [vmem:[%s2 + $0x68] sm:$0xff]
  %v4226 = vld [vmem:[%s2 + $0x70] sm:$0xff]
  %v4227 = vld [vmem:[%s2 + $0x78] sm:$0xff]
  %v4228 = vld [vmem:[%s2 + $0x80] sm:$0xff]
  %v4229 = vld [vmem:[%s2 + $0x88] sm:$0xff]
  %v4230 = vld [vmem:[%s2 + $0x90] sm:$0xff]
  %v4231 = vld [vmem:[%s2 + $0x98] sm:$0xff]
  %v4232 = vld [vmem:[%s2 + $0xa0] sm:$0xff]
  %v4233 = vld [vmem:[%s2 + $0xa8] sm:$0xff]
  %v4234 = vld [vmem:[%s2 + $0xb0] sm:$0xff]
  %v4235 = vld [vmem:[%s2 + $0xb8] sm:$0xff]
  %v4236 = vld [vmem:[%s2 + $0xc0] sm:$0xff]
  %v4237 = vld [vmem:[%s2 + $0xc8] sm:$0xff]
  %v4238 = vld [vmem:[%s2 + $0xd0] sm:$0xff]
  %v4239 = vld [vmem:[%s2 + $0xd8] sm:$0xff]
  %v4240 = vld [vmem:[%s2 + $0xe0] sm:$0xff]
  %v4241 = vld [vmem:[%s2 + $0xe8] sm:$0xff]
  %v4242 = vld [vmem:[%s2 + $0xf0] sm:$0xff]
  %v4243 = vld [vmem:[%s2 + $0xf8] sm:$0xff]
  %v4244 = vld [vmem:[%s2 + $0x100] sm:$0xff]
  %v4245 = vld [vmem:[%s2 + $0x108] sm:$0xff]
  %v4246 = vld [vmem:[%s2 + $0x110] sm:$0xff]
  %v4247 = vld [vmem:[%s2 + $0x118] sm:$0xff]
  %v4248 = vld [vmem:[%s2 + $0x120] sm:$0xff]
  %v4249 = vld [vmem:[%s2 + $0x128] sm:$0xff]
  %v4250 = vld [vmem:[%s2 + $0x130] sm:$0xff]
  %v4251 = vld [vmem:[%s2 + $0x138] sm:$0xff]
  %v4252 = vld [vmem:[%s2 + $0x140] sm:$0xff]
  %v4253 = vld [vmem:[%s2 + $0x148] sm:$0xff]
  %v4254 = vld [vmem:[%s2 + $0x150] sm:$0xff]
  %v4255 = vld [vmem:[%s2 + $0x158] sm:$0xff]
  %v4256 = vld [vmem:[%s2 + $0x160] sm:$0xff]
  %v4257 = vld [vmem:[%s2 + $0x168] sm:$0xff]
  %v4258 = vld [vmem:[%s2 + $0x170] sm:$0xff]
  %v4259 = vld [vmem:[%s2 + $0x178] sm:$0xff]
  %v4260 = vld [vmem:[%s2 + $0x180] sm:$0xff]
  %v4261 = vld [vmem:[%s2 + $0x188] sm:$0xff]
  %v4262 = vld [vmem:[%s2 + $0x190] sm:$0xff]
  %v4263 = vld [vmem:[%s2 + $0x198] sm:$0xff]
  %v4264 = vld [vmem:[%s2 + $0x1a0] sm:$0xff]
  %v4265 = vld [vmem:[%s2 + $0x1a8] sm:$0xff]
  %v4266 = vld [vmem:[%s2 + $0x1b0] sm:$0xff]
  %v4267 = vld [vmem:[%s2 + $0x1b8] sm:$0xff]
  %v4268 = vld [vmem:[%s2 + $0x1c0] sm:$0xff]
  %v4269 = vld [vmem:[%s2 + $0x1c8] sm:$0xff]
  %v4270 = vld [vmem:[%s2 + $0x1d0] sm:$0xff]
  %v4271 = vld [vmem:[%s2 + $0x1d8] sm:$0xff]
  %v4272 = vld [vmem:[%s2 + $0x1e0] sm:$0xff]
  %v4273 = vld [vmem:[%s2 + $0x1e8] sm:$0xff]
  %v4274 = vld [vmem:[%s2 + $0x1f0] sm:$0xff]
  %v4275 = vld [vmem:[%s2 + $0x1f8] sm:$0xff]
  %v4276 = vld [vmem:[%s2 + $0x200] sm:$0xff]
  %v4277 = vld [vmem:[%s2 + $0x208] sm:$0xff]
  %v4278 = vld [vmem:[%s2 + $0x210] sm:$0xff]
  %v4279 = vld [vmem:[%s2 + $0x218] sm:$0xff]
  %v4280 = vld [vmem:[%s2 + $0x220] sm:$0xff]
  %v4281 = vld [vmem:[%s2 + $0x228] sm:$0xff]
  %v4282 = vld [vmem:[%s2 + $0x230] sm:$0xff]
  %v4283 = vld [vmem:[%s2 + $0x238] sm:$0xff]
  %v4284 = vld [vmem:[%s2 + $0x240] sm:$0xff]
  %v4285 = vld [vmem:[%s2 + $0x248] sm:$0xff]
  %v4286 = vld [vmem:[%s2 + $0x250] sm:$0xff]
  %v4287 = vld [vmem:[%s2 + $0x258] sm:$0xff]
  %v4288 = vld [vmem:[%s2 + $0x260] sm:$0xff]
  %v4289 = vld [vmem:[%s2 + $0x268] sm:$0xff]
  %v4290 = vld [vmem:[%s2 + $0x270] sm:$0xff]
  %v4291 = vld [vmem:[%s2 + $0x278] sm:$0xff]
  %v4292 = vld [vmem:[%s2 + $0x280] sm:$0xff]
  %v4293 = vld [vmem:[%s2 + $0x288] sm:$0xff]
  %v4294 = vld [vmem:[%s2 + $0x290] sm:$0xff]
  %v4295 = vld [vmem:[%s2 + $0x298] sm:$0xff]
  %v4296 = vld [vmem:[%s2 + $0x2a0] sm:$0xff]
  %v4297 = vld [vmem:[%s2 + $0x2a8] sm:$0xff]
  %v4298 = vld [vmem:[%s2 + $0x2b0] sm:$0xff]
  %v4299 = vld [vmem:[%s2 + $0x2b8] sm:$0xff]
  %v4300 = vld [vmem:[%s2 + $0x2c0] sm:$0xff]
  %v4301 = vld [vmem:[%s2 + $0x2c8] sm:$0xff]
  %v4302 = vld [vmem:[%s2 + $0x2d0] sm:$0xff]
  %v4303 = vld [vmem:[%s2 + $0x2d8] sm:$0xff]
  %v4304 = vld [vmem:[%s2 + $0x2e0] sm:$0xff]
  %v4305 = vld [vmem:[%s2 + $0x2e8] sm:$0xff]
  %v4306 = vld [vmem:[%s2 + $0x2f0] sm:$0xff]
  %v4307 = vld [vmem:[%s2 + $0x2f8] sm:$0xff]
  %v4308 = vld [vmem:[%s2 + $0x300] sm:$0xff]
  %v4309 = vld [vmem:[%s2 + $0x308] sm:$0xff]
  %v4310 = vld [vmem:[%s2 + $0x310] sm:$0xff]
  %v4311 = vld [vmem:[%s2 + $0x318] sm:$0xff]
  %v4312 = vld [vmem:[%s2 + $0x320] sm:$0xff]
  %v4313 = vld [vmem:[%s2 + $0x328] sm:$0xff]
  %v4314 = vld [vmem:[%s2 + $0x330] sm:$0xff]
  %v4315 = vld [vmem:[%s2 + $0x338] sm:$0xff]
  %v4316 = vld [vmem:[%s2 + $0x340] sm:$0xff]
  %v4317 = vld [vmem:[%s2 + $0x348] sm:$0xff]
  %v4318 = vld [vmem:[%s2 + $0x350] sm:$0xff]
  %v4319 = vld [vmem:[%s2 + $0x358] sm:$0xff]
  %v4320 = vld [vmem:[%s2 + $0x360] sm:$0xff]
  %v4321 = vld [vmem:[%s2 + $0x368] sm:$0xff]
  %v4322 = vld [vmem:[%s2 + $0x370] sm:$0xff]
  %v4323 = vld [vmem:[%s2 + $0x378] sm:$0xff]
  %v4324 = vld [vmem:[%s2 + $0x380] sm:$0xff]
  %v4325 = vld [vmem:[%s2 + $0x388] sm:$0xff]
  %v4326 = vld [vmem:[%s2 + $0x390] sm:$0xff]
  %v4327 = vld [vmem:[%s2 + $0x398] sm:$0xff]
  %v4328 = vld [vmem:[%s2 + $0x3a0] sm:$0xff]
  %v4329 = vld [vmem:[%s2 + $0x3a8] sm:$0xff]
  %v4330 = vld [vmem:[%s2 + $0x3b0] sm:$0xff]
  %v4331 = vld [vmem:[%s2 + $0x3b8] sm:$0xff]
  %v4332 = vld [vmem:[%s2 + $0x3c0] sm:$0xff]
  %v4333 = vld [vmem:[%s2 + $0x3c8] sm:$0xff]
  %v4334 = vld [vmem:[%s2 + $0x3d0] sm:$0xff]
  %v4335 = vld [vmem:[%s2 + $0x3d8] sm:$0xff]
  %v4336 = vld [vmem:[%s2 + $0x3e0] sm:$0xff]
  %v4337 = vld [vmem:[%s2 + $0x3e8] sm:$0xff]
  %v4338 = vld [vmem:[%s2 + $0x3f0] sm:$0xff]
  %v4339 = vld [vmem:[%s2 + $0x3f8] sm:$0xff]
  %v4340 = vld [vmem:[%s2 + $0x400] sm:$0xff]
  %v4341 = vld [vmem:[%s2 + $0x408] sm:$0xff]
  %v4342 = vld [vmem:[%s2 + $0x410] sm:$0xff]
  %v4343 = vld [vmem:[%s2 + $0x418] sm:$0xff]
  %v4344 = vld [vmem:[%s2 + $0x420] sm:$0xff]
  %v4345 = vld [vmem:[%s2 + $0x428] sm:$0xff]
  %v4346 = vld [vmem:[%s2 + $0x430] sm:$0xff]
  %v4347 = vld [vmem:[%s2 + $0x438] sm:$0xff]
  %v4348 = vld [vmem:[%s2 + $0x440] sm:$0xff]
  %v4349 = vld [vmem:[%s2 + $0x448] sm:$0xff]
  %v4350 = vld [vmem:[%s2 + $0x450] sm:$0xff]
  %v4351 = vld [vmem:[%s2 + $0x458] sm:$0xff]
  %v4352 = vld [vmem:[%s2 + $0x460] sm:$0xff]
  %v4353 = vld [vmem:[%s2 + $0x468] sm:$0xff]
  %v4354 = vld [vmem:[%s2 + $0x470] sm:$0xff]
  %v4355 = vld [vmem:[%s2 + $0x478] sm:$0xff]
  %v4356 = vld [vmem:[%s2 + $0x480] sm:$0xff]
  %v4357 = vld [vmem:[%s2 + $0x488] sm:$0xff]
  %v4358 = vld [vmem:[%s2 + $0x490] sm:$0xff]
  %v4359 = vld [vmem:[%s2 + $0x498] sm:$0xff]
  %v4360 = vld [vmem:[%s2 + $0x4a0] sm:$0xff]
  %v4361 = vld [vmem:[%s2 + $0x4a8] sm:$0xff]
  %v4362 = vld [vmem:[%s2 + $0x4b0] sm:$0xff]
  %v4363 = vld [vmem:[%s2 + $0x4b8] sm:$0xff]
  %v4364 = vld [vmem:[%s2 + $0x4c0] sm:$0xff]
  %v4365 = vld [vmem:[%s2 + $0x4c8] sm:$0xff]
  %v4366 = vld [vmem:[%s2 + $0x4d0] sm:$0xff]
  %v4367 = vld [vmem:[%s2 + $0x4d8] sm:$0xff]
  %v4368 = vld [vmem:[%s2 + $0x4e0] sm:$0xff]
  %v4369 = vld [vmem:[%s2 + $0x4e8] sm:$0xff]
  %v4370 = vld [vmem:[%s2 + $0x4f0] sm:$0xff]
  %v4371 = vld [vmem:[%s2 + $0x4f8] sm:$0xff]
  %v4372 = vld [vmem:[%s2 + $0x500] sm:$0xff]
  %v4373 = vld [vmem:[%s2 + $0x508] sm:$0xff]
  %v4374 = vld [vmem:[%s2 + $0x510] sm:$0xff]
  %v4375 = vld [vmem:[%s2 + $0x518] sm:$0xff]
  %v4376 = vld [vmem:[%s2 + $0x520] sm:$0xff]
  %v4377 = vld [vmem:[%s2 + $0x528] sm:$0xff]
  %v4378 = vld [vmem:[%s2 + $0x530] sm:$0xff]
  %v4379 = vld [vmem:[%s2 + $0x538] sm:$0xff]
  %v4380 = vld [vmem:[%s2 + $0x540] sm:$0xff]
  %v4381 = vld [vmem:[%s2 + $0x548] sm:$0xff]
  %v4382 = vld [vmem:[%s2 + $0x550] sm:$0xff]
  %v4383 = vld [vmem:[%s2 + $0x558] sm:$0xff]
  %v4384 = vld [vmem:[%s2 + $0x560] sm:$0xff]
  %v4385 = vld [vmem:[%s2 + $0x568] sm:$0xff]
  %v4386 = vld [vmem:[%s2 + $0x570] sm:$0xff]
  %v4387 = vld [vmem:[%s2 + $0x578] sm:$0xff]
  %v4388 = vld [vmem:[%s2 + $0x580] sm:$0xff]
  %v4389 = vld [vmem:[%s2 + $0x588] sm:$0xff]
  %v4390 = vld [vmem:[%s2 + $0x590] sm:$0xff]
  %v4391 = vld [vmem:[%s2 + $0x598] sm:$0xff]
  %v4392 = vld [vmem:[%s2 + $0x5a0] sm:$0xff]
  %v4393 = vld [vmem:[%s2 + $0x5a8] sm:$0xff]
  %v4394 = vld [vmem:[%s2 + $0x5b0] sm:$0xff]
  %v4395 = vld [vmem:[%s2 + $0x5b8] sm:$0xff]
  %v4396 = vld [vmem:[%s2 + $0x5c0] sm:$0xff]
  %v4397 = vld [vmem:[%s2 + $0x5c8] sm:$0xff]
  %v4398 = vld [vmem:[%s2 + $0x5d0] sm:$0xff]
  %v4399 = vld [vmem:[%s2 + $0x5d8] sm:$0xff]
  %v4400 = vld [vmem:[%s2 + $0x5e0] sm:$0xff]
  %v4401 = vld [vmem:[%s2 + $0x5e8] sm:$0xff]
  %v4402 = vld [vmem:[%s2 + $0x5f0] sm:$0xff]
  %v4403 = vld [vmem:[%s2 + $0x5f8] sm:$0xff]
  %v4404 = vld [vmem:[%s2 + $0x600] sm:$0xff]
  %v4405 = vld [vmem:[%s2 + $0x608] sm:$0xff]
  %v4406 = vld [vmem:[%s2 + $0x610] sm:$0xff]
  %v4407 = vld [vmem:[%s2 + $0x618] sm:$0xff]
  %v4408 = vld [vmem:[%s2 + $0x620] sm:$0xff]
  %v4409 = vld [vmem:[%s2 + $0x628] sm:$0xff]
  %v4410 = vld [vmem:[%s2 + $0x630] sm:$0xff]
  %v4411 = vld [vmem:[%s2 + $0x638] sm:$0xff]
  %v4412 = vld [vmem:[%s2 + $0x640] sm:$0xff]
  %v4413 = vld [vmem:[%s2 + $0x648] sm:$0xff]
  %v4414 = vld [vmem:[%s2 + $0x650] sm:$0xff]
  %v4415 = vld [vmem:[%s2 + $0x658] sm:$0xff]
  %v4416 = vld [vmem:[%s2 + $0x660] sm:$0xff]
  %v4417 = vld [vmem:[%s2 + $0x668] sm:$0xff]
  %v4418 = vld [vmem:[%s2 + $0x670] sm:$0xff]
  %v4419 = vld [vmem:[%s2 + $0x678] sm:$0xff]
  %v4420 = vld [vmem:[%s2 + $0x680] sm:$0xff]
  %v4421 = vld [vmem:[%s2 + $0x688] sm:$0xff]
  %v4422 = vld [vmem:[%s2 + $0x690] sm:$0xff]
  %v4423 = vld [vmem:[%s2 + $0x698] sm:$0xff]
  %v4424 = vld [vmem:[%s2 + $0x6a0] sm:$0xff]
  %v4425 = vld [vmem:[%s2 + $0x6a8] sm:$0xff]
  %v4426 = vld [vmem:[%s2 + $0x6b0] sm:$0xff]
  %v4427 = vld [vmem:[%s2 + $0x6b8] sm:$0xff]
  %v4428 = vld [vmem:[%s2 + $0x6c0] sm:$0xff]
  %v4429 = vld [vmem:[%s2 + $0x6c8] sm:$0xff]
  %v4430 = vld [vmem:[%s2 + $0x6d0] sm:$0xff]
  %v4431 = vld [vmem:[%s2 + $0x6d8] sm:$0xff]
  %v4432 = vld [vmem:[%s2 + $0x6e0] sm:$0xff]
  %v4433 = vld [vmem:[%s2 + $0x6e8] sm:$0xff]
  %v4434 = vld [vmem:[%s2 + $0x6f0] sm:$0xff]
  %v4435 = vld [vmem:[%s2 + $0x6f8] sm:$0xff]
  %v4436 = vld [vmem:[%s2 + $0x700] sm:$0xff]
  %v4437 = vld [vmem:[%s2 + $0x708] sm:$0xff]
  %v4438 = vld [vmem:[%s2 + $0x710] sm:$0xff]
  %v4439 = vld [vmem:[%s2 + $0x718] sm:$0xff]
  %v4440 = vld [vmem:[%s2 + $0x720] sm:$0xff]
  %v4441 = vld [vmem:[%s2 + $0x728] sm:$0xff]
  %v4442 = vld [vmem:[%s2 + $0x730] sm:$0xff]
  %v4443 = vld [vmem:[%s2 + $0x738] sm:$0xff]
  %v4444 = vld [vmem:[%s2 + $0x740] sm:$0xff]
  %v4445 = vld [vmem:[%s2 + $0x748] sm:$0xff]
  %v4446 = vld [vmem:[%s2 + $0x750] sm:$0xff]
  %v4447 = vld [vmem:[%s2 + $0x758] sm:$0xff]
  %v4448 = vld [vmem:[%s2 + $0x760] sm:$0xff]
  %v4449 = vld [vmem:[%s2 + $0x768] sm:$0xff]
  %v4450 = vld [vmem:[%s2 + $0x770] sm:$0xff]
  %v4451 = vld [vmem:[%s2 + $0x778] sm:$0xff]
  %v4452 = vld [vmem:[%s2 + $0x780] sm:$0xff]
  %v4453 = vld [vmem:[%s2 + $0x788] sm:$0xff]
  %v4454 = vld [vmem:[%s2 + $0x790] sm:$0xff]
  %v4455 = vld [vmem:[%s2 + $0x798] sm:$0xff]
  %v4456 = vld [vmem:[%s2 + $0x7a0] sm:$0xff]
  %v4457 = vld [vmem:[%s2 + $0x7a8] sm:$0xff]
  %v4458 = vld [vmem:[%s2 + $0x7b0] sm:$0xff]
  %v4459 = vld [vmem:[%s2 + $0x7b8] sm:$0xff]
  %v4460 = vld [vmem:[%s2 + $0x7c0] sm:$0xff]
  %v4461 = vld [vmem:[%s2 + $0x7c8] sm:$0xff]
  %v4462 = vld [vmem:[%s2 + $0x7d0] sm:$0xff]
  %v4463 = vld [vmem:[%s2 + $0x7d8] sm:$0xff]
  %v4464 = vld [vmem:[%s2 + $0x7e0] sm:$0xff]
  %v4465 = vld [vmem:[%s2 + $0x7e8] sm:$0xff]
  %v4466 = vld [vmem:[%s2 + $0x7f0] sm:$0xff]
  %v4467 = vld [vmem:[%s2 + $0x7f8] sm:$0xff]
  %v4468 = vld [vmem:[%s3] sm:$0xf]
  %v4470 = vlaneseq
  %v4471 = vshrl.u32 %v4470, 7
  %v4472 = vsub.s32 0, %v4471
  %v4473 = vrot.slane %v4468, %v4472
  %v4474 = vlaneseq
  %v4475 = vshrl.u32 %v4474, 7
  %v4476 = vsub.s32 1, %v4475
  %v4477 = vrot.slane %v4468, %v4476
  %v4478 = vlaneseq
  %v4479 = vshrl.u32 %v4478, 7
  %v4480 = vsub.s32 2, %v4479
  %v4481 = vrot.slane %v4468, %v4480
  %v4482 = vlaneseq
  %v4483 = vshrl.u32 %v4482, 7
  %v4484 = vsub.s32 3, %v4483
  %v4485 = vrot.slane %v4468, %v4484
  %v4491 = vcombine.high %v4211, %v4211
  %v4493 = vunpack.c.l.s4 1966171168
  %v4494 = vunpack.c.0.s8 %v4493
  %v4495 = vlaneseq
  %v4496 = vshrl.u32 %v4495, 7
  %v4497 = vsub.s32 %v4494, %v4496
  %v4498 = vrot.slane %v4211, %v4497
  %v4500 = vunpack.c.l.s4 1966171168
  %v4501 = vunpack.c.0.s8 %v4500
  %v4502 = vlaneseq
  %v4503 = vshrl.u32 %v4502, 7
  %v4504 = vsub.s32 %v4501, %v4503
  %v4505 = vrot.slane %v4491, %v4504
  %v4506 = vcombine.high %v4498, %v4498
  %v4507 = vcombine.high %v4505, %v4505
  %v4509 = vunpack.c.l.s4 1966171168
  %v4510 = vunpack.c.0.s8 %v4509
  %v4511 = vlaneseq
  %v4512 = vshrl.u32 %v4511, 7
  %v4513 = vsub.s32 %v4510, %v4512
  %v4514 = vrot.slane %v4498, %v4513
  %v4516 = vunpack.c.l.s4 1966171168
  %v4517 = vunpack.c.0.s8 %v4516
  %v4518 = vlaneseq
  %v4519 = vshrl.u32 %v4518, 7
  %v4520 = vsub.s32 %v4517, %v4519
  %v4521 = vrot.slane %v4505, %v4520
  %v4523 = vunpack.c.l.s4 1966171168
  %v4524 = vunpack.c.0.s8 %v4523
  %v4525 = vlaneseq
  %v4526 = vshrl.u32 %v4525, 7
  %v4527 = vsub.s32 %v4524, %v4526
  %v4528 = vrot.slane %v4506, %v4527
  %v4530 = vunpack.c.l.s4 1966171168
  %v4531 = vunpack.c.0.s8 %v4530
  %v4532 = vlaneseq
  %v4533 = vshrl.u32 %v4532, 7
  %v4534 = vsub.s32 %v4531, %v4533
  %v4535 = vrot.slane %v4507, %v4534
  %v4536 = vcombine.high %v4514, %v4514
  %v4537 = vcombine.high %v4521, %v4521
  %v4538 = vcombine.high %v4528, %v4528
  %v4539 = vcombine.high %v4535, %v4535
  %v4804 = vunpack.c.l.b16 %v4212
  %v4805 = vunpack.c.h.b16 %v4212
  %v4806 = vunpack.c.l.b16 %v4213
  %v4807 = vunpack.c.h.b16 %v4213
  %v4808 = vunpack.c.l.b16 %v4214
  %v4809 = vunpack.c.h.b16 %v4214
  %v4810 = vunpack.c.l.b16 %v4215
  %v4811 = vunpack.c.h.b16 %v4215
  %v4812 = vunpack.c.l.b16 %v4216
  %v4813 = vunpack.c.h.b16 %v4216
  %v4814 = vunpack.c.l.b16 %v4217
  %v4815 = vunpack.c.h.b16 %v4217
  %v4816 = vunpack.c.l.b16 %v4218
  %v4817 = vunpack.c.h.b16 %v4218
  %v4818 = vunpack.c.l.b16 %v4219
  %v4819 = vunpack.c.h.b16 %v4219
  %v4820 = vunpack.c.l.b16 %v4220
  %v4821 = vunpack.c.h.b16 %v4220
  %v4822 = vunpack.c.l.b16 %v4221
  %v4823 = vunpack.c.h.b16 %v4221
  %v4824 = vunpack.c.l.b16 %v4222
  %v4825 = vunpack.c.h.b16 %v4222
  %v4826 = vunpack.c.l.b16 %v4223
  %v4827 = vunpack.c.h.b16 %v4223
  %v4828 = vunpack.c.l.b16 %v4224
  %v4829 = vunpack.c.h.b16 %v4224
  %v4830 = vunpack.c.l.b16 %v4225
  %v4831 = vunpack.c.h.b16 %v4225
  %v4832 = vunpack.c.l.b16 %v4226
  %v4833 = vunpack.c.h.b16 %v4226
  %v4834 = vunpack.c.l.b16 %v4227
  %v4835 = vunpack.c.h.b16 %v4227
  %v4836 = vunpack.c.l.b16 %v4228
  %v4837 = vunpack.c.h.b16 %v4228
  %v4838 = vunpack.c.l.b16 %v4229
  %v4839 = vunpack.c.h.b16 %v4229
  %v4840 = vunpack.c.l.b16 %v4230
  %v4841 = vunpack.c.h.b16 %v4230
  %v4842 = vunpack.c.l.b16 %v4231
  %v4843 = vunpack.c.h.b16 %v4231
  %v4844 = vunpack.c.l.b16 %v4232
  %v4845 = vunpack.c.h.b16 %v4232
  %v4846 = vunpack.c.l.b16 %v4233
  %v4847 = vunpack.c.h.b16 %v4233
  %v4848 = vunpack.c.l.b16 %v4234
  %v4849 = vunpack.c.h.b16 %v4234
  %v4850 = vunpack.c.l.b16 %v4235
  %v4851 = vunpack.c.h.b16 %v4235
  %v4852 = vunpack.c.l.b16 %v4236
  %v4853 = vunpack.c.h.b16 %v4236
  %v4854 = vunpack.c.l.b16 %v4237
  %v4855 = vunpack.c.h.b16 %v4237
  %v4856 = vunpack.c.l.b16 %v4238
  %v4857 = vunpack.c.h.b16 %v4238
  %v4858 = vunpack.c.l.b16 %v4239
  %v4859 = vunpack.c.h.b16 %v4239
  %v4860 = vunpack.c.l.b16 %v4240
  %v4861 = vunpack.c.h.b16 %v4240
  %v4862 = vunpack.c.l.b16 %v4241
  %v4863 = vunpack.c.h.b16 %v4241
  %v4864 = vunpack.c.l.b16 %v4242
  %v4865 = vunpack.c.h.b16 %v4242
  %v4866 = vunpack.c.l.b16 %v4243
  %v4867 = vunpack.c.h.b16 %v4243
  %v4868 = vunpack.c.l.b16 %v4244
  %v4869 = vunpack.c.h.b16 %v4244
  %v4870 = vunpack.c.l.b16 %v4245
  %v4871 = vunpack.c.h.b16 %v4245
  %v4872 = vunpack.c.l.b16 %v4246
  %v4873 = vunpack.c.h.b16 %v4246
  %v4874 = vunpack.c.l.b16 %v4247
  %v4875 = vunpack.c.h.b16 %v4247
  %v4876 = vunpack.c.l.b16 %v4248
  %v4877 = vunpack.c.h.b16 %v4248
  %v4878 = vunpack.c.l.b16 %v4249
  %v4879 = vunpack.c.h.b16 %v4249
  %v4880 = vunpack.c.l.b16 %v4250
  %v4881 = vunpack.c.h.b16 %v4250
  %v4882 = vunpack.c.l.b16 %v4251
  %v4883 = vunpack.c.h.b16 %v4251
  %v4884 = vunpack.c.l.b16 %v4252
  %v4885 = vunpack.c.h.b16 %v4252
  %v4886 = vunpack.c.l.b16 %v4253
  %v4887 = vunpack.c.h.b16 %v4253
  %v4888 = vunpack.c.l.b16 %v4254
  %v4889 = vunpack.c.h.b16 %v4254
  %v4890 = vunpack.c.l.b16 %v4255
  %v4891 = vunpack.c.h.b16 %v4255
  %v4892 = vunpack.c.l.b16 %v4256
  %v4893 = vunpack.c.h.b16 %v4256
  %v4894 = vunpack.c.l.b16 %v4257
  %v4895 = vunpack.c.h.b16 %v4257
  %v4896 = vunpack.c.l.b16 %v4258
  %v4897 = vunpack.c.h.b16 %v4258
  %v4898 = vunpack.c.l.b16 %v4259
  %v4899 = vunpack.c.h.b16 %v4259
  %v4900 = vunpack.c.l.b16 %v4260
  %v4901 = vunpack.c.h.b16 %v4260
  %v4902 = vunpack.c.l.b16 %v4261
  %v4903 = vunpack.c.h.b16 %v4261
  %v4904 = vunpack.c.l.b16 %v4262
  %v4905 = vunpack.c.h.b16 %v4262
  %v4906 = vunpack.c.l.b16 %v4263
  %v4907 = vunpack.c.h.b16 %v4263
  %v4908 = vunpack.c.l.b16 %v4264
  %v4909 = vunpack.c.h.b16 %v4264
  %v4910 = vunpack.c.l.b16 %v4265
  %v4911 = vunpack.c.h.b16 %v4265
  %v4912 = vunpack.c.l.b16 %v4266
  %v4913 = vunpack.c.h.b16 %v4266
  %v4914 = vunpack.c.l.b16 %v4267
  %v4915 = vunpack.c.h.b16 %v4267
  %v4916 = vunpack.c.l.b16 %v4268
  %v4917 = vunpack.c.h.b16 %v4268
  %v4918 = vunpack.c.l.b16 %v4269
  %v4919 = vunpack.c.h.b16 %v4269
  %v4920 = vunpack.c.l.b16 %v4270
  %v4921 = vunpack.c.h.b16 %v4270
  %v4922 = vunpack.c.l.b16 %v4271
  %v4923 = vunpack.c.h.b16 %v4271
  %v4924 = vunpack.c.l.b16 %v4272
  %v4925 = vunpack.c.h.b16 %v4272
  %v4926 = vunpack.c.l.b16 %v4273
  %v4927 = vunpack.c.h.b16 %v4273
  %v4928 = vunpack.c.l.b16 %v4274
  %v4929 = vunpack.c.h.b16 %v4274
  %v4930 = vunpack.c.l.b16 %v4275
  %v4931 = vunpack.c.h.b16 %v4275
  %v4932 = vunpack.c.l.b16 %v4276
  %v4933 = vunpack.c.h.b16 %v4276
  %v4934 = vunpack.c.l.b16 %v4277
  %v4935 = vunpack.c.h.b16 %v4277
  %v4936 = vunpack.c.l.b16 %v4278
  %v4937 = vunpack.c.h.b16 %v4278
  %v4938 = vunpack.c.l.b16 %v4279
  %v4939 = vunpack.c.h.b16 %v4279
  %v4940 = vunpack.c.l.b16 %v4280
  %v4941 = vunpack.c.h.b16 %v4280
  %v4942 = vunpack.c.l.b16 %v4281
  %v4943 = vunpack.c.h.b16 %v4281
  %v4944 = vunpack.c.l.b16 %v4282
  %v4945 = vunpack.c.h.b16 %v4282
  %v4946 = vunpack.c.l.b16 %v4283
  %v4947 = vunpack.c.h.b16 %v4283
  %v4948 = vunpack.c.l.b16 %v4284
  %v4949 = vunpack.c.h.b16 %v4284
  %v4950 = vunpack.c.l.b16 %v4285
  %v4951 = vunpack.c.h.b16 %v4285
  %v4952 = vunpack.c.l.b16 %v4286
  %v4953 = vunpack.c.h.b16 %v4286
  %v4954 = vunpack.c.l.b16 %v4287
  %v4955 = vunpack.c.h.b16 %v4287
  %v4956 = vunpack.c.l.b16 %v4288
  %v4957 = vunpack.c.h.b16 %v4288
  %v4958 = vunpack.c.l.b16 %v4289
  %v4959 = vunpack.c.h.b16 %v4289
  %v4960 = vunpack.c.l.b16 %v4290
  %v4961 = vunpack.c.h.b16 %v4290
  %v4962 = vunpack.c.l.b16 %v4291
  %v4963 = vunpack.c.h.b16 %v4291
  %v4964 = vunpack.c.l.b16 %v4292
  %v4965 = vunpack.c.h.b16 %v4292
  %v4966 = vunpack.c.l.b16 %v4293
  %v4967 = vunpack.c.h.b16 %v4293
  %v4968 = vunpack.c.l.b16 %v4294
  %v4969 = vunpack.c.h.b16 %v4294
  %v4970 = vunpack.c.l.b16 %v4295
  %v4971 = vunpack.c.h.b16 %v4295
  %v4972 = vunpack.c.l.b16 %v4296
  %v4973 = vunpack.c.h.b16 %v4296
  %v4974 = vunpack.c.l.b16 %v4297
  %v4975 = vunpack.c.h.b16 %v4297
  %v4976 = vunpack.c.l.b16 %v4298
  %v4977 = vunpack.c.h.b16 %v4298
  %v4978 = vunpack.c.l.b16 %v4299
  %v4979 = vunpack.c.h.b16 %v4299
  %v4980 = vunpack.c.l.b16 %v4300
  %v4981 = vunpack.c.h.b16 %v4300
  %v4982 = vunpack.c.l.b16 %v4301
  %v4983 = vunpack.c.h.b16 %v4301
  %v4984 = vunpack.c.l.b16 %v4302
  %v4985 = vunpack.c.h.b16 %v4302
  %v4986 = vunpack.c.l.b16 %v4303
  %v4987 = vunpack.c.h.b16 %v4303
  %v4988 = vunpack.c.l.b16 %v4304
  %v4989 = vunpack.c.h.b16 %v4304
  %v4990 = vunpack.c.l.b16 %v4305
  %v4991 = vunpack.c.h.b16 %v4305
  %v4992 = vunpack.c.l.b16 %v4306
  %v4993 = vunpack.c.h.b16 %v4306
  %v4994 = vunpack.c.l.b16 %v4307
  %v4995 = vunpack.c.h.b16 %v4307
  %v4996 = vunpack.c.l.b16 %v4308
  %v4997 = vunpack.c.h.b16 %v4308
  %v4998 = vunpack.c.l.b16 %v4309
  %v4999 = vunpack.c.h.b16 %v4309
  %v5000 = vunpack.c.l.b16 %v4310
  %v5001 = vunpack.c.h.b16 %v4310
  %v5002 = vunpack.c.l.b16 %v4311
  %v5003 = vunpack.c.h.b16 %v4311
  %v5004 = vunpack.c.l.b16 %v4312
  %v5005 = vunpack.c.h.b16 %v4312
  %v5006 = vunpack.c.l.b16 %v4313
  %v5007 = vunpack.c.h.b16 %v4313
  %v5008 = vunpack.c.l.b16 %v4314
  %v5009 = vunpack.c.h.b16 %v4314
  %v5010 = vunpack.c.l.b16 %v4315
  %v5011 = vunpack.c.h.b16 %v4315
  %v5012 = vunpack.c.l.b16 %v4316
  %v5013 = vunpack.c.h.b16 %v4316
  %v5014 = vunpack.c.l.b16 %v4317
  %v5015 = vunpack.c.h.b16 %v4317
  %v5016 = vunpack.c.l.b16 %v4318
  %v5017 = vunpack.c.h.b16 %v4318
  %v5018 = vunpack.c.l.b16 %v4319
  %v5019 = vunpack.c.h.b16 %v4319
  %v5020 = vunpack.c.l.b16 %v4320
  %v5021 = vunpack.c.h.b16 %v4320
  %v5022 = vunpack.c.l.b16 %v4321
  %v5023 = vunpack.c.h.b16 %v4321
  %v5024 = vunpack.c.l.b16 %v4322
  %v5025 = vunpack.c.h.b16 %v4322
  %v5026 = vunpack.c.l.b16 %v4323
  %v5027 = vunpack.c.h.b16 %v4323
  %v5028 = vunpack.c.l.b16 %v4324
  %v5029 = vunpack.c.h.b16 %v4324
  %v5030 = vunpack.c.l.b16 %v4325
  %v5031 = vunpack.c.h.b16 %v4325
  %v5032 = vunpack.c.l.b16 %v4326
  %v5033 = vunpack.c.h.b16 %v4326
  %v5034 = vunpack.c.l.b16 %v4327
  %v5035 = vunpack.c.h.b16 %v4327
  %v5036 = vunpack.c.l.b16 %v4328
  %v5037 = vunpack.c.h.b16 %v4328
  %v5038 = vunpack.c.l.b16 %v4329
  %v5039 = vunpack.c.h.b16 %v4329
  %v5040 = vunpack.c.l.b16 %v4330
  %v5041 = vunpack.c.h.b16 %v4330
  %v5042 = vunpack.c.l.b16 %v4331
  %v5043 = vunpack.c.h.b16 %v4331
  %v5044 = vunpack.c.l.b16 %v4332
  %v5045 = vunpack.c.h.b16 %v4332
  %v5046 = vunpack.c.l.b16 %v4333
  %v5047 = vunpack.c.h.b16 %v4333
  %v5048 = vunpack.c.l.b16 %v4334
  %v5049 = vunpack.c.h.b16 %v4334
  %v5050 = vunpack.c.l.b16 %v4335
  %v5051 = vunpack.c.h.b16 %v4335
  %v5052 = vunpack.c.l.b16 %v4336
  %v5053 = vunpack.c.h.b16 %v4336
  %v5054 = vunpack.c.l.b16 %v4337
  %v5055 = vunpack.c.h.b16 %v4337
  %v5056 = vunpack.c.l.b16 %v4338
  %v5057 = vunpack.c.h.b16 %v4338
  %v5058 = vunpack.c.l.b16 %v4339
  %v5059 = vunpack.c.h.b16 %v4339
  %v5060 = vunpack.c.l.b16 %v4340
  %v5061 = vunpack.c.h.b16 %v4340
  %v5062 = vunpack.c.l.b16 %v4341
  %v5063 = vunpack.c.h.b16 %v4341
  %v5064 = vunpack.c.l.b16 %v4342
  %v5065 = vunpack.c.h.b16 %v4342
  %v5066 = vunpack.c.l.b16 %v4343
  %v5067 = vunpack.c.h.b16 %v4343
  %v5068 = vunpack.c.l.b16 %v4344
  %v5069 = vunpack.c.h.b16 %v4344
  %v5070 = vunpack.c.l.b16 %v4345
  %v5071 = vunpack.c.h.b16 %v4345
  %v5072 = vunpack.c.l.b16 %v4346
  %v5073 = vunpack.c.h.b16 %v4346
  %v5074 = vunpack.c.l.b16 %v4347
  %v5075 = vunpack.c.h.b16 %v4347
  %v5076 = vunpack.c.l.b16 %v4348
  %v5077 = vunpack.c.h.b16 %v4348
  %v5078 = vunpack.c.l.b16 %v4349
  %v5079 = vunpack.c.h.b16 %v4349
  %v5080 = vunpack.c.l.b16 %v4350
  %v5081 = vunpack.c.h.b16 %v4350
  %v5082 = vunpack.c.l.b16 %v4351
  %v5083 = vunpack.c.h.b16 %v4351
  %v5084 = vunpack.c.l.b16 %v4352
  %v5085 = vunpack.c.h.b16 %v4352
  %v5086 = vunpack.c.l.b16 %v4353
  %v5087 = vunpack.c.h.b16 %v4353
  %v5088 = vunpack.c.l.b16 %v4354
  %v5089 = vunpack.c.h.b16 %v4354
  %v5090 = vunpack.c.l.b16 %v4355
  %v5091 = vunpack.c.h.b16 %v4355
  %v5092 = vunpack.c.l.b16 %v4356
  %v5093 = vunpack.c.h.b16 %v4356
  %v5094 = vunpack.c.l.b16 %v4357
  %v5095 = vunpack.c.h.b16 %v4357
  %v5096 = vunpack.c.l.b16 %v4358
  %v5097 = vunpack.c.h.b16 %v4358
  %v5098 = vunpack.c.l.b16 %v4359
  %v5099 = vunpack.c.h.b16 %v4359
  %v5100 = vunpack.c.l.b16 %v4360
  %v5101 = vunpack.c.h.b16 %v4360
  %v5102 = vunpack.c.l.b16 %v4361
  %v5103 = vunpack.c.h.b16 %v4361
  %v5104 = vunpack.c.l.b16 %v4362
  %v5105 = vunpack.c.h.b16 %v4362
  %v5106 = vunpack.c.l.b16 %v4363
  %v5107 = vunpack.c.h.b16 %v4363
  %v5108 = vunpack.c.l.b16 %v4364
  %v5109 = vunpack.c.h.b16 %v4364
  %v5110 = vunpack.c.l.b16 %v4365
  %v5111 = vunpack.c.h.b16 %v4365
  %v5112 = vunpack.c.l.b16 %v4366
  %v5113 = vunpack.c.h.b16 %v4366
  %v5114 = vunpack.c.l.b16 %v4367
  %v5115 = vunpack.c.h.b16 %v4367
  %v5116 = vunpack.c.l.b16 %v4368
  %v5117 = vunpack.c.h.b16 %v4368
  %v5118 = vunpack.c.l.b16 %v4369
  %v5119 = vunpack.c.h.b16 %v4369
  %v5120 = vunpack.c.l.b16 %v4370
  %v5121 = vunpack.c.h.b16 %v4370
  %v5122 = vunpack.c.l.b16 %v4371
  %v5123 = vunpack.c.h.b16 %v4371
  %v5124 = vunpack.c.l.b16 %v4372
  %v5125 = vunpack.c.h.b16 %v4372
  %v5126 = vunpack.c.l.b16 %v4373
  %v5127 = vunpack.c.h.b16 %v4373
  %v5128 = vunpack.c.l.b16 %v4374
  %v5129 = vunpack.c.h.b16 %v4374
  %v5130 = vunpack.c.l.b16 %v4375
  %v5131 = vunpack.c.h.b16 %v4375
  %v5132 = vunpack.c.l.b16 %v4376
  %v5133 = vunpack.c.h.b16 %v4376
  %v5134 = vunpack.c.l.b16 %v4377
  %v5135 = vunpack.c.h.b16 %v4377
  %v5136 = vunpack.c.l.b16 %v4378
  %v5137 = vunpack.c.h.b16 %v4378
  %v5138 = vunpack.c.l.b16 %v4379
  %v5139 = vunpack.c.h.b16 %v4379
  %v5140 = vunpack.c.l.b16 %v4380
  %v5141 = vunpack.c.h.b16 %v4380
  %v5142 = vunpack.c.l.b16 %v4381
  %v5143 = vunpack.c.h.b16 %v4381
  %v5144 = vunpack.c.l.b16 %v4382
  %v5145 = vunpack.c.h.b16 %v4382
  %v5146 = vunpack.c.l.b16 %v4383
  %v5147 = vunpack.c.h.b16 %v4383
  %v5148 = vunpack.c.l.b16 %v4384
  %v5149 = vunpack.c.h.b16 %v4384
  %v5150 = vunpack.c.l.b16 %v4385
  %v5151 = vunpack.c.h.b16 %v4385
  %v5152 = vunpack.c.l.b16 %v4386
  %v5153 = vunpack.c.h.b16 %v4386
  %v5154 = vunpack.c.l.b16 %v4387
  %v5155 = vunpack.c.h.b16 %v4387
  %v5156 = vunpack.c.l.b16 %v4388
  %v5157 = vunpack.c.h.b16 %v4388
  %v5158 = vunpack.c.l.b16 %v4389
  %v5159 = vunpack.c.h.b16 %v4389
  %v5160 = vunpack.c.l.b16 %v4390
  %v5161 = vunpack.c.h.b16 %v4390
  %v5162 = vunpack.c.l.b16 %v4391
  %v5163 = vunpack.c.h.b16 %v4391
  %v5164 = vunpack.c.l.b16 %v4392
  %v5165 = vunpack.c.h.b16 %v4392
  %v5166 = vunpack.c.l.b16 %v4393
  %v5167 = vunpack.c.h.b16 %v4393
  %v5168 = vunpack.c.l.b16 %v4394
  %v5169 = vunpack.c.h.b16 %v4394
  %v5170 = vunpack.c.l.b16 %v4395
  %v5171 = vunpack.c.h.b16 %v4395
  %v5172 = vunpack.c.l.b16 %v4396
  %v5173 = vunpack.c.h.b16 %v4396
  %v5174 = vunpack.c.l.b16 %v4397
  %v5175 = vunpack.c.h.b16 %v4397
  %v5176 = vunpack.c.l.b16 %v4398
  %v5177 = vunpack.c.h.b16 %v4398
  %v5178 = vunpack.c.l.b16 %v4399
  %v5179 = vunpack.c.h.b16 %v4399
  %v5180 = vunpack.c.l.b16 %v4400
  %v5181 = vunpack.c.h.b16 %v4400
  %v5182 = vunpack.c.l.b16 %v4401
  %v5183 = vunpack.c.h.b16 %v4401
  %v5184 = vunpack.c.l.b16 %v4402
  %v5185 = vunpack.c.h.b16 %v4402
  %v5186 = vunpack.c.l.b16 %v4403
  %v5187 = vunpack.c.h.b16 %v4403
  %v5188 = vunpack.c.l.b16 %v4404
  %v5189 = vunpack.c.h.b16 %v4404
  %v5190 = vunpack.c.l.b16 %v4405
  %v5191 = vunpack.c.h.b16 %v4405
  %v5192 = vunpack.c.l.b16 %v4406
  %v5193 = vunpack.c.h.b16 %v4406
  %v5194 = vunpack.c.l.b16 %v4407
  %v5195 = vunpack.c.h.b16 %v4407
  %v5196 = vunpack.c.l.b16 %v4408
  %v5197 = vunpack.c.h.b16 %v4408
  %v5198 = vunpack.c.l.b16 %v4409
  %v5199 = vunpack.c.h.b16 %v4409
  %v5200 = vunpack.c.l.b16 %v4410
  %v5201 = vunpack.c.h.b16 %v4410
  %v5202 = vunpack.c.l.b16 %v4411
  %v5203 = vunpack.c.h.b16 %v4411
  %v5204 = vunpack.c.l.b16 %v4412
  %v5205 = vunpack.c.h.b16 %v4412
  %v5206 = vunpack.c.l.b16 %v4413
  %v5207 = vunpack.c.h.b16 %v4413
  %v5208 = vunpack.c.l.b16 %v4414
  %v5209 = vunpack.c.h.b16 %v4414
  %v5210 = vunpack.c.l.b16 %v4415
  %v5211 = vunpack.c.h.b16 %v4415
  %v5212 = vunpack.c.l.b16 %v4416
  %v5213 = vunpack.c.h.b16 %v4416
  %v5214 = vunpack.c.l.b16 %v4417
  %v5215 = vunpack.c.h.b16 %v4417
  %v5216 = vunpack.c.l.b16 %v4418
  %v5217 = vunpack.c.h.b16 %v4418
  %v5218 = vunpack.c.l.b16 %v4419
  %v5219 = vunpack.c.h.b16 %v4419
  %v5220 = vunpack.c.l.b16 %v4420
  %v5221 = vunpack.c.h.b16 %v4420
  %v5222 = vunpack.c.l.b16 %v4421
  %v5223 = vunpack.c.h.b16 %v4421
  %v5224 = vunpack.c.l.b16 %v4422
  %v5225 = vunpack.c.h.b16 %v4422
  %v5226 = vunpack.c.l.b16 %v4423
  %v5227 = vunpack.c.h.b16 %v4423
  %v5228 = vunpack.c.l.b16 %v4424
  %v5229 = vunpack.c.h.b16 %v4424
  %v5230 = vunpack.c.l.b16 %v4425
  %v5231 = vunpack.c.h.b16 %v4425
  %v5232 = vunpack.c.l.b16 %v4426
  %v5233 = vunpack.c.h.b16 %v4426
  %v5234 = vunpack.c.l.b16 %v4427
  %v5235 = vunpack.c.h.b16 %v4427
  %v5236 = vunpack.c.l.b16 %v4428
  %v5237 = vunpack.c.h.b16 %v4428
  %v5238 = vunpack.c.l.b16 %v4429
  %v5239 = vunpack.c.h.b16 %v4429
  %v5240 = vunpack.c.l.b16 %v4430
  %v5241 = vunpack.c.h.b16 %v4430
  %v5242 = vunpack.c.l.b16 %v4431
  %v5243 = vunpack.c.h.b16 %v4431
  %v5244 = vunpack.c.l.b16 %v4432
  %v5245 = vunpack.c.h.b16 %v4432
  %v5246 = vunpack.c.l.b16 %v4433
  %v5247 = vunpack.c.h.b16 %v4433
  %v5248 = vunpack.c.l.b16 %v4434
  %v5249 = vunpack.c.h.b16 %v4434
  %v5250 = vunpack.c.l.b16 %v4435
  %v5251 = vunpack.c.h.b16 %v4435
  %v5252 = vunpack.c.l.b16 %v4436
  %v5253 = vunpack.c.h.b16 %v4436
  %v5254 = vunpack.c.l.b16 %v4437
  %v5255 = vunpack.c.h.b16 %v4437
  %v5256 = vunpack.c.l.b16 %v4438
  %v5257 = vunpack.c.h.b16 %v4438
  %v5258 = vunpack.c.l.b16 %v4439
  %v5259 = vunpack.c.h.b16 %v4439
  %v5260 = vunpack.c.l.b16 %v4440
  %v5261 = vunpack.c.h.b16 %v4440
  %v5262 = vunpack.c.l.b16 %v4441
  %v5263 = vunpack.c.h.b16 %v4441
  %v5264 = vunpack.c.l.b16 %v4442
  %v5265 = vunpack.c.h.b16 %v4442
  %v5266 = vunpack.c.l.b16 %v4443
  %v5267 = vunpack.c.h.b16 %v4443
  %v5268 = vunpack.c.l.b16 %v4444
  %v5269 = vunpack.c.h.b16 %v4444
  %v5270 = vunpack.c.l.b16 %v4445
  %v5271 = vunpack.c.h.b16 %v4445
  %v5272 = vunpack.c.l.b16 %v4446
  %v5273 = vunpack.c.h.b16 %v4446
  %v5274 = vunpack.c.l.b16 %v4447
  %v5275 = vunpack.c.h.b16 %v4447
  %v5276 = vunpack.c.l.b16 %v4448
  %v5277 = vunpack.c.h.b16 %v4448
  %v5278 = vunpack.c.l.b16 %v4449
  %v5279 = vunpack.c.h.b16 %v4449
  %v5280 = vunpack.c.l.b16 %v4450
  %v5281 = vunpack.c.h.b16 %v4450
  %v5282 = vunpack.c.l.b16 %v4451
  %v5283 = vunpack.c.h.b16 %v4451
  %v5284 = vunpack.c.l.b16 %v4452
  %v5285 = vunpack.c.h.b16 %v4452
  %v5286 = vunpack.c.l.b16 %v4453
  %v5287 = vunpack.c.h.b16 %v4453
  %v5288 = vunpack.c.l.b16 %v4454
  %v5289 = vunpack.c.h.b16 %v4454
  %v5290 = vunpack.c.l.b16 %v4455
  %v5291 = vunpack.c.h.b16 %v4455
  %v5292 = vunpack.c.l.b16 %v4456
  %v5293 = vunpack.c.h.b16 %v4456
  %v5294 = vunpack.c.l.b16 %v4457
  %v5295 = vunpack.c.h.b16 %v4457
  %v5296 = vunpack.c.l.b16 %v4458
  %v5297 = vunpack.c.h.b16 %v4458
  %v5298 = vunpack.c.l.b16 %v4459
  %v5299 = vunpack.c.h.b16 %v4459
  %v5300 = vunpack.c.l.b16 %v4460
  %v5301 = vunpack.c.h.b16 %v4460
  %v5302 = vunpack.c.l.b16 %v4461
  %v5303 = vunpack.c.h.b16 %v4461
  %v5304 = vunpack.c.l.b16 %v4462
  %v5305 = vunpack.c.h.b16 %v4462
  %v5306 = vunpack.c.l.b16 %v4463
  %v5307 = vunpack.c.h.b16 %v4463
  %v5308 = vunpack.c.l.b16 %v4464
  %v5309 = vunpack.c.h.b16 %v4464
  %v5310 = vunpack.c.l.b16 %v4465
  %v5311 = vunpack.c.h.b16 %v4465
  %v5312 = vunpack.c.l.b16 %v4466
  %v5313 = vunpack.c.h.b16 %v4466
  %v5314 = vunpack.c.l.b16 %v4467
  %v5315 = vunpack.c.h.b16 %v4467
  %v5316 = vpack.c.b16 %v4808, %v4804
  %v5317 = vpack.c.b16 %v4809, %v4805
  %v5318 = vpack.c.b16 %v4810, %v4806
  %v5319 = vpack.c.b16 %v4811, %v4807
  %v5320 = vpack.c.b16 %v4816, %v4812
  %v5321 = vpack.c.b16 %v4817, %v4813
  %v5322 = vpack.c.b16 %v4818, %v4814
  %v5323 = vpack.c.b16 %v4819, %v4815
  %v5324 = vpack.c.b16 %v4824, %v4820
  %v5325 = vpack.c.b16 %v4825, %v4821
  %v5326 = vpack.c.b16 %v4826, %v4822
  %v5327 = vpack.c.b16 %v4827, %v4823
  %v5328 = vpack.c.b16 %v4832, %v4828
  %v5329 = vpack.c.b16 %v4833, %v4829
  %v5330 = vpack.c.b16 %v4834, %v4830
  %v5331 = vpack.c.b16 %v4835, %v4831
  %v5332 = vpack.c.b16 %v4840, %v4836
  %v5333 = vpack.c.b16 %v4841, %v4837
  %v5334 = vpack.c.b16 %v4842, %v4838
  %v5335 = vpack.c.b16 %v4843, %v4839
  %v5336 = vpack.c.b16 %v4848, %v4844
  %v5337 = vpack.c.b16 %v4849, %v4845
  %v5338 = vpack.c.b16 %v4850, %v4846
  %v5339 = vpack.c.b16 %v4851, %v4847
  %v5340 = vpack.c.b16 %v4856, %v4852
  %v5341 = vpack.c.b16 %v4857, %v4853
  %v5342 = vpack.c.b16 %v4858, %v4854
  %v5343 = vpack.c.b16 %v4859, %v4855
  %v5344 = vpack.c.b16 %v4864, %v4860
  %v5345 = vpack.c.b16 %v4865, %v4861
  %v5346 = vpack.c.b16 %v4866, %v4862
  %v5347 = vpack.c.b16 %v4867, %v4863
  %v5348 = vpack.c.b16 %v4872, %v4868
  %v5349 = vpack.c.b16 %v4873, %v4869
  %v5350 = vpack.c.b16 %v4874, %v4870
  %v5351 = vpack.c.b16 %v4875, %v4871
  %v5352 = vpack.c.b16 %v4880, %v4876
  %v5353 = vpack.c.b16 %v4881, %v4877
  %v5354 = vpack.c.b16 %v4882, %v4878
  %v5355 = vpack.c.b16 %v4883, %v4879
  %v5356 = vpack.c.b16 %v4888, %v4884
  %v5357 = vpack.c.b16 %v4889, %v4885
  %v5358 = vpack.c.b16 %v4890, %v4886
  %v5359 = vpack.c.b16 %v4891, %v4887
  %v5360 = vpack.c.b16 %v4896, %v4892
  %v5361 = vpack.c.b16 %v4897, %v4893
  %v5362 = vpack.c.b16 %v4898, %v4894
  %v5363 = vpack.c.b16 %v4899, %v4895
  %v5364 = vpack.c.b16 %v4904, %v4900
  %v5365 = vpack.c.b16 %v4905, %v4901
  %v5366 = vpack.c.b16 %v4906, %v4902
  %v5367 = vpack.c.b16 %v4907, %v4903
  %v5368 = vpack.c.b16 %v4912, %v4908
  %v5369 = vpack.c.b16 %v4913, %v4909
  %v5370 = vpack.c.b16 %v4914, %v4910
  %v5371 = vpack.c.b16 %v4915, %v4911
  %v5372 = vpack.c.b16 %v4920, %v4916
  %v5373 = vpack.c.b16 %v4921, %v4917
  %v5374 = vpack.c.b16 %v4922, %v4918
  %v5375 = vpack.c.b16 %v4923, %v4919
  %v5376 = vpack.c.b16 %v4928, %v4924
  %v5377 = vpack.c.b16 %v4929, %v4925
  %v5378 = vpack.c.b16 %v4930, %v4926
  %v5379 = vpack.c.b16 %v4931, %v4927
  %v5380 = vpack.c.b16 %v4936, %v4932
  %v5381 = vpack.c.b16 %v4937, %v4933
  %v5382 = vpack.c.b16 %v4938, %v4934
  %v5383 = vpack.c.b16 %v4939, %v4935
  %v5384 = vpack.c.b16 %v4944, %v4940
  %v5385 = vpack.c.b16 %v4945, %v4941
  %v5386 = vpack.c.b16 %v4946, %v4942
  %v5387 = vpack.c.b16 %v4947, %v4943
  %v5388 = vpack.c.b16 %v4952, %v4948
  %v5389 = vpack.c.b16 %v4953, %v4949
  %v5390 = vpack.c.b16 %v4954, %v4950
  %v5391 = vpack.c.b16 %v4955, %v4951
  %v5392 = vpack.c.b16 %v4960, %v4956
  %v5393 = vpack.c.b16 %v4961, %v4957
  %v5394 = vpack.c.b16 %v4962, %v4958
  %v5395 = vpack.c.b16 %v4963, %v4959
  %v5396 = vpack.c.b16 %v4968, %v4964
  %v5397 = vpack.c.b16 %v4969, %v4965
  %v5398 = vpack.c.b16 %v4970, %v4966
  %v5399 = vpack.c.b16 %v4971, %v4967
  %v5400 = vpack.c.b16 %v4976, %v4972
  %v5401 = vpack.c.b16 %v4977, %v4973
  %v5402 = vpack.c.b16 %v4978, %v4974
  %v5403 = vpack.c.b16 %v4979, %v4975
  %v5404 = vpack.c.b16 %v4984, %v4980
  %v5405 = vpack.c.b16 %v4985, %v4981
  %v5406 = vpack.c.b16 %v4986, %v4982
  %v5407 = vpack.c.b16 %v4987, %v4983
  %v5408 = vpack.c.b16 %v4992, %v4988
  %v5409 = vpack.c.b16 %v4993, %v4989
  %v5410 = vpack.c.b16 %v4994, %v4990
  %v5411 = vpack.c.b16 %v4995, %v4991
  %v5412 = vpack.c.b16 %v5000, %v4996
  %v5413 = vpack.c.b16 %v5001, %v4997
  %v5414 = vpack.c.b16 %v5002, %v4998
  %v5415 = vpack.c.b16 %v5003, %v4999
  %v5416 = vpack.c.b16 %v5008, %v5004
  %v5417 = vpack.c.b16 %v5009, %v5005
  %v5418 = vpack.c.b16 %v5010, %v5006
  %v5419 = vpack.c.b16 %v5011, %v5007
  %v5420 = vpack.c.b16 %v5016, %v5012
  %v5421 = vpack.c.b16 %v5017, %v5013
  %v5422 = vpack.c.b16 %v5018, %v5014
  %v5423 = vpack.c.b16 %v5019, %v5015
  %v5424 = vpack.c.b16 %v5024, %v5020
  %v5425 = vpack.c.b16 %v5025, %v5021
  %v5426 = vpack.c.b16 %v5026, %v5022
  %v5427 = vpack.c.b16 %v5027, %v5023
  %v5428 = vpack.c.b16 %v5032, %v5028
  %v5429 = vpack.c.b16 %v5033, %v5029
  %v5430 = vpack.c.b16 %v5034, %v5030
  %v5431 = vpack.c.b16 %v5035, %v5031
  %v5432 = vpack.c.b16 %v5040, %v5036
  %v5433 = vpack.c.b16 %v5041, %v5037
  %v5434 = vpack.c.b16 %v5042, %v5038
  %v5435 = vpack.c.b16 %v5043, %v5039
  %v5436 = vpack.c.b16 %v5048, %v5044
  %v5437 = vpack.c.b16 %v5049, %v5045
  %v5438 = vpack.c.b16 %v5050, %v5046
  %v5439 = vpack.c.b16 %v5051, %v5047
  %v5440 = vpack.c.b16 %v5056, %v5052
  %v5441 = vpack.c.b16 %v5057, %v5053
  %v5442 = vpack.c.b16 %v5058, %v5054
  %v5443 = vpack.c.b16 %v5059, %v5055
  %v5444 = vpack.c.b16 %v5064, %v5060
  %v5445 = vpack.c.b16 %v5065, %v5061
  %v5446 = vpack.c.b16 %v5066, %v5062
  %v5447 = vpack.c.b16 %v5067, %v5063
  %v5448 = vpack.c.b16 %v5072, %v5068
  %v5449 = vpack.c.b16 %v5073, %v5069
  %v5450 = vpack.c.b16 %v5074, %v5070
  %v5451 = vpack.c.b16 %v5075, %v5071
  %v5452 = vpack.c.b16 %v5080, %v5076
  %v5453 = vpack.c.b16 %v5081, %v5077
  %v5454 = vpack.c.b16 %v5082, %v5078
  %v5455 = vpack.c.b16 %v5083, %v5079
  %v5456 = vpack.c.b16 %v5088, %v5084
  %v5457 = vpack.c.b16 %v5089, %v5085
  %v5458 = vpack.c.b16 %v5090, %v5086
  %v5459 = vpack.c.b16 %v5091, %v5087
  %v5460 = vpack.c.b16 %v5096, %v5092
  %v5461 = vpack.c.b16 %v5097, %v5093
  %v5462 = vpack.c.b16 %v5098, %v5094
  %v5463 = vpack.c.b16 %v5099, %v5095
  %v5464 = vpack.c.b16 %v5104, %v5100
  %v5465 = vpack.c.b16 %v5105, %v5101
  %v5466 = vpack.c.b16 %v5106, %v5102
  %v5467 = vpack.c.b16 %v5107, %v5103
  %v5468 = vpack.c.b16 %v5112, %v5108
  %v5469 = vpack.c.b16 %v5113, %v5109
  %v5470 = vpack.c.b16 %v5114, %v5110
  %v5471 = vpack.c.b16 %v5115, %v5111
  %v5472 = vpack.c.b16 %v5120, %v5116
  %v5473 = vpack.c.b16 %v5121, %v5117
  %v5474 = vpack.c.b16 %v5122, %v5118
  %v5475 = vpack.c.b16 %v5123, %v5119
  %v5476 = vpack.c.b16 %v5128, %v5124
  %v5477 = vpack.c.b16 %v5129, %v5125
  %v5478 = vpack.c.b16 %v5130, %v5126
  %v5479 = vpack.c.b16 %v5131, %v5127
  %v5480 = vpack.c.b16 %v5136, %v5132
  %v5481 = vpack.c.b16 %v5137, %v5133
  %v5482 = vpack.c.b16 %v5138, %v5134
  %v5483 = vpack.c.b16 %v5139, %v5135
  %v5484 = vpack.c.b16 %v5144, %v5140
  %v5485 = vpack.c.b16 %v5145, %v5141
  %v5486 = vpack.c.b16 %v5146, %v5142
  %v5487 = vpack.c.b16 %v5147, %v5143
  %v5488 = vpack.c.b16 %v5152, %v5148
  %v5489 = vpack.c.b16 %v5153, %v5149
  %v5490 = vpack.c.b16 %v5154, %v5150
  %v5491 = vpack.c.b16 %v5155, %v5151
  %v5492 = vpack.c.b16 %v5160, %v5156
  %v5493 = vpack.c.b16 %v5161, %v5157
  %v5494 = vpack.c.b16 %v5162, %v5158
  %v5495 = vpack.c.b16 %v5163, %v5159
  %v5496 = vpack.c.b16 %v5168, %v5164
  %v5497 = vpack.c.b16 %v5169, %v5165
  %v5498 = vpack.c.b16 %v5170, %v5166
  %v5499 = vpack.c.b16 %v5171, %v5167
  %v5500 = vpack.c.b16 %v5176, %v5172
  %v5501 = vpack.c.b16 %v5177, %v5173
  %v5502 = vpack.c.b16 %v5178, %v5174
  %v5503 = vpack.c.b16 %v5179, %v5175
  %v5504 = vpack.c.b16 %v5184, %v5180
  %v5505 = vpack.c.b16 %v5185, %v5181
  %v5506 = vpack.c.b16 %v5186, %v5182
  %v5507 = vpack.c.b16 %v5187, %v5183
  %v5508 = vpack.c.b16 %v5192, %v5188
  %v5509 = vpack.c.b16 %v5193, %v5189
  %v5510 = vpack.c.b16 %v5194, %v5190
  %v5511 = vpack.c.b16 %v5195, %v5191
  %v5512 = vpack.c.b16 %v5200, %v5196
  %v5513 = vpack.c.b16 %v5201, %v5197
  %v5514 = vpack.c.b16 %v5202, %v5198
  %v5515 = vpack.c.b16 %v5203, %v5199
  %v5516 = vpack.c.b16 %v5208, %v5204
  %v5517 = vpack.c.b16 %v5209, %v5205
  %v5518 = vpack.c.b16 %v5210, %v5206
  %v5519 = vpack.c.b16 %v5211, %v5207
  %v5520 = vpack.c.b16 %v5216, %v5212
  %v5521 = vpack.c.b16 %v5217, %v5213
  %v5522 = vpack.c.b16 %v5218, %v5214
  %v5523 = vpack.c.b16 %v5219, %v5215
  %v5524 = vpack.c.b16 %v5224, %v5220
  %v5525 = vpack.c.b16 %v5225, %v5221
  %v5526 = vpack.c.b16 %v5226, %v5222
  %v5527 = vpack.c.b16 %v5227, %v5223
  %v5528 = vpack.c.b16 %v5232, %v5228
  %v5529 = vpack.c.b16 %v5233, %v5229
  %v5530 = vpack.c.b16 %v5234, %v5230
  %v5531 = vpack.c.b16 %v5235, %v5231
  %v5532 = vpack.c.b16 %v5240, %v5236
  %v5533 = vpack.c.b16 %v5241, %v5237
  %v5534 = vpack.c.b16 %v5242, %v5238
  %v5535 = vpack.c.b16 %v5243, %v5239
  %v5536 = vpack.c.b16 %v5248, %v5244
  %v5537 = vpack.c.b16 %v5249, %v5245
  %v5538 = vpack.c.b16 %v5250, %v5246
  %v5539 = vpack.c.b16 %v5251, %v5247
  %v5540 = vpack.c.b16 %v5256, %v5252
  %v5541 = vpack.c.b16 %v5257, %v5253
  %v5542 = vpack.c.b16 %v5258, %v5254
  %v5543 = vpack.c.b16 %v5259, %v5255
  %v5544 = vpack.c.b16 %v5264, %v5260
  %v5545 = vpack.c.b16 %v5265, %v5261
  %v5546 = vpack.c.b16 %v5266, %v5262
  %v5547 = vpack.c.b16 %v5267, %v5263
  %v5548 = vpack.c.b16 %v5272, %v5268
  %v5549 = vpack.c.b16 %v5273, %v5269
  %v5550 = vpack.c.b16 %v5274, %v5270
  %v5551 = vpack.c.b16 %v5275, %v5271
  %v5552 = vpack.c.b16 %v5280, %v5276
  %v5553 = vpack.c.b16 %v5281, %v5277
  %v5554 = vpack.c.b16 %v5282, %v5278
  %v5555 = vpack.c.b16 %v5283, %v5279
  %v5556 = vpack.c.b16 %v5288, %v5284
  %v5557 = vpack.c.b16 %v5289, %v5285
  %v5558 = vpack.c.b16 %v5290, %v5286
  %v5559 = vpack.c.b16 %v5291, %v5287
  %v5560 = vpack.c.b16 %v5296, %v5292
  %v5561 = vpack.c.b16 %v5297, %v5293
  %v5562 = vpack.c.b16 %v5298, %v5294
  %v5563 = vpack.c.b16 %v5299, %v5295
  %v5564 = vpack.c.b16 %v5304, %v5300
  %v5565 = vpack.c.b16 %v5305, %v5301
  %v5566 = vpack.c.b16 %v5306, %v5302
  %v5567 = vpack.c.b16 %v5307, %v5303
  %v5568 = vpack.c.b16 %v5312, %v5308
  %v5569 = vpack.c.b16 %v5313, %v5309
  %v5570 = vpack.c.b16 %v5314, %v5310
  %v5571 = vpack.c.b16 %v5315, %v5311
  %5828 = vmatprep.subr.bf16.mxu0 %v5317
  %5829 = vmatpush1.bf16.msra.mxu0 %v5316
  %5830 = vmatprep.subr.bf16.mxu0 %v5321
  %5831 = vmatpush1.bf16.msra.mxu0 %v5320
  %5832 = vmatprep.subr.bf16.mxu0 %v5325
  %5833 = vmatpush1.bf16.msra.mxu0 %v5324
  %5834 = vmatprep.subr.bf16.mxu0 %v5329
  %5835 = vmatpush1.bf16.msra.mxu0 %v5328
  %5836 = vmatprep.subr.bf16.mxu0 %v5333
  %5837 = vmatpush1.bf16.msra.mxu0 %v5332
  %5838 = vmatprep.subr.bf16.mxu0 %v5337
  %5839 = vmatpush1.bf16.msra.mxu0 %v5336
  %5840 = vmatprep.subr.bf16.mxu0 %v5341
  %5841 = vmatpush1.bf16.msra.mxu0 %v5340
  %5842 = vmatprep.subr.bf16.mxu0 %v5345
  %5843 = vmatpush1.bf16.msra.mxu0 %v5344
  %5844 = vmatprep.subr.bf16.mxu0 %v5349
  %5845 = vmatpush1.bf16.msra.mxu0 %v5348
  %5846 = vmatprep.subr.bf16.mxu0 %v5353
  %5847 = vmatpush1.bf16.msra.mxu0 %v5352
  %5848 = vmatprep.subr.bf16.mxu0 %v5357
  %5849 = vmatpush1.bf16.msra.mxu0 %v5356
  %5850 = vmatprep.subr.bf16.mxu0 %v5361
  %5851 = vmatpush1.bf16.msra.mxu0 %v5360
  %5852 = vmatprep.subr.bf16.mxu0 %v5365
  %5853 = vmatpush1.bf16.msra.mxu0 %v5364
  %5854 = vmatprep.subr.bf16.mxu0 %v5369
  %5855 = vmatpush1.bf16.msra.mxu0 %v5368
  %5856 = vmatprep.subr.bf16.mxu0 %v5373
  %5857 = vmatpush1.bf16.msra.mxu0 %v5372
  %5858 = vmatprep.subr.bf16.mxu0 %v5377
  %5859 = vmatpush1.bf16.msra.mxu0 %v5376
  %5860 = vmatprep.mubr.bf16.mxu0 %v4528
  %5861 = vmatmul.mubr.bf16.gmra.mrb[0].mxu0 %v4514
  %v5862 = vpop.f32.mrb[0].mxu0
  %v5863 = vadd.f32 %v4473, %v5862
  %v5864 = vpop.f32.mrb[0].mxu0
  %v5865 = vadd.f32 %v4477, %v5864
  %v5866 = vpop.f32.mrb[0].mxu0
  %v5867 = vpop.f32.mrb[0].mxu0
  %5868 = vdwg.mxu0
  %5869 = vmatprep.subr.bf16.mxu0 %v5381
  %5870 = vmatpush1.bf16.msra.mxu0 %v5380
  %5871 = vmatprep.subr.bf16.mxu0 %v5385
  %5872 = vmatpush1.bf16.msra.mxu0 %v5384
  %5873 = vmatprep.subr.bf16.mxu0 %v5389
  %5874 = vmatpush1.bf16.msra.mxu0 %v5388
  %5875 = vmatprep.subr.bf16.mxu0 %v5393
  %5876 = vmatpush1.bf16.msra.mxu0 %v5392
  %5877 = vmatprep.subr.bf16.mxu0 %v5397
  %5878 = vmatpush1.bf16.msra.mxu0 %v5396
  %5879 = vmatprep.subr.bf16.mxu0 %v5401
  %5880 = vmatpush1.bf16.msra.mxu0 %v5400
  %5881 = vmatprep.subr.bf16.mxu0 %v5405
  %5882 = vmatpush1.bf16.msra.mxu0 %v5404
  %5883 = vmatprep.subr.bf16.mxu0 %v5409
  %5884 = vmatpush1.bf16.msra.mxu0 %v5408
  %5885 = vmatprep.subr.bf16.mxu0 %v5413
  %5886 = vmatpush1.bf16.msra.mxu0 %v5412
  %5887 = vmatprep.subr.bf16.mxu0 %v5417
  %5888 = vmatpush1.bf16.msra.mxu0 %v5416
  %5889 = vmatprep.subr.bf16.mxu0 %v5421
  %5890 = vmatpush1.bf16.msra.mxu0 %v5420
  %5891 = vmatprep.subr.bf16.mxu0 %v5425
  %5892 = vmatpush1.bf16.msra.mxu0 %v5424
  %5893 = vmatprep.subr.bf16.mxu0 %v5429
  %5894 = vmatpush1.bf16.msra.mxu0 %v5428
  %5895 = vmatprep.subr.bf16.mxu0 %v5433
  %5896 = vmatpush1.bf16.msra.mxu0 %v5432
  %5897 = vmatprep.subr.bf16.mxu0 %v5437
  %5898 = vmatpush1.bf16.msra.mxu0 %v5436
  %5899 = vmatprep.subr.bf16.mxu0 %v5441
  %5900 = vmatpush1.bf16.msra.mxu0 %v5440
  %5901 = vmatprep.mubr.bf16.mxu0 %v4538
  %5902 = vmatmul.mubr.bf16.gmra.mrb[0].mxu0 %v4536
  %v5903 = vpop.f32.mrb[0].mxu0
  %v5904 = vadd.f32 %v5863, %v5903
  %v5905 = vpop.f32.mrb[0].mxu0
  %v5906 = vadd.f32 %v5865, %v5905
  %v5907 = vpop.f32.mrb[0].mxu0
  %v5908 = vpop.f32.mrb[0].mxu0
  %5909 = vdwg.mxu0
  %5910 = vmatprep.subr.bf16.mxu0 %v5445
  %5911 = vmatpush1.bf16.msra.mxu0 %v5444
  %5912 = vmatprep.subr.bf16.mxu0 %v5449
  %5913 = vmatpush1.bf16.msra.mxu0 %v5448
  %5914 = vmatprep.subr.bf16.mxu0 %v5453
  %5915 = vmatpush1.bf16.msra.mxu0 %v5452
  %5916 = vmatprep.subr.bf16.mxu0 %v5457
  %5917 = vmatpush1.bf16.msra.mxu0 %v5456
  %5918 = vmatprep.subr.bf16.mxu0 %v5461
  %5919 = vmatpush1.bf16.msra.mxu0 %v5460
  %5920 = vmatprep.subr.bf16.mxu0 %v5465
  %5921 = vmatpush1.bf16.msra.mxu0 %v5464
  %5922 = vmatprep.subr.bf16.mxu0 %v5469
  %5923 = vmatpush1.bf16.msra.mxu0 %v5468
  %5924 = vmatprep.subr.bf16.mxu0 %v5473
  %5925 = vmatpush1.bf16.msra.mxu0 %v5472
  %5926 = vmatprep.subr.bf16.mxu0 %v5477
  %5927 = vmatpush1.bf16.msra.mxu0 %v5476
  %5928 = vmatprep.subr.bf16.mxu0 %v5481
  %5929 = vmatpush1.bf16.msra.mxu0 %v5480
  %5930 = vmatprep.subr.bf16.mxu0 %v5485
  %5931 = vmatpush1.bf16.msra.mxu0 %v5484
  %5932 = vmatprep.subr.bf16.mxu0 %v5489
  %5933 = vmatpush1.bf16.msra.mxu0 %v5488
  %5934 = vmatprep.subr.bf16.mxu0 %v5493
  %5935 = vmatpush1.bf16.msra.mxu0 %v5492
  %5936 = vmatprep.subr.bf16.mxu0 %v5497
  %5937 = vmatpush1.bf16.msra.mxu0 %v5496
  %5938 = vmatprep.subr.bf16.mxu0 %v5501
  %5939 = vmatpush1.bf16.msra.mxu0 %v5500
  %5940 = vmatprep.subr.bf16.mxu0 %v5505
  %5941 = vmatpush1.bf16.msra.mxu0 %v5504
  %5942 = vmatprep.mubr.bf16.mxu0 %v4535
  %5943 = vmatmul.mubr.bf16.gmra.mrb[0].mxu0 %v4521
  %v5944 = vpop.f32.mrb[0].mxu0
  %v5945 = vadd.f32 %v5904, %v5944
  %v5946 = vpop.f32.mrb[0].mxu0
  %v5947 = vadd.f32 %v5906, %v5946
  %v5948 = vpop.f32.mrb[0].mxu0
  %v5949 = vpop.f32.mrb[0].mxu0
  %5950 = vdwg.mxu0
  %5951 = vmatprep.subr.bf16.mxu0 %v5509
  %5952 = vmatpush1.bf16.msra.mxu0 %v5508
  %5953 = vmatprep.subr.bf16.mxu0 %v5513
  %5954 = vmatpush1.bf16.msra.mxu0 %v5512
  %5955 = vmatprep.subr.bf16.mxu0 %v5517
  %5956 = vmatpush1.bf16.msra.mxu0 %v5516
  %5957 = vmatprep.subr.bf16.mxu0 %v5521
  %5958 = vmatpush1.bf16.msra.mxu0 %v5520
  %5959 = vmatprep.subr.bf16.mxu0 %v5525
  %5960 = vmatpush1.bf16.msra.mxu0 %v5524
  %5961 = vmatprep.subr.bf16.mxu0 %v5529
  %5962 = vmatpush1.bf16.msra.mxu0 %v5528
  %5963 = vmatprep.subr.bf16.mxu0 %v5533
  %5964 = vmatpush1.bf16.msra.mxu0 %v5532
  %5965 = vmatprep.subr.bf16.mxu0 %v5537
  %5966 = vmatpush1.bf16.msra.mxu0 %v5536
  %5967 = vmatprep.subr.bf16.mxu0 %v5541
  %5968 = vmatpush1.bf16.msra.mxu0 %v5540
  %5969 = vmatprep.subr.bf16.mxu0 %v5545
  %5970 = vmatpush1.bf16.msra.mxu0 %v5544
  %5971 = vmatprep.subr.bf16.mxu0 %v5549
  %5972 = vmatpush1.bf16.msra.mxu0 %v5548
  %5973 = vmatprep.subr.bf16.mxu0 %v5553
  %5974 = vmatpush1.bf16.msra.mxu0 %v5552
  %5975 = vmatprep.subr.bf16.mxu0 %v5557
  %5976 = vmatpush1.bf16.msra.mxu0 %v5556
  %5977 = vmatprep.subr.bf16.mxu0 %v5561
  %5978 = vmatpush1.bf16.msra.mxu0 %v5560
  %5979 = vmatprep.subr.bf16.mxu0 %v5565
  %5980 = vmatpush1.bf16.msra.mxu0 %v5564
  %5981 = vmatprep.subr.bf16.mxu0 %v5569
  %5982 = vmatpush1.bf16.msra.mxu0 %v5568
  %5983 = vmatprep.mubr.bf16.mxu0 %v4539
  %5984 = vmatmul.mubr.bf16.gmra.mrb[0].mxu0 %v4537
  %v5985 = vpop.f32.mrb[0].mxu0
  %v5986 = vadd.f32 %v5945, %v5985
  %v5987 = vpop.f32.mrb[0].mxu0
  %v5988 = vadd.f32 %v5947, %v5987
  %v5989 = vpop.f32.mrb[0].mxu0
  %v5990 = vpop.f32.mrb[0].mxu0
  %5991 = vdwg.mxu0
  %5992 = vmatprep.subr.bf16.mxu0 %v5319
  %5993 = vmatpush1.bf16.msra.mxu0 %v5318
  %5994 = vmatprep.subr.bf16.mxu0 %v5323
  %5995 = vmatpush1.bf16.msra.mxu0 %v5322
  %5996 = vmatprep.subr.bf16.mxu0 %v5327
  %5997 = vmatpush1.bf16.msra.mxu0 %v5326
  %5998 = vmatprep.subr.bf16.mxu0 %v5331
  %5999 = vmatpush1.bf16.msra.mxu0 %v5330
  %6000 = vmatprep.subr.bf16.mxu0 %v5335
  %6001 = vmatpush1.bf16.msra.mxu0 %v5334
  %6002 = vmatprep.subr.bf16.mxu0 %v5339
  %6003 = vmatpush1.bf16.msra.mxu0 %v5338
  %6004 = vmatprep.subr.bf16.mxu0 %v5343
  %6005 = vmatpush1.bf16.msra.mxu0 %v5342
  %6006 = vmatprep.subr.bf16.mxu0 %v5347
  %6007 = vmatpush1.bf16.msra.mxu0 %v5346
  %6008 = vmatprep.subr.bf16.mxu0 %v5351
  %6009 = vmatpush1.bf16.msra.mxu0 %v5350
  %6010 = vmatprep.subr.bf16.mxu0 %v5355
  %6011 = vmatpush1.bf16.msra.mxu0 %v5354
  %6012 = vmatprep.subr.bf16.mxu0 %v5359
  %6013 = vmatpush1.bf16.msra.mxu0 %v5358
  %6014 = vmatprep.subr.bf16.mxu0 %v5363
  %6015 = vmatpush1.bf16.msra.mxu0 %v5362
  %6016 = vmatprep.subr.bf16.mxu0 %v5367
  %6017 = vmatpush1.bf16.msra.mxu0 %v5366
  %6018 = vmatprep.subr.bf16.mxu0 %v5371
  %6019 = vmatpush1.bf16.msra.mxu0 %v5370
  %6020 = vmatprep.subr.bf16.mxu0 %v5375
  %6021 = vmatpush1.bf16.msra.mxu0 %v5374
  %6022 = vmatprep.subr.bf16.mxu0 %v5379
  %6023 = vmatpush1.bf16.msra.mxu0 %v5378
  %6024 = vmatprep.mubr.bf16.mxu0 %v4528
  %6025 = vmatmul.mubr.bf16.gmra.mrb[0].mxu0 %v4514
  %v6026 = vpop.f32.mrb[0].mxu0
  %v6027 = vadd.f32 %v4481, %v6026
  %v6028 = vpop.f32.mrb[0].mxu0
  %v6029 = vadd.f32 %v4485, %v6028
  %v6030 = vpop.f32.mrb[0].mxu0
  %v6031 = vpop.f32.mrb[0].mxu0
  %6032 = vdwg.mxu0
  %6033 = vmatprep.subr.bf16.mxu0 %v5383
  %6034 = vmatpush1.bf16.msra.mxu0 %v5382
  %6035 = vmatprep.subr.bf16.mxu0 %v5387
  %6036 = vmatpush1.bf16.msra.mxu0 %v5386
  %6037 = vmatprep.subr.bf16.mxu0 %v5391
  %6038 = vmatpush1.bf16.msra.mxu0 %v5390
  %6039 = vmatprep.subr.bf16.mxu0 %v5395
  %6040 = vmatpush1.bf16.msra.mxu0 %v5394
  %6041 = vmatprep.subr.bf16.mxu0 %v5399
  %6042 = vmatpush1.bf16.msra.mxu0 %v5398
  %6043 = vmatprep.subr.bf16.mxu0 %v5403
  %6044 = vmatpush1.bf16.msra.mxu0 %v5402
  %6045 = vmatprep.subr.bf16.mxu0 %v5407
  %6046 = vmatpush1.bf16.msra.mxu0 %v5406
  %6047 = vmatprep.subr.bf16.mxu0 %v5411
  %6048 = vmatpush1.bf16.msra.mxu0 %v5410
  %6049 = vmatprep.subr.bf16.mxu0 %v5415
  %6050 = vmatpush1.bf16.msra.mxu0 %v5414
  %6051 = vmatprep.subr.bf16.mxu0 %v5419
  %6052 = vmatpush1.bf16.msra.mxu0 %v5418
  %6053 = vmatprep.subr.bf16.mxu0 %v5423
  %6054 = vmatpush1.bf16.msra.mxu0 %v5422
  %6055 = vmatprep.subr.bf16.mxu0 %v5427
  %6056 = vmatpush1.bf16.msra.mxu0 %v5426
  %6057 = vmatprep.subr.bf16.mxu0 %v5431
  %6058 = vmatpush1.bf16.msra.mxu0 %v5430
  %6059 = vmatprep.subr.bf16.mxu0 %v5435
  %6060 = vmatpush1.bf16.msra.mxu0 %v5434
  %6061 = vmatprep.subr.bf16.mxu0 %v5439
  %6062 = vmatpush1.bf16.msra.mxu0 %v5438
  %6063 = vmatprep.subr.bf16.mxu0 %v5443
  %6064 = vmatpush1.bf16.msra.mxu0 %v5442
  %6065 = vmatprep.mubr.bf16.mxu0 %v4538
  %6066 = vmatmul.mubr.bf16.gmra.mrb[0].mxu0 %v4536
  %v6067 = vpop.f32.mrb[0].mxu0
  %v6068 = vadd.f32 %v6027, %v6067
  %v6069 = vpop.f32.mrb[0].mxu0
  %v6070 = vadd.f32 %v6029, %v6069
  %v6071 = vpop.f32.mrb[0].mxu0
  %v6072 = vpop.f32.mrb[0].mxu0
  %6073 = vdwg.mxu0
  %6074 = vmatprep.subr.bf16.mxu0 %v5447
  %6075 = vmatpush1.bf16.msra.mxu0 %v5446
  %6076 = vmatprep.subr.bf16.mxu0 %v5451
  %6077 = vmatpush1.bf16.msra.mxu0 %v5450
  %6078 = vmatprep.subr.bf16.mxu0 %v5455
  %6079 = vmatpush1.bf16.msra.mxu0 %v5454
  %6080 = vmatprep.subr.bf16.mxu0 %v5459
  %6081 = vmatpush1.bf16.msra.mxu0 %v5458
  %6082 = vmatprep.subr.bf16.mxu0 %v5463
  %6083 = vmatpush1.bf16.msra.mxu0 %v5462
  %6084 = vmatprep.subr.bf16.mxu0 %v5467
  %6085 = vmatpush1.bf16.msra.mxu0 %v5466
  %6086 = vmatprep.subr.bf16.mxu0 %v5471
  %6087 = vmatpush1.bf16.msra.mxu0 %v5470
  %6088 = vmatprep.subr.bf16.mxu0 %v5475
  %6089 = vmatpush1.bf16.msra.mxu0 %v5474
  %6090 = vmatprep.subr.bf16.mxu0 %v5479
  %6091 = vmatpush1.bf16.msra.mxu0 %v5478
  %6092 = vmatprep.subr.bf16.mxu0 %v5483
  %6093 = vmatpush1.bf16.msra.mxu0 %v5482
  %6094 = vmatprep.subr.bf16.mxu0 %v5487
  %6095 = vmatpush1.bf16.msra.mxu0 %v5486
  %6096 = vmatprep.subr.bf16.mxu0 %v5491
  %6097 = vmatpush1.bf16.msra.mxu0 %v5490
  %6098 = vmatprep.subr.bf16.mxu0 %v5495
  %6099 = vmatpush1.bf16.msra.mxu0 %v5494
  %6100 = vmatprep.subr.bf16.mxu0 %v5499
  %6101 = vmatpush1.bf16.msra.mxu0 %v5498
  %6102 = vmatprep.subr.bf16.mxu0 %v5503
  %6103 = vmatpush1.bf16.msra.mxu0 %v5502
  %6104 = vmatprep.subr.bf16.mxu0 %v5507
  %6105 = vmatpush1.bf16.msra.mxu0 %v5506
  %6106 = vmatprep.mubr.bf16.mxu0 %v4535
  %6107 = vmatmul.mubr.bf16.gmra.mrb[0].mxu0 %v4521
  %v6108 = vpop.f32.mrb[0].mxu0
  %v6109 = vadd.f32 %v6068, %v6108
  %v6110 = vpop.f32.mrb[0].mxu0
  %v6111 = vadd.f32 %v6070, %v6110
  %v6112 = vpop.f32.mrb[0].mxu0
  %v6113 = vpop.f32.mrb[0].mxu0
  %6114 = vdwg.mxu0
  %6115 = vmatprep.subr.bf16.mxu0 %v5511
  %6116 = vmatpush1.bf16.msra.mxu0 %v5510
  %6117 = vmatprep.subr.bf16.mxu0 %v5515
  %6118 = vmatpush1.bf16.msra.mxu0 %v5514
  %6119 = vmatprep.subr.bf16.mxu0 %v5519
  %6120 = vmatpush1.bf16.msra.mxu0 %v5518
  %6121 = vmatprep.subr.bf16.mxu0 %v5523
  %6122 = vmatpush1.bf16.msra.mxu0 %v5522
  %6123 = vmatprep.subr.bf16.mxu0 %v5527
  %6124 = vmatpush1.bf16.msra.mxu0 %v5526
  %6125 = vmatprep.subr.bf16.mxu0 %v5531
  %6126 = vmatpush1.bf16.msra.mxu0 %v5530
  %6127 = vmatprep.subr.bf16.mxu0 %v5535
  %6128 = vmatpush1.bf16.msra.mxu0 %v5534
  %6129 = vmatprep.subr.bf16.mxu0 %v5539
  %6130 = vmatpush1.bf16.msra.mxu0 %v5538
  %6131 = vmatprep.subr.bf16.mxu0 %v5543
  %6132 = vmatpush1.bf16.msra.mxu0 %v5542
  %6133 = vmatprep.subr.bf16.mxu0 %v5547
  %6134 = vmatpush1.bf16.msra.mxu0 %v5546
  %6135 = vmatprep.subr.bf16.mxu0 %v5551
  %6136 = vmatpush1.bf16.msra.mxu0 %v5550
  %6137 = vmatprep.subr.bf16.mxu0 %v5555
  %6138 = vmatpush1.bf16.msra.mxu0 %v5554
  %6139 = vmatprep.subr.bf16.mxu0 %v5559
  %6140 = vmatpush1.bf16.msra.mxu0 %v5558
  %6141 = vmatprep.subr.bf16.mxu0 %v5563
  %6142 = vmatpush1.bf16.msra.mxu0 %v5562
  %6143 = vmatprep.subr.bf16.mxu0 %v5567
  %6144 = vmatpush1.bf16.msra.mxu0 %v5566
  %6145 = vmatprep.subr.bf16.mxu0 %v5571
  %6146 = vmatpush1.bf16.msra.mxu0 %v5570
  %6147 = vmatprep.mubr.bf16.mxu0 %v4539
  %6148 = vmatmul.mubr.bf16.gmra.mrb[0].mxu0 %v4537
  %v6149 = vpop.f32.mrb[0].mxu0
  %v6150 = vadd.f32 %v6109, %v6149
  %v6151 = vpop.f32.mrb[0].mxu0
  %v6152 = vadd.f32 %v6111, %v6151
  %v6153 = vpop.f32.mrb[0].mxu0
  %v6154 = vpop.f32.mrb[0].mxu0
  %6155 = vdwg.mxu0
  %v6156 = vmax.f32 %v5986, 0.0
  %v6157 = vmax.f32 %v5988, 0.0
  %v6158 = vmax.f32 %v6150, 0.0
  %v6159 = vmax.f32 %v6152, 0.0
  %v6160 = vld [vmem:[%s4] sm:$0xff]
  %v6161 = vld [vmem:[%s4 + $0x8] sm:$0xff]
  %v6162 = vld [vmem:[%s4 + $0x10] sm:$0xff]
  %v6163 = vld [vmem:[%s4 + $0x18] sm:$0xff]
  %v6164 = vld [vmem:[%s4 + $0x20] sm:$0xff]
  %v6165 = vld [vmem:[%s4 + $0x28] sm:$0xff]
  %v6166 = vld [vmem:[%s4 + $0x30] sm:$0xff]
  %v6167 = vld [vmem:[%s4 + $0x38] sm:$0xff]
  %v6168 = vld [vmem:[%s4 + $0x40] sm:$0xff]
  %v6169 = vld [vmem:[%s4 + $0x48] sm:$0xff]
  %v6170 = vld [vmem:[%s4 + $0x50] sm:$0xff]
  %v6171 = vld [vmem:[%s4 + $0x58] sm:$0xff]
  %v6172 = vld [vmem:[%s4 + $0x60] sm:$0xff]
  %v6173 = vld [vmem:[%s4 + $0x68] sm:$0xff]
  %v6174 = vld [vmem:[%s4 + $0x70] sm:$0xff]
  %v6175 = vld [vmem:[%s4 + $0x78] sm:$0xff]
  %v6176 = vld [vmem:[%s4 + $0x80] sm:$0xff]
  %v6177 = vld [vmem:[%s4 + $0x88] sm:$0xff]
  %v6178 = vld [vmem:[%s4 + $0x90] sm:$0xff]
  %v6179 = vld [vmem:[%s4 + $0x98] sm:$0xff]
  %v6180 = vld [vmem:[%s4 + $0xa0] sm:$0xff]
  %v6181 = vld [vmem:[%s4 + $0xa8] sm:$0xff]
  %v6182 = vld [vmem:[%s4 + $0xb0] sm:$0xff]
  %v6183 = vld [vmem:[%s4 + $0xb8] sm:$0xff]
  %v6184 = vld [vmem:[%s4 + $0xc0] sm:$0xff]
  %v6185 = vld [vmem:[%s4 + $0xc8] sm:$0xff]
  %v6186 = vld [vmem:[%s4 + $0xd0] sm:$0xff]
  %v6187 = vld [vmem:[%s4 + $0xd8] sm:$0xff]
  %v6188 = vld [vmem:[%s4 + $0xe0] sm:$0xff]
  %v6189 = vld [vmem:[%s4 + $0xe8] sm:$0xff]
  %v6190 = vld [vmem:[%s4 + $0xf0] sm:$0xff]
  %v6191 = vld [vmem:[%s4 + $0xf8] sm:$0xff]
  %v6192 = vld [vmem:[%s4 + $0x100] sm:$0xff]
  %v6193 = vld [vmem:[%s4 + $0x108] sm:$0xff]
  %v6194 = vld [vmem:[%s4 + $0x110] sm:$0xff]
  %v6195 = vld [vmem:[%s4 + $0x118] sm:$0xff]
  %v6196 = vld [vmem:[%s4 + $0x120] sm:$0xff]
  %v6197 = vld [vmem:[%s4 + $0x128] sm:$0xff]
  %v6198 = vld [vmem:[%s4 + $0x130] sm:$0xff]
  %v6199 = vld [vmem:[%s4 + $0x138] sm:$0xff]
  %v6200 = vld [vmem:[%s4 + $0x140] sm:$0xff]
  %v6201 = vld [vmem:[%s4 + $0x148] sm:$0xff]
  %v6202 = vld [vmem:[%s4 + $0x150] sm:$0xff]
  %v6203 = vld [vmem:[%s4 + $0x158] sm:$0xff]
  %v6204 = vld [vmem:[%s4 + $0x160] sm:$0xff]
  %v6205 = vld [vmem:[%s4 + $0x168] sm:$0xff]
  %v6206 = vld [vmem:[%s4 + $0x170] sm:$0xff]
  %v6207 = vld [vmem:[%s4 + $0x178] sm:$0xff]
  %v6208 = vld [vmem:[%s4 + $0x180] sm:$0xff]
  %v6209 = vld [vmem:[%s4 + $0x188] sm:$0xff]
  %v6210 = vld [vmem:[%s4 + $0x190] sm:$0xff]
  %v6211 = vld [vmem:[%s4 + $0x198] sm:$0xff]
  %v6212 = vld [vmem:[%s4 + $0x1a0] sm:$0xff]
  %v6213 = vld [vmem:[%s4 + $0x1a8] sm:$0xff]
  %v6214 = vld [vmem:[%s4 + $0x1b0] sm:$0xff]
  %v6215 = vld [vmem:[%s4 + $0x1b8] sm:$0xff]
  %v6216 = vld [vmem:[%s4 + $0x1c0] sm:$0xff]
  %v6217 = vld [vmem:[%s4 + $0x1c8] sm:$0xff]
  %v6218 = vld [vmem:[%s4 + $0x1d0] sm:$0xff]
  %v6219 = vld [vmem:[%s4 + $0x1d8] sm:$0xff]
  %v6220 = vld [vmem:[%s4 + $0x1e0] sm:$0xff]
  %v6221 = vld [vmem:[%s4 + $0x1e8] sm:$0xff]
  %v6222 = vld [vmem:[%s4 + $0x1f0] sm:$0xff]
  %v6223 = vld [vmem:[%s4 + $0x1f8] sm:$0xff]
  %v6224 = vld [vmem:[%s5] sm:$0x1]
  %v6226 = vlaneseq
  %v6227 = vshrl.u32 %v6226, 7
  %v6228 = vsub.s32 0, %v6227
  %v6229 = vrot.slane %v6224, %v6228
  %6231 = vmatprep.subr.mxu0 0.0
  %v6232 = vand.u32 %v6160, 4294901760
  %6233 = vmatpush1.msra.mxu0 %v6232
  %6234 = vmatprep.subr.mxu0 0.0
  %v6235 = vand.u32 %v6161, 4294901760
  %6236 = vmatpush1.msra.mxu0 %v6235
  %6237 = vmatprep.subr.mxu0 0.0
  %v6238 = vand.u32 %v6162, 4294901760
  %6239 = vmatpush1.msra.mxu0 %v6238
  %6240 = vmatprep.subr.mxu0 0.0
  %v6241 = vand.u32 %v6163, 4294901760
  %6242 = vmatpush1.msra.mxu0 %v6241
  %6243 = vmatprep.subr.mxu0 0.0
  %v6244 = vand.u32 %v6164, 4294901760
  %6245 = vmatpush1.msra.mxu0 %v6244
  %6246 = vmatprep.subr.mxu0 0.0
  %v6247 = vand.u32 %v6165, 4294901760
  %6248 = vmatpush1.msra.mxu0 %v6247
  %6249 = vmatprep.subr.mxu0 0.0
  %v6250 = vand.u32 %v6166, 4294901760
  %6251 = vmatpush1.msra.mxu0 %v6250
  %6252 = vmatprep.subr.mxu0 0.0
  %v6253 = vand.u32 %v6167, 4294901760
  %6254 = vmatpush1.msra.mxu0 %v6253
  %6255 = vmatprep.subr.mxu0 0.0
  %v6256 = vand.u32 %v6168, 4294901760
  %6257 = vmatpush1.msra.mxu0 %v6256
  %6258 = vmatprep.subr.mxu0 0.0
  %v6259 = vand.u32 %v6169, 4294901760
  %6260 = vmatpush1.msra.mxu0 %v6259
  %6261 = vmatprep.subr.mxu0 0.0
  %v6262 = vand.u32 %v6170, 4294901760
  %6263 = vmatpush1.msra.mxu0 %v6262
  %6264 = vmatprep.subr.mxu0 0.0
  %v6265 = vand.u32 %v6171, 4294901760
  %6266 = vmatpush1.msra.mxu0 %v6265
  %6267 = vmatprep.subr.mxu0 0.0
  %v6268 = vand.u32 %v6172, 4294901760
  %6269 = vmatpush1.msra.mxu0 %v6268
  %6270 = vmatprep.subr.mxu0 0.0
  %v6271 = vand.u32 %v6173, 4294901760
  %6272 = vmatpush1.msra.mxu0 %v6271
  %6273 = vmatprep.subr.mxu0 0.0
  %v6274 = vand.u32 %v6174, 4294901760
  %6275 = vmatpush1.msra.mxu0 %v6274
  %6276 = vmatprep.subr.mxu0 0.0
  %v6277 = vand.u32 %v6175, 4294901760
  %6278 = vmatpush1.msra.mxu0 %v6277
  %6279 = vmatprep.subr.mxu0 0.0
  %v6280 = vand.u32 %v6176, 4294901760
  %6281 = vmatpush1.msra.mxu0 %v6280
  %6282 = vmatprep.subr.mxu0 0.0
  %v6283 = vand.u32 %v6177, 4294901760
  %6284 = vmatpush1.msra.mxu0 %v6283
  %6285 = vmatprep.subr.mxu0 0.0
  %v6286 = vand.u32 %v6178, 4294901760
  %6287 = vmatpush1.msra.mxu0 %v6286
  %6288 = vmatprep.subr.mxu0 0.0
  %v6289 = vand.u32 %v6179, 4294901760
  %6290 = vmatpush1.msra.mxu0 %v6289
  %6291 = vmatprep.subr.mxu0 0.0
  %v6292 = vand.u32 %v6180, 4294901760
  %6293 = vmatpush1.msra.mxu0 %v6292
  %6294 = vmatprep.subr.mxu0 0.0
  %v6295 = vand.u32 %v6181, 4294901760
  %6296 = vmatpush1.msra.mxu0 %v6295
  %6297 = vmatprep.subr.mxu0 0.0
  %v6298 = vand.u32 %v6182, 4294901760
  %6299 = vmatpush1.msra.mxu0 %v6298
  %6300 = vmatprep.subr.mxu0 0.0
  %v6301 = vand.u32 %v6183, 4294901760
  %6302 = vmatpush1.msra.mxu0 %v6301
  %6303 = vmatprep.subr.mxu0 0.0
  %v6304 = vand.u32 %v6184, 4294901760
  %6305 = vmatpush1.msra.mxu0 %v6304
  %6306 = vmatprep.subr.mxu0 0.0
  %v6307 = vand.u32 %v6185, 4294901760
  %6308 = vmatpush1.msra.mxu0 %v6307
  %6309 = vmatprep.subr.mxu0 0.0
  %v6310 = vand.u32 %v6186, 4294901760
  %6311 = vmatpush1.msra.mxu0 %v6310
  %6312 = vmatprep.subr.mxu0 0.0
  %v6313 = vand.u32 %v6187, 4294901760
  %6314 = vmatpush1.msra.mxu0 %v6313
  %6315 = vmatprep.subr.mxu0 0.0
  %v6316 = vand.u32 %v6188, 4294901760
  %6317 = vmatpush1.msra.mxu0 %v6316
  %6318 = vmatprep.subr.mxu0 0.0
  %v6319 = vand.u32 %v6189, 4294901760
  %6320 = vmatpush1.msra.mxu0 %v6319
  %6321 = vmatprep.subr.mxu0 0.0
  %v6322 = vand.u32 %v6190, 4294901760
  %6323 = vmatpush1.msra.mxu0 %v6322
  %6324 = vmatprep.subr.mxu0 0.0
  %v6325 = vand.u32 %v6191, 4294901760
  %6326 = vmatpush1.msra.mxu0 %v6325
  %v6327 = vand.u32 %v6157, 4294901760
  %v6328 = vsub.f32 %v6157, %v6327
  %v6329 = vand.u32 %v6328, 4294901760
  %v6330 = vsub.f32 %v6328, %v6329
  %v6331 = vand.u32 %v6330, 4294901760
  %6332 = vmatprep.mubr.f32.mxu0 %v6331
  %v6333 = vand.u32 %v6156, 4294901760
  %v6334 = vsub.f32 %v6156, %v6333
  %v6335 = vand.u32 %v6334, 4294901760
  %v6336 = vsub.f32 %v6334, %v6335
  %v6337 = vand.u32 %v6336, 4294901760
  %6338 = vmatmul.mubr.f32.gmra.mrb[0].mxu0 %v6337
  %v6339 = vpop.f32.mrb[0].mxu0
  %v6340 = vadd.f32 %v6229, %v6339
  %v6341 = vpop.f32.mrb[0].mxu0
  %6342 = vdwg.mxu0
  %6343 = vmatprep.subr.mxu0 0.0
  %v6344 = vand.u32 %v6160, 4294901760
  %v6345 = vsub.f32 %v6160, %v6344
  %v6346 = vand.u32 %v6345, 4294901760
  %v6347 = vsub.f32 %v6345, %v6346
  %v6348 = vand.u32 %v6347, 4294901760
  %6349 = vmatpush1.msra.mxu0 %v6348
  %6350 = vmatprep.subr.mxu0 0.0
  %v6351 = vand.u32 %v6161, 4294901760
  %v6352 = vsub.f32 %v6161, %v6351
  %v6353 = vand.u32 %v6352, 4294901760
  %v6354 = vsub.f32 %v6352, %v6353
  %v6355 = vand.u32 %v6354, 4294901760
  %6356 = vmatpush1.msra.mxu0 %v6355
  %6357 = vmatprep.subr.mxu0 0.0
  %v6358 = vand.u32 %v6162, 4294901760
  %v6359 = vsub.f32 %v6162, %v6358
  %v6360 = vand.u32 %v6359, 4294901760
  %v6361 = vsub.f32 %v6359, %v6360
  %v6362 = vand.u32 %v6361, 4294901760
  %6363 = vmatpush1.msra.mxu0 %v6362
  %6364 = vmatprep.subr.mxu0 0.0
  %v6365 = vand.u32 %v6163, 4294901760
  %v6366 = vsub.f32 %v6163, %v6365
  %v6367 = vand.u32 %v6366, 4294901760
  %v6368 = vsub.f32 %v6366, %v6367
  %v6369 = vand.u32 %v6368, 4294901760
  %6370 = vmatpush1.msra.mxu0 %v6369
  %6371 = vmatprep.subr.mxu0 0.0
  %v6372 = vand.u32 %v6164, 4294901760
  %v6373 = vsub.f32 %v6164, %v6372
  %v6374 = vand.u32 %v6373, 4294901760
  %v6375 = vsub.f32 %v6373, %v6374
  %v6376 = vand.u32 %v6375, 4294901760
  %6377 = vmatpush1.msra.mxu0 %v6376
  %6378 = vmatprep.subr.mxu0 0.0
  %v6379 = vand.u32 %v6165, 4294901760
  %v6380 = vsub.f32 %v6165, %v6379
  %v6381 = vand.u32 %v6380, 4294901760
  %v6382 = vsub.f32 %v6380, %v6381
  %v6383 = vand.u32 %v6382, 4294901760
  %6384 = vmatpush1.msra.mxu0 %v6383
  %6385 = vmatprep.subr.mxu0 0.0
  %v6386 = vand.u32 %v6166, 4294901760
  %v6387 = vsub.f32 %v6166, %v6386
  %v6388 = vand.u32 %v6387, 4294901760
  %v6389 = vsub.f32 %v6387, %v6388
  %v6390 = vand.u32 %v6389, 4294901760
  %6391 = vmatpush1.msra.mxu0 %v6390
  %6392 = vmatprep.subr.mxu0 0.0
  %v6393 = vand.u32 %v6167, 4294901760
  %v6394 = vsub.f32 %v6167, %v6393
  %v6395 = vand.u32 %v6394, 4294901760
  %v6396 = vsub.f32 %v6394, %v6395
  %v6397 = vand.u32 %v6396, 4294901760
  %6398 = vmatpush1.msra.mxu0 %v6397
  %6399 = vmatprep.subr.mxu0 0.0
  %v6400 = vand.u32 %v6168, 4294901760
  %v6401 = vsub.f32 %v6168, %v6400
  %v6402 = vand.u32 %v6401, 4294901760
  %v6403 = vsub.f32 %v6401, %v6402
  %v6404 = vand.u32 %v6403, 4294901760
  %6405 = vmatpush1.msra.mxu0 %v6404
  %6406 = vmatprep.subr.mxu0 0.0
  %v6407 = vand.u32 %v6169, 4294901760
  %v6408 = vsub.f32 %v6169, %v6407
  %v6409 = vand.u32 %v6408, 4294901760
  %v6410 = vsub.f32 %v6408, %v6409
  %v6411 = vand.u32 %v6410, 4294901760
  %6412 = vmatpush1.msra.mxu0 %v6411
  %6413 = vmatprep.subr.mxu0 0.0
  %v6414 = vand.u32 %v6170, 4294901760
  %v6415 = vsub.f32 %v6170, %v6414
  %v6416 = vand.u32 %v6415, 4294901760
  %v6417 = vsub.f32 %v6415, %v6416
  %v6418 = vand.u32 %v6417, 4294901760
  %6419 = vmatpush1.msra.mxu0 %v6418
  %6420 = vmatprep.subr.mxu0 0.0
  %v6421 = vand.u32 %v6171, 4294901760
  %v6422 = vsub.f32 %v6171, %v6421
  %v6423 = vand.u32 %v6422, 4294901760
  %v6424 = vsub.f32 %v6422, %v6423
  %v6425 = vand.u32 %v6424, 4294901760
  %6426 = vmatpush1.msra.mxu0 %v6425
  %6427 = vmatprep.subr.mxu0 0.0
  %v6428 = vand.u32 %v6172, 4294901760
  %v6429 = vsub.f32 %v6172, %v6428
  %v6430 = vand.u32 %v6429, 4294901760
  %v6431 = vsub.f32 %v6429, %v6430
  %v6432 = vand.u32 %v6431, 4294901760
  %6433 = vmatpush1.msra.mxu0 %v6432
  %6434 = vmatprep.subr.mxu0 0.0
  %v6435 = vand.u32 %v6173, 4294901760
  %v6436 = vsub.f32 %v6173, %v6435
  %v6437 = vand.u32 %v6436, 4294901760
  %v6438 = vsub.f32 %v6436, %v6437
  %v6439 = vand.u32 %v6438, 4294901760
  %6440 = vmatpush1.msra.mxu0 %v6439
  %6441 = vmatprep.subr.mxu0 0.0
  %v6442 = vand.u32 %v6174, 4294901760
  %v6443 = vsub.f32 %v6174, %v6442
  %v6444 = vand.u32 %v6443, 4294901760
  %v6445 = vsub.f32 %v6443, %v6444
  %v6446 = vand.u32 %v6445, 4294901760
  %6447 = vmatpush1.msra.mxu0 %v6446
  %6448 = vmatprep.subr.mxu0 0.0
  %v6449 = vand.u32 %v6175, 4294901760
  %v6450 = vsub.f32 %v6175, %v6449
  %v6451 = vand.u32 %v6450, 4294901760
  %v6452 = vsub.f32 %v6450, %v6451
  %v6453 = vand.u32 %v6452, 4294901760
  %6454 = vmatpush1.msra.mxu0 %v6453
  %6455 = vmatprep.subr.mxu0 0.0
  %v6456 = vand.u32 %v6176, 4294901760
  %v6457 = vsub.f32 %v6176, %v6456
  %v6458 = vand.u32 %v6457, 4294901760
  %v6459 = vsub.f32 %v6457, %v6458
  %v6460 = vand.u32 %v6459, 4294901760
  %6461 = vmatpush1.msra.mxu0 %v6460
  %6462 = vmatprep.subr.mxu0 0.0
  %v6463 = vand.u32 %v6177, 4294901760
  %v6464 = vsub.f32 %v6177, %v6463
  %v6465 = vand.u32 %v6464, 4294901760
  %v6466 = vsub.f32 %v6464, %v6465
  %v6467 = vand.u32 %v6466, 4294901760
  %6468 = vmatpush1.msra.mxu0 %v6467
  %6469 = vmatprep.subr.mxu0 0.0
  %v6470 = vand.u32 %v6178, 4294901760
  %v6471 = vsub.f32 %v6178, %v6470
  %v6472 = vand.u32 %v6471, 4294901760
  %v6473 = vsub.f32 %v6471, %v6472
  %v6474 = vand.u32 %v6473, 4294901760
  %6475 = vmatpush1.msra.mxu0 %v6474
  %6476 = vmatprep.subr.mxu0 0.0
  %v6477 = vand.u32 %v6179, 4294901760
  %v6478 = vsub.f32 %v6179, %v6477
  %v6479 = vand.u32 %v6478, 4294901760
  %v6480 = vsub.f32 %v6478, %v6479
  %v6481 = vand.u32 %v6480, 4294901760
  %6482 = vmatpush1.msra.mxu0 %v6481
  %6483 = vmatprep.subr.mxu0 0.0
  %v6484 = vand.u32 %v6180, 4294901760
  %v6485 = vsub.f32 %v6180, %v6484
  %v6486 = vand.u32 %v6485, 4294901760
  %v6487 = vsub.f32 %v6485, %v6486
  %v6488 = vand.u32 %v6487, 4294901760
  %6489 = vmatpush1.msra.mxu0 %v6488
  %6490 = vmatprep.subr.mxu0 0.0
  %v6491 = vand.u32 %v6181, 4294901760
  %v6492 = vsub.f32 %v6181, %v6491
  %v6493 = vand.u32 %v6492, 4294901760
  %v6494 = vsub.f32 %v6492, %v6493
  %v6495 = vand.u32 %v6494, 4294901760
  %6496 = vmatpush1.msra.mxu0 %v6495
  %6497 = vmatprep.subr.mxu0 0.0
  %v6498 = vand.u32 %v6182, 4294901760
  %v6499 = vsub.f32 %v6182, %v6498
  %v6500 = vand.u32 %v6499, 4294901760
  %v6501 = vsub.f32 %v6499, %v6500
  %v6502 = vand.u32 %v6501, 4294901760
  %6503 = vmatpush1.msra.mxu0 %v6502
  %6504 = vmatprep.subr.mxu0 0.0
  %v6505 = vand.u32 %v6183, 4294901760
  %v6506 = vsub.f32 %v6183, %v6505
  %v6507 = vand.u32 %v6506, 4294901760
  %v6508 = vsub.f32 %v6506, %v6507
  %v6509 = vand.u32 %v6508, 4294901760
  %6510 = vmatpush1.msra.mxu0 %v6509
  %6511 = vmatprep.subr.mxu0 0.0
  %v6512 = vand.u32 %v6184, 4294901760
  %v6513 = vsub.f32 %v6184, %v6512
  %v6514 = vand.u32 %v6513, 4294901760
  %v6515 = vsub.f32 %v6513, %v6514
  %v6516 = vand.u32 %v6515, 4294901760
  %6517 = vmatpush1.msra.mxu0 %v6516
  %6518 = vmatprep.subr.mxu0 0.0
  %v6519 = vand.u32 %v6185, 4294901760
  %v6520 = vsub.f32 %v6185, %v6519
  %v6521 = vand.u32 %v6520, 4294901760
  %v6522 = vsub.f32 %v6520, %v6521
  %v6523 = vand.u32 %v6522, 4294901760
  %6524 = vmatpush1.msra.mxu0 %v6523
  %6525 = vmatprep.subr.mxu0 0.0
  %v6526 = vand.u32 %v6186, 4294901760
  %v6527 = vsub.f32 %v6186, %v6526
  %v6528 = vand.u32 %v6527, 4294901760
  %v6529 = vsub.f32 %v6527, %v6528
  %v6530 = vand.u32 %v6529, 4294901760
  %6531 = vmatpush1.msra.mxu0 %v6530
  %6532 = vmatprep.subr.mxu0 0.0
  %v6533 = vand.u32 %v6187, 4294901760
  %v6534 = vsub.f32 %v6187, %v6533
  %v6535 = vand.u32 %v6534, 4294901760
  %v6536 = vsub.f32 %v6534, %v6535
  %v6537 = vand.u32 %v6536, 4294901760
  %6538 = vmatpush1.msra.mxu0 %v6537
  %6539 = vmatprep.subr.mxu0 0.0
  %v6540 = vand.u32 %v6188, 4294901760
  %v6541 = vsub.f32 %v6188, %v6540
  %v6542 = vand.u32 %v6541, 4294901760
  %v6543 = vsub.f32 %v6541, %v6542
  %v6544 = vand.u32 %v6543, 4294901760
  %6545 = vmatpush1.msra.mxu0 %v6544
  %6546 = vmatprep.subr.mxu0 0.0
  %v6547 = vand.u32 %v6189, 4294901760
  %v6548 = vsub.f32 %v6189, %v6547
  %v6549 = vand.u32 %v6548, 4294901760
  %v6550 = vsub.f32 %v6548, %v6549
  %v6551 = vand.u32 %v6550, 4294901760
  %6552 = vmatpush1.msra.mxu0 %v6551
  %6553 = vmatprep.subr.mxu0 0.0
  %v6554 = vand.u32 %v6190, 4294901760
  %v6555 = vsub.f32 %v6190, %v6554
  %v6556 = vand.u32 %v6555, 4294901760
  %v6557 = vsub.f32 %v6555, %v6556
  %v6558 = vand.u32 %v6557, 4294901760
  %6559 = vmatpush1.msra.mxu0 %v6558
  %6560 = vmatprep.subr.mxu0 0.0
  %v6561 = vand.u32 %v6191, 4294901760
  %v6562 = vsub.f32 %v6191, %v6561
  %v6563 = vand.u32 %v6562, 4294901760
  %v6564 = vsub.f32 %v6562, %v6563
  %v6565 = vand.u32 %v6564, 4294901760
  %6566 = vmatpush1.msra.mxu0 %v6565
  %v6567 = vand.u32 %v6157, 4294901760
  %6568 = vmatprep.mubr.f32.mxu0 %v6567
  %v6569 = vand.u32 %v6156, 4294901760
  %6570 = vmatmul.mubr.f32.gmra.mrb[0].mxu0 %v6569
  %v6571 = vpop.f32.mrb[0].mxu0
  %v6572 = vadd.f32 %v6340, %v6571
  %v6573 = vpop.f32.mrb[0].mxu0
  %6574 = vdwg.mxu0
  %6575 = vmatprep.subr.mxu0 0.0
  %v6576 = vand.u32 %v6160, 4294901760
  %v6577 = vsub.f32 %v6160, %v6576
  %6578 = vmatpush1.msra.mxu0 %v6577
  %6579 = vmatprep.subr.mxu0 0.0
  %v6580 = vand.u32 %v6161, 4294901760
  %v6581 = vsub.f32 %v6161, %v6580
  %6582 = vmatpush1.msra.mxu0 %v6581
  %6583 = vmatprep.subr.mxu0 0.0
  %v6584 = vand.u32 %v6162, 4294901760
  %v6585 = vsub.f32 %v6162, %v6584
  %6586 = vmatpush1.msra.mxu0 %v6585
  %6587 = vmatprep.subr.mxu0 0.0
  %v6588 = vand.u32 %v6163, 4294901760
  %v6589 = vsub.f32 %v6163, %v6588
  %6590 = vmatpush1.msra.mxu0 %v6589
  %6591 = vmatprep.subr.mxu0 0.0
  %v6592 = vand.u32 %v6164, 4294901760
  %v6593 = vsub.f32 %v6164, %v6592
  %6594 = vmatpush1.msra.mxu0 %v6593
  %6595 = vmatprep.subr.mxu0 0.0
  %v6596 = vand.u32 %v6165, 4294901760
  %v6597 = vsub.f32 %v6165, %v6596
  %6598 = vmatpush1.msra.mxu0 %v6597
  %6599 = vmatprep.subr.mxu0 0.0
  %v6600 = vand.u32 %v6166, 4294901760
  %v6601 = vsub.f32 %v6166, %v6600
  %6602 = vmatpush1.msra.mxu0 %v6601
  %6603 = vmatprep.subr.mxu0 0.0
  %v6604 = vand.u32 %v6167, 4294901760
  %v6605 = vsub.f32 %v6167, %v6604
  %6606 = vmatpush1.msra.mxu0 %v6605
  %6607 = vmatprep.subr.mxu0 0.0
  %v6608 = vand.u32 %v6168, 4294901760
  %v6609 = vsub.f32 %v6168, %v6608
  %6610 = vmatpush1.msra.mxu0 %v6609
  %6611 = vmatprep.subr.mxu0 0.0
  %v6612 = vand.u32 %v6169, 4294901760
  %v6613 = vsub.f32 %v6169, %v6612
  %6614 = vmatpush1.msra.mxu0 %v6613
  %6615 = vmatprep.subr.mxu0 0.0
  %v6616 = vand.u32 %v6170, 4294901760
  %v6617 = vsub.f32 %v6170, %v6616
  %6618 = vmatpush1.msra.mxu0 %v6617
  %6619 = vmatprep.subr.mxu0 0.0
  %v6620 = vand.u32 %v6171, 4294901760
  %v6621 = vsub.f32 %v6171, %v6620
  %6622 = vmatpush1.msra.mxu0 %v6621
  %6623 = vmatprep.subr.mxu0 0.0
  %v6624 = vand.u32 %v6172, 4294901760
  %v6625 = vsub.f32 %v6172, %v6624
  %6626 = vmatpush1.msra.mxu0 %v6625
  %6627 = vmatprep.subr.mxu0 0.0
  %v6628 = vand.u32 %v6173, 4294901760
  %v6629 = vsub.f32 %v6173, %v6628
  %6630 = vmatpush1.msra.mxu0 %v6629
  %6631 = vmatprep.subr.mxu0 0.0
  %v6632 = vand.u32 %v6174, 4294901760
  %v6633 = vsub.f32 %v6174, %v6632
  %6634 = vmatpush1.msra.mxu0 %v6633
  %6635 = vmatprep.subr.mxu0 0.0
  %v6636 = vand.u32 %v6175, 4294901760
  %v6637 = vsub.f32 %v6175, %v6636
  %6638 = vmatpush1.msra.mxu0 %v6637
  %6639 = vmatprep.subr.mxu0 0.0
  %v6640 = vand.u32 %v6176, 4294901760
  %v6641 = vsub.f32 %v6176, %v6640
  %6642 = vmatpush1.msra.mxu0 %v6641
  %6643 = vmatprep.subr.mxu0 0.0
  %v6644 = vand.u32 %v6177, 4294901760
  %v6645 = vsub.f32 %v6177, %v6644
  %6646 = vmatpush1.msra.mxu0 %v6645
  %6647 = vmatprep.subr.mxu0 0.0
  %v6648 = vand.u32 %v6178, 4294901760
  %v6649 = vsub.f32 %v6178, %v6648
  %6650 = vmatpush1.msra.mxu0 %v6649
  %6651 = vmatprep.subr.mxu0 0.0
  %v6652 = vand.u32 %v6179, 4294901760
  %v6653 = vsub.f32 %v6179, %v6652
  %6654 = vmatpush1.msra.mxu0 %v6653
  %6655 = vmatprep.subr.mxu0 0.0
  %v6656 = vand.u32 %v6180, 4294901760
  %v6657 = vsub.f32 %v6180, %v6656
  %6658 = vmatpush1.msra.mxu0 %v6657
  %6659 = vmatprep.subr.mxu0 0.0
  %v6660 = vand.u32 %v6181, 4294901760
  %v6661 = vsub.f32 %v6181, %v6660
  %6662 = vmatpush1.msra.mxu0 %v6661
  %6663 = vmatprep.subr.mxu0 0.0
  %v6664 = vand.u32 %v6182, 4294901760
  %v6665 = vsub.f32 %v6182, %v6664
  %6666 = vmatpush1.msra.mxu0 %v6665
  %6667 = vmatprep.subr.mxu0 0.0
  %v6668 = vand.u32 %v6183, 4294901760
  %v6669 = vsub.f32 %v6183, %v6668
  %6670 = vmatpush1.msra.mxu0 %v6669
  %6671 = vmatprep.subr.mxu0 0.0
  %v6672 = vand.u32 %v6184, 4294901760
  %v6673 = vsub.f32 %v6184, %v6672
  %6674 = vmatpush1.msra.mxu0 %v6673
  %6675 = vmatprep.subr.mxu0 0.0
  %v6676 = vand.u32 %v6185, 4294901760
  %v6677 = vsub.f32 %v6185, %v6676
  %6678 = vmatpush1.msra.mxu0 %v6677
  %6679 = vmatprep.subr.mxu0 0.0
  %v6680 = vand.u32 %v6186, 4294901760
  %v6681 = vsub.f32 %v6186, %v6680
  %6682 = vmatpush1.msra.mxu0 %v6681
  %6683 = vmatprep.subr.mxu0 0.0
  %v6684 = vand.u32 %v6187, 4294901760
  %v6685 = vsub.f32 %v6187, %v6684
  %6686 = vmatpush1.msra.mxu0 %v6685
  %6687 = vmatprep.subr.mxu0 0.0
  %v6688 = vand.u32 %v6188, 4294901760
  %v6689 = vsub.f32 %v6188, %v6688
  %6690 = vmatpush1.msra.mxu0 %v6689
  %6691 = vmatprep.subr.mxu0 0.0
  %v6692 = vand.u32 %v6189, 4294901760
  %v6693 = vsub.f32 %v6189, %v6692
  %6694 = vmatpush1.msra.mxu0 %v6693
  %6695 = vmatprep.subr.mxu0 0.0
  %v6696 = vand.u32 %v6190, 4294901760
  %v6697 = vsub.f32 %v6190, %v6696
  %6698 = vmatpush1.msra.mxu0 %v6697
  %6699 = vmatprep.subr.mxu0 0.0
  %v6700 = vand.u32 %v6191, 4294901760
  %v6701 = vsub.f32 %v6191, %v6700
  %6702 = vmatpush1.msra.mxu0 %v6701
  %v6703 = vand.u32 %v6157, 4294901760
  %v6704 = vsub.f32 %v6157, %v6703
  %6705 = vmatprep.mubr.f32.mxu0 %v6704
  %v6706 = vand.u32 %v6156, 4294901760
  %v6707 = vsub.f32 %v6156, %v6706
  %6708 = vmatmul.mubr.f32.gmra.mrb[0].mxu0 %v6707
  %v6709 = vpop.f32.mrb[0].mxu0
  %v6710 = vadd.f32 %v6572, %v6709
  %v6711 = vpop.f32.mrb[0].mxu0
  %6712 = vdwg.mxu0
  %6713 = vmatprep.subr.mxu0 0.0
  %v6714 = vand.u32 %v6160, 4294901760
  %6715 = vmatpush1.msra.mxu0 %v6714
  %6716 = vmatprep.subr.mxu0 0.0
  %v6717 = vand.u32 %v6161, 4294901760
  %6718 = vmatpush1.msra.mxu0 %v6717
  %6719 = vmatprep.subr.mxu0 0.0
  %v6720 = vand.u32 %v6162, 4294901760
  %6721 = vmatpush1.msra.mxu0 %v6720
  %6722 = vmatprep.subr.mxu0 0.0
  %v6723 = vand.u32 %v6163, 4294901760
  %6724 = vmatpush1.msra.mxu0 %v6723
  %6725 = vmatprep.subr.mxu0 0.0
  %v6726 = vand.u32 %v6164, 4294901760
  %6727 = vmatpush1.msra.mxu0 %v6726
  %6728 = vmatprep.subr.mxu0 0.0
  %v6729 = vand.u32 %v6165, 4294901760
  %6730 = vmatpush1.msra.mxu0 %v6729
  %6731 = vmatprep.subr.mxu0 0.0
  %v6732 = vand.u32 %v6166, 4294901760
  %6733 = vmatpush1.msra.mxu0 %v6732
  %6734 = vmatprep.subr.mxu0 0.0
  %v6735 = vand.u32 %v6167, 4294901760
  %6736 = vmatpush1.msra.mxu0 %v6735
  %6737 = vmatprep.subr.mxu0 0.0
  %v6738 = vand.u32 %v6168, 4294901760
  %6739 = vmatpush1.msra.mxu0 %v6738
  %6740 = vmatprep.subr.mxu0 0.0
  %v6741 = vand.u32 %v6169, 4294901760
  %6742 = vmatpush1.msra.mxu0 %v6741
  %6743 = vmatprep.subr.mxu0 0.0
  %v6744 = vand.u32 %v6170, 4294901760
  %6745 = vmatpush1.msra.mxu0 %v6744
  %6746 = vmatprep.subr.mxu0 0.0
  %v6747 = vand.u32 %v6171, 4294901760
  %6748 = vmatpush1.msra.mxu0 %v6747
  %6749 = vmatprep.subr.mxu0 0.0
  %v6750 = vand.u32 %v6172, 4294901760
  %6751 = vmatpush1.msra.mxu0 %v6750
  %6752 = vmatprep.subr.mxu0 0.0
  %v6753 = vand.u32 %v6173, 4294901760
  %6754 = vmatpush1.msra.mxu0 %v6753
  %6755 = vmatprep.subr.mxu0 0.0
  %v6756 = vand.u32 %v6174, 4294901760
  %6757 = vmatpush1.msra.mxu0 %v6756
  %6758 = vmatprep.subr.mxu0 0.0
  %v6759 = vand.u32 %v6175, 4294901760
  %6760 = vmatpush1.msra.mxu0 %v6759
  %6761 = vmatprep.subr.mxu0 0.0
  %v6762 = vand.u32 %v6176, 4294901760
  %6763 = vmatpush1.msra.mxu0 %v6762
  %6764 = vmatprep.subr.mxu0 0.0
  %v6765 = vand.u32 %v6177, 4294901760
  %6766 = vmatpush1.msra.mxu0 %v6765
  %6767 = vmatprep.subr.mxu0 0.0
  %v6768 = vand.u32 %v6178, 4294901760
  %6769 = vmatpush1.msra.mxu0 %v6768
  %6770 = vmatprep.subr.mxu0 0.0
  %v6771 = vand.u32 %v6179, 4294901760
  %6772 = vmatpush1.msra.mxu0 %v6771
  %6773 = vmatprep.subr.mxu0 0.0
  %v6774 = vand.u32 %v6180, 4294901760
  %6775 = vmatpush1.msra.mxu0 %v6774
  %6776 = vmatprep.subr.mxu0 0.0
  %v6777 = vand.u32 %v6181, 4294901760
  %6778 = vmatpush1.msra.mxu0 %v6777
  %6779 = vmatprep.subr.mxu0 0.0
  %v6780 = vand.u32 %v6182, 4294901760
  %6781 = vmatpush1.msra.mxu0 %v6780
  %6782 = vmatprep.subr.mxu0 0.0
  %v6783 = vand.u32 %v6183, 4294901760
  %6784 = vmatpush1.msra.mxu0 %v6783
  %6785 = vmatprep.subr.mxu0 0.0
  %v6786 = vand.u32 %v6184, 4294901760
  %6787 = vmatpush1.msra.mxu0 %v6786
  %6788 = vmatprep.subr.mxu0 0.0
  %v6789 = vand.u32 %v6185, 4294901760
  %6790 = vmatpush1.msra.mxu0 %v6789
  %6791 = vmatprep.subr.mxu0 0.0
  %v6792 = vand.u32 %v6186, 4294901760
  %6793 = vmatpush1.msra.mxu0 %v6792
  %6794 = vmatprep.subr.mxu0 0.0
  %v6795 = vand.u32 %v6187, 4294901760
  %6796 = vmatpush1.msra.mxu0 %v6795
  %6797 = vmatprep.subr.mxu0 0.0
  %v6798 = vand.u32 %v6188, 4294901760
  %6799 = vmatpush1.msra.mxu0 %v6798
  %6800 = vmatprep.subr.mxu0 0.0
  %v6801 = vand.u32 %v6189, 4294901760
  %6802 = vmatpush1.msra.mxu0 %v6801
  %6803 = vmatprep.subr.mxu0 0.0
  %v6804 = vand.u32 %v6190, 4294901760
  %6805 = vmatpush1.msra.mxu0 %v6804
  %6806 = vmatprep.subr.mxu0 0.0
  %v6807 = vand.u32 %v6191, 4294901760
  %6808 = vmatpush1.msra.mxu0 %v6807
  %v6809 = vand.u32 %v6157, 4294901760
  %v6810 = vsub.f32 %v6157, %v6809
  %v6811 = vand.u32 %v6810, 4294901760
  %6812 = vmatprep.mubr.f32.mxu0 %v6811
  %v6813 = vand.u32 %v6156, 4294901760
  %v6814 = vsub.f32 %v6156, %v6813
  %v6815 = vand.u32 %v6814, 4294901760
  %6816 = vmatmul.mubr.f32.gmra.mrb[0].mxu0 %v6815
  %v6817 = vpop.f32.mrb[0].mxu0
  %v6818 = vadd.f32 %v6710, %v6817
  %v6819 = vpop.f32.mrb[0].mxu0
  %6820 = vdwg.mxu0
  %6821 = vmatprep.subr.mxu0 0.0
  %v6822 = vand.u32 %v6160, 4294901760
  %v6823 = vsub.f32 %v6160, %v6822
  %v6824 = vand.u32 %v6823, 4294901760
  %6825 = vmatpush1.msra.mxu0 %v6824
  %6826 = vmatprep.subr.mxu0 0.0
  %v6827 = vand.u32 %v6161, 4294901760
  %v6828 = vsub.f32 %v6161, %v6827
  %v6829 = vand.u32 %v6828, 4294901760
  %6830 = vmatpush1.msra.mxu0 %v6829
  %6831 = vmatprep.subr.mxu0 0.0
  %v6832 = vand.u32 %v6162, 4294901760
  %v6833 = vsub.f32 %v6162, %v6832
  %v6834 = vand.u32 %v6833, 4294901760
  %6835 = vmatpush1.msra.mxu0 %v6834
  %6836 = vmatprep.subr.mxu0 0.0
  %v6837 = vand.u32 %v6163, 4294901760
  %v6838 = vsub.f32 %v6163, %v6837
  %v6839 = vand.u32 %v6838, 4294901760
  %6840 = vmatpush1.msra.mxu0 %v6839
  %6841 = vmatprep.subr.mxu0 0.0
  %v6842 = vand.u32 %v6164, 4294901760
  %v6843 = vsub.f32 %v6164, %v6842
  %v6844 = vand.u32 %v6843, 4294901760
  %6845 = vmatpush1.msra.mxu0 %v6844
  %6846 = vmatprep.subr.mxu0 0.0
  %v6847 = vand.u32 %v6165, 4294901760
  %v6848 = vsub.f32 %v6165, %v6847
  %v6849 = vand.u32 %v6848, 4294901760
  %6850 = vmatpush1.msra.mxu0 %v6849
  %6851 = vmatprep.subr.mxu0 0.0
  %v6852 = vand.u32 %v6166, 4294901760
  %v6853 = vsub.f32 %v6166, %v6852
  %v6854 = vand.u32 %v6853, 4294901760
  %6855 = vmatpush1.msra.mxu0 %v6854
  %6856 = vmatprep.subr.mxu0 0.0
  %v6857 = vand.u32 %v6167, 4294901760
  %v6858 = vsub.f32 %v6167, %v6857
  %v6859 = vand.u32 %v6858, 4294901760
  %6860 = vmatpush1.msra.mxu0 %v6859
  %6861 = vmatprep.subr.mxu0 0.0
  %v6862 = vand.u32 %v6168, 4294901760
  %v6863 = vsub.f32 %v6168, %v6862
  %v6864 = vand.u32 %v6863, 4294901760
  %6865 = vmatpush1.msra.mxu0 %v6864
  %6866 = vmatprep.subr.mxu0 0.0
  %v6867 = vand.u32 %v6169, 4294901760
  %v6868 = vsub.f32 %v6169, %v6867
  %v6869 = vand.u32 %v6868, 4294901760
  %6870 = vmatpush1.msra.mxu0 %v6869
  %6871 = vmatprep.subr.mxu0 0.0
  %v6872 = vand.u32 %v6170, 4294901760
  %v6873 = vsub.f32 %v6170, %v6872
  %v6874 = vand.u32 %v6873, 4294901760
  %6875 = vmatpush1.msra.mxu0 %v6874
  %6876 = vmatprep.subr.mxu0 0.0
  %v6877 = vand.u32 %v6171, 4294901760
  %v6878 = vsub.f32 %v6171, %v6877
  %v6879 = vand.u32 %v6878, 4294901760
  %6880 = vmatpush1.msra.mxu0 %v6879
  %6881 = vmatprep.subr.mxu0 0.0
  %v6882 = vand.u32 %v6172, 4294901760
  %v6883 = vsub.f32 %v6172, %v6882
  %v6884 = vand.u32 %v6883, 4294901760
  %6885 = vmatpush1.msra.mxu0 %v6884
  %6886 = vmatprep.subr.mxu0 0.0
  %v6887 = vand.u32 %v6173, 4294901760
  %v6888 = vsub.f32 %v6173, %v6887
  %v6889 = vand.u32 %v6888, 4294901760
  %6890 = vmatpush1.msra.mxu0 %v6889
  %6891 = vmatprep.subr.mxu0 0.0
  %v6892 = vand.u32 %v6174, 4294901760
  %v6893 = vsub.f32 %v6174, %v6892
  %v6894 = vand.u32 %v6893, 4294901760
  %6895 = vmatpush1.msra.mxu0 %v6894
  %6896 = vmatprep.subr.mxu0 0.0
  %v6897 = vand.u32 %v6175, 4294901760
  %v6898 = vsub.f32 %v6175, %v6897
  %v6899 = vand.u32 %v6898, 4294901760
  %6900 = vmatpush1.msra.mxu0 %v6899
  %6901 = vmatprep.subr.mxu0 0.0
  %v6902 = vand.u32 %v6176, 4294901760
  %v6903 = vsub.f32 %v6176, %v6902
  %v6904 = vand.u32 %v6903, 4294901760
  %6905 = vmatpush1.msra.mxu0 %v6904
  %6906 = vmatprep.subr.mxu0 0.0
  %v6907 = vand.u32 %v6177, 4294901760
  %v6908 = vsub.f32 %v6177, %v6907
  %v6909 = vand.u32 %v6908, 4294901760
  %6910 = vmatpush1.msra.mxu0 %v6909
  %6911 = vmatprep.subr.mxu0 0.0
  %v6912 = vand.u32 %v6178, 4294901760
  %v6913 = vsub.f32 %v6178, %v6912
  %v6914 = vand.u32 %v6913, 4294901760
  %6915 = vmatpush1.msra.mxu0 %v6914
  %6916 = vmatprep.subr.mxu0 0.0
  %v6917 = vand.u32 %v6179, 4294901760
  %v6918 = vsub.f32 %v6179, %v6917
  %v6919 = vand.u32 %v6918, 4294901760
  %6920 = vmatpush1.msra.mxu0 %v6919
  %6921 = vmatprep.subr.mxu0 0.0
  %v6922 = vand.u32 %v6180, 4294901760
  %v6923 = vsub.f32 %v6180, %v6922
  %v6924 = vand.u32 %v6923, 4294901760
  %6925 = vmatpush1.msra.mxu0 %v6924
  %6926 = vmatprep.subr.mxu0 0.0
  %v6927 = vand.u32 %v6181, 4294901760
  %v6928 = vsub.f32 %v6181, %v6927
  %v6929 = vand.u32 %v6928, 4294901760
  %6930 = vmatpush1.msra.mxu0 %v6929
  %6931 = vmatprep.subr.mxu0 0.0
  %v6932 = vand.u32 %v6182, 4294901760
  %v6933 = vsub.f32 %v6182, %v6932
  %v6934 = vand.u32 %v6933, 4294901760
  %6935 = vmatpush1.msra.mxu0 %v6934
  %6936 = vmatprep.subr.mxu0 0.0
  %v6937 = vand.u32 %v6183, 4294901760
  %v6938 = vsub.f32 %v6183, %v6937
  %v6939 = vand.u32 %v6938, 4294901760
  %6940 = vmatpush1.msra.mxu0 %v6939
  %6941 = vmatprep.subr.mxu0 0.0
  %v6942 = vand.u32 %v6184, 4294901760
  %v6943 = vsub.f32 %v6184, %v6942
  %v6944 = vand.u32 %v6943, 4294901760
  %6945 = vmatpush1.msra.mxu0 %v6944
  %6946 = vmatprep.subr.mxu0 0.0
  %v6947 = vand.u32 %v6185, 4294901760
  %v6948 = vsub.f32 %v6185, %v6947
  %v6949 = vand.u32 %v6948, 4294901760
  %6950 = vmatpush1.msra.mxu0 %v6949
  %6951 = vmatprep.subr.mxu0 0.0
  %v6952 = vand.u32 %v6186, 4294901760
  %v6953 = vsub.f32 %v6186, %v6952
  %v6954 = vand.u32 %v6953, 4294901760
  %6955 = vmatpush1.msra.mxu0 %v6954
  %6956 = vmatprep.subr.mxu0 0.0
  %v6957 = vand.u32 %v6187, 4294901760
  %v6958 = vsub.f32 %v6187, %v6957
  %v6959 = vand.u32 %v6958, 4294901760
  %6960 = vmatpush1.msra.mxu0 %v6959
  %6961 = vmatprep.subr.mxu0 0.0
  %v6962 = vand.u32 %v6188, 4294901760
  %v6963 = vsub.f32 %v6188, %v6962
  %v6964 = vand.u32 %v6963, 4294901760
  %6965 = vmatpush1.msra.mxu0 %v6964
  %6966 = vmatprep.subr.mxu0 0.0
  %v6967 = vand.u32 %v6189, 4294901760
  %v6968 = vsub.f32 %v6189, %v6967
  %v6969 = vand.u32 %v6968, 4294901760
  %6970 = vmatpush1.msra.mxu0 %v6969
  %6971 = vmatprep.subr.mxu0 0.0
  %v6972 = vand.u32 %v6190, 4294901760
  %v6973 = vsub.f32 %v6190, %v6972
  %v6974 = vand.u32 %v6973, 4294901760
  %6975 = vmatpush1.msra.mxu0 %v6974
  %6976 = vmatprep.subr.mxu0 0.0
  %v6977 = vand.u32 %v6191, 4294901760
  %v6978 = vsub.f32 %v6191, %v6977
  %v6979 = vand.u32 %v6978, 4294901760
  %6980 = vmatpush1.msra.mxu0 %v6979
  %v6981 = vand.u32 %v6157, 4294901760
  %6982 = vmatprep.mubr.f32.mxu0 %v6981
  %v6983 = vand.u32 %v6156, 4294901760
  %6984 = vmatmul.mubr.f32.gmra.mrb[0].mxu0 %v6983
  %v6985 = vpop.f32.mrb[0].mxu0
  %v6986 = vadd.f32 %v6818, %v6985
  %v6987 = vpop.f32.mrb[0].mxu0
  %6988 = vdwg.mxu0
  %6989 = vmatprep.subr.mxu0 0.0
  %v6990 = vand.u32 %v6160, 4294901760
  %6991 = vmatpush1.msra.mxu0 %v6990
  %6992 = vmatprep.subr.mxu0 0.0
  %v6993 = vand.u32 %v6161, 4294901760
  %6994 = vmatpush1.msra.mxu0 %v6993
  %6995 = vmatprep.subr.mxu0 0.0
  %v6996 = vand.u32 %v6162, 4294901760
  %6997 = vmatpush1.msra.mxu0 %v6996
  %6998 = vmatprep.subr.mxu0 0.0
  %v6999 = vand.u32 %v6163, 4294901760
  %7000 = vmatpush1.msra.mxu0 %v6999
  %7001 = vmatprep.subr.mxu0 0.0
  %v7002 = vand.u32 %v6164, 4294901760
  %7003 = vmatpush1.msra.mxu0 %v7002
  %7004 = vmatprep.subr.mxu0 0.0
  %v7005 = vand.u32 %v6165, 4294901760
  %7006 = vmatpush1.msra.mxu0 %v7005
  %7007 = vmatprep.subr.mxu0 0.0
  %v7008 = vand.u32 %v6166, 4294901760
  %7009 = vmatpush1.msra.mxu0 %v7008
  %7010 = vmatprep.subr.mxu0 0.0
  %v7011 = vand.u32 %v6167, 4294901760
  %7012 = vmatpush1.msra.mxu0 %v7011
  %7013 = vmatprep.subr.mxu0 0.0
  %v7014 = vand.u32 %v6168, 4294901760
  %7015 = vmatpush1.msra.mxu0 %v7014
  %7016 = vmatprep.subr.mxu0 0.0
  %v7017 = vand.u32 %v6169, 4294901760
  %7018 = vmatpush1.msra.mxu0 %v7017
  %7019 = vmatprep.subr.mxu0 0.0
  %v7020 = vand.u32 %v6170, 4294901760
  %7021 = vmatpush1.msra.mxu0 %v7020
  %7022 = vmatprep.subr.mxu0 0.0
  %v7023 = vand.u32 %v6171, 4294901760
  %7024 = vmatpush1.msra.mxu0 %v7023
  %7025 = vmatprep.subr.mxu0 0.0
  %v7026 = vand.u32 %v6172, 4294901760
  %7027 = vmatpush1.msra.mxu0 %v7026
  %7028 = vmatprep.subr.mxu0 0.0
  %v7029 = vand.u32 %v6173, 4294901760
  %7030 = vmatpush1.msra.mxu0 %v7029
  %7031 = vmatprep.subr.mxu0 0.0
  %v7032 = vand.u32 %v6174, 4294901760
  %7033 = vmatpush1.msra.mxu0 %v7032
  %7034 = vmatprep.subr.mxu0 0.0
  %v7035 = vand.u32 %v6175, 4294901760
  %7036 = vmatpush1.msra.mxu0 %v7035
  %7037 = vmatprep.subr.mxu0 0.0
  %v7038 = vand.u32 %v6176, 4294901760
  %7039 = vmatpush1.msra.mxu0 %v7038
  %7040 = vmatprep.subr.mxu0 0.0
  %v7041 = vand.u32 %v6177, 4294901760
  %7042 = vmatpush1.msra.mxu0 %v7041
  %7043 = vmatprep.subr.mxu0 0.0
  %v7044 = vand.u32 %v6178, 4294901760
  %7045 = vmatpush1.msra.mxu0 %v7044
  %7046 = vmatprep.subr.mxu0 0.0
  %v7047 = vand.u32 %v6179, 4294901760
  %7048 = vmatpush1.msra.mxu0 %v7047
  %7049 = vmatprep.subr.mxu0 0.0
  %v7050 = vand.u32 %v6180, 4294901760
  %7051 = vmatpush1.msra.mxu0 %v7050
  %7052 = vmatprep.subr.mxu0 0.0
  %v7053 = vand.u32 %v6181, 4294901760
  %7054 = vmatpush1.msra.mxu0 %v7053
  %7055 = vmatprep.subr.mxu0 0.0
  %v7056 = vand.u32 %v6182, 4294901760
  %7057 = vmatpush1.msra.mxu0 %v7056
  %7058 = vmatprep.subr.mxu0 0.0
  %v7059 = vand.u32 %v6183, 4294901760
  %7060 = vmatpush1.msra.mxu0 %v7059
  %7061 = vmatprep.subr.mxu0 0.0
  %v7062 = vand.u32 %v6184, 4294901760
  %7063 = vmatpush1.msra.mxu0 %v7062
  %7064 = vmatprep.subr.mxu0 0.0
  %v7065 = vand.u32 %v6185, 4294901760
  %7066 = vmatpush1.msra.mxu0 %v7065
  %7067 = vmatprep.subr.mxu0 0.0
  %v7068 = vand.u32 %v6186, 4294901760
  %7069 = vmatpush1.msra.mxu0 %v7068
  %7070 = vmatprep.subr.mxu0 0.0
  %v7071 = vand.u32 %v6187, 4294901760
  %7072 = vmatpush1.msra.mxu0 %v7071
  %7073 = vmatprep.subr.mxu0 0.0
  %v7074 = vand.u32 %v6188, 4294901760
  %7075 = vmatpush1.msra.mxu0 %v7074
  %7076 = vmatprep.subr.mxu0 0.0
  %v7077 = vand.u32 %v6189, 4294901760
  %7078 = vmatpush1.msra.mxu0 %v7077
  %7079 = vmatprep.subr.mxu0 0.0
  %v7080 = vand.u32 %v6190, 4294901760
  %7081 = vmatpush1.msra.mxu0 %v7080
  %7082 = vmatprep.subr.mxu0 0.0
  %v7083 = vand.u32 %v6191, 4294901760
  %7084 = vmatpush1.msra.mxu0 %v7083
  %v7085 = vand.u32 %v6157, 4294901760
  %7086 = vmatprep.mubr.f32.mxu0 %v7085
  %v7087 = vand.u32 %v6156, 4294901760
  %7088 = vmatmul.mubr.f32.gmra.mrb[0].mxu0 %v7087
  %v7089 = vpop.f32.mrb[0].mxu0
  %v7090 = vadd.f32 %v6986, %v7089
  %v7091 = vpop.f32.mrb[0].mxu0
  %7092 = vdwg.mxu0
  %7093 = vmatprep.subr.mxu0 0.0
  %v7094 = vand.u32 %v6192, 4294901760
  %7095 = vmatpush1.msra.mxu0 %v7094
  %7096 = vmatprep.subr.mxu0 0.0
  %v7097 = vand.u32 %v6193, 4294901760
  %7098 = vmatpush1.msra.mxu0 %v7097
  %7099 = vmatprep.subr.mxu0 0.0
  %v7100 = vand.u32 %v6194, 4294901760
  %7101 = vmatpush1.msra.mxu0 %v7100
  %7102 = vmatprep.subr.mxu0 0.0
  %v7103 = vand.u32 %v6195, 4294901760
  %7104 = vmatpush1.msra.mxu0 %v7103
  %7105 = vmatprep.subr.mxu0 0.0
  %v7106 = vand.u32 %v6196, 4294901760
  %7107 = vmatpush1.msra.mxu0 %v7106
  %7108 = vmatprep.subr.mxu0 0.0
  %v7109 = vand.u32 %v6197, 4294901760
  %7110 = vmatpush1.msra.mxu0 %v7109
  %7111 = vmatprep.subr.mxu0 0.0
  %v7112 = vand.u32 %v6198, 4294901760
  %7113 = vmatpush1.msra.mxu0 %v7112
  %7114 = vmatprep.subr.mxu0 0.0
  %v7115 = vand.u32 %v6199, 4294901760
  %7116 = vmatpush1.msra.mxu0 %v7115
  %7117 = vmatprep.subr.mxu0 0.0
  %v7118 = vand.u32 %v6200, 4294901760
  %7119 = vmatpush1.msra.mxu0 %v7118
  %7120 = vmatprep.subr.mxu0 0.0
  %v7121 = vand.u32 %v6201, 4294901760
  %7122 = vmatpush1.msra.mxu0 %v7121
  %7123 = vmatprep.subr.mxu0 0.0
  %v7124 = vand.u32 %v6202, 4294901760
  %7125 = vmatpush1.msra.mxu0 %v7124
  %7126 = vmatprep.subr.mxu0 0.0
  %v7127 = vand.u32 %v6203, 4294901760
  %7128 = vmatpush1.msra.mxu0 %v7127
  %7129 = vmatprep.subr.mxu0 0.0
  %v7130 = vand.u32 %v6204, 4294901760
  %7131 = vmatpush1.msra.mxu0 %v7130
  %7132 = vmatprep.subr.mxu0 0.0
  %v7133 = vand.u32 %v6205, 4294901760
  %7134 = vmatpush1.msra.mxu0 %v7133
  %7135 = vmatprep.subr.mxu0 0.0
  %v7136 = vand.u32 %v6206, 4294901760
  %7137 = vmatpush1.msra.mxu0 %v7136
  %7138 = vmatprep.subr.mxu0 0.0
  %v7139 = vand.u32 %v6207, 4294901760
  %7140 = vmatpush1.msra.mxu0 %v7139
  %7141 = vmatprep.subr.mxu0 0.0
  %v7142 = vand.u32 %v6208, 4294901760
  %7143 = vmatpush1.msra.mxu0 %v7142
  %7144 = vmatprep.subr.mxu0 0.0
  %v7145 = vand.u32 %v6209, 4294901760
  %7146 = vmatpush1.msra.mxu0 %v7145
  %7147 = vmatprep.subr.mxu0 0.0
  %v7148 = vand.u32 %v6210, 4294901760
  %7149 = vmatpush1.msra.mxu0 %v7148
  %7150 = vmatprep.subr.mxu0 0.0
  %v7151 = vand.u32 %v6211, 4294901760
  %7152 = vmatpush1.msra.mxu0 %v7151
  %7153 = vmatprep.subr.mxu0 0.0
  %v7154 = vand.u32 %v6212, 4294901760
  %7155 = vmatpush1.msra.mxu0 %v7154
  %7156 = vmatprep.subr.mxu0 0.0
  %v7157 = vand.u32 %v6213, 4294901760
  %7158 = vmatpush1.msra.mxu0 %v7157
  %7159 = vmatprep.subr.mxu0 0.0
  %v7160 = vand.u32 %v6214, 4294901760
  %7161 = vmatpush1.msra.mxu0 %v7160
  %7162 = vmatprep.subr.mxu0 0.0
  %v7163 = vand.u32 %v6215, 4294901760
  %7164 = vmatpush1.msra.mxu0 %v7163
  %7165 = vmatprep.subr.mxu0 0.0
  %v7166 = vand.u32 %v6216, 4294901760
  %7167 = vmatpush1.msra.mxu0 %v7166
  %7168 = vmatprep.subr.mxu0 0.0
  %v7169 = vand.u32 %v6217, 4294901760
  %7170 = vmatpush1.msra.mxu0 %v7169
  %7171 = vmatprep.subr.mxu0 0.0
  %v7172 = vand.u32 %v6218, 4294901760
  %7173 = vmatpush1.msra.mxu0 %v7172
  %7174 = vmatprep.subr.mxu0 0.0
  %v7175 = vand.u32 %v6219, 4294901760
  %7176 = vmatpush1.msra.mxu0 %v7175
  %7177 = vmatprep.subr.mxu0 0.0
  %v7178 = vand.u32 %v6220, 4294901760
  %7179 = vmatpush1.msra.mxu0 %v7178
  %7180 = vmatprep.subr.mxu0 0.0
  %v7181 = vand.u32 %v6221, 4294901760
  %7182 = vmatpush1.msra.mxu0 %v7181
  %7183 = vmatprep.subr.mxu0 0.0
  %v7184 = vand.u32 %v6222, 4294901760
  %7185 = vmatpush1.msra.mxu0 %v7184
  %7186 = vmatprep.subr.mxu0 0.0
  %v7187 = vand.u32 %v6223, 4294901760
  %7188 = vmatpush1.msra.mxu0 %v7187
  %v7189 = vand.u32 %v6159, 4294901760
  %v7190 = vsub.f32 %v6159, %v7189
  %v7191 = vand.u32 %v7190, 4294901760
  %v7192 = vsub.f32 %v7190, %v7191
  %v7193 = vand.u32 %v7192, 4294901760
  %7194 = vmatprep.mubr.f32.mxu0 %v7193
  %v7195 = vand.u32 %v6158, 4294901760
  %v7196 = vsub.f32 %v6158, %v7195
  %v7197 = vand.u32 %v7196, 4294901760
  %v7198 = vsub.f32 %v7196, %v7197
  %v7199 = vand.u32 %v7198, 4294901760
  %7200 = vmatmul.mubr.f32.gmra.mrb[0].mxu0 %v7199
  %v7201 = vpop.f32.mrb[0].mxu0
  %v7202 = vadd.f32 %v7090, %v7201
  %v7203 = vpop.f32.mrb[0].mxu0
  %7204 = vdwg.mxu0
  %7205 = vmatprep.subr.mxu0 0.0
  %v7206 = vand.u32 %v6192, 4294901760
  %v7207 = vsub.f32 %v6192, %v7206
  %v7208 = vand.u32 %v7207, 4294901760
  %v7209 = vsub.f32 %v7207, %v7208
  %v7210 = vand.u32 %v7209, 4294901760
  %7211 = vmatpush1.msra.mxu0 %v7210
  %7212 = vmatprep.subr.mxu0 0.0
  %v7213 = vand.u32 %v6193, 4294901760
  %v7214 = vsub.f32 %v6193, %v7213
  %v7215 = vand.u32 %v7214, 4294901760
  %v7216 = vsub.f32 %v7214, %v7215
  %v7217 = vand.u32 %v7216, 4294901760
  %7218 = vmatpush1.msra.mxu0 %v7217
  %7219 = vmatprep.subr.mxu0 0.0
  %v7220 = vand.u32 %v6194, 4294901760
  %v7221 = vsub.f32 %v6194, %v7220
  %v7222 = vand.u32 %v7221, 4294901760
  %v7223 = vsub.f32 %v7221, %v7222
  %v7224 = vand.u32 %v7223, 4294901760
  %7225 = vmatpush1.msra.mxu0 %v7224
  %7226 = vmatprep.subr.mxu0 0.0
  %v7227 = vand.u32 %v6195, 4294901760
  %v7228 = vsub.f32 %v6195, %v7227
  %v7229 = vand.u32 %v7228, 4294901760
  %v7230 = vsub.f32 %v7228, %v7229
  %v7231 = vand.u32 %v7230, 4294901760
  %7232 = vmatpush1.msra.mxu0 %v7231
  %7233 = vmatprep.subr.mxu0 0.0
  %v7234 = vand.u32 %v6196, 4294901760
  %v7235 = vsub.f32 %v6196, %v7234
  %v7236 = vand.u32 %v7235, 4294901760
  %v7237 = vsub.f32 %v7235, %v7236
  %v7238 = vand.u32 %v7237, 4294901760
  %7239 = vmatpush1.msra.mxu0 %v7238
  %7240 = vmatprep.subr.mxu0 0.0
  %v7241 = vand.u32 %v6197, 4294901760
  %v7242 = vsub.f32 %v6197, %v7241
  %v7243 = vand.u32 %v7242, 4294901760
  %v7244 = vsub.f32 %v7242, %v7243
  %v7245 = vand.u32 %v7244, 4294901760
  %7246 = vmatpush1.msra.mxu0 %v7245
  %7247 = vmatprep.subr.mxu0 0.0
  %v7248 = vand.u32 %v6198, 4294901760
  %v7249 = vsub.f32 %v6198, %v7248
  %v7250 = vand.u32 %v7249, 4294901760
  %v7251 = vsub.f32 %v7249, %v7250
  %v7252 = vand.u32 %v7251, 4294901760
  %7253 = vmatpush1.msra.mxu0 %v7252
  %7254 = vmatprep.subr.mxu0 0.0
  %v7255 = vand.u32 %v6199, 4294901760
  %v7256 = vsub.f32 %v6199, %v7255
  %v7257 = vand.u32 %v7256, 4294901760
  %v7258 = vsub.f32 %v7256, %v7257
  %v7259 = vand.u32 %v7258, 4294901760
  %7260 = vmatpush1.msra.mxu0 %v7259
  %7261 = vmatprep.subr.mxu0 0.0
  %v7262 = vand.u32 %v6200, 4294901760
  %v7263 = vsub.f32 %v6200, %v7262
  %v7264 = vand.u32 %v7263, 4294901760
  %v7265 = vsub.f32 %v7263, %v7264
  %v7266 = vand.u32 %v7265, 4294901760
  %7267 = vmatpush1.msra.mxu0 %v7266
  %7268 = vmatprep.subr.mxu0 0.0
  %v7269 = vand.u32 %v6201, 4294901760
  %v7270 = vsub.f32 %v6201, %v7269
  %v7271 = vand.u32 %v7270, 4294901760
  %v7272 = vsub.f32 %v7270, %v7271
  %v7273 = vand.u32 %v7272, 4294901760
  %7274 = vmatpush1.msra.mxu0 %v7273
  %7275 = vmatprep.subr.mxu0 0.0
  %v7276 = vand.u32 %v6202, 4294901760
  %v7277 = vsub.f32 %v6202, %v7276
  %v7278 = vand.u32 %v7277, 4294901760
  %v7279 = vsub.f32 %v7277, %v7278
  %v7280 = vand.u32 %v7279, 4294901760
  %7281 = vmatpush1.msra.mxu0 %v7280
  %7282 = vmatprep.subr.mxu0 0.0
  %v7283 = vand.u32 %v6203, 4294901760
  %v7284 = vsub.f32 %v6203, %v7283
  %v7285 = vand.u32 %v7284, 4294901760
  %v7286 = vsub.f32 %v7284, %v7285
  %v7287 = vand.u32 %v7286, 4294901760
  %7288 = vmatpush1.msra.mxu0 %v7287
  %7289 = vmatprep.subr.mxu0 0.0
  %v7290 = vand.u32 %v6204, 4294901760
  %v7291 = vsub.f32 %v6204, %v7290
  %v7292 = vand.u32 %v7291, 4294901760
  %v7293 = vsub.f32 %v7291, %v7292
  %v7294 = vand.u32 %v7293, 4294901760
  %7295 = vmatpush1.msra.mxu0 %v7294
  %7296 = vmatprep.subr.mxu0 0.0
  %v7297 = vand.u32 %v6205, 4294901760
  %v7298 = vsub.f32 %v6205, %v7297
  %v7299 = vand.u32 %v7298, 4294901760
  %v7300 = vsub.f32 %v7298, %v7299
  %v7301 = vand.u32 %v7300, 4294901760
  %7302 = vmatpush1.msra.mxu0 %v7301
  %7303 = vmatprep.subr.mxu0 0.0
  %v7304 = vand.u32 %v6206, 4294901760
  %v7305 = vsub.f32 %v6206, %v7304
  %v7306 = vand.u32 %v7305, 4294901760
  %v7307 = vsub.f32 %v7305, %v7306
  %v7308 = vand.u32 %v7307, 4294901760
  %7309 = vmatpush1.msra.mxu0 %v7308
  %7310 = vmatprep.subr.mxu0 0.0
  %v7311 = vand.u32 %v6207, 4294901760
  %v7312 = vsub.f32 %v6207, %v7311
  %v7313 = vand.u32 %v7312, 4294901760
  %v7314 = vsub.f32 %v7312, %v7313
  %v7315 = vand.u32 %v7314, 4294901760
  %7316 = vmatpush1.msra.mxu0 %v7315
  %7317 = vmatprep.subr.mxu0 0.0
  %v7318 = vand.u32 %v6208, 4294901760
  %v7319 = vsub.f32 %v6208, %v7318
  %v7320 = vand.u32 %v7319, 4294901760
  %v7321 = vsub.f32 %v7319, %v7320
  %v7322 = vand.u32 %v7321, 4294901760
  %7323 = vmatpush1.msra.mxu0 %v7322
  %7324 = vmatprep.subr.mxu0 0.0
  %v7325 = vand.u32 %v6209, 4294901760
  %v7326 = vsub.f32 %v6209, %v7325
  %v7327 = vand.u32 %v7326, 4294901760
  %v7328 = vsub.f32 %v7326, %v7327
  %v7329 = vand.u32 %v7328, 4294901760
  %7330 = vmatpush1.msra.mxu0 %v7329
  %7331 = vmatprep.subr.mxu0 0.0
  %v7332 = vand.u32 %v6210, 4294901760
  %v7333 = vsub.f32 %v6210, %v7332
  %v7334 = vand.u32 %v7333, 4294901760
  %v7335 = vsub.f32 %v7333, %v7334
  %v7336 = vand.u32 %v7335, 4294901760
  %7337 = vmatpush1.msra.mxu0 %v7336
  %7338 = vmatprep.subr.mxu0 0.0
  %v7339 = vand.u32 %v6211, 4294901760
  %v7340 = vsub.f32 %v6211, %v7339
  %v7341 = vand.u32 %v7340, 4294901760
  %v7342 = vsub.f32 %v7340, %v7341
  %v7343 = vand.u32 %v7342, 4294901760
  %7344 = vmatpush1.msra.mxu0 %v7343
  %7345 = vmatprep.subr.mxu0 0.0
  %v7346 = vand.u32 %v6212, 4294901760
  %v7347 = vsub.f32 %v6212, %v7346
  %v7348 = vand.u32 %v7347, 4294901760
  %v7349 = vsub.f32 %v7347, %v7348
  %v7350 = vand.u32 %v7349, 4294901760
  %7351 = vmatpush1.msra.mxu0 %v7350
  %7352 = vmatprep.subr.mxu0 0.0
  %v7353 = vand.u32 %v6213, 4294901760
  %v7354 = vsub.f32 %v6213, %v7353
  %v7355 = vand.u32 %v7354, 4294901760
  %v7356 = vsub.f32 %v7354, %v7355
  %v7357 = vand.u32 %v7356, 4294901760
  %7358 = vmatpush1.msra.mxu0 %v7357
  %7359 = vmatprep.subr.mxu0 0.0
  %v7360 = vand.u32 %v6214, 4294901760
  %v7361 = vsub.f32 %v6214, %v7360
  %v7362 = vand.u32 %v7361, 4294901760
  %v7363 = vsub.f32 %v7361, %v7362
  %v7364 = vand.u32 %v7363, 4294901760
  %7365 = vmatpush1.msra.mxu0 %v7364
  %7366 = vmatprep.subr.mxu0 0.0
  %v7367 = vand.u32 %v6215, 4294901760
  %v7368 = vsub.f32 %v6215, %v7367
  %v7369 = vand.u32 %v7368, 4294901760
  %v7370 = vsub.f32 %v7368, %v7369
  %v7371 = vand.u32 %v7370, 4294901760
  %7372 = vmatpush1.msra.mxu0 %v7371
  %7373 = vmatprep.subr.mxu0 0.0
  %v7374 = vand.u32 %v6216, 4294901760
  %v7375 = vsub.f32 %v6216, %v7374
  %v7376 = vand.u32 %v7375, 4294901760
  %v7377 = vsub.f32 %v7375, %v7376
  %v7378 = vand.u32 %v7377, 4294901760
  %7379 = vmatpush1.msra.mxu0 %v7378
  %7380 = vmatprep.subr.mxu0 0.0
  %v7381 = vand.u32 %v6217, 4294901760
  %v7382 = vsub.f32 %v6217, %v7381
  %v7383 = vand.u32 %v7382, 4294901760
  %v7384 = vsub.f32 %v7382, %v7383
  %v7385 = vand.u32 %v7384, 4294901760
  %7386 = vmatpush1.msra.mxu0 %v7385
  %7387 = vmatprep.subr.mxu0 0.0
  %v7388 = vand.u32 %v6218, 4294901760
  %v7389 = vsub.f32 %v6218, %v7388
  %v7390 = vand.u32 %v7389, 4294901760
  %v7391 = vsub.f32 %v7389, %v7390
  %v7392 = vand.u32 %v7391, 4294901760
  %7393 = vmatpush1.msra.mxu0 %v7392
  %7394 = vmatprep.subr.mxu0 0.0
  %v7395 = vand.u32 %v6219, 4294901760
  %v7396 = vsub.f32 %v6219, %v7395
  %v7397 = vand.u32 %v7396, 4294901760
  %v7398 = vsub.f32 %v7396, %v7397
  %v7399 = vand.u32 %v7398, 4294901760
  %7400 = vmatpush1.msra.mxu0 %v7399
  %7401 = vmatprep.subr.mxu0 0.0
  %v7402 = vand.u32 %v6220, 4294901760
  %v7403 = vsub.f32 %v6220, %v7402
  %v7404 = vand.u32 %v7403, 4294901760
  %v7405 = vsub.f32 %v7403, %v7404
  %v7406 = vand.u32 %v7405, 4294901760
  %7407 = vmatpush1.msra.mxu0 %v7406
  %7408 = vmatprep.subr.mxu0 0.0
  %v7409 = vand.u32 %v6221, 4294901760
  %v7410 = vsub.f32 %v6221, %v7409
  %v7411 = vand.u32 %v7410, 4294901760
  %v7412 = vsub.f32 %v7410, %v7411
  %v7413 = vand.u32 %v7412, 4294901760
  %7414 = vmatpush1.msra.mxu0 %v7413
  %7415 = vmatprep.subr.mxu0 0.0
  %v7416 = vand.u32 %v6222, 4294901760
  %v7417 = vsub.f32 %v6222, %v7416
  %v7418 = vand.u32 %v7417, 4294901760
  %v7419 = vsub.f32 %v7417, %v7418
  %v7420 = vand.u32 %v7419, 4294901760
  %7421 = vmatpush1.msra.mxu0 %v7420
  %7422 = vmatprep.subr.mxu0 0.0
  %v7423 = vand.u32 %v6223, 4294901760
  %v7424 = vsub.f32 %v6223, %v7423
  %v7425 = vand.u32 %v7424, 4294901760
  %v7426 = vsub.f32 %v7424, %v7425
  %v7427 = vand.u32 %v7426, 4294901760
  %7428 = vmatpush1.msra.mxu0 %v7427
  %v7429 = vand.u32 %v6159, 4294901760
  %7430 = vmatprep.mubr.f32.mxu0 %v7429
  %v7431 = vand.u32 %v6158, 4294901760
  %7432 = vmatmul.mubr.f32.gmra.mrb[0].mxu0 %v7431
  %v7433 = vpop.f32.mrb[0].mxu0
  %v7434 = vadd.f32 %v7202, %v7433
  %v7435 = vpop.f32.mrb[0].mxu0
  %7436 = vdwg.mxu0
  %7437 = vmatprep.subr.mxu0 0.0
  %v7438 = vand.u32 %v6192, 4294901760
  %v7439 = vsub.f32 %v6192, %v7438
  %7440 = vmatpush1.msra.mxu0 %v7439
  %7441 = vmatprep.subr.mxu0 0.0
  %v7442 = vand.u32 %v6193, 4294901760
  %v7443 = vsub.f32 %v6193, %v7442
  %7444 = vmatpush1.msra.mxu0 %v7443
  %7445 = vmatprep.subr.mxu0 0.0
  %v7446 = vand.u32 %v6194, 4294901760
  %v7447 = vsub.f32 %v6194, %v7446
  %7448 = vmatpush1.msra.mxu0 %v7447
  %7449 = vmatprep.subr.mxu0 0.0
  %v7450 = vand.u32 %v6195, 4294901760
  %v7451 = vsub.f32 %v6195, %v7450
  %7452 = vmatpush1.msra.mxu0 %v7451
  %7453 = vmatprep.subr.mxu0 0.0
  %v7454 = vand.u32 %v6196, 4294901760
  %v7455 = vsub.f32 %v6196, %v7454
  %7456 = vmatpush1.msra.mxu0 %v7455
  %7457 = vmatprep.subr.mxu0 0.0
  %v7458 = vand.u32 %v6197, 4294901760
  %v7459 = vsub.f32 %v6197, %v7458
  %7460 = vmatpush1.msra.mxu0 %v7459
  %7461 = vmatprep.subr.mxu0 0.0
  %v7462 = vand.u32 %v6198, 4294901760
  %v7463 = vsub.f32 %v6198, %v7462
  %7464 = vmatpush1.msra.mxu0 %v7463
  %7465 = vmatprep.subr.mxu0 0.0
  %v7466 = vand.u32 %v6199, 4294901760
  %v7467 = vsub.f32 %v6199, %v7466
  %7468 = vmatpush1.msra.mxu0 %v7467
  %7469 = vmatprep.subr.mxu0 0.0
  %v7470 = vand.u32 %v6200, 4294901760
  %v7471 = vsub.f32 %v6200, %v7470
  %7472 = vmatpush1.msra.mxu0 %v7471
  %7473 = vmatprep.subr.mxu0 0.0
  %v7474 = vand.u32 %v6201, 4294901760
  %v7475 = vsub.f32 %v6201, %v7474
  %7476 = vmatpush1.msra.mxu0 %v7475
  %7477 = vmatprep.subr.mxu0 0.0
  %v7478 = vand.u32 %v6202, 4294901760
  %v7479 = vsub.f32 %v6202, %v7478
  %7480 = vmatpush1.msra.mxu0 %v7479
  %7481 = vmatprep.subr.mxu0 0.0
  %v7482 = vand.u32 %v6203, 4294901760
  %v7483 = vsub.f32 %v6203, %v7482
  %7484 = vmatpush1.msra.mxu0 %v7483
  %7485 = vmatprep.subr.mxu0 0.0
  %v7486 = vand.u32 %v6204, 4294901760
  %v7487 = vsub.f32 %v6204, %v7486
  %7488 = vmatpush1.msra.mxu0 %v7487
  %7489 = vmatprep.subr.mxu0 0.0
  %v7490 = vand.u32 %v6205, 4294901760
  %v7491 = vsub.f32 %v6205, %v7490
  %7492 = vmatpush1.msra.mxu0 %v7491
  %7493 = vmatprep.subr.mxu0 0.0
  %v7494 = vand.u32 %v6206, 4294901760
  %v7495 = vsub.f32 %v6206, %v7494
  %7496 = vmatpush1.msra.mxu0 %v7495
  %7497 = vmatprep.subr.mxu0 0.0
  %v7498 = vand.u32 %v6207, 4294901760
  %v7499 = vsub.f32 %v6207, %v7498
  %7500 = vmatpush1.msra.mxu0 %v7499
  %7501 = vmatprep.subr.mxu0 0.0
  %v7502 = vand.u32 %v6208, 4294901760
  %v7503 = vsub.f32 %v6208, %v7502
  %7504 = vmatpush1.msra.mxu0 %v7503
  %7505 = vmatprep.subr.mxu0 0.0
  %v7506 = vand.u32 %v6209, 4294901760
  %v7507 = vsub.f32 %v6209, %v7506
  %7508 = vmatpush1.msra.mxu0 %v7507
  %7509 = vmatprep.subr.mxu0 0.0
  %v7510 = vand.u32 %v6210, 4294901760
  %v7511 = vsub.f32 %v6210, %v7510
  %7512 = vmatpush1.msra.mxu0 %v7511
  %7513 = vmatprep.subr.mxu0 0.0
  %v7514 = vand.u32 %v6211, 4294901760
  %v7515 = vsub.f32 %v6211, %v7514
  %7516 = vmatpush1.msra.mxu0 %v7515
  %7517 = vmatprep.subr.mxu0 0.0
  %v7518 = vand.u32 %v6212, 4294901760
  %v7519 = vsub.f32 %v6212, %v7518
  %7520 = vmatpush1.msra.mxu0 %v7519
  %7521 = vmatprep.subr.mxu0 0.0
  %v7522 = vand.u32 %v6213, 4294901760
  %v7523 = vsub.f32 %v6213, %v7522
  %7524 = vmatpush1.msra.mxu0 %v7523
  %7525 = vmatprep.subr.mxu0 0.0
  %v7526 = vand.u32 %v6214, 4294901760
  %v7527 = vsub.f32 %v6214, %v7526
  %7528 = vmatpush1.msra.mxu0 %v7527
  %7529 = vmatprep.subr.mxu0 0.0
  %v7530 = vand.u32 %v6215, 4294901760
  %v7531 = vsub.f32 %v6215, %v7530
  %7532 = vmatpush1.msra.mxu0 %v7531
  %7533 = vmatprep.subr.mxu0 0.0
  %v7534 = vand.u32 %v6216, 4294901760
  %v7535 = vsub.f32 %v6216, %v7534
  %7536 = vmatpush1.msra.mxu0 %v7535
  %7537 = vmatprep.subr.mxu0 0.0
  %v7538 = vand.u32 %v6217, 4294901760
  %v7539 = vsub.f32 %v6217, %v7538
  %7540 = vmatpush1.msra.mxu0 %v7539
  %7541 = vmatprep.subr.mxu0 0.0
  %v7542 = vand.u32 %v6218, 4294901760
  %v7543 = vsub.f32 %v6218, %v7542
  %7544 = vmatpush1.msra.mxu0 %v7543
  %7545 = vmatprep.subr.mxu0 0.0
  %v7546 = vand.u32 %v6219, 4294901760
  %v7547 = vsub.f32 %v6219, %v7546
  %7548 = vmatpush1.msra.mxu0 %v7547
  %7549 = vmatprep.subr.mxu0 0.0
  %v7550 = vand.u32 %v6220, 4294901760
  %v7551 = vsub.f32 %v6220, %v7550
  %7552 = vmatpush1.msra.mxu0 %v7551
  %7553 = vmatprep.subr.mxu0 0.0
  %v7554 = vand.u32 %v6221, 4294901760
  %v7555 = vsub.f32 %v6221, %v7554
  %7556 = vmatpush1.msra.mxu0 %v7555
  %7557 = vmatprep.subr.mxu0 0.0
  %v7558 = vand.u32 %v6222, 4294901760
  %v7559 = vsub.f32 %v6222, %v7558
  %7560 = vmatpush1.msra.mxu0 %v7559
  %7561 = vmatprep.subr.mxu0 0.0
  %v7562 = vand.u32 %v6223, 4294901760
  %v7563 = vsub.f32 %v6223, %v7562
  %7564 = vmatpush1.msra.mxu0 %v7563
  %v7565 = vand.u32 %v6159, 4294901760
  %v7566 = vsub.f32 %v6159, %v7565
  %7567 = vmatprep.mubr.f32.mxu0 %v7566
  %v7568 = vand.u32 %v6158, 4294901760
  %v7569 = vsub.f32 %v6158, %v7568
  %7570 = vmatmul.mubr.f32.gmra.mrb[0].mxu0 %v7569
  %v7571 = vpop.f32.mrb[0].mxu0
  %v7572 = vadd.f32 %v7434, %v7571
  %v7573 = vpop.f32.mrb[0].mxu0
  %7574 = vdwg.mxu0
  %7575 = vmatprep.subr.mxu0 0.0
  %v7576 = vand.u32 %v6192, 4294901760
  %7577 = vmatpush1.msra.mxu0 %v7576
  %7578 = vmatprep.subr.mxu0 0.0
  %v7579 = vand.u32 %v6193, 4294901760
  %7580 = vmatpush1.msra.mxu0 %v7579
  %7581 = vmatprep.subr.mxu0 0.0
  %v7582 = vand.u32 %v6194, 4294901760
  %7583 = vmatpush1.msra.mxu0 %v7582
  %7584 = vmatprep.subr.mxu0 0.0
  %v7585 = vand.u32 %v6195, 4294901760
  %7586 = vmatpush1.msra.mxu0 %v7585
  %7587 = vmatprep.subr.mxu0 0.0
  %v7588 = vand.u32 %v6196, 4294901760
  %7589 = vmatpush1.msra.mxu0 %v7588
  %7590 = vmatprep.subr.mxu0 0.0
  %v7591 = vand.u32 %v6197, 4294901760
  %7592 = vmatpush1.msra.mxu0 %v7591
  %7593 = vmatprep.subr.mxu0 0.0
  %v7594 = vand.u32 %v6198, 4294901760
  %7595 = vmatpush1.msra.mxu0 %v7594
  %7596 = vmatprep.subr.mxu0 0.0
  %v7597 = vand.u32 %v6199, 4294901760
  %7598 = vmatpush1.msra.mxu0 %v7597
  %7599 = vmatprep.subr.mxu0 0.0
  %v7600 = vand.u32 %v6200, 4294901760
  %7601 = vmatpush1.msra.mxu0 %v7600
  %7602 = vmatprep.subr.mxu0 0.0
  %v7603 = vand.u32 %v6201, 4294901760
  %7604 = vmatpush1.msra.mxu0 %v7603
  %7605 = vmatprep.subr.mxu0 0.0
  %v7606 = vand.u32 %v6202, 4294901760
  %7607 = vmatpush1.msra.mxu0 %v7606
  %7608 = vmatprep.subr.mxu0 0.0
  %v7609 = vand.u32 %v6203, 4294901760
  %7610 = vmatpush1.msra.mxu0 %v7609
  %7611 = vmatprep.subr.mxu0 0.0
  %v7612 = vand.u32 %v6204, 4294901760
  %7613 = vmatpush1.msra.mxu0 %v7612
  %7614 = vmatprep.subr.mxu0 0.0
  %v7615 = vand.u32 %v6205, 4294901760
  %7616 = vmatpush1.msra.mxu0 %v7615
  %7617 = vmatprep.subr.mxu0 0.0
  %v7618 = vand.u32 %v6206, 4294901760
  %7619 = vmatpush1.msra.mxu0 %v7618
  %7620 = vmatprep.subr.mxu0 0.0
  %v7621 = vand.u32 %v6207, 4294901760
  %7622 = vmatpush1.msra.mxu0 %v7621
  %7623 = vmatprep.subr.mxu0 0.0
  %v7624 = vand.u32 %v6208, 4294901760
  %7625 = vmatpush1.msra.mxu0 %v7624
  %7626 = vmatprep.subr.mxu0 0.0
  %v7627 = vand.u32 %v6209, 4294901760
  %7628 = vmatpush1.msra.mxu0 %v7627
  %7629 = vmatprep.subr.mxu0 0.0
  %v7630 = vand.u32 %v6210, 4294901760
  %7631 = vmatpush1.msra.mxu0 %v7630
  %7632 = vmatprep.subr.mxu0 0.0
  %v7633 = vand.u32 %v6211, 4294901760
  %7634 = vmatpush1.msra.mxu0 %v7633
  %7635 = vmatprep.subr.mxu0 0.0
  %v7636 = vand.u32 %v6212, 4294901760
  %7637 = vmatpush1.msra.mxu0 %v7636
  %7638 = vmatprep.subr.mxu0 0.0
  %v7639 = vand.u32 %v6213, 4294901760
  %7640 = vmatpush1.msra.mxu0 %v7639
  %7641 = vmatprep.subr.mxu0 0.0
  %v7642 = vand.u32 %v6214, 4294901760
  %7643 = vmatpush1.msra.mxu0 %v7642
  %7644 = vmatprep.subr.mxu0 0.0
  %v7645 = vand.u32 %v6215, 4294901760
  %7646 = vmatpush1.msra.mxu0 %v7645
  %7647 = vmatprep.subr.mxu0 0.0
  %v7648 = vand.u32 %v6216, 4294901760
  %7649 = vmatpush1.msra.mxu0 %v7648
  %7650 = vmatprep.subr.mxu0 0.0
  %v7651 = vand.u32 %v6217, 4294901760
  %7652 = vmatpush1.msra.mxu0 %v7651
  %7653 = vmatprep.subr.mxu0 0.0
  %v7654 = vand.u32 %v6218, 4294901760
  %7655 = vmatpush1.msra.mxu0 %v7654
  %7656 = vmatprep.subr.mxu0 0.0
  %v7657 = vand.u32 %v6219, 4294901760
  %7658 = vmatpush1.msra.mxu0 %v7657
  %7659 = vmatprep.subr.mxu0 0.0
  %v7660 = vand.u32 %v6220, 4294901760
  %7661 = vmatpush1.msra.mxu0 %v7660
  %7662 = vmatprep.subr.mxu0 0.0
  %v7663 = vand.u32 %v6221, 4294901760
  %7664 = vmatpush1.msra.mxu0 %v7663
  %7665 = vmatprep.subr.mxu0 0.0
  %v7666 = vand.u32 %v6222, 4294901760
  %7667 = vmatpush1.msra.mxu0 %v7666
  %7668 = vmatprep.subr.mxu0 0.0
  %v7669 = vand.u32 %v6223, 4294901760
  %7670 = vmatpush1.msra.mxu0 %v7669
  %v7671 = vand.u32 %v6159, 4294901760
  %v7672 = vsub.f32 %v6159, %v7671
  %v7673 = vand.u32 %v7672, 4294901760
  %7674 = vmatprep.mubr.f32.mxu0 %v7673
  %v7675 = vand.u32 %v6158, 4294901760
  %v7676 = vsub.f32 %v6158, %v7675
  %v7677 = vand.u32 %v7676, 4294901760
  %7678 = vmatmul.mubr.f32.gmra.mrb[0].mxu0 %v7677
  %v7679 = vpop.f32.mrb[0].mxu0
  %v7680 = vadd.f32 %v7572, %v7679
  %v7681 = vpop.f32.mrb[0].mxu0
  %7682 = vdwg.mxu0
  %7683 = vmatprep.subr.mxu0 0.0
  %v7684 = vand.u32 %v6192, 4294901760
  %v7685 = vsub.f32 %v6192, %v7684
  %v7686 = vand.u32 %v7685, 4294901760
  %7687 = vmatpush1.msra.mxu0 %v7686
  %7688 = vmatprep.subr.mxu0 0.0
  %v7689 = vand.u32 %v6193, 4294901760
  %v7690 = vsub.f32 %v6193, %v7689
  %v7691 = vand.u32 %v7690, 4294901760
  %7692 = vmatpush1.msra.mxu0 %v7691
  %7693 = vmatprep.subr.mxu0 0.0
  %v7694 = vand.u32 %v6194, 4294901760
  %v7695 = vsub.f32 %v6194, %v7694
  %v7696 = vand.u32 %v7695, 4294901760
  %7697 = vmatpush1.msra.mxu0 %v7696
  %7698 = vmatprep.subr.mxu0 0.0
  %v7699 = vand.u32 %v6195, 4294901760
  %v7700 = vsub.f32 %v6195, %v7699
  %v7701 = vand.u32 %v7700, 4294901760
  %7702 = vmatpush1.msra.mxu0 %v7701
  %7703 = vmatprep.subr.mxu0 0.0
  %v7704 = vand.u32 %v6196, 4294901760
  %v7705 = vsub.f32 %v6196, %v7704
  %v7706 = vand.u32 %v7705, 4294901760
  %7707 = vmatpush1.msra.mxu0 %v7706
  %7708 = vmatprep.subr.mxu0 0.0
  %v7709 = vand.u32 %v6197, 4294901760
  %v7710 = vsub.f32 %v6197, %v7709
  %v7711 = vand.u32 %v7710, 4294901760
  %7712 = vmatpush1.msra.mxu0 %v7711
  %7713 = vmatprep.subr.mxu0 0.0
  %v7714 = vand.u32 %v6198, 4294901760
  %v7715 = vsub.f32 %v6198, %v7714
  %v7716 = vand.u32 %v7715, 4294901760
  %7717 = vmatpush1.msra.mxu0 %v7716
  %7718 = vmatprep.subr.mxu0 0.0
  %v7719 = vand.u32 %v6199, 4294901760
  %v7720 = vsub.f32 %v6199, %v7719
  %v7721 = vand.u32 %v7720, 4294901760
  %7722 = vmatpush1.msra.mxu0 %v7721
  %7723 = vmatprep.subr.mxu0 0.0
  %v7724 = vand.u32 %v6200, 4294901760
  %v7725 = vsub.f32 %v6200, %v7724
  %v7726 = vand.u32 %v7725, 4294901760
  %7727 = vmatpush1.msra.mxu0 %v7726
  %7728 = vmatprep.subr.mxu0 0.0
  %v7729 = vand.u32 %v6201, 4294901760
  %v7730 = vsub.f32 %v6201, %v7729
  %v7731 = vand.u32 %v7730, 4294901760
  %7732 = vmatpush1.msra.mxu0 %v7731
  %7733 = vmatprep.subr.mxu0 0.0
  %v7734 = vand.u32 %v6202, 4294901760
  %v7735 = vsub.f32 %v6202, %v7734
  %v7736 = vand.u32 %v7735, 4294901760
  %7737 = vmatpush1.msra.mxu0 %v7736
  %7738 = vmatprep.subr.mxu0 0.0
  %v7739 = vand.u32 %v6203, 4294901760
  %v7740 = vsub.f32 %v6203, %v7739
  %v7741 = vand.u32 %v7740, 4294901760
  %7742 = vmatpush1.msra.mxu0 %v7741
  %7743 = vmatprep.subr.mxu0 0.0
  %v7744 = vand.u32 %v6204, 4294901760
  %v7745 = vsub.f32 %v6204, %v7744
  %v7746 = vand.u32 %v7745, 4294901760
  %7747 = vmatpush1.msra.mxu0 %v7746
  %7748 = vmatprep.subr.mxu0 0.0
  %v7749 = vand.u32 %v6205, 4294901760
  %v7750 = vsub.f32 %v6205, %v7749
  %v7751 = vand.u32 %v7750, 4294901760
  %7752 = vmatpush1.msra.mxu0 %v7751
  %7753 = vmatprep.subr.mxu0 0.0
  %v7754 = vand.u32 %v6206, 4294901760
  %v7755 = vsub.f32 %v6206, %v7754
  %v7756 = vand.u32 %v7755, 4294901760
  %7757 = vmatpush1.msra.mxu0 %v7756
  %7758 = vmatprep.subr.mxu0 0.0
  %v7759 = vand.u32 %v6207, 4294901760
  %v7760 = vsub.f32 %v6207, %v7759
  %v7761 = vand.u32 %v7760, 4294901760
  %7762 = vmatpush1.msra.mxu0 %v7761
  %7763 = vmatprep.subr.mxu0 0.0
  %v7764 = vand.u32 %v6208, 4294901760
  %v7765 = vsub.f32 %v6208, %v7764
  %v7766 = vand.u32 %v7765, 4294901760
  %7767 = vmatpush1.msra.mxu0 %v7766
  %7768 = vmatprep.subr.mxu0 0.0
  %v7769 = vand.u32 %v6209, 4294901760
  %v7770 = vsub.f32 %v6209, %v7769
  %v7771 = vand.u32 %v7770, 4294901760
  %7772 = vmatpush1.msra.mxu0 %v7771
  %7773 = vmatprep.subr.mxu0 0.0
  %v7774 = vand.u32 %v6210, 4294901760
  %v7775 = vsub.f32 %v6210, %v7774
  %v7776 = vand.u32 %v7775, 4294901760
  %7777 = vmatpush1.msra.mxu0 %v7776
  %7778 = vmatprep.subr.mxu0 0.0
  %v7779 = vand.u32 %v6211, 4294901760
  %v7780 = vsub.f32 %v6211, %v7779
  %v7781 = vand.u32 %v7780, 4294901760
  %7782 = vmatpush1.msra.mxu0 %v7781
  %7783 = vmatprep.subr.mxu0 0.0
  %v7784 = vand.u32 %v6212, 4294901760
  %v7785 = vsub.f32 %v6212, %v7784
  %v7786 = vand.u32 %v7785, 4294901760
  %7787 = vmatpush1.msra.mxu0 %v7786
  %7788 = vmatprep.subr.mxu0 0.0
  %v7789 = vand.u32 %v6213, 4294901760
  %v7790 = vsub.f32 %v6213, %v7789
  %v7791 = vand.u32 %v7790, 4294901760
  %7792 = vmatpush1.msra.mxu0 %v7791
  %7793 = vmatprep.subr.mxu0 0.0
  %v7794 = vand.u32 %v6214, 4294901760
  %v7795 = vsub.f32 %v6214, %v7794
  %v7796 = vand.u32 %v7795, 4294901760
  %7797 = vmatpush1.msra.mxu0 %v7796
  %7798 = vmatprep.subr.mxu0 0.0
  %v7799 = vand.u32 %v6215, 4294901760
  %v7800 = vsub.f32 %v6215, %v7799
  %v7801 = vand.u32 %v7800, 4294901760
  %7802 = vmatpush1.msra.mxu0 %v7801
  %7803 = vmatprep.subr.mxu0 0.0
  %v7804 = vand.u32 %v6216, 4294901760
  %v7805 = vsub.f32 %v6216, %v7804
  %v7806 = vand.u32 %v7805, 4294901760
  %7807 = vmatpush1.msra.mxu0 %v7806
  %7808 = vmatprep.subr.mxu0 0.0
  %v7809 = vand.u32 %v6217, 4294901760
  %v7810 = vsub.f32 %v6217, %v7809
  %v7811 = vand.u32 %v7810, 4294901760
  %7812 = vmatpush1.msra.mxu0 %v7811
  %7813 = vmatprep.subr.mxu0 0.0
  %v7814 = vand.u32 %v6218, 4294901760
  %v7815 = vsub.f32 %v6218, %v7814
  %v7816 = vand.u32 %v7815, 4294901760
  %7817 = vmatpush1.msra.mxu0 %v7816
  %7818 = vmatprep.subr.mxu0 0.0
  %v7819 = vand.u32 %v6219, 4294901760
  %v7820 = vsub.f32 %v6219, %v7819
  %v7821 = vand.u32 %v7820, 4294901760
  %7822 = vmatpush1.msra.mxu0 %v7821
  %7823 = vmatprep.subr.mxu0 0.0
  %v7824 = vand.u32 %v6220, 4294901760
  %v7825 = vsub.f32 %v6220, %v7824
  %v7826 = vand.u32 %v7825, 4294901760
  %7827 = vmatpush1.msra.mxu0 %v7826
  %7828 = vmatprep.subr.mxu0 0.0
  %v7829 = vand.u32 %v6221, 4294901760
  %v7830 = vsub.f32 %v6221, %v7829
  %v7831 = vand.u32 %v7830, 4294901760
  %7832 = vmatpush1.msra.mxu0 %v7831
  %7833 = vmatprep.subr.mxu0 0.0
  %v7834 = vand.u32 %v6222, 4294901760
  %v7835 = vsub.f32 %v6222, %v7834
  %v7836 = vand.u32 %v7835, 4294901760
  %7837 = vmatpush1.msra.mxu0 %v7836
  %7838 = vmatprep.subr.mxu0 0.0
  %v7839 = vand.u32 %v6223, 4294901760
  %v7840 = vsub.f32 %v6223, %v7839
  %v7841 = vand.u32 %v7840, 4294901760
  %7842 = vmatpush1.msra.mxu0 %v7841
  %v7843 = vand.u32 %v6159, 4294901760
  %7844 = vmatprep.mubr.f32.mxu0 %v7843
  %v7845 = vand.u32 %v6158, 4294901760
  %7846 = vmatmul.mubr.f32.gmra.mrb[0].mxu0 %v7845
  %v7847 = vpop.f32.mrb[0].mxu0
  %v7848 = vadd.f32 %v7680, %v7847
  %v7849 = vpop.f32.mrb[0].mxu0
  %7850 = vdwg.mxu0
  %7851 = vmatprep.subr.mxu0 0.0
  %v7852 = vand.u32 %v6192, 4294901760
  %7853 = vmatpush1.msra.mxu0 %v7852
  %7854 = vmatprep.subr.mxu0 0.0
  %v7855 = vand.u32 %v6193, 4294901760
  %7856 = vmatpush1.msra.mxu0 %v7855
  %7857 = vmatprep.subr.mxu0 0.0
  %v7858 = vand.u32 %v6194, 4294901760
  %7859 = vmatpush1.msra.mxu0 %v7858
  %7860 = vmatprep.subr.mxu0 0.0
  %v7861 = vand.u32 %v6195, 4294901760
  %7862 = vmatpush1.msra.mxu0 %v7861
  %7863 = vmatprep.subr.mxu0 0.0
  %v7864 = vand.u32 %v6196, 4294901760
  %7865 = vmatpush1.msra.mxu0 %v7864
  %7866 = vmatprep.subr.mxu0 0.0
  %v7867 = vand.u32 %v6197, 4294901760
  %7868 = vmatpush1.msra.mxu0 %v7867
  %7869 = vmatprep.subr.mxu0 0.0
  %v7870 = vand.u32 %v6198, 4294901760
  %7871 = vmatpush1.msra.mxu0 %v7870
  %7872 = vmatprep.subr.mxu0 0.0
  %v7873 = vand.u32 %v6199, 4294901760
  %7874 = vmatpush1.msra.mxu0 %v7873
  %7875 = vmatprep.subr.mxu0 0.0
  %v7876 = vand.u32 %v6200, 4294901760
  %7877 = vmatpush1.msra.mxu0 %v7876
  %7878 = vmatprep.subr.mxu0 0.0
  %v7879 = vand.u32 %v6201, 4294901760
  %7880 = vmatpush1.msra.mxu0 %v7879
  %7881 = vmatprep.subr.mxu0 0.0
  %v7882 = vand.u32 %v6202, 4294901760
  %7883 = vmatpush1.msra.mxu0 %v7882
  %7884 = vmatprep.subr.mxu0 0.0
  %v7885 = vand.u32 %v6203, 4294901760
  %7886 = vmatpush1.msra.mxu0 %v7885
  %7887 = vmatprep.subr.mxu0 0.0
  %v7888 = vand.u32 %v6204, 4294901760
  %7889 = vmatpush1.msra.mxu0 %v7888
  %7890 = vmatprep.subr.mxu0 0.0
  %v7891 = vand.u32 %v6205, 4294901760
  %7892 = vmatpush1.msra.mxu0 %v7891
  %7893 = vmatprep.subr.mxu0 0.0
  %v7894 = vand.u32 %v6206, 4294901760
  %7895 = vmatpush1.msra.mxu0 %v7894
  %7896 = vmatprep.subr.mxu0 0.0
  %v7897 = vand.u32 %v6207, 4294901760
  %7898 = vmatpush1.msra.mxu0 %v7897
  %7899 = vmatprep.subr.mxu0 0.0
  %v7900 = vand.u32 %v6208, 4294901760
  %7901 = vmatpush1.msra.mxu0 %v7900
  %7902 = vmatprep.subr.mxu0 0.0
  %v7903 = vand.u32 %v6209, 4294901760
  %7904 = vmatpush1.msra.mxu0 %v7903
  %7905 = vmatprep.subr.mxu0 0.0
  %v7906 = vand.u32 %v6210, 4294901760
  %7907 = vmatpush1.msra.mxu0 %v7906
  %7908 = vmatprep.subr.mxu0 0.0
  %v7909 = vand.u32 %v6211, 4294901760
  %7910 = vmatpush1.msra.mxu0 %v7909
  %7911 = vmatprep.subr.mxu0 0.0
  %v7912 = vand.u32 %v6212, 4294901760
  %7913 = vmatpush1.msra.mxu0 %v7912
  %7914 = vmatprep.subr.mxu0 0.0
  %v7915 = vand.u32 %v6213, 4294901760
  %7916 = vmatpush1.msra.mxu0 %v7915
  %7917 = vmatprep.subr.mxu0 0.0
  %v7918 = vand.u32 %v6214, 4294901760
  %7919 = vmatpush1.msra.mxu0 %v7918
  %7920 = vmatprep.subr.mxu0 0.0
  %v7921 = vand.u32 %v6215, 4294901760
  %7922 = vmatpush1.msra.mxu0 %v7921
  %7923 = vmatprep.subr.mxu0 0.0
  %v7924 = vand.u32 %v6216, 4294901760
  %7925 = vmatpush1.msra.mxu0 %v7924
  %7926 = vmatprep.subr.mxu0 0.0
  %v7927 = vand.u32 %v6217, 4294901760
  %7928 = vmatpush1.msra.mxu0 %v7927
  %7929 = vmatprep.subr.mxu0 0.0
  %v7930 = vand.u32 %v6218, 4294901760
  %7931 = vmatpush1.msra.mxu0 %v7930
  %7932 = vmatprep.subr.mxu0 0.0
  %v7933 = vand.u32 %v6219, 4294901760
  %7934 = vmatpush1.msra.mxu0 %v7933
  %7935 = vmatprep.subr.mxu0 0.0
  %v7936 = vand.u32 %v6220, 4294901760
  %7937 = vmatpush1.msra.mxu0 %v7936
  %7938 = vmatprep.subr.mxu0 0.0
  %v7939 = vand.u32 %v6221, 4294901760
  %7940 = vmatpush1.msra.mxu0 %v7939
  %7941 = vmatprep.subr.mxu0 0.0
  %v7942 = vand.u32 %v6222, 4294901760
  %7943 = vmatpush1.msra.mxu0 %v7942
  %7944 = vmatprep.subr.mxu0 0.0
  %v7945 = vand.u32 %v6223, 4294901760
  %7946 = vmatpush1.msra.mxu0 %v7945
  %v7947 = vand.u32 %v6159, 4294901760
  %7948 = vmatprep.mubr.f32.mxu0 %v7947
  %v7949 = vand.u32 %v6158, 4294901760
  %7950 = vmatmul.mubr.f32.gmra.mrb[0].mxu0 %v7949
  %v7951 = vpop.f32.mrb[0].mxu0
  %v7952 = vadd.f32 %v7848, %v7951
  %v7953 = vpop.f32.mrb[0].mxu0
  %7954 = vdwg.mxu0
  %v7955 = vld [vmem:[%s1] sm:$0x3]
  %v7956 = vmul.f32 %v7952, 1.442695
  %v7957 = vpow.pop %v7956
  %7959 = vrot.lane.b32.xlu0 %v7957, 112
  %v7960 = vpop.permute.xlu0 %7959
  %v7962 = vmul.f32 %v7955, %v7960
  %v7963 = vadd.f32 %v7952, %v7962
  %v7964 = vpack.c.bf16 %v7963, %v7963
  %v7965 = vld [vmem:[%s6] sm:$0xff]
  %v7966 = vld [vmem:[%s6 + $0x8] sm:$0xff]
  %v7967 = vld [vmem:[%s6 + $0x10] sm:$0xff]
  %v7968 = vld [vmem:[%s6 + $0x18] sm:$0xff]
  %v7969 = vld [vmem:[%s7] sm:$0xf]
  %v7971 = vlaneseq
  %v7972 = vshrl.u32 %v7971, 7
  %v7973 = vsub.s32 0, %v7972
  %v7974 = vrot.slane %v7969, %v7973
  %v7975 = vlaneseq
  %v7976 = vshrl.u32 %v7975, 7
  %v7977 = vsub.s32 1, %v7976
  %v7978 = vrot.slane %v7969, %v7977
  %v7979 = vlaneseq
  %v7980 = vshrl.u32 %v7979, 7
  %v7981 = vsub.s32 2, %v7980
  %v7982 = vrot.slane %v7969, %v7981
  %v7983 = vlaneseq
  %v7984 = vshrl.u32 %v7983, 7
  %v7985 = vsub.s32 3, %v7984
  %v7986 = vrot.slane %v7969, %v7985
  %v7995 = vunpack.c.l.b16 %v7965
  %v7996 = vunpack.c.h.b16 %v7965
  %v7997 = vunpack.c.l.b16 %v7966
  %v7998 = vunpack.c.h.b16 %v7966
  %v7999 = vunpack.c.l.b16 %v7967
  %v8000 = vunpack.c.h.b16 %v7967
  %v8001 = vunpack.c.l.b16 %v7968
  %v8002 = vunpack.c.h.b16 %v7968
  %v8003 = vpack.c.b16 %v7999, %v7995
  %v8004 = vpack.c.b16 %v8000, %v7996
  %v8005 = vpack.c.b16 %v8001, %v7997
  %v8006 = vpack.c.b16 %v8002, %v7998
  %vm8011 = vcmask 130048
  %v8013 = vsel %vm8011, %v7964, 0
  %8015 = vmatprep.subr.bf16.mxu0 %v8004
  %8016 = vmatpush1.bf16.msra.mxu0 %v8003
  %8017 = vmatprep.subr.bf16.mxu0 0
  %8018 = vmatpush1.bf16.msra.mxu0 0
  %8019 = vmatprep.subr.bf16.mxu0 0
  %8020 = vmatpush1.bf16.msra.mxu0 0
  %8021 = vmatprep.subr.bf16.mxu0 0
  %8022 = vmatpush1.bf16.msra.mxu0 0
  %8023 = vmatprep.subr.bf16.mxu0 0
  %8024 = vmatpush1.bf16.msra.mxu0 0
  %8025 = vmatprep.subr.bf16.mxu0 0
  %8026 = vmatpush1.bf16.msra.mxu0 0
  %8027 = vmatprep.subr.bf16.mxu0 0
  %8028 = vmatpush1.bf16.msra.mxu0 0
  %8029 = vmatprep.subr.bf16.mxu0 0
  %8030 = vmatpush1.bf16.msra.mxu0 0
  %8031 = vmatprep.subr.bf16.mxu0 0
  %8032 = vmatpush1.bf16.msra.mxu0 0
  %8033 = vmatprep.subr.bf16.mxu0 0
  %8034 = vmatpush1.bf16.msra.mxu0 0
  %8035 = vmatprep.subr.bf16.mxu0 0
  %8036 = vmatpush1.bf16.msra.mxu0 0
  %8037 = vmatprep.subr.bf16.mxu0 0
  %8038 = vmatpush1.bf16.msra.mxu0 0
  %8039 = vmatprep.subr.bf16.mxu0 0
  %8040 = vmatpush1.bf16.msra.mxu0 0
  %8041 = vmatprep.subr.bf16.mxu0 0
  %8042 = vmatpush1.bf16.msra.mxu0 0
  %8043 = vmatprep.subr.bf16.mxu0 0
  %8044 = vmatpush1.bf16.msra.mxu0 0
  %8045 = vmatprep.subr.bf16.mxu0 0
  %8046 = vmatpush1.bf16.msra.mxu0 0
  %8047 = vmatprep.mubr.bf16.mxu0 0
  %8048 = vmatmul.mubr.bf16.gmra.mrb[0].mxu0 %v8013
  %v8049 = vpop.f32.mrb[0].mxu0
  %v8050 = vadd.f32 %v7974, %v8049
  %v8051 = vpop.f32.mrb[0].mxu0
  %v8052 = vadd.f32 %v7978, %v8051
  %v8053 = vpop.f32.mrb[0].mxu0
  %v8054 = vpop.f32.mrb[0].mxu0
  %8055 = vdwg.mxu0
  %8056 = vmatprep.subr.bf16.mxu0 %v8006
  %8057 = vmatpush1.bf16.msra.mxu0 %v8005
  %8058 = vmatprep.subr.bf16.mxu0 0
  %8059 = vmatpush1.bf16.msra.mxu0 0
  %8060 = vmatprep.subr.bf16.mxu0 0
  %8061 = vmatpush1.bf16.msra.mxu0 0
  %8062 = vmatprep.subr.bf16.mxu0 0
  %8063 = vmatpush1.bf16.msra.mxu0 0
  %8064 = vmatprep.subr.bf16.mxu0 0
  %8065 = vmatpush1.bf16.msra.mxu0 0
  %8066 = vmatprep.subr.bf16.mxu0 0
  %8067 = vmatpush1.bf16.msra.mxu0 0
  %8068 = vmatprep.subr.bf16.mxu0 0
  %8069 = vmatpush1.bf16.msra.mxu0 0
  %8070 = vmatprep.subr.bf16.mxu0 0
  %8071 = vmatpush1.bf16.msra.mxu0 0
  %8072 = vmatprep.subr.bf16.mxu0 0
  %8073 = vmatpush1.bf16.msra.mxu0 0
  %8074 = vmatprep.subr.bf16.mxu0 0
  %8075 = vmatpush1.bf16.msra.mxu0 0
  %8076 = vmatprep.subr.bf16.mxu0 0
  %8077 = vmatpush1.bf16.msra.mxu0 0
  %8078 = vmatprep.subr.bf16.mxu0 0
  %8079 = vmatpush1.bf16.msra.mxu0 0
  %8080 = vmatprep.subr.bf16.mxu0 0
  %8081 = vmatpush1.bf16.msra.mxu0 0
  %8082 = vmatprep.subr.bf16.mxu0 0
  %8083 = vmatpush1.bf16.msra.mxu0 0
  %8084 = vmatprep.subr.bf16.mxu0 0
  %8085 = vmatpush1.bf16.msra.mxu0 0
  %8086 = vmatprep.subr.bf16.mxu0 0
  %8087 = vmatpush1.bf16.msra.mxu0 0
  %8088 = vmatprep.mubr.bf16.mxu0 0
  %8089 = vmatmul.mubr.bf16.gmra.mrb[0].mxu0 %v8013
  %v8090 = vpop.f32.mrb[0].mxu0
  %v8091 = vadd.f32 %v7982, %v8090
  %v8092 = vpop.f32.mrb[0].mxu0
  %v8093 = vadd.f32 %v7986, %v8092
  %v8094 = vpop.f32.mrb[0].mxu0
  %v8095 = vpop.f32.mrb[0].mxu0
  %8096 = vdwg.mxu0
  %s8097 = smul.u32 4, 64
  %s8098 = smul.u32 %s8097, 8
  %s8099 = sshll.u32 %s8098, 4
  %8100 = dma.done [#allocation3], %s8099
  %v8101 = vpack.c.bf16 %v8050, %v8050
  %v8102 = vpack.c.bf16 %v8052, %v8052
  %v8103 = vpack.c.bf16 %v8091, %v8091
  %v8104 = vpack.c.bf16 %v8093, %v8093
  %v8105 = vld [vmem:[#allocation2] sm:$0xff]
  %v8106 = vld [vmem:[#allocation2 + $0x8] sm:$0xff]
  %v8107 = vld [vmem:[#allocation2 + $0x10] sm:$0xff]
  %v8108 = vld [vmem:[#allocation2 + $0x18] sm:$0xff]
  %v8109 = vld [vmem:[#allocation2 + $0x20] sm:$0xff]
  %v8110 = vld [vmem:[#allocation2 + $0x28] sm:$0xff]
  %v8111 = vld [vmem:[#allocation2 + $0x30] sm:$0xff]
  %v8112 = vld [vmem:[#allocation2 + $0x38] sm:$0xff]
  %v8113 = vld [vmem:[#allocation2 + $0x40] sm:$0xff]
  %v8114 = vld [vmem:[#allocation2 + $0x48] sm:$0xff]
  %v8115 = vld [vmem:[#allocation2 + $0x50] sm:$0xff]
  %v8116 = vld [vmem:[#allocation2 + $0x58] sm:$0xff]
  %v8117 = vld [vmem:[#allocation2 + $0x60] sm:$0xff]
  %v8118 = vld [vmem:[#allocation2 + $0x68] sm:$0xff]
  %v8119 = vld [vmem:[#allocation2 + $0x70] sm:$0xff]
  %v8120 = vld [vmem:[#allocation2 + $0x78] sm:$0xff]
  %v8121 = vld [vmem:[#allocation2 + $0x80] sm:$0xff]
  %v8122 = vld [vmem:[#allocation2 + $0x88] sm:$0xff]
  %v8123 = vld [vmem:[#allocation2 + $0x90] sm:$0xff]
  %v8124 = vld [vmem:[#allocation2 + $0x98] sm:$0xff]
  %v8125 = vld [vmem:[#allocation2 + $0xa0] sm:$0xff]
  %v8126 = vld [vmem:[#allocation2 + $0xa8] sm:$0xff]
  %v8127 = vld [vmem:[#allocation2 + $0xb0] sm:$0xff]
  %v8128 = vld [vmem:[#allocation2 + $0xb8] sm:$0xff]
  %v8129 = vld [vmem:[#allocation2 + $0xc0] sm:$0xff]
  %v8130 = vld [vmem:[#allocation2 + $0xc8] sm:$0xff]
  %v8131 = vld [vmem:[#allocation2 + $0xd0] sm:$0xff]
  %v8132 = vld [vmem:[#allocation2 + $0xd8] sm:$0xff]
  %v8133 = vld [vmem:[#allocation2 + $0xe0] sm:$0xff]
  %v8134 = vld [vmem:[#allocation2 + $0xe8] sm:$0xff]
  %v8135 = vld [vmem:[#allocation2 + $0xf0] sm:$0xff]
  %v8136 = vld [vmem:[#allocation2 + $0xf8] sm:$0xff]
  %v8137 = vld [vmem:[#allocation2 + $0x100] sm:$0xff]
  %v8138 = vld [vmem:[#allocation2 + $0x108] sm:$0xff]
  %v8139 = vld [vmem:[#allocation2 + $0x110] sm:$0xff]
  %v8140 = vld [vmem:[#allocation2 + $0x118] sm:$0xff]
  %v8141 = vld [vmem:[#allocation2 + $0x120] sm:$0xff]
  %v8142 = vld [vmem:[#allocation2 + $0x128] sm:$0xff]
  %v8143 = vld [vmem:[#allocation2 + $0x130] sm:$0xff]
  %v8144 = vld [vmem:[#allocation2 + $0x138] sm:$0xff]
  %v8145 = vld [vmem:[#allocation2 + $0x140] sm:$0xff]
  %v8146 = vld [vmem:[#allocation2 + $0x148] sm:$0xff]
  %v8147 = vld [vmem:[#allocation2 + $0x150] sm:$0xff]
  %v8148 = vld [vmem:[#allocation2 + $0x158] sm:$0xff]
  %v8149 = vld [vmem:[#allocation2 + $0x160] sm:$0xff]
  %v8150 = vld [vmem:[#allocation2 + $0x168] sm:$0xff]
  %v8151 = vld [vmem:[#allocation2 + $0x170] sm:$0xff]
  %v8152 = vld [vmem:[#allocation2 + $0x178] sm:$0xff]
  %v8153 = vld [vmem:[#allocation2 + $0x180] sm:$0xff]
  %v8154 = vld [vmem:[#allocation2 + $0x188] sm:$0xff]
  %v8155 = vld [vmem:[#allocation2 + $0x190] sm:$0xff]
  %v8156 = vld [vmem:[#allocation2 + $0x198] sm:$0xff]
  %v8157 = vld [vmem:[#allocation2 + $0x1a0] sm:$0xff]
  %v8158 = vld [vmem:[#allocation2 + $0x1a8] sm:$0xff]
  %v8159 = vld [vmem:[#allocation2 + $0x1b0] sm:$0xff]
  %v8160 = vld [vmem:[#allocation2 + $0x1b8] sm:$0xff]
  %v8161 = vld [vmem:[#allocation2 + $0x1c0] sm:$0xff]
  %v8162 = vld [vmem:[#allocation2 + $0x1c8] sm:$0xff]
  %v8163 = vld [vmem:[#allocation2 + $0x1d0] sm:$0xff]
  %v8164 = vld [vmem:[#allocation2 + $0x1d8] sm:$0xff]
  %v8165 = vld [vmem:[#allocation2 + $0x1e0] sm:$0xff]
  %v8166 = vld [vmem:[#allocation2 + $0x1e8] sm:$0xff]
  %v8167 = vld [vmem:[#allocation2 + $0x1f0] sm:$0xff]
  %v8168 = vld [vmem:[#allocation2 + $0x1f8] sm:$0xff]
  %v8169 = vld [vmem:[#allocation2 + $0x200] sm:$0xff]
  %v8170 = vld [vmem:[#allocation2 + $0x208] sm:$0xff]
  %v8171 = vld [vmem:[#allocation2 + $0x210] sm:$0xff]
  %v8172 = vld [vmem:[#allocation2 + $0x218] sm:$0xff]
  %v8173 = vld [vmem:[#allocation2 + $0x220] sm:$0xff]
  %v8174 = vld [vmem:[#allocation2 + $0x228] sm:$0xff]
  %v8175 = vld [vmem:[#allocation2 + $0x230] sm:$0xff]
  %v8176 = vld [vmem:[#allocation2 + $0x238] sm:$0xff]
  %v8177 = vld [vmem:[#allocation2 + $0x240] sm:$0xff]
  %v8178 = vld [vmem:[#allocation2 + $0x248] sm:$0xff]
  %v8179 = vld [vmem:[#allocation2 + $0x250] sm:$0xff]
  %v8180 = vld [vmem:[#allocation2 + $0x258] sm:$0xff]
  %v8181 = vld [vmem:[#allocation2 + $0x260] sm:$0xff]
  %v8182 = vld [vmem:[#allocation2 + $0x268] sm:$0xff]
  %v8183 = vld [vmem:[#allocation2 + $0x270] sm:$0xff]
  %v8184 = vld [vmem:[#allocation2 + $0x278] sm:$0xff]
  %v8185 = vld [vmem:[#allocation2 + $0x280] sm:$0xff]
  %v8186 = vld [vmem:[#allocation2 + $0x288] sm:$0xff]
  %v8187 = vld [vmem:[#allocation2 + $0x290] sm:$0xff]
  %v8188 = vld [vmem:[#allocation2 + $0x298] sm:$0xff]
  %v8189 = vld [vmem:[#allocation2 + $0x2a0] sm:$0xff]
  %v8190 = vld [vmem:[#allocation2 + $0x2a8] sm:$0xff]
  %v8191 = vld [vmem:[#allocation2 + $0x2b0] sm:$0xff]
  %v8192 = vld [vmem:[#allocation2 + $0x2b8] sm:$0xff]
  %v8193 = vld [vmem:[#allocation2 + $0x2c0] sm:$0xff]
  %v8194 = vld [vmem:[#allocation2 + $0x2c8] sm:$0xff]
  %v8195 = vld [vmem:[#allocation2 + $0x2d0] sm:$0xff]
  %v8196 = vld [vmem:[#allocation2 + $0x2d8] sm:$0xff]
  %v8197 = vld [vmem:[#allocation2 + $0x2e0] sm:$0xff]
  %v8198 = vld [vmem:[#allocation2 + $0x2e8] sm:$0xff]
  %v8199 = vld [vmem:[#allocation2 + $0x2f0] sm:$0xff]
  %v8200 = vld [vmem:[#allocation2 + $0x2f8] sm:$0xff]
  %v8201 = vld [vmem:[#allocation2 + $0x300] sm:$0xff]
  %v8202 = vld [vmem:[#allocation2 + $0x308] sm:$0xff]
  %v8203 = vld [vmem:[#allocation2 + $0x310] sm:$0xff]
  %v8204 = vld [vmem:[#allocation2 + $0x318] sm:$0xff]
  %v8205 = vld [vmem:[#allocation2 + $0x320] sm:$0xff]
  %v8206 = vld [vmem:[#allocation2 + $0x328] sm:$0xff]
  %v8207 = vld [vmem:[#allocation2 + $0x330] sm:$0xff]
  %v8208 = vld [vmem:[#allocation2 + $0x338] sm:$0xff]
  %v8209 = vld [vmem:[#allocation2 + $0x340] sm:$0xff]
  %v8210 = vld [vmem:[#allocation2 + $0x348] sm:$0xff]
  %v8211 = vld [vmem:[#allocation2 + $0x350] sm:$0xff]
  %v8212 = vld [vmem:[#allocation2 + $0x358] sm:$0xff]
  %v8213 = vld [vmem:[#allocation2 + $0x360] sm:$0xff]
  %v8214 = vld [vmem:[#allocation2 + $0x368] sm:$0xff]
  %v8215 = vld [vmem:[#allocation2 + $0x370] sm:$0xff]
  %v8216 = vld [vmem:[#allocation2 + $0x378] sm:$0xff]
  %v8217 = vld [vmem:[#allocation2 + $0x380] sm:$0xff]
  %v8218 = vld [vmem:[#allocation2 + $0x388] sm:$0xff]
  %v8219 = vld [vmem:[#allocation2 + $0x390] sm:$0xff]
  %v8220 = vld [vmem:[#allocation2 + $0x398] sm:$0xff]
  %v8221 = vld [vmem:[#allocation2 + $0x3a0] sm:$0xff]
  %v8222 = vld [vmem:[#allocation2 + $0x3a8] sm:$0xff]
  %v8223 = vld [vmem:[#allocation2 + $0x3b0] sm:$0xff]
  %v8224 = vld [vmem:[#allocation2 + $0x3b8] sm:$0xff]
  %v8225 = vld [vmem:[#allocation2 + $0x3c0] sm:$0xff]
  %v8226 = vld [vmem:[#allocation2 + $0x3c8] sm:$0xff]
  %v8227 = vld [vmem:[#allocation2 + $0x3d0] sm:$0xff]
  %v8228 = vld [vmem:[#allocation2 + $0x3d8] sm:$0xff]
  %v8229 = vld [vmem:[#allocation2 + $0x3e0] sm:$0xff]
  %v8230 = vld [vmem:[#allocation2 + $0x3e8] sm:$0xff]
  %v8231 = vld [vmem:[#allocation2 + $0x3f0] sm:$0xff]
  %v8232 = vld [vmem:[#allocation2 + $0x3f8] sm:$0xff]
  %v8233 = vld [vmem:[#allocation2 + $0x400] sm:$0xff]
  %v8234 = vld [vmem:[#allocation2 + $0x408] sm:$0xff]
  %v8235 = vld [vmem:[#allocation2 + $0x410] sm:$0xff]
  %v8236 = vld [vmem:[#allocation2 + $0x418] sm:$0xff]
  %v8237 = vld [vmem:[#allocation2 + $0x420] sm:$0xff]
  %v8238 = vld [vmem:[#allocation2 + $0x428] sm:$0xff]
  %v8239 = vld [vmem:[#allocation2 + $0x430] sm:$0xff]
  %v8240 = vld [vmem:[#allocation2 + $0x438] sm:$0xff]
  %v8241 = vld [vmem:[#allocation2 + $0x440] sm:$0xff]
  %v8242 = vld [vmem:[#allocation2 + $0x448] sm:$0xff]
  %v8243 = vld [vmem:[#allocation2 + $0x450] sm:$0xff]
  %v8244 = vld [vmem:[#allocation2 + $0x458] sm:$0xff]
  %v8245 = vld [vmem:[#allocation2 + $0x460] sm:$0xff]
  %v8246 = vld [vmem:[#allocation2 + $0x468] sm:$0xff]
  %v8247 = vld [vmem:[#allocation2 + $0x470] sm:$0xff]
  %v8248 = vld [vmem:[#allocation2 + $0x478] sm:$0xff]
  %v8249 = vld [vmem:[#allocation2 + $0x480] sm:$0xff]
  %v8250 = vld [vmem:[#allocation2 + $0x488] sm:$0xff]
  %v8251 = vld [vmem:[#allocation2 + $0x490] sm:$0xff]
  %v8252 = vld [vmem:[#allocation2 + $0x498] sm:$0xff]
  %v8253 = vld [vmem:[#allocation2 + $0x4a0] sm:$0xff]
  %v8254 = vld [vmem:[#allocation2 + $0x4a8] sm:$0xff]
  %v8255 = vld [vmem:[#allocation2 + $0x4b0] sm:$0xff]
  %v8256 = vld [vmem:[#allocation2 + $0x4b8] sm:$0xff]
  %v8257 = vld [vmem:[#allocation2 + $0x4c0] sm:$0xff]
  %v8258 = vld [vmem:[#allocation2 + $0x4c8] sm:$0xff]
  %v8259 = vld [vmem:[#allocation2 + $0x4d0] sm:$0xff]
  %v8260 = vld [vmem:[#allocation2 + $0x4d8] sm:$0xff]
  %v8261 = vld [vmem:[#allocation2 + $0x4e0] sm:$0xff]
  %v8262 = vld [vmem:[#allocation2 + $0x4e8] sm:$0xff]
  %v8263 = vld [vmem:[#allocation2 + $0x4f0] sm:$0xff]
  %v8264 = vld [vmem:[#allocation2 + $0x4f8] sm:$0xff]
  %v8265 = vld [vmem:[#allocation2 + $0x500] sm:$0xff]
  %v8266 = vld [vmem:[#allocation2 + $0x508] sm:$0xff]
  %v8267 = vld [vmem:[#allocation2 + $0x510] sm:$0xff]
  %v8268 = vld [vmem:[#allocation2 + $0x518] sm:$0xff]
  %v8269 = vld [vmem:[#allocation2 + $0x520] sm:$0xff]
  %v8270 = vld [vmem:[#allocation2 + $0x528] sm:$0xff]
  %v8271 = vld [vmem:[#allocation2 + $0x530] sm:$0xff]
  %v8272 = vld [vmem:[#allocation2 + $0x538] sm:$0xff]
  %v8273 = vld [vmem:[#allocation2 + $0x540] sm:$0xff]
  %v8274 = vld [vmem:[#allocation2 + $0x548] sm:$0xff]
  %v8275 = vld [vmem:[#allocation2 + $0x550] sm:$0xff]
  %v8276 = vld [vmem:[#allocation2 + $0x558] sm:$0xff]
  %v8277 = vld [vmem:[#allocation2 + $0x560] sm:$0xff]
  %v8278 = vld [vmem:[#allocation2 + $0x568] sm:$0xff]
  %v8279 = vld [vmem:[#allocation2 + $0x570] sm:$0xff]
  %v8280 = vld [vmem:[#allocation2 + $0x578] sm:$0xff]
  %v8281 = vld [vmem:[#allocation2 + $0x580] sm:$0xff]
  %v8282 = vld [vmem:[#allocation2 + $0x588] sm:$0xff]
  %v8283 = vld [vmem:[#allocation2 + $0x590] sm:$0xff]
  %v8284 = vld [vmem:[#allocation2 + $0x598] sm:$0xff]
  %v8285 = vld [vmem:[#allocation2 + $0x5a0] sm:$0xff]
  %v8286 = vld [vmem:[#allocation2 + $0x5a8] sm:$0xff]
  %v8287 = vld [vmem:[#allocation2 + $0x5b0] sm:$0xff]
  %v8288 = vld [vmem:[#allocation2 + $0x5b8] sm:$0xff]
  %v8289 = vld [vmem:[#allocation2 + $0x5c0] sm:$0xff]
  %v8290 = vld [vmem:[#allocation2 + $0x5c8] sm:$0xff]
  %v8291 = vld [vmem:[#allocation2 + $0x5d0] sm:$0xff]
  %v8292 = vld [vmem:[#allocation2 + $0x5d8] sm:$0xff]
  %v8293 = vld [vmem:[#allocation2 + $0x5e0] sm:$0xff]
  %v8294 = vld [vmem:[#allocation2 + $0x5e8] sm:$0xff]
  %v8295 = vld [vmem:[#allocation2 + $0x5f0] sm:$0xff]
  %v8296 = vld [vmem:[#allocation2 + $0x5f8] sm:$0xff]
  %v8297 = vld [vmem:[#allocation2 + $0x600] sm:$0xff]
  %v8298 = vld [vmem:[#allocation2 + $0x608] sm:$0xff]
  %v8299 = vld [vmem:[#allocation2 + $0x610] sm:$0xff]
  %v8300 = vld [vmem:[#allocation2 + $0x618] sm:$0xff]
  %v8301 = vld [vmem:[#allocation2 + $0x620] sm:$0xff]
  %v8302 = vld [vmem:[#allocation2 + $0x628] sm:$0xff]
  %v8303 = vld [vmem:[#allocation2 + $0x630] sm:$0xff]
  %v8304 = vld [vmem:[#allocation2 + $0x638] sm:$0xff]
  %v8305 = vld [vmem:[#allocation2 + $0x640] sm:$0xff]
  %v8306 = vld [vmem:[#allocation2 + $0x648] sm:$0xff]
  %v8307 = vld [vmem:[#allocation2 + $0x650] sm:$0xff]
  %v8308 = vld [vmem:[#allocation2 + $0x658] sm:$0xff]
  %v8309 = vld [vmem:[#allocation2 + $0x660] sm:$0xff]
  %v8310 = vld [vmem:[#allocation2 + $0x668] sm:$0xff]
  %v8311 = vld [vmem:[#allocation2 + $0x670] sm:$0xff]
  %v8312 = vld [vmem:[#allocation2 + $0x678] sm:$0xff]
  %v8313 = vld [vmem:[#allocation2 + $0x680] sm:$0xff]
  %v8314 = vld [vmem:[#allocation2 + $0x688] sm:$0xff]
  %v8315 = vld [vmem:[#allocation2 + $0x690] sm:$0xff]
  %v8316 = vld [vmem:[#allocation2 + $0x698] sm:$0xff]
  %v8317 = vld [vmem:[#allocation2 + $0x6a0] sm:$0xff]
  %v8318 = vld [vmem:[#allocation2 + $0x6a8] sm:$0xff]
  %v8319 = vld [vmem:[#allocation2 + $0x6b0] sm:$0xff]
  %v8320 = vld [vmem:[#allocation2 + $0x6b8] sm:$0xff]
  %v8321 = vld [vmem:[#allocation2 + $0x6c0] sm:$0xff]
  %v8322 = vld [vmem:[#allocation2 + $0x6c8] sm:$0xff]
  %v8323 = vld [vmem:[#allocation2 + $0x6d0] sm:$0xff]
  %v8324 = vld [vmem:[#allocation2 + $0x6d8] sm:$0xff]
  %v8325 = vld [vmem:[#allocation2 + $0x6e0] sm:$0xff]
  %v8326 = vld [vmem:[#allocation2 + $0x6e8] sm:$0xff]
  %v8327 = vld [vmem:[#allocation2 + $0x6f0] sm:$0xff]
  %v8328 = vld [vmem:[#allocation2 + $0x6f8] sm:$0xff]
  %v8329 = vld [vmem:[#allocation2 + $0x700] sm:$0xff]
  %v8330 = vld [vmem:[#allocation2 + $0x708] sm:$0xff]
  %v8331 = vld [vmem:[#allocation2 + $0x710] sm:$0xff]
  %v8332 = vld [vmem:[#allocation2 + $0x718] sm:$0xff]
  %v8333 = vld [vmem:[#allocation2 + $0x720] sm:$0xff]
  %v8334 = vld [vmem:[#allocation2 + $0x728] sm:$0xff]
  %v8335 = vld [vmem:[#allocation2 + $0x730] sm:$0xff]
  %v8336 = vld [vmem:[#allocation2 + $0x738] sm:$0xff]
  %v8337 = vld [vmem:[#allocation2 + $0x740] sm:$0xff]
  %v8338 = vld [vmem:[#allocation2 + $0x748] sm:$0xff]
  %v8339 = vld [vmem:[#allocation2 + $0x750] sm:$0xff]
  %v8340 = vld [vmem:[#allocation2 + $0x758] sm:$0xff]
  %v8341 = vld [vmem:[#allocation2 + $0x760] sm:$0xff]
  %v8342 = vld [vmem:[#allocation2 + $0x768] sm:$0xff]
  %v8343 = vld [vmem:[#allocation2 + $0x770] sm:$0xff]
  %v8344 = vld [vmem:[#allocation2 + $0x778] sm:$0xff]
  %v8345 = vld [vmem:[#allocation2 + $0x780] sm:$0xff]
  %v8346 = vld [vmem:[#allocation2 + $0x788] sm:$0xff]
  %v8347 = vld [vmem:[#allocation2 + $0x790] sm:$0xff]
  %v8348 = vld [vmem:[#allocation2 + $0x798] sm:$0xff]
  %v8349 = vld [vmem:[#allocation2 + $0x7a0] sm:$0xff]
  %v8350 = vld [vmem:[#allocation2 + $0x7a8] sm:$0xff]
  %v8351 = vld [vmem:[#allocation2 + $0x7b0] sm:$0xff]
  %v8352 = vld [vmem:[#allocation2 + $0x7b8] sm:$0xff]
  %v8353 = vld [vmem:[#allocation2 + $0x7c0] sm:$0xff]
  %v8354 = vld [vmem:[#allocation2 + $0x7c8] sm:$0xff]
  %v8355 = vld [vmem:[#allocation2 + $0x7d0] sm:$0xff]
  %v8356 = vld [vmem:[#allocation2 + $0x7d8] sm:$0xff]
  %v8357 = vld [vmem:[#allocation2 + $0x7e0] sm:$0xff]
  %v8358 = vld [vmem:[#allocation2 + $0x7e8] sm:$0xff]
  %v8359 = vld [vmem:[#allocation2 + $0x7f0] sm:$0xff]
  %v8360 = vld [vmem:[#allocation2 + $0x7f8] sm:$0xff]
  %v8361 = vld [vmem:[%s8] sm:$0xff]
  %v8363 = vlaneseq
  %v8364 = vshrl.u32 %v8363, 7
  %v8365 = vsub.s32 0, %v8364
  %v8366 = vrot.slane %v8361, %v8365
  %v8367 = vlaneseq
  %v8368 = vshrl.u32 %v8367, 7
  %v8369 = vsub.s32 1, %v8368
  %v8370 = vrot.slane %v8361, %v8369
  %v8371 = vlaneseq
  %v8372 = vshrl.u32 %v8371, 7
  %v8373 = vsub.s32 2, %v8372
  %v8374 = vrot.slane %v8361, %v8373
  %v8375 = vlaneseq
  %v8376 = vshrl.u32 %v8375, 7
  %v8377 = vsub.s32 3, %v8376
  %v8378 = vrot.slane %v8361, %v8377
  %v8379 = vlaneseq
  %v8380 = vshrl.u32 %v8379, 7
  %v8381 = vsub.s32 4, %v8380
  %v8382 = vrot.slane %v8361, %v8381
  %v8383 = vlaneseq
  %v8384 = vshrl.u32 %v8383, 7
  %v8385 = vsub.s32 5, %v8384
  %v8386 = vrot.slane %v8361, %v8385
  %v8387 = vlaneseq
  %v8388 = vshrl.u32 %v8387, 7
  %v8389 = vsub.s32 6, %v8388
  %v8390 = vrot.slane %v8361, %v8389
  %v8391 = vlaneseq
  %v8392 = vshrl.u32 %v8391, 7
  %v8393 = vsub.s32 7, %v8392
  %v8394 = vrot.slane %v8361, %v8393
  %8403 = vmatprep.subr.bf16.mxu0 %v8106
  %8404 = vmatpush1.bf16.msra.mxu0 %v8105
  %8405 = vmatprep.subr.bf16.mxu0 %v8114
  %8406 = vmatpush1.bf16.msra.mxu0 %v8113
  %8407 = vmatprep.subr.bf16.mxu0 %v8122
  %8408 = vmatpush1.bf16.msra.mxu0 %v8121
  %8409 = vmatprep.subr.bf16.mxu0 %v8130
  %8410 = vmatpush1.bf16.msra.mxu0 %v8129
  %8411 = vmatprep.subr.bf16.mxu0 %v8138
  %8412 = vmatpush1.bf16.msra.mxu0 %v8137
  %8413 = vmatprep.subr.bf16.mxu0 %v8146
  %8414 = vmatpush1.bf16.msra.mxu0 %v8145
  %8415 = vmatprep.subr.bf16.mxu0 %v8154
  %8416 = vmatpush1.bf16.msra.mxu0 %v8153
  %8417 = vmatprep.subr.bf16.mxu0 %v8162
  %8418 = vmatpush1.bf16.msra.mxu0 %v8161
  %8419 = vmatprep.subr.bf16.mxu0 %v8170
  %8420 = vmatpush1.bf16.msra.mxu0 %v8169
  %8421 = vmatprep.subr.bf16.mxu0 %v8178
  %8422 = vmatpush1.bf16.msra.mxu0 %v8177
  %8423 = vmatprep.subr.bf16.mxu0 %v8186
  %8424 = vmatpush1.bf16.msra.mxu0 %v8185
  %8425 = vmatprep.subr.bf16.mxu0 %v8194
  %8426 = vmatpush1.bf16.msra.mxu0 %v8193
  %8427 = vmatprep.subr.bf16.mxu0 %v8202
  %8428 = vmatpush1.bf16.msra.mxu0 %v8201
  %8429 = vmatprep.subr.bf16.mxu0 %v8210
  %8430 = vmatpush1.bf16.msra.mxu0 %v8209
  %8431 = vmatprep.subr.bf16.mxu0 %v8218
  %8432 = vmatpush1.bf16.msra.mxu0 %v8217
  %8433 = vmatprep.subr.bf16.mxu0 %v8226
  %8434 = vmatpush1.bf16.msra.mxu0 %v8225
  %8435 = vmatprep.mubr.bf16.mxu0 %v8102
  %8436 = vmatmul.mubr.bf16.gmra.mrb[0].mxu0 %v8101
  %v8437 = vpop.f32.mrb[0].mxu0
  %v8438 = vadd.f32 %v8366, %v8437
  %v8439 = vpop.f32.mrb[0].mxu0
  %v8440 = vadd.f32 %v8370, %v8439
  %v8441 = vpop.f32.mrb[0].mxu0
  %v8442 = vpop.f32.mrb[0].mxu0
  %8443 = vdwg.mxu0
  %8444 = vmatprep.subr.bf16.mxu0 %v8234
  %8445 = vmatpush1.bf16.msra.mxu0 %v8233
  %8446 = vmatprep.subr.bf16.mxu0 %v8242
  %8447 = vmatpush1.bf16.msra.mxu0 %v8241
  %8448 = vmatprep.subr.bf16.mxu0 %v8250
  %8449 = vmatpush1.bf16.msra.mxu0 %v8249
  %8450 = vmatprep.subr.bf16.mxu0 %v8258
  %8451 = vmatpush1.bf16.msra.mxu0 %v8257
  %8452 = vmatprep.subr.bf16.mxu0 %v8266
  %8453 = vmatpush1.bf16.msra.mxu0 %v8265
  %8454 = vmatprep.subr.bf16.mxu0 %v8274
  %8455 = vmatpush1.bf16.msra.mxu0 %v8273
  %8456 = vmatprep.subr.bf16.mxu0 %v8282
  %8457 = vmatpush1.bf16.msra.mxu0 %v8281
  %8458 = vmatprep.subr.bf16.mxu0 %v8290
  %8459 = vmatpush1.bf16.msra.mxu0 %v8289
  %8460 = vmatprep.subr.bf16.mxu0 %v8298
  %8461 = vmatpush1.bf16.msra.mxu0 %v8297
  %8462 = vmatprep.subr.bf16.mxu0 %v8306
  %8463 = vmatpush1.bf16.msra.mxu0 %v8305
  %8464 = vmatprep.subr.bf16.mxu0 %v8314
  %8465 = vmatpush1.bf16.msra.mxu0 %v8313
  %8466 = vmatprep.subr.bf16.mxu0 %v8322
  %8467 = vmatpush1.bf16.msra.mxu0 %v8321
  %8468 = vmatprep.subr.bf16.mxu0 %v8330
  %8469 = vmatpush1.bf16.msra.mxu0 %v8329
  %8470 = vmatprep.subr.bf16.mxu0 %v8338
  %8471 = vmatpush1.bf16.msra.mxu0 %v8337
  %8472 = vmatprep.subr.bf16.mxu0 %v8346
  %8473 = vmatpush1.bf16.msra.mxu0 %v8345
  %8474 = vmatprep.subr.bf16.mxu0 %v8354
  %8475 = vmatpush1.bf16.msra.mxu0 %v8353
  %8476 = vmatprep.mubr.bf16.mxu0 %v8104
  %8477 = vmatmul.mubr.bf16.gmra.mrb[0].mxu0 %v8103
  %v8478 = vpop.f32.mrb[0].mxu0
  %v8479 = vadd.f32 %v8438, %v8478
  %v8480 = vpop.f32.mrb[0].mxu0
  %v8481 = vadd.f32 %v8440, %v8480
  %v8482 = vpop.f32.mrb[0].mxu0
  %v8483 = vpop.f32.mrb[0].mxu0
  %8484 = vdwg.mxu0
  %8485 = vmatprep.subr.bf16.mxu0 %v8108
  %8486 = vmatpush1.bf16.msra.mxu0 %v8107
  %8487 = vmatprep.subr.bf16.mxu0 %v8116
  %8488 = vmatpush1.bf16.msra.mxu0 %v8115
  %8489 = vmatprep.subr.bf16.mxu0 %v8124
  %8490 = vmatpush1.bf16.msra.mxu0 %v8123
  %8491 = vmatprep.subr.bf16.mxu0 %v8132
  %8492 = vmatpush1.bf16.msra.mxu0 %v8131
  %8493 = vmatprep.subr.bf16.mxu0 %v8140
  %8494 = vmatpush1.bf16.msra.mxu0 %v8139
  %8495 = vmatprep.subr.bf16.mxu0 %v8148
  %8496 = vmatpush1.bf16.msra.mxu0 %v8147
  %8497 = vmatprep.subr.bf16.mxu0 %v8156
  %8498 = vmatpush1.bf16.msra.mxu0 %v8155
  %8499 = vmatprep.subr.bf16.mxu0 %v8164
  %8500 = vmatpush1.bf16.msra.mxu0 %v8163
  %8501 = vmatprep.subr.bf16.mxu0 %v8172
  %8502 = vmatpush1.bf16.msra.mxu0 %v8171
  %8503 = vmatprep.subr.bf16.mxu0 %v8180
  %8504 = vmatpush1.bf16.msra.mxu0 %v8179
  %8505 = vmatprep.subr.bf16.mxu0 %v8188
  %8506 = vmatpush1.bf16.msra.mxu0 %v8187
  %8507 = vmatprep.subr.bf16.mxu0 %v8196
  %8508 = vmatpush1.bf16.msra.mxu0 %v8195
  %8509 = vmatprep.subr.bf16.mxu0 %v8204
  %8510 = vmatpush1.bf16.msra.mxu0 %v8203
  %8511 = vmatprep.subr.bf16.mxu0 %v8212
  %8512 = vmatpush1.bf16.msra.mxu0 %v8211
  %8513 = vmatprep.subr.bf16.mxu0 %v8220
  %8514 = vmatpush1.bf16.msra.mxu0 %v8219
  %8515 = vmatprep.subr.bf16.mxu0 %v8228
  %8516 = vmatpush1.bf16.msra.mxu0 %v8227
  %8517 = vmatprep.mubr.bf16.mxu0 %v8102
  %8518 = vmatmul.mubr.bf16.gmra.mrb[0].mxu0 %v8101
  %v8519 = vpop.f32.mrb[0].mxu0
  %v8520 = vadd.f32 %v8374, %v8519
  %v8521 = vpop.f32.mrb[0].mxu0
  %v8522 = vadd.f32 %v8378, %v8521
  %v8523 = vpop.f32.mrb[0].mxu0
  %v8524 = vpop.f32.mrb[0].mxu0
  %8525 = vdwg.mxu0
  %8526 = vmatprep.subr.bf16.mxu0 %v8236
  %8527 = vmatpush1.bf16.msra.mxu0 %v8235
  %8528 = vmatprep.subr.bf16.mxu0 %v8244
  %8529 = vmatpush1.bf16.msra.mxu0 %v8243
  %8530 = vmatprep.subr.bf16.mxu0 %v8252
  %8531 = vmatpush1.bf16.msra.mxu0 %v8251
  %8532 = vmatprep.subr.bf16.mxu0 %v8260
  %8533 = vmatpush1.bf16.msra.mxu0 %v8259
  %8534 = vmatprep.subr.bf16.mxu0 %v8268
  %8535 = vmatpush1.bf16.msra.mxu0 %v8267
  %8536 = vmatprep.subr.bf16.mxu0 %v8276
  %8537 = vmatpush1.bf16.msra.mxu0 %v8275
  %8538 = vmatprep.subr.bf16.mxu0 %v8284
  %8539 = vmatpush1.bf16.msra.mxu0 %v8283
  %8540 = vmatprep.subr.bf16.mxu0 %v8292
  %8541 = vmatpush1.bf16.msra.mxu0 %v8291
  %8542 = vmatprep.subr.bf16.mxu0 %v8300
  %8543 = vmatpush1.bf16.msra.mxu0 %v8299
  %8544 = vmatprep.subr.bf16.mxu0 %v8308
  %8545 = vmatpush1.bf16.msra.mxu0 %v8307
  %8546 = vmatprep.subr.bf16.mxu0 %v8316
  %8547 = vmatpush1.bf16.msra.mxu0 %v8315
  %8548 = vmatprep.subr.bf16.mxu0 %v8324
  %8549 = vmatpush1.bf16.msra.mxu0 %v8323
  %8550 = vmatprep.subr.bf16.mxu0 %v8332
  %8551 = vmatpush1.bf16.msra.mxu0 %v8331
  %8552 = vmatprep.subr.bf16.mxu0 %v8340
  %8553 = vmatpush1.bf16.msra.mxu0 %v8339
  %8554 = vmatprep.subr.bf16.mxu0 %v8348
  %8555 = vmatpush1.bf16.msra.mxu0 %v8347
  %8556 = vmatprep.subr.bf16.mxu0 %v8356
  %8557 = vmatpush1.bf16.msra.mxu0 %v8355
  %8558 = vmatprep.mubr.bf16.mxu0 %v8104
  %8559 = vmatmul.mubr.bf16.gmra.mrb[0].mxu0 %v8103
  %v8560 = vpop.f32.mrb[0].mxu0
  %v8561 = vadd.f32 %v8520, %v8560
  %v8562 = vpop.f32.mrb[0].mxu0
  %v8563 = vadd.f32 %v8522, %v8562
  %v8564 = vpop.f32.mrb[0].mxu0
  %v8565 = vpop.f32.mrb[0].mxu0
  %8566 = vdwg.mxu0
  %8567 = vmatprep.subr.bf16.mxu0 %v8110
  %8568 = vmatpush1.bf16.msra.mxu0 %v8109
  %8569 = vmatprep.subr.bf16.mxu0 %v8118
  %8570 = vmatpush1.bf16.msra.mxu0 %v8117
  %8571 = vmatprep.subr.bf16.mxu0 %v8126
  %8572 = vmatpush1.bf16.msra.mxu0 %v8125
  %8573 = vmatprep.subr.bf16.mxu0 %v8134
  %8574 = vmatpush1.bf16.msra.mxu0 %v8133
  %8575 = vmatprep.subr.bf16.mxu0 %v8142
  %8576 = vmatpush1.bf16.msra.mxu0 %v8141
  %8577 = vmatprep.subr.bf16.mxu0 %v8150
  %8578 = vmatpush1.bf16.msra.mxu0 %v8149
  %8579 = vmatprep.subr.bf16.mxu0 %v8158
  %8580 = vmatpush1.bf16.msra.mxu0 %v8157
  %8581 = vmatprep.subr.bf16.mxu0 %v8166
  %8582 = vmatpush1.bf16.msra.mxu0 %v8165
  %8583 = vmatprep.subr.bf16.mxu0 %v8174
  %8584 = vmatpush1.bf16.msra.mxu0 %v8173
  %8585 = vmatprep.subr.bf16.mxu0 %v8182
  %8586 = vmatpush1.bf16.msra.mxu0 %v8181
  %8587 = vmatprep.subr.bf16.mxu0 %v8190
  %8588 = vmatpush1.bf16.msra.mxu0 %v8189
  %8589 = vmatprep.subr.bf16.mxu0 %v8198
  %8590 = vmatpush1.bf16.msra.mxu0 %v8197
  %8591 = vmatprep.subr.bf16.mxu0 %v8206
  %8592 = vmatpush1.bf16.msra.mxu0 %v8205
  %8593 = vmatprep.subr.bf16.mxu0 %v8214
  %8594 = vmatpush1.bf16.msra.mxu0 %v8213
  %8595 = vmatprep.subr.bf16.mxu0 %v8222
  %8596 = vmatpush1.bf16.msra.mxu0 %v8221
  %8597 = vmatprep.subr.bf16.mxu0 %v8230
  %8598 = vmatpush1.bf16.msra.mxu0 %v8229
  %8599 = vmatprep.mubr.bf16.mxu0 %v8102
  %8600 = vmatmul.mubr.bf16.gmra.mrb[0].mxu0 %v8101
  %v8601 = vpop.f32.mrb[0].mxu0
  %v8602 = vadd.f32 %v8382, %v8601
  %v8603 = vpop.f32.mrb[0].mxu0
  %v8604 = vadd.f32 %v8386, %v8603
  %v8605 = vpop.f32.mrb[0].mxu0
  %v8606 = vpop.f32.mrb[0].mxu0
  %8607 = vdwg.mxu0
  %8608 = vmatprep.subr.bf16.mxu0 %v8238
  %8609 = vmatpush1.bf16.msra.mxu0 %v8237
  %8610 = vmatprep.subr.bf16.mxu0 %v8246
  %8611 = vmatpush1.bf16.msra.mxu0 %v8245
  %8612 = vmatprep.subr.bf16.mxu0 %v8254
  %8613 = vmatpush1.bf16.msra.mxu0 %v8253
  %8614 = vmatprep.subr.bf16.mxu0 %v8262
  %8615 = vmatpush1.bf16.msra.mxu0 %v8261
  %8616 = vmatprep.subr.bf16.mxu0 %v8270
  %8617 = vmatpush1.bf16.msra.mxu0 %v8269
  %8618 = vmatprep.subr.bf16.mxu0 %v8278
  %8619 = vmatpush1.bf16.msra.mxu0 %v8277
  %8620 = vmatprep.subr.bf16.mxu0 %v8286
  %8621 = vmatpush1.bf16.msra.mxu0 %v8285
  %8622 = vmatprep.subr.bf16.mxu0 %v8294
  %8623 = vmatpush1.bf16.msra.mxu0 %v8293
  %8624 = vmatprep.subr.bf16.mxu0 %v8302
  %8625 = vmatpush1.bf16.msra.mxu0 %v8301
  %8626 = vmatprep.subr.bf16.mxu0 %v8310
  %8627 = vmatpush1.bf16.msra.mxu0 %v8309
  %8628 = vmatprep.subr.bf16.mxu0 %v8318
  %8629 = vmatpush1.bf16.msra.mxu0 %v8317
  %8630 = vmatprep.subr.bf16.mxu0 %v8326
  %8631 = vmatpush1.bf16.msra.mxu0 %v8325
  %8632 = vmatprep.subr.bf16.mxu0 %v8334
  %8633 = vmatpush1.bf16.msra.mxu0 %v8333
  %8634 = vmatprep.subr.bf16.mxu0 %v8342
  %8635 = vmatpush1.bf16.msra.mxu0 %v8341
  %8636 = vmatprep.subr.bf16.mxu0 %v8350
  %8637 = vmatpush1.bf16.msra.mxu0 %v8349
  %8638 = vmatprep.subr.bf16.mxu0 %v8358
  %8639 = vmatpush1.bf16.msra.mxu0 %v8357
  %8640 = vmatprep.mubr.bf16.mxu0 %v8104
  %8641 = vmatmul.mubr.bf16.gmra.mrb[0].mxu0 %v8103
  %v8642 = vpop.f32.mrb[0].mxu0
  %v8643 = vadd.f32 %v8602, %v8642
  %v8644 = vpop.f32.mrb[0].mxu0
  %v8645 = vadd.f32 %v8604, %v8644
  %v8646 = vpop.f32.mrb[0].mxu0
  %v8647 = vpop.f32.mrb[0].mxu0
  %8648 = vdwg.mxu0
  %8649 = vmatprep.subr.bf16.mxu0 %v8112
  %8650 = vmatpush1.bf16.msra.mxu0 %v8111
  %8651 = vmatprep.subr.bf16.mxu0 %v8120
  %8652 = vmatpush1.bf16.msra.mxu0 %v8119
  %8653 = vmatprep.subr.bf16.mxu0 %v8128
  %8654 = vmatpush1.bf16.msra.mxu0 %v8127
  %8655 = vmatprep.subr.bf16.mxu0 %v8136
  %8656 = vmatpush1.bf16.msra.mxu0 %v8135
  %8657 = vmatprep.subr.bf16.mxu0 %v8144
  %8658 = vmatpush1.bf16.msra.mxu0 %v8143
  %8659 = vmatprep.subr.bf16.mxu0 %v8152
  %8660 = vmatpush1.bf16.msra.mxu0 %v8151
  %8661 = vmatprep.subr.bf16.mxu0 %v8160
  %8662 = vmatpush1.bf16.msra.mxu0 %v8159
  %8663 = vmatprep.subr.bf16.mxu0 %v8168
  %8664 = vmatpush1.bf16.msra.mxu0 %v8167
  %8665 = vmatprep.subr.bf16.mxu0 %v8176
  %8666 = vmatpush1.bf16.msra.mxu0 %v8175
  %8667 = vmatprep.subr.bf16.mxu0 %v8184
  %8668 = vmatpush1.bf16.msra.mxu0 %v8183
  %8669 = vmatprep.subr.bf16.mxu0 %v8192
  %8670 = vmatpush1.bf16.msra.mxu0 %v8191
  %8671 = vmatprep.subr.bf16.mxu0 %v8200
  %8672 = vmatpush1.bf16.msra.mxu0 %v8199
  %8673 = vmatprep.subr.bf16.mxu0 %v8208
  %8674 = vmatpush1.bf16.msra.mxu0 %v8207
  %8675 = vmatprep.subr.bf16.mxu0 %v8216
  %8676 = vmatpush1.bf16.msra.mxu0 %v8215
  %8677 = vmatprep.subr.bf16.mxu0 %v8224
  %8678 = vmatpush1.bf16.msra.mxu0 %v8223
  %8679 = vmatprep.subr.bf16.mxu0 %v8232
  %8680 = vmatpush1.bf16.msra.mxu0 %v8231
  %8681 = vmatprep.mubr.bf16.mxu0 %v8102
  %8682 = vmatmul.mubr.bf16.gmra.mrb[0].mxu0 %v8101
  %v8683 = vpop.f32.mrb[0].mxu0
  %v8684 = vadd.f32 %v8390, %v8683
  %v8685 = vpop.f32.mrb[0].mxu0
  %v8686 = vadd.f32 %v8394, %v8685
  %v8687 = vpop.f32.mrb[0].mxu0
  %v8688 = vpop.f32.mrb[0].mxu0
  %8689 = vdwg.mxu0
  %8690 = vmatprep.subr.bf16.mxu0 %v8240
  %8691 = vmatpush1.bf16.msra.mxu0 %v8239
  %8692 = vmatprep.subr.bf16.mxu0 %v8248
  %8693 = vmatpush1.bf16.msra.mxu0 %v8247
  %8694 = vmatprep.subr.bf16.mxu0 %v8256
  %8695 = vmatpush1.bf16.msra.mxu0 %v8255
  %8696 = vmatprep.subr.bf16.mxu0 %v8264
  %8697 = vmatpush1.bf16.msra.mxu0 %v8263
  %8698 = vmatprep.subr.bf16.mxu0 %v8272
  %8699 = vmatpush1.bf16.msra.mxu0 %v8271
  %8700 = vmatprep.subr.bf16.mxu0 %v8280
  %8701 = vmatpush1.bf16.msra.mxu0 %v8279
  %8702 = vmatprep.subr.bf16.mxu0 %v8288
  %8703 = vmatpush1.bf16.msra.mxu0 %v8287
  %8704 = vmatprep.subr.bf16.mxu0 %v8296
  %8705 = vmatpush1.bf16.msra.mxu0 %v8295
  %8706 = vmatprep.subr.bf16.mxu0 %v8304
  %8707 = vmatpush1.bf16.msra.mxu0 %v8303
  %8708 = vmatprep.subr.bf16.mxu0 %v8312
  %8709 = vmatpush1.bf16.msra.mxu0 %v8311
  %8710 = vmatprep.subr.bf16.mxu0 %v8320
  %8711 = vmatpush1.bf16.msra.mxu0 %v8319
  %8712 = vmatprep.subr.bf16.mxu0 %v8328
  %8713 = vmatpush1.bf16.msra.mxu0 %v8327
  %8714 = vmatprep.subr.bf16.mxu0 %v8336
  %8715 = vmatpush1.bf16.msra.mxu0 %v8335
  %8716 = vmatprep.subr.bf16.mxu0 %v8344
  %8717 = vmatpush1.bf16.msra.mxu0 %v8343
  %8718 = vmatprep.subr.bf16.mxu0 %v8352
  %8719 = vmatpush1.bf16.msra.mxu0 %v8351
  %8720 = vmatprep.subr.bf16.mxu0 %v8360
  %8721 = vmatpush1.bf16.msra.mxu0 %v8359
  %8722 = vmatprep.mubr.bf16.mxu0 %v8104
  %8723 = vmatmul.mubr.bf16.gmra.mrb[0].mxu0 %v8103
  %v8724 = vpop.f32.mrb[0].mxu0
  %v8725 = vadd.f32 %v8684, %v8724
  %v8726 = vpop.f32.mrb[0].mxu0
  %v8727 = vadd.f32 %v8686, %v8726
  %v8728 = vpop.f32.mrb[0].mxu0
  %v8729 = vpop.f32.mrb[0].mxu0
  %8730 = vdwg.mxu0
  %vm8731 = vcmask 261120
  %v8732 = vsel %vm8731, %v7952, 0.0
  %v8733 = vtanh.pop %v8479
  %v8734 = vtanh.pop %v8481
  %v8735 = vtanh.pop %v8561
  %v8736 = vtanh.pop %v8563
  %v8737 = vtanh.pop %v8643
  %v8738 = vtanh.pop %v8645
  %v8739 = vtanh.pop %v8725
  %v8740 = vtanh.pop %v8727
  %v8750 = vcombine.low %v8733, %v8734
  %v8751 = vcombine.low %v8735, %v8736
  %v8753 = vunpack.c.l.s4 1983009808
  %v8754 = vunpack.c.0.s8 %v8753
  %v8755 = vlaneseq
  %v8756 = vshrl.u32 %v8755, 7
  %v8757 = vsub.s32 %v8754, %v8756
  %v8758 = vrot.slane %v8750, %v8757
  %v8760 = vunpack.c.l.s4 1983009808
  %v8761 = vunpack.c.0.s8 %v8760
  %v8762 = vlaneseq
  %v8763 = vshrl.u32 %v8762, 7
  %v8764 = vsub.s32 %v8761, %v8763
  %v8765 = vrot.slane %v8751, %v8764
  %v8766 = vcombine.low %v8758, %v8765
  %v8767 = vcombine.low %v8737, %v8738
  %v8768 = vcombine.low %v8739, %v8740
  %v8770 = vunpack.c.l.s4 1983009808
  %v8771 = vunpack.c.0.s8 %v8770
  %v8772 = vlaneseq
  %v8773 = vshrl.u32 %v8772, 7
  %v8774 = vsub.s32 %v8771, %v8773
  %v8775 = vrot.slane %v8767, %v8774
  %v8777 = vunpack.c.l.s4 1983009808
  %v8778 = vunpack.c.0.s8 %v8777
  %v8779 = vlaneseq
  %v8780 = vshrl.u32 %v8779, 7
  %v8781 = vsub.s32 %v8778, %v8780
  %v8782 = vrot.slane %v8768, %v8781
  %v8783 = vcombine.low %v8775, %v8782
  %v8785 = vunpack.c.l.s4 1983009808
  %v8786 = vunpack.c.0.s8 %v8785
  %v8787 = vlaneseq
  %v8788 = vshrl.u32 %v8787, 7
  %v8789 = vsub.s32 %v8786, %v8788
  %v8790 = vrot.slane %v8732, %v8789
  %8794 = vst [vmem:[%s10] sm:$0xff] %v8766
  %8795 = vst [vmem:[%s10 + $0x8] sm:$0xff] %v8783
  %8796 = vst [vmem:[%s10 + $0x10] sm:$0x3] %v8790
  // Predicated region
  $region86: #{_lambda_.1} parent=0 // pred_check
    _
  $region87: #{_lambda_.1} parent=0 // pred_check_branch
    %8798 = sbr.rel (0) target = $region89
  $region88: #{_lambda_.1} parent=0 // pred_region
    _
  $region89: #{_lambda_.1} parent=0 // pred_fallthru
    _
  // Predicated region
  $region90: #{_lambda_.1} parent=0 // pred_check
    _
  $region91: #{_lambda_.1} parent=0 // pred_check_branch
    %8800 = sbr.rel (0) target = $region93
  $region92: #{_lambda_.1} parent=0 // pred_region
    _
  $region93: #{_lambda_.1} parent=0 // pred_fallthru
    _
  %8801 = vsyncmov [#allocation3]
  %s8802 = vpop.sfrf %8801
  %p8803 = scmp.eq.s32.totalorder %s8802, 0
  %p8804 = pneg %p8803
  %8806 = shalt.err (%p8804)

</llo_original>
